<compile_context>
chip_gen: v7x
topology: tpu7x:2x2x1
jax: 0.10.0
libtpu: 0.0.40
codegen_flags: <defaults>
</compile_context>

<pallas_src>
import math
import numpy as np
import jax
import jax.numpy as jnp
from jax.experimental import pallas as pl
from jax.experimental.pallas import tpu as pltpu

BLOCK_ROWS = 1024   # folded rows per grid step (multiple of 8 sublanes)
MAX_FOLD = 8        # cap on how many logical rows are packed per 128-lane row


def _fourier_kernel(tab_ref, x_ref, out_ref):
    # tab_ref: (fold+1, fold*d) f32 — rows 0..fold-1: lane-masked angular
    #          frequencies (2*pi/wavelength tiled [f|f] in slot j, 0 elsewhere);
    #          row fold: phase row ([0...0 | pi/2...pi/2] tiled).
    # x_ref:   (block_rows, fold)   f32 — fold logical inputs per folded row.
    # out_ref: (block_rows, fold*d) f32 — lane-dense [sin | cos] expansion.
    x = x_ref[...]                          # (B, fold)
    tab = tab_ref[...]                      # (fold+1, fold*d)
    fold = x.shape[1]
    # prod[r, j*d + c] = x[r, j] * freq[c]; built as rank-1 broadcast
    # multiply-adds on the VPU (no MXU for a K<=8 outer product).
    prod = x[:, 0:1] * tab[0:1, :]
    for j in range(1, fold):
        prod = prod + x[:, j:j + 1] * tab[j:j + 1, :]
    # cos(t) == sin(t + pi/2): one fused transcendental pass over all lanes,
    # no concatenate temporary.
    out_ref[...] = jnp.sin(prod + tab[fold:fold + 1, :]).astype(out_ref.dtype)


class FourierExpansion:
    """JAX/Pallas port of aurora.model.fourier.FourierExpansion."""

    def __init__(self, lower: float, upper: float, assert_range: bool = True):
        self.lower = float(lower)
        self.upper = float(upper)
        self.assert_range = assert_range
        self._tables = {}   # d -> (fold, device table)

    def _table(self, d: int):
        cached = self._tables.get(d)
        if cached is not None:
            return cached
        half = d // 2
        # Frequencies in float64 on host (mirrors torch's double computation),
        # then cast to f32 for the TPU kernel.
        # TODO(synk): torch computes sin/cos in float64; TPU Pallas has no f64,
        # so the trig itself runs in float32 here.
        wavelengths = np.logspace(
            math.log10(self.lower), math.log10(self.upper), half,
            base=10.0, dtype=np.float64)
        freq_d = np.concatenate([2.0 * np.pi / wavelengths] * 2).astype(np.float32)
        phase_d = np.concatenate(
            [np.zeros(half), np.full(half, 0.5 * np.pi)]).astype(np.float32)

        if d < 128 and 128 % d == 0 and (128 // d) <= MAX_FOLD:
            fold = 128 // d
        else:
            fold = 1          # d >= 128 (or awkward d): keep one row per row
        lane_d = fold * d

        tab = np.zeros((fold + 1, lane_d), np.float32)
        for j in range(fold):
            tab[j, j * d:(j + 1) * d] = freq_d
        tab[fold, :] = np.tile(phase_d, fold)

        table = (fold, jnp.asarray(tab))
        self._tables[d] = table
        return table

    def __call__(self, x: jax.Array, d: int) -> jax.Array:
        if d % 2 != 0:
            raise ValueError("The dimensionality must be a multiple of two.")

        ok = None
        if self.assert_range:
            # Elementwise range test (OR'd with x == 0, reduced with all),
            # computed on device; the blocking host sync happens only after
            # the kernel has been dispatched.  (Like the torch eager assert,
            # this is incompatible with jit; set assert_range=False there.)
            ax = jnp.abs(x)
            in_range = jnp.logical_and(self.lower <= ax, ax <= self.upper)
            ok = jnp.all(jnp.logical_or(in_range, x == 0))

        fold, tab = self._table(d)
        lane_d = fold * d

        orig_shape = x.shape
        n_total = int(np.prod(orig_shape)) if orig_shape else 1
        x_flat = jnp.reshape(x, (n_total,)).astype(jnp.float32)

        # Pad element count to a multiple of `fold` (at most fold-1 elements;
        # zero for the common shapes, so no extra HBM pass in practice).
        n_padded = ((n_total + fold - 1) // fold) * fold
        if n_padded != n_total:
            x_flat = jnp.pad(x_flat, (0, n_padded - n_total))
        n_rows = n_padded // fold
        x2 = jnp.reshape(x_flat, (n_rows, fold))

        block_rows = min(BLOCK_ROWS, n_rows)
        grid = (pl.cdiv(n_rows, block_rows),)   # ragged last block is masked

        out = pl.pallas_call(
            _fourier_kernel,
            out_shape=jax.ShapeDtypeStruct((n_rows, lane_d), jnp.float32),
            grid_spec=pltpu.PrefetchScalarGridSpec(
                num_scalar_prefetch=0,
                grid=grid,
                in_specs=[
                    pl.BlockSpec((fold + 1, lane_d), lambda i: (0, 0)),
                    pl.BlockSpec((block_rows, fold), lambda i: (i, 0)),
                ],
                out_specs=pl.BlockSpec((block_rows, lane_d), lambda i: (i, 0)),
            ),
            compiler_params=pltpu.CompilerParams(
                dimension_semantics=("parallel",)),
        )(tab, x2)

        # (n_rows, fold*d) -> (n_padded, d): same row-major HBM layout (free).
        out = jnp.reshape(out, (n_padded, d))
        if n_padded != n_total:
            out = out[:n_total]
        out = jnp.reshape(out, orig_shape + (d,))

        if ok is not None and not bool(ok):   # host sync after dispatch
            raise AssertionError(
                f"The input tensor is not within the configured range "
                f"`[{self.lower}, {self.upper}]`.")
        return out


if __name__ == "__main__":
    lower, upper = 1.0, 720.0
    d = 32
    expansion = FourierExpansion(lower, upper, assert_range=True)

    key = jax.random.PRNGKey(0)
    x = jax.random.uniform(
        key, (2, 4, 16, 16), dtype=jnp.float32, minval=lower, maxval=upper)

    out = expansion(x, d)
    out = jax.block_until_ready(out)

    # Reference in float64 on host (mirrors the torch module), cast to f32.
    half = d // 2
    wl = np.logspace(math.log10(lower), math.log10(upper), half, base=10.0)
    xr = np.asarray(jax.device_get(x)).astype(np.float64)
    prod = xr[..., None] * (2.0 * np.pi / wl)
    ref = np.concatenate([np.sin(prod), np.cos(prod)], axis=-1).astype(np.float32)

    assert out.shape == (2, 4, 16, 16, d), out.shape
    assert out.dtype == jnp.float32
    # f32 argument rounding at up to ~2*pi*720 rad gives ~1e-3 abs error vs
    # the f64 torch reference; tolerance reflects that (not a kernel bug).
    np.testing.assert_allclose(np.asarray(out), ref, rtol=0.0, atol=2e-3)

    print("KERNEL_OK")
</pallas_src>

<mosaic_0001>
module attributes {stable_mosaic.version = 11 : i64} {
  func.func @_fourier_kernel(%arg0: i32, %arg1: memref<5x128xf32, #tpu.memory_space<vmem>>, %arg2: memref<512x4xf32, #tpu.memory_space<vmem>>, %arg3: memref<512x128xf32, #tpu.memory_space<vmem>>) attributes {dimension_semantics = [#tpu.dimension_semantics<parallel>], iteration_bounds = array<i64: 1>, scalar_prefetch = 0 : i64, scratch_operands = 0 : i64, tpu.core_type = #tpu.core_type<tc>, window_params = [{pipeline_mode = #tpu.pipeline_mode<synchronous>, transform_indices = @transform_0, window_bounds = array<i64: 5, 128>}, {transform_indices = @transform_1, window_bounds = array<i64: 512, 4>}, {transform_indices = @transform_2, window_bounds = array<i64: 512, 128>}]} {
    %c0 = arith.constant 0 : index
    %c0_0 = arith.constant 0 : index
    %0 = vector.load %arg2[%c0, %c0_0] : memref<512x4xf32, #tpu.memory_space<vmem>>, vector<512x4xf32>
    %c0_1 = arith.constant 0 : index
    %c0_2 = arith.constant 0 : index
    %1 = vector.load %arg1[%c0_1, %c0_2] : memref<5x128xf32, #tpu.memory_space<vmem>>, vector<5x128xf32>
    %2 = vector.extract_strided_slice %0 {offsets = [0, 0], sizes = [512, 1], strides = [1, 1]} : vector<512x4xf32> to vector<512x1xf32>
    %3 = vector.extract_strided_slice %1 {offsets = [0, 0], sizes = [1, 128], strides = [1, 1]} : vector<5x128xf32> to vector<1x128xf32>
    %4 = vector.broadcast %2 : vector<512x1xf32> to vector<512x128xf32>
    %5 = vector.broadcast %3 : vector<1x128xf32> to vector<512x128xf32>
    %6 = arith.mulf %4, %5 : vector<512x128xf32>
    %7 = vector.extract_strided_slice %0 {offsets = [0, 1], sizes = [512, 1], strides = [1, 1]} : vector<512x4xf32> to vector<512x1xf32>
    %8 = vector.extract_strided_slice %1 {offsets = [1, 0], sizes = [1, 128], strides = [1, 1]} : vector<5x128xf32> to vector<1x128xf32>
    %9 = vector.broadcast %7 : vector<512x1xf32> to vector<512x128xf32>
    %10 = vector.broadcast %8 : vector<1x128xf32> to vector<512x128xf32>
    %11 = arith.mulf %9, %10 : vector<512x128xf32>
    %12 = arith.addf %6, %11 : vector<512x128xf32>
    %13 = vector.extract_strided_slice %0 {offsets = [0, 2], sizes = [512, 1], strides = [1, 1]} : vector<512x4xf32> to vector<512x1xf32>
    %14 = vector.extract_strided_slice %1 {offsets = [2, 0], sizes = [1, 128], strides = [1, 1]} : vector<5x128xf32> to vector<1x128xf32>
    %15 = vector.broadcast %13 : vector<512x1xf32> to vector<512x128xf32>
    %16 = vector.broadcast %14 : vector<1x128xf32> to vector<512x128xf32>
    %17 = arith.mulf %15, %16 : vector<512x128xf32>
    %18 = arith.addf %12, %17 : vector<512x128xf32>
    %19 = vector.extract_strided_slice %0 {offsets = [0, 3], sizes = [512, 1], strides = [1, 1]} : vector<512x4xf32> to vector<512x1xf32>
    %20 = vector.extract_strided_slice %1 {offsets = [3, 0], sizes = [1, 128], strides = [1, 1]} : vector<5x128xf32> to vector<1x128xf32>
    %21 = vector.broadcast %19 : vector<512x1xf32> to vector<512x128xf32>
    %22 = vector.broadcast %20 : vector<1x128xf32> to vector<512x128xf32>
    %23 = arith.mulf %21, %22 : vector<512x128xf32>
    %24 = arith.addf %18, %23 : vector<512x128xf32>
    %25 = vector.extract_strided_slice %1 {offsets = [4, 0], sizes = [1, 128], strides = [1, 1]} : vector<5x128xf32> to vector<1x128xf32>
    %26 = vector.broadcast %25 : vector<1x128xf32> to vector<512x128xf32>
    %27 = arith.addf %24, %26 : vector<512x128xf32>
    %28 = math.sin %27 : vector<512x128xf32>
    %c0_3 = arith.constant 0 : index
    %c0_4 = arith.constant 0 : index
    %29 = vector.load %arg3[%c0_3, %c0_4] : memref<512x128xf32, #tpu.memory_space<vmem>>, vector<512x128xf32>
    tpu.vector_store %arg3[%c0_3, %c0_4], %28 {strides = array<i32>} : memref<512x128xf32, #tpu.memory_space<vmem>>, vector<512x128xf32>,
    return
  }
  func.func @transform_0(%arg0: i32) -> (i32, i32) {
    %c0_i32 = arith.constant 0 : i32
    %c0_i32_0 = arith.constant 0 : i32
    %c0_i32_1 = arith.constant 0 : i32
    return %c0_i32, %c0_i32_0 : i32, i32
  }
  func.func @transform_1(%arg0: i32) -> (i32, i32) {
    %c0_i32 = arith.constant 0 : i32
    %c0_i32_0 = arith.constant 0 : i32
    return %arg0, %c0_i32 : i32, i32
  }
  func.func @transform_2(%arg0: i32) -> (i32, i32) {
    %c0_i32 = arith.constant 0 : i32
    %c0_i32_0 = arith.constant 0 : i32
    return %arg0, %c0_i32 : i32, i32
  }
}

</mosaic_0001>

<llo_original>
// kernel: tpu_custom_call.1
$region0: #{tpu_custom_call.1}
  #allocation0 [shape = 'u32[]', space=smem, size = 0x4, offset = 0x4, fixed_abs, tag = 'smem constant byte address 0x4 - core index']
  #allocation1 [shape = 'u32[144,128]{1,0:T(1,128)}', space=vmem, size = 0x12000, scoped, tag = 'internal scratch']
  %s0 = inlined_call_operand.vmem [shape: f32[5,128], index: 0, kind: input, shape index: {}]
  %s1 = inlined_call_operand.vmem [shape: f32[512,4], index: 1, kind: input, shape index: {}]
  %s2 = inlined_call_operand.hbm [shape: f32[512,128], index: 2, kind: output, shape index: {}]
  %s3 = sld [smem:[#allocation0]]
  $region18: #{tpu_custom_call.1} parent=0
    _
  %s5 = ssub.s32 1, %s3
  %s6 = scalar_select 0, %s5, %s3
  $region1: #{tpu_custom_call.1} parent=0
    #allocation2 [shape = 'u8[262144]{0}', space=vmem, size = 0x40000, scoped, tag = 'output window, operand 0, single buffered']
    #allocation3 [shape = 's32[1]{0}', space=sflag, size = 0x4, scoped, tag = 'scoped memory for tpu_custom_call.1']
    %7 = vsyncpa [#allocation3], 0
    // Predicated region
    $region2: #{tpu_custom_call.1} parent=1 // pred_check
      _
    $region3: #{tpu_custom_call.1} parent=1 // pred_check_branch
      %9 = sbr.rel (0) target = $region5
    $region4: #{tpu_custom_call.1} parent=1 // pred_region
      _
    $region5: #{tpu_custom_call.1} parent=1 // pred_fallthru
      _
    // Predicated region
    $region6: #{tpu_custom_call.1} parent=1 // pred_check
      _
    $region7: #{tpu_custom_call.1} parent=1 // pred_check_branch
      %11 = sbr.rel (0) target = $region9
    $region8: #{tpu_custom_call.1} parent=1 // pred_region
      _
    $region9: #{tpu_custom_call.1} parent=1 // pred_fallthru
      _
    %v12 = vld [vmem:[%s1] sm:$0xff]
    %v13 = vld [vmem:[%s1 + $0x8] sm:$0xff]
    %v14 = vld [vmem:[%s1 + $0x10] sm:$0xff]
    %v15 = vld [vmem:[%s1 + $0x18] sm:$0xff]
    %v16 = vld [vmem:[%s1 + $0x20] sm:$0xff]
    %v17 = vld [vmem:[%s1 + $0x28] sm:$0xff]
    %v18 = vld [vmem:[%s1 + $0x30] sm:$0xff]
    %v19 = vld [vmem:[%s1 + $0x38] sm:$0xff]
    %v20 = vld [vmem:[%s1 + $0x40] sm:$0xff]
    %v21 = vld [vmem:[%s1 + $0x48] sm:$0xff]
    %v22 = vld [vmem:[%s1 + $0x50] sm:$0xff]
    %v23 = vld [vmem:[%s1 + $0x58] sm:$0xff]
    %v24 = vld [vmem:[%s1 + $0x60] sm:$0xff]
    %v25 = vld [vmem:[%s1 + $0x68] sm:$0xff]
    %v26 = vld [vmem:[%s1 + $0x70] sm:$0xff]
    %v27 = vld [vmem:[%s1 + $0x78] sm:$0xff]
    %v28 = vld [vmem:[%s1 + $0x80] sm:$0xff]
    %v29 = vld [vmem:[%s1 + $0x88] sm:$0xff]
    %v30 = vld [vmem:[%s1 + $0x90] sm:$0xff]
    %v31 = vld [vmem:[%s1 + $0x98] sm:$0xff]
    %v32 = vld [vmem:[%s1 + $0xa0] sm:$0xff]
    %v33 = vld [vmem:[%s1 + $0xa8] sm:$0xff]
    %v34 = vld [vmem:[%s1 + $0xb0] sm:$0xff]
    %v35 = vld [vmem:[%s1 + $0xb8] sm:$0xff]
    %v36 = vld [vmem:[%s1 + $0xc0] sm:$0xff]
    %v37 = vld [vmem:[%s1 + $0xc8] sm:$0xff]
    %v38 = vld [vmem:[%s1 + $0xd0] sm:$0xff]
    %v39 = vld [vmem:[%s1 + $0xd8] sm:$0xff]
    %v40 = vld [vmem:[%s1 + $0xe0] sm:$0xff]
    %v41 = vld [vmem:[%s1 + $0xe8] sm:$0xff]
    %v42 = vld [vmem:[%s1 + $0xf0] sm:$0xff]
    %v43 = vld [vmem:[%s1 + $0xf8] sm:$0xff]
    %v44 = vld [vmem:[%s1 + $0x100] sm:$0xff]
    %v45 = vld [vmem:[%s1 + $0x108] sm:$0xff]
    %v46 = vld [vmem:[%s1 + $0x110] sm:$0xff]
    %v47 = vld [vmem:[%s1 + $0x118] sm:$0xff]
    %v48 = vld [vmem:[%s1 + $0x120] sm:$0xff]
    %v49 = vld [vmem:[%s1 + $0x128] sm:$0xff]
    %v50 = vld [vmem:[%s1 + $0x130] sm:$0xff]
    %v51 = vld [vmem:[%s1 + $0x138] sm:$0xff]
    %v52 = vld [vmem:[%s1 + $0x140] sm:$0xff]
    %v53 = vld [vmem:[%s1 + $0x148] sm:$0xff]
    %v54 = vld [vmem:[%s1 + $0x150] sm:$0xff]
    %v55 = vld [vmem:[%s1 + $0x158] sm:$0xff]
    %v56 = vld [vmem:[%s1 + $0x160] sm:$0xff]
    %v57 = vld [vmem:[%s1 + $0x168] sm:$0xff]
    %v58 = vld [vmem:[%s1 + $0x170] sm:$0xff]
    %v59 = vld [vmem:[%s1 + $0x178] sm:$0xff]
    %v60 = vld [vmem:[%s1 + $0x180] sm:$0xff]
    %v61 = vld [vmem:[%s1 + $0x188] sm:$0xff]
    %v62 = vld [vmem:[%s1 + $0x190] sm:$0xff]
    %v63 = vld [vmem:[%s1 + $0x198] sm:$0xff]
    %v64 = vld [vmem:[%s1 + $0x1a0] sm:$0xff]
    %v65 = vld [vmem:[%s1 + $0x1a8] sm:$0xff]
    %v66 = vld [vmem:[%s1 + $0x1b0] sm:$0xff]
    %v67 = vld [vmem:[%s1 + $0x1b8] sm:$0xff]
    %v68 = vld [vmem:[%s1 + $0x1c0] sm:$0xff]
    %v69 = vld [vmem:[%s1 + $0x1c8] sm:$0xff]
    %v70 = vld [vmem:[%s1 + $0x1d0] sm:$0xff]
    %v71 = vld [vmem:[%s1 + $0x1d8] sm:$0xff]
    %v72 = vld [vmem:[%s1 + $0x1e0] sm:$0xff]
    %v73 = vld [vmem:[%s1 + $0x1e8] sm:$0xff]
    %v74 = vld [vmem:[%s1 + $0x1f0] sm:$0xff]
    %v75 = vld [vmem:[%s1 + $0x1f8] sm:$0xff]
    %v76 = vld [vmem:[%s0] sm:$0x1f]
    %78 = vset.pattern.permute.xlu0 0
    %79 = vperm.xlu0 %78, %v12
    %v80 = vpop.permute.xlu0 %79
    %83 = vset.pattern.permute.xlu0 0
    %84 = vperm.xlu0 %83, %v13
    %v85 = vpop.permute.xlu0 %84
    %88 = vset.pattern.permute.xlu0 0
    %89 = vperm.xlu0 %88, %v14
    %v90 = vpop.permute.xlu0 %89
    %93 = vset.pattern.permute.xlu0 0
    %94 = vperm.xlu0 %93, %v15
    %v95 = vpop.permute.xlu0 %94
    %98 = vset.pattern.permute.xlu0 0
    %99 = vperm.xlu0 %98, %v16
    %v100 = vpop.permute.xlu0 %99
    %103 = vset.pattern.permute.xlu0 0
    %104 = vperm.xlu0 %103, %v17
    %v105 = vpop.permute.xlu0 %104
    %108 = vset.pattern.permute.xlu0 0
    %109 = vperm.xlu0 %108, %v18
    %v110 = vpop.permute.xlu0 %109
    %113 = vset.pattern.permute.xlu0 0
    %114 = vperm.xlu0 %113, %v19
    %v115 = vpop.permute.xlu0 %114
    %118 = vset.pattern.permute.xlu0 0
    %119 = vperm.xlu0 %118, %v20
    %v120 = vpop.permute.xlu0 %119
    %123 = vset.pattern.permute.xlu0 0
    %124 = vperm.xlu0 %123, %v21
    %v125 = vpop.permute.xlu0 %124
    %128 = vset.pattern.permute.xlu0 0
    %129 = vperm.xlu0 %128, %v22
    %v130 = vpop.permute.xlu0 %129
    %133 = vset.pattern.permute.xlu0 0
    %134 = vperm.xlu0 %133, %v23
    %v135 = vpop.permute.xlu0 %134
    %138 = vset.pattern.permute.xlu0 0
    %139 = vperm.xlu0 %138, %v24
    %v140 = vpop.permute.xlu0 %139
    %143 = vset.pattern.permute.xlu0 0
    %144 = vperm.xlu0 %143, %v25
    %v145 = vpop.permute.xlu0 %144
    %148 = vset.pattern.permute.xlu0 0
    %149 = vperm.xlu0 %148, %v26
    %v150 = vpop.permute.xlu0 %149
    %153 = vset.pattern.permute.xlu0 0
    %154 = vperm.xlu0 %153, %v27
    %v155 = vpop.permute.xlu0 %154
    %158 = vset.pattern.permute.xlu0 0
    %159 = vperm.xlu0 %158, %v28
    %v160 = vpop.permute.xlu0 %159
    %163 = vset.pattern.permute.xlu0 0
    %164 = vperm.xlu0 %163, %v29
    %v165 = vpop.permute.xlu0 %164
    %168 = vset.pattern.permute.xlu0 0
    %169 = vperm.xlu0 %168, %v30
    %v170 = vpop.permute.xlu0 %169
    %173 = vset.pattern.permute.xlu0 0
    %174 = vperm.xlu0 %173, %v31
    %v175 = vpop.permute.xlu0 %174
    %178 = vset.pattern.permute.xlu0 0
    %179 = vperm.xlu0 %178, %v32
    %v180 = vpop.permute.xlu0 %179
    %183 = vset.pattern.permute.xlu0 0
    %184 = vperm.xlu0 %183, %v33
    %v185 = vpop.permute.xlu0 %184
    %188 = vset.pattern.permute.xlu0 0
    %189 = vperm.xlu0 %188, %v34
    %v190 = vpop.permute.xlu0 %189
    %193 = vset.pattern.permute.xlu0 0
    %194 = vperm.xlu0 %193, %v35
    %v195 = vpop.permute.xlu0 %194
    %198 = vset.pattern.permute.xlu0 0
    %199 = vperm.xlu0 %198, %v36
    %v200 = vpop.permute.xlu0 %199
    %203 = vset.pattern.permute.xlu0 0
    %204 = vperm.xlu0 %203, %v37
    %v205 = vpop.permute.xlu0 %204
    %208 = vset.pattern.permute.xlu0 0
    %209 = vperm.xlu0 %208, %v38
    %v210 = vpop.permute.xlu0 %209
    %213 = vset.pattern.permute.xlu0 0
    %214 = vperm.xlu0 %213, %v39
    %v215 = vpop.permute.xlu0 %214
    %218 = vset.pattern.permute.xlu0 0
    %219 = vperm.xlu0 %218, %v40
    %v220 = vpop.permute.xlu0 %219
    %223 = vset.pattern.permute.xlu0 0
    %224 = vperm.xlu0 %223, %v41
    %v225 = vpop.permute.xlu0 %224
    %228 = vset.pattern.permute.xlu0 0
    %229 = vperm.xlu0 %228, %v42
    %v230 = vpop.permute.xlu0 %229
    %233 = vset.pattern.permute.xlu0 0
    %234 = vperm.xlu0 %233, %v43
    %v235 = vpop.permute.xlu0 %234
    %238 = vset.pattern.permute.xlu0 0
    %239 = vperm.xlu0 %238, %v44
    %v240 = vpop.permute.xlu0 %239
    %243 = vset.pattern.permute.xlu0 0
    %244 = vperm.xlu0 %243, %v45
    %v245 = vpop.permute.xlu0 %244
    %248 = vset.pattern.permute.xlu0 0
    %249 = vperm.xlu0 %248, %v46
    %v250 = vpop.permute.xlu0 %249
    %253 = vset.pattern.permute.xlu0 0
    %254 = vperm.xlu0 %253, %v47
    %v255 = vpop.permute.xlu0 %254
    %258 = vset.pattern.permute.xlu0 0
    %259 = vperm.xlu0 %258, %v48
    %v260 = vpop.permute.xlu0 %259
    %263 = vset.pattern.permute.xlu0 0
    %264 = vperm.xlu0 %263, %v49
    %v265 = vpop.permute.xlu0 %264
    %268 = vset.pattern.permute.xlu0 0
    %269 = vperm.xlu0 %268, %v50
    %v270 = vpop.permute.xlu0 %269
    %273 = vset.pattern.permute.xlu0 0
    %274 = vperm.xlu0 %273, %v51
    %v275 = vpop.permute.xlu0 %274
    %278 = vset.pattern.permute.xlu0 0
    %279 = vperm.xlu0 %278, %v52
    %v280 = vpop.permute.xlu0 %279
    %283 = vset.pattern.permute.xlu0 0
    %284 = vperm.xlu0 %283, %v53
    %v285 = vpop.permute.xlu0 %284
    %288 = vset.pattern.permute.xlu0 0
    %289 = vperm.xlu0 %288, %v54
    %v290 = vpop.permute.xlu0 %289
    %293 = vset.pattern.permute.xlu0 0
    %294 = vperm.xlu0 %293, %v55
    %v295 = vpop.permute.xlu0 %294
    %298 = vset.pattern.permute.xlu0 0
    %299 = vperm.xlu0 %298, %v56
    %v300 = vpop.permute.xlu0 %299
    %303 = vset.pattern.permute.xlu0 0
    %304 = vperm.xlu0 %303, %v57
    %v305 = vpop.permute.xlu0 %304
    %308 = vset.pattern.permute.xlu0 0
    %309 = vperm.xlu0 %308, %v58
    %v310 = vpop.permute.xlu0 %309
    %313 = vset.pattern.permute.xlu0 0
    %314 = vperm.xlu0 %313, %v59
    %v315 = vpop.permute.xlu0 %314
    %318 = vset.pattern.permute.xlu0 0
    %319 = vperm.xlu0 %318, %v60
    %v320 = vpop.permute.xlu0 %319
    %323 = vset.pattern.permute.xlu0 0
    %324 = vperm.xlu0 %323, %v61
    %v325 = vpop.permute.xlu0 %324
    %328 = vset.pattern.permute.xlu0 0
    %329 = vperm.xlu0 %328, %v62
    %v330 = vpop.permute.xlu0 %329
    %333 = vset.pattern.permute.xlu0 0
    %334 = vperm.xlu0 %333, %v63
    %v335 = vpop.permute.xlu0 %334
    %338 = vset.pattern.permute.xlu0 0
    %339 = vperm.xlu0 %338, %v64
    %v340 = vpop.permute.xlu0 %339
    %343 = vset.pattern.permute.xlu0 0
    %344 = vperm.xlu0 %343, %v65
    %v345 = vpop.permute.xlu0 %344
    %348 = vset.pattern.permute.xlu0 0
    %349 = vperm.xlu0 %348, %v66
    %v350 = vpop.permute.xlu0 %349
    %353 = vset.pattern.permute.xlu0 0
    %354 = vperm.xlu0 %353, %v67
    %v355 = vpop.permute.xlu0 %354
    %358 = vset.pattern.permute.xlu0 0
    %359 = vperm.xlu0 %358, %v68
    %v360 = vpop.permute.xlu0 %359
    %363 = vset.pattern.permute.xlu0 0
    %364 = vperm.xlu0 %363, %v69
    %v365 = vpop.permute.xlu0 %364
    %368 = vset.pattern.permute.xlu0 0
    %369 = vperm.xlu0 %368, %v70
    %v370 = vpop.permute.xlu0 %369
    %373 = vset.pattern.permute.xlu0 0
    %374 = vperm.xlu0 %373, %v71
    %v375 = vpop.permute.xlu0 %374
    %378 = vset.pattern.permute.xlu0 0
    %379 = vperm.xlu0 %378, %v72
    %v380 = vpop.permute.xlu0 %379
    %383 = vset.pattern.permute.xlu0 0
    %384 = vperm.xlu0 %383, %v73
    %v385 = vpop.permute.xlu0 %384
    %388 = vset.pattern.permute.xlu0 0
    %389 = vperm.xlu0 %388, %v74
    %v390 = vpop.permute.xlu0 %389
    %393 = vset.pattern.permute.xlu0 0
    %394 = vperm.xlu0 %393, %v75
    %v395 = vpop.permute.xlu0 %394
    %v397 = vlaneseq
    %v398 = vshrl.u32 %v397, 7
    %v399 = vsub.s32 0, %v398
    %v400 = vrot.slane %v76, %v399
    %v401 = vmul.f32 %v80, %v400
    %v402 = vmul.f32 %v85, %v400
    %v403 = vmul.f32 %v90, %v400
    %v404 = vmul.f32 %v95, %v400
    %v405 = vmul.f32 %v100, %v400
    %v406 = vmul.f32 %v105, %v400
    %v407 = vmul.f32 %v110, %v400
    %v408 = vmul.f32 %v115, %v400
    %v409 = vmul.f32 %v120, %v400
    %v410 = vmul.f32 %v125, %v400
    %v411 = vmul.f32 %v130, %v400
    %v412 = vmul.f32 %v135, %v400
    %v413 = vmul.f32 %v140, %v400
    %v414 = vmul.f32 %v145, %v400
    %v415 = vmul.f32 %v150, %v400
    %v416 = vmul.f32 %v155, %v400
    %v417 = vmul.f32 %v160, %v400
    %v418 = vmul.f32 %v165, %v400
    %v419 = vmul.f32 %v170, %v400
    %v420 = vmul.f32 %v175, %v400
    %v421 = vmul.f32 %v180, %v400
    %v422 = vmul.f32 %v185, %v400
    %v423 = vmul.f32 %v190, %v400
    %v424 = vmul.f32 %v195, %v400
    %v425 = vmul.f32 %v200, %v400
    %v426 = vmul.f32 %v205, %v400
    %v427 = vmul.f32 %v210, %v400
    %v428 = vmul.f32 %v215, %v400
    %v429 = vmul.f32 %v220, %v400
    %v430 = vmul.f32 %v225, %v400
    %v431 = vmul.f32 %v230, %v400
    %v432 = vmul.f32 %v235, %v400
    %v433 = vmul.f32 %v240, %v400
    %v434 = vmul.f32 %v245, %v400
    %v435 = vmul.f32 %v250, %v400
    %v436 = vmul.f32 %v255, %v400
    %v437 = vmul.f32 %v260, %v400
    %v438 = vmul.f32 %v265, %v400
    %v439 = vmul.f32 %v270, %v400
    %v440 = vmul.f32 %v275, %v400
    %v441 = vmul.f32 %v280, %v400
    %v442 = vmul.f32 %v285, %v400
    %v443 = vmul.f32 %v290, %v400
    %v444 = vmul.f32 %v295, %v400
    %v445 = vmul.f32 %v300, %v400
    %v446 = vmul.f32 %v305, %v400
    %v447 = vmul.f32 %v310, %v400
    %v448 = vmul.f32 %v315, %v400
    %v449 = vmul.f32 %v320, %v400
    %v450 = vmul.f32 %v325, %v400
    %v451 = vmul.f32 %v330, %v400
    %v452 = vmul.f32 %v335, %v400
    %v453 = vmul.f32 %v340, %v400
    %v454 = vmul.f32 %v345, %v400
    %v455 = vmul.f32 %v350, %v400
    %v456 = vmul.f32 %v355, %v400
    %v457 = vmul.f32 %v360, %v400
    %v458 = vmul.f32 %v365, %v400
    %v459 = vmul.f32 %v370, %v400
    %v460 = vmul.f32 %v375, %v400
    %v461 = vmul.f32 %v380, %v400
    %v462 = vmul.f32 %v385, %v400
    %v463 = vmul.f32 %v390, %v400
    %v464 = vmul.f32 %v395, %v400
    %465 = vset.pattern.permute.xlu0 1
    %466 = vperm.xlu0 %465, %v12
    %v467 = vpop.permute.xlu0 %466
    %469 = vset.pattern.permute.xlu0 1
    %470 = vperm.xlu0 %469, %v13
    %v471 = vpop.permute.xlu0 %470
    %473 = vset.pattern.permute.xlu0 1
    %474 = vperm.xlu0 %473, %v14
    %v475 = vpop.permute.xlu0 %474
    %477 = vset.pattern.permute.xlu0 1
    %478 = vperm.xlu0 %477, %v15
    %v479 = vpop.permute.xlu0 %478
    %481 = vset.pattern.permute.xlu0 1
    %482 = vperm.xlu0 %481, %v16
    %v483 = vpop.permute.xlu0 %482
    %485 = vset.pattern.permute.xlu0 1
    %486 = vperm.xlu0 %485, %v17
    %v487 = vpop.permute.xlu0 %486
    %489 = vset.pattern.permute.xlu0 1
    %490 = vperm.xlu0 %489, %v18
    %v491 = vpop.permute.xlu0 %490
    %493 = vset.pattern.permute.xlu0 1
    %494 = vperm.xlu0 %493, %v19
    %v495 = vpop.permute.xlu0 %494
    %497 = vset.pattern.permute.xlu0 1
    %498 = vperm.xlu0 %497, %v20
    %v499 = vpop.permute.xlu0 %498
    %501 = vset.pattern.permute.xlu0 1
    %502 = vperm.xlu0 %501, %v21
    %v503 = vpop.permute.xlu0 %502
    %505 = vset.pattern.permute.xlu0 1
    %506 = vperm.xlu0 %505, %v22
    %v507 = vpop.permute.xlu0 %506
    %509 = vset.pattern.permute.xlu0 1
    %510 = vperm.xlu0 %509, %v23
    %v511 = vpop.permute.xlu0 %510
    %513 = vset.pattern.permute.xlu0 1
    %514 = vperm.xlu0 %513, %v24
    %v515 = vpop.permute.xlu0 %514
    %517 = vset.pattern.permute.xlu0 1
    %518 = vperm.xlu0 %517, %v25
    %v519 = vpop.permute.xlu0 %518
    %521 = vset.pattern.permute.xlu0 1
    %522 = vperm.xlu0 %521, %v26
    %v523 = vpop.permute.xlu0 %522
    %525 = vset.pattern.permute.xlu0 1
    %526 = vperm.xlu0 %525, %v27
    %v527 = vpop.permute.xlu0 %526
    %529 = vset.pattern.permute.xlu0 1
    %530 = vperm.xlu0 %529, %v28
    %v531 = vpop.permute.xlu0 %530
    %533 = vset.pattern.permute.xlu0 1
    %534 = vperm.xlu0 %533, %v29
    %v535 = vpop.permute.xlu0 %534
    %537 = vset.pattern.permute.xlu0 1
    %538 = vperm.xlu0 %537, %v30
    %v539 = vpop.permute.xlu0 %538
    %541 = vset.pattern.permute.xlu0 1
    %542 = vperm.xlu0 %541, %v31
    %v543 = vpop.permute.xlu0 %542
    %545 = vset.pattern.permute.xlu0 1
    %546 = vperm.xlu0 %545, %v32
    %v547 = vpop.permute.xlu0 %546
    %549 = vset.pattern.permute.xlu0 1
    %550 = vperm.xlu0 %549, %v33
    %v551 = vpop.permute.xlu0 %550
    %553 = vset.pattern.permute.xlu0 1
    %554 = vperm.xlu0 %553, %v34
    %v555 = vpop.permute.xlu0 %554
    %557 = vset.pattern.permute.xlu0 1
    %558 = vperm.xlu0 %557, %v35
    %v559 = vpop.permute.xlu0 %558
    %561 = vset.pattern.permute.xlu0 1
    %562 = vperm.xlu0 %561, %v36
    %v563 = vpop.permute.xlu0 %562
    %565 = vset.pattern.permute.xlu0 1
    %566 = vperm.xlu0 %565, %v37
    %v567 = vpop.permute.xlu0 %566
    %569 = vset.pattern.permute.xlu0 1
    %570 = vperm.xlu0 %569, %v38
    %v571 = vpop.permute.xlu0 %570
    %573 = vset.pattern.permute.xlu0 1
    %574 = vperm.xlu0 %573, %v39
    %v575 = vpop.permute.xlu0 %574
    %577 = vset.pattern.permute.xlu0 1
    %578 = vperm.xlu0 %577, %v40
    %v579 = vpop.permute.xlu0 %578
    %581 = vset.pattern.permute.xlu0 1
    %582 = vperm.xlu0 %581, %v41
    %v583 = vpop.permute.xlu0 %582
    %585 = vset.pattern.permute.xlu0 1
    %586 = vperm.xlu0 %585, %v42
    %v587 = vpop.permute.xlu0 %586
    %589 = vset.pattern.permute.xlu0 1
    %590 = vperm.xlu0 %589, %v43
    %v591 = vpop.permute.xlu0 %590
    %593 = vset.pattern.permute.xlu0 1
    %594 = vperm.xlu0 %593, %v44
    %v595 = vpop.permute.xlu0 %594
    %597 = vset.pattern.permute.xlu0 1
    %598 = vperm.xlu0 %597, %v45
    %v599 = vpop.permute.xlu0 %598
    %601 = vset.pattern.permute.xlu0 1
    %602 = vperm.xlu0 %601, %v46
    %v603 = vpop.permute.xlu0 %602
    %605 = vset.pattern.permute.xlu0 1
    %606 = vperm.xlu0 %605, %v47
    %v607 = vpop.permute.xlu0 %606
    %609 = vset.pattern.permute.xlu0 1
    %610 = vperm.xlu0 %609, %v48
    %v611 = vpop.permute.xlu0 %610
    %613 = vset.pattern.permute.xlu0 1
    %614 = vperm.xlu0 %613, %v49
    %v615 = vpop.permute.xlu0 %614
    %617 = vset.pattern.permute.xlu0 1
    %618 = vperm.xlu0 %617, %v50
    %v619 = vpop.permute.xlu0 %618
    %621 = vset.pattern.permute.xlu0 1
    %622 = vperm.xlu0 %621, %v51
    %v623 = vpop.permute.xlu0 %622
    %625 = vset.pattern.permute.xlu0 1
    %626 = vperm.xlu0 %625, %v52
    %v627 = vpop.permute.xlu0 %626
    %629 = vset.pattern.permute.xlu0 1
    %630 = vperm.xlu0 %629, %v53
    %v631 = vpop.permute.xlu0 %630
    %633 = vset.pattern.permute.xlu0 1
    %634 = vperm.xlu0 %633, %v54
    %v635 = vpop.permute.xlu0 %634
    %637 = vset.pattern.permute.xlu0 1
    %638 = vperm.xlu0 %637, %v55
    %v639 = vpop.permute.xlu0 %638
    %641 = vset.pattern.permute.xlu0 1
    %642 = vperm.xlu0 %641, %v56
    %v643 = vpop.permute.xlu0 %642
    %645 = vset.pattern.permute.xlu0 1
    %646 = vperm.xlu0 %645, %v57
    %v647 = vpop.permute.xlu0 %646
    %649 = vset.pattern.permute.xlu0 1
    %650 = vperm.xlu0 %649, %v58
    %v651 = vpop.permute.xlu0 %650
    %653 = vset.pattern.permute.xlu0 1
    %654 = vperm.xlu0 %653, %v59
    %v655 = vpop.permute.xlu0 %654
    %657 = vset.pattern.permute.xlu0 1
    %658 = vperm.xlu0 %657, %v60
    %v659 = vpop.permute.xlu0 %658
    %661 = vset.pattern.permute.xlu0 1
    %662 = vperm.xlu0 %661, %v61
    %v663 = vpop.permute.xlu0 %662
    %665 = vset.pattern.permute.xlu0 1
    %666 = vperm.xlu0 %665, %v62
    %v667 = vpop.permute.xlu0 %666
    %669 = vset.pattern.permute.xlu0 1
    %670 = vperm.xlu0 %669, %v63
    %v671 = vpop.permute.xlu0 %670
    %673 = vset.pattern.permute.xlu0 1
    %674 = vperm.xlu0 %673, %v64
    %v675 = vpop.permute.xlu0 %674
    %677 = vset.pattern.permute.xlu0 1
    %678 = vperm.xlu0 %677, %v65
    %v679 = vpop.permute.xlu0 %678
    %681 = vset.pattern.permute.xlu0 1
    %682 = vperm.xlu0 %681, %v66
    %v683 = vpop.permute.xlu0 %682
    %685 = vset.pattern.permute.xlu0 1
    %686 = vperm.xlu0 %685, %v67
    %v687 = vpop.permute.xlu0 %686
    %689 = vset.pattern.permute.xlu0 1
    %690 = vperm.xlu0 %689, %v68
    %v691 = vpop.permute.xlu0 %690
    %693 = vset.pattern.permute.xlu0 1
    %694 = vperm.xlu0 %693, %v69
    %v695 = vpop.permute.xlu0 %694
    %697 = vset.pattern.permute.xlu0 1
    %698 = vperm.xlu0 %697, %v70
    %v699 = vpop.permute.xlu0 %698
    %701 = vset.pattern.permute.xlu0 1
    %702 = vperm.xlu0 %701, %v71
    %v703 = vpop.permute.xlu0 %702
    %705 = vset.pattern.permute.xlu0 1
    %706 = vperm.xlu0 %705, %v72
    %v707 = vpop.permute.xlu0 %706
    %709 = vset.pattern.permute.xlu0 1
    %710 = vperm.xlu0 %709, %v73
    %v711 = vpop.permute.xlu0 %710
    %713 = vset.pattern.permute.xlu0 1
    %714 = vperm.xlu0 %713, %v74
    %v715 = vpop.permute.xlu0 %714
    %717 = vset.pattern.permute.xlu0 1
    %718 = vperm.xlu0 %717, %v75
    %v719 = vpop.permute.xlu0 %718
    %v721 = vlaneseq
    %v722 = vshrl.u32 %v721, 7
    %v723 = vsub.s32 1, %v722
    %v724 = vrot.slane %v76, %v723
    %v725 = vmul.f32 %v467, %v724
    %v726 = vmul.f32 %v471, %v724
    %v727 = vmul.f32 %v475, %v724
    %v728 = vmul.f32 %v479, %v724
    %v729 = vmul.f32 %v483, %v724
    %v730 = vmul.f32 %v487, %v724
    %v731 = vmul.f32 %v491, %v724
    %v732 = vmul.f32 %v495, %v724
    %v733 = vmul.f32 %v499, %v724
    %v734 = vmul.f32 %v503, %v724
    %v735 = vmul.f32 %v507, %v724
    %v736 = vmul.f32 %v511, %v724
    %v737 = vmul.f32 %v515, %v724
    %v738 = vmul.f32 %v519, %v724
    %v739 = vmul.f32 %v523, %v724
    %v740 = vmul.f32 %v527, %v724
    %v741 = vmul.f32 %v531, %v724
    %v742 = vmul.f32 %v535, %v724
    %v743 = vmul.f32 %v539, %v724
    %v744 = vmul.f32 %v543, %v724
    %v745 = vmul.f32 %v547, %v724
    %v746 = vmul.f32 %v551, %v724
    %v747 = vmul.f32 %v555, %v724
    %v748 = vmul.f32 %v559, %v724
    %v749 = vmul.f32 %v563, %v724
    %v750 = vmul.f32 %v567, %v724
    %v751 = vmul.f32 %v571, %v724
    %v752 = vmul.f32 %v575, %v724
    %v753 = vmul.f32 %v579, %v724
    %v754 = vmul.f32 %v583, %v724
    %v755 = vmul.f32 %v587, %v724
    %v756 = vmul.f32 %v591, %v724
    %v757 = vmul.f32 %v595, %v724
    %v758 = vmul.f32 %v599, %v724
    %v759 = vmul.f32 %v603, %v724
    %v760 = vmul.f32 %v607, %v724
    %v761 = vmul.f32 %v611, %v724
    %v762 = vmul.f32 %v615, %v724
    %v763 = vmul.f32 %v619, %v724
    %v764 = vmul.f32 %v623, %v724
    %v765 = vmul.f32 %v627, %v724
    %v766 = vmul.f32 %v631, %v724
    %v767 = vmul.f32 %v635, %v724
    %v768 = vmul.f32 %v639, %v724
    %v769 = vmul.f32 %v643, %v724
    %v770 = vmul.f32 %v647, %v724
    %v771 = vmul.f32 %v651, %v724
    %v772 = vmul.f32 %v655, %v724
    %v773 = vmul.f32 %v659, %v724
    %v774 = vmul.f32 %v663, %v724
    %v775 = vmul.f32 %v667, %v724
    %v776 = vmul.f32 %v671, %v724
    %v777 = vmul.f32 %v675, %v724
    %v778 = vmul.f32 %v679, %v724
    %v779 = vmul.f32 %v683, %v724
    %v780 = vmul.f32 %v687, %v724
    %v781 = vmul.f32 %v691, %v724
    %v782 = vmul.f32 %v695, %v724
    %v783 = vmul.f32 %v699, %v724
    %v784 = vmul.f32 %v703, %v724
    %v785 = vmul.f32 %v707, %v724
    %v786 = vmul.f32 %v711, %v724
    %v787 = vmul.f32 %v715, %v724
    %v788 = vmul.f32 %v719, %v724
    %v789 = vadd.f32 %v401, %v725
    %v790 = vadd.f32 %v402, %v726
    %v791 = vadd.f32 %v403, %v727
    %v792 = vadd.f32 %v404, %v728
    %v793 = vadd.f32 %v405, %v729
    %v794 = vadd.f32 %v406, %v730
    %v795 = vadd.f32 %v407, %v731
    %v796 = vadd.f32 %v408, %v732
    %v797 = vadd.f32 %v409, %v733
    %v798 = vadd.f32 %v410, %v734
    %v799 = vadd.f32 %v411, %v735
    %v800 = vadd.f32 %v412, %v736
    %v801 = vadd.f32 %v413, %v737
    %v802 = vadd.f32 %v414, %v738
    %v803 = vadd.f32 %v415, %v739
    %v804 = vadd.f32 %v416, %v740
    %v805 = vadd.f32 %v417, %v741
    %v806 = vadd.f32 %v418, %v742
    %v807 = vadd.f32 %v419, %v743
    %v808 = vadd.f32 %v420, %v744
    %v809 = vadd.f32 %v421, %v745
    %v810 = vadd.f32 %v422, %v746
    %v811 = vadd.f32 %v423, %v747
    %v812 = vadd.f32 %v424, %v748
    %v813 = vadd.f32 %v425, %v749
    %v814 = vadd.f32 %v426, %v750
    %v815 = vadd.f32 %v427, %v751
    %v816 = vadd.f32 %v428, %v752
    %v817 = vadd.f32 %v429, %v753
    %v818 = vadd.f32 %v430, %v754
    %v819 = vadd.f32 %v431, %v755
    %v820 = vadd.f32 %v432, %v756
    %v821 = vadd.f32 %v433, %v757
    %v822 = vadd.f32 %v434, %v758
    %v823 = vadd.f32 %v435, %v759
    %v824 = vadd.f32 %v436, %v760
    %v825 = vadd.f32 %v437, %v761
    %v826 = vadd.f32 %v438, %v762
    %v827 = vadd.f32 %v439, %v763
    %v828 = vadd.f32 %v440, %v764
    %v829 = vadd.f32 %v441, %v765
    %v830 = vadd.f32 %v442, %v766
    %v831 = vadd.f32 %v443, %v767
    %v832 = vadd.f32 %v444, %v768
    %v833 = vadd.f32 %v445, %v769
    %v834 = vadd.f32 %v446, %v770
    %v835 = vadd.f32 %v447, %v771
    %v836 = vadd.f32 %v448, %v772
    %v837 = vadd.f32 %v449, %v773
    %v838 = vadd.f32 %v450, %v774
    %v839 = vadd.f32 %v451, %v775
    %v840 = vadd.f32 %v452, %v776
    %v841 = vadd.f32 %v453, %v777
    %v842 = vadd.f32 %v454, %v778
    %v843 = vadd.f32 %v455, %v779
    %v844 = vadd.f32 %v456, %v780
    %v845 = vadd.f32 %v457, %v781
    %v846 = vadd.f32 %v458, %v782
    %v847 = vadd.f32 %v459, %v783
    %v848 = vadd.f32 %v460, %v784
    %v849 = vadd.f32 %v461, %v785
    %v850 = vadd.f32 %v462, %v786
    %v851 = vadd.f32 %v463, %v787
    %v852 = vadd.f32 %v464, %v788
    %853 = vset.pattern.permute.xlu0 2
    %854 = vperm.xlu0 %853, %v12
    %v855 = vpop.permute.xlu0 %854
    %857 = vset.pattern.permute.xlu0 2
    %858 = vperm.xlu0 %857, %v13
    %v859 = vpop.permute.xlu0 %858
    %861 = vset.pattern.permute.xlu0 2
    %862 = vperm.xlu0 %861, %v14
    %v863 = vpop.permute.xlu0 %862
    %865 = vset.pattern.permute.xlu0 2
    %866 = vperm.xlu0 %865, %v15
    %v867 = vpop.permute.xlu0 %866
    %869 = vset.pattern.permute.xlu0 2
    %870 = vperm.xlu0 %869, %v16
    %v871 = vpop.permute.xlu0 %870
    %873 = vset.pattern.permute.xlu0 2
    %874 = vperm.xlu0 %873, %v17
    %v875 = vpop.permute.xlu0 %874
    %877 = vset.pattern.permute.xlu0 2
    %878 = vperm.xlu0 %877, %v18
    %v879 = vpop.permute.xlu0 %878
    %881 = vset.pattern.permute.xlu0 2
    %882 = vperm.xlu0 %881, %v19
    %v883 = vpop.permute.xlu0 %882
    %885 = vset.pattern.permute.xlu0 2
    %886 = vperm.xlu0 %885, %v20
    %v887 = vpop.permute.xlu0 %886
    %889 = vset.pattern.permute.xlu0 2
    %890 = vperm.xlu0 %889, %v21
    %v891 = vpop.permute.xlu0 %890
    %893 = vset.pattern.permute.xlu0 2
    %894 = vperm.xlu0 %893, %v22
    %v895 = vpop.permute.xlu0 %894
    %897 = vset.pattern.permute.xlu0 2
    %898 = vperm.xlu0 %897, %v23
    %v899 = vpop.permute.xlu0 %898
    %901 = vset.pattern.permute.xlu0 2
    %902 = vperm.xlu0 %901, %v24
    %v903 = vpop.permute.xlu0 %902
    %905 = vset.pattern.permute.xlu0 2
    %906 = vperm.xlu0 %905, %v25
    %v907 = vpop.permute.xlu0 %906
    %909 = vset.pattern.permute.xlu0 2
    %910 = vperm.xlu0 %909, %v26
    %v911 = vpop.permute.xlu0 %910
    %913 = vset.pattern.permute.xlu0 2
    %914 = vperm.xlu0 %913, %v27
    %v915 = vpop.permute.xlu0 %914
    %917 = vset.pattern.permute.xlu0 2
    %918 = vperm.xlu0 %917, %v28
    %v919 = vpop.permute.xlu0 %918
    %921 = vset.pattern.permute.xlu0 2
    %922 = vperm.xlu0 %921, %v29
    %v923 = vpop.permute.xlu0 %922
    %925 = vset.pattern.permute.xlu0 2
    %926 = vperm.xlu0 %925, %v30
    %v927 = vpop.permute.xlu0 %926
    %929 = vset.pattern.permute.xlu0 2
    %930 = vperm.xlu0 %929, %v31
    %v931 = vpop.permute.xlu0 %930
    %933 = vset.pattern.permute.xlu0 2
    %934 = vperm.xlu0 %933, %v32
    %v935 = vpop.permute.xlu0 %934
    %937 = vset.pattern.permute.xlu0 2
    %938 = vperm.xlu0 %937, %v33
    %v939 = vpop.permute.xlu0 %938
    %941 = vset.pattern.permute.xlu0 2
    %942 = vperm.xlu0 %941, %v34
    %v943 = vpop.permute.xlu0 %942
    %945 = vset.pattern.permute.xlu0 2
    %946 = vperm.xlu0 %945, %v35
    %v947 = vpop.permute.xlu0 %946
    %949 = vset.pattern.permute.xlu0 2
    %950 = vperm.xlu0 %949, %v36
    %v951 = vpop.permute.xlu0 %950
    %953 = vset.pattern.permute.xlu0 2
    %954 = vperm.xlu0 %953, %v37
    %v955 = vpop.permute.xlu0 %954
    %957 = vset.pattern.permute.xlu0 2
    %958 = vperm.xlu0 %957, %v38
    %v959 = vpop.permute.xlu0 %958
    %961 = vset.pattern.permute.xlu0 2
    %962 = vperm.xlu0 %961, %v39
    %v963 = vpop.permute.xlu0 %962
    %965 = vset.pattern.permute.xlu0 2
    %966 = vperm.xlu0 %965, %v40
    %v967 = vpop.permute.xlu0 %966
    %969 = vset.pattern.permute.xlu0 2
    %970 = vperm.xlu0 %969, %v41
    %v971 = vpop.permute.xlu0 %970
    %973 = vset.pattern.permute.xlu0 2
    %974 = vperm.xlu0 %973, %v42
    %v975 = vpop.permute.xlu0 %974
    %977 = vset.pattern.permute.xlu0 2
    %978 = vperm.xlu0 %977, %v43
    %v979 = vpop.permute.xlu0 %978
    %981 = vset.pattern.permute.xlu0 2
    %982 = vperm.xlu0 %981, %v44
    %v983 = vpop.permute.xlu0 %982
    %985 = vset.pattern.permute.xlu0 2
    %986 = vperm.xlu0 %985, %v45
    %v987 = vpop.permute.xlu0 %986
    %989 = vset.pattern.permute.xlu0 2
    %990 = vperm.xlu0 %989, %v46
    %v991 = vpop.permute.xlu0 %990
    %993 = vset.pattern.permute.xlu0 2
    %994 = vperm.xlu0 %993, %v47
    %v995 = vpop.permute.xlu0 %994
    %997 = vset.pattern.permute.xlu0 2
    %998 = vperm.xlu0 %997, %v48
    %v999 = vpop.permute.xlu0 %998
    %1001 = vset.pattern.permute.xlu0 2
    %1002 = vperm.xlu0 %1001, %v49
    %v1003 = vpop.permute.xlu0 %1002
    %1005 = vset.pattern.permute.xlu0 2
    %1006 = vperm.xlu0 %1005, %v50
    %v1007 = vpop.permute.xlu0 %1006
    %1009 = vset.pattern.permute.xlu0 2
    %1010 = vperm.xlu0 %1009, %v51
    %v1011 = vpop.permute.xlu0 %1010
    %1013 = vset.pattern.permute.xlu0 2
    %1014 = vperm.xlu0 %1013, %v52
    %v1015 = vpop.permute.xlu0 %1014
    %1017 = vset.pattern.permute.xlu0 2
    %1018 = vperm.xlu0 %1017, %v53
    %v1019 = vpop.permute.xlu0 %1018
    %1021 = vset.pattern.permute.xlu0 2
    %1022 = vperm.xlu0 %1021, %v54
    %v1023 = vpop.permute.xlu0 %1022
    %1025 = vset.pattern.permute.xlu0 2
    %1026 = vperm.xlu0 %1025, %v55
    %v1027 = vpop.permute.xlu0 %1026
    %1029 = vset.pattern.permute.xlu0 2
    %1030 = vperm.xlu0 %1029, %v56
    %v1031 = vpop.permute.xlu0 %1030
    %1033 = vset.pattern.permute.xlu0 2
    %1034 = vperm.xlu0 %1033, %v57
    %v1035 = vpop.permute.xlu0 %1034
    %1037 = vset.pattern.permute.xlu0 2
    %1038 = vperm.xlu0 %1037, %v58
    %v1039 = vpop.permute.xlu0 %1038
    %1041 = vset.pattern.permute.xlu0 2
    %1042 = vperm.xlu0 %1041, %v59
    %v1043 = vpop.permute.xlu0 %1042
    %1045 = vset.pattern.permute.xlu0 2
    %1046 = vperm.xlu0 %1045, %v60
    %v1047 = vpop.permute.xlu0 %1046
    %1049 = vset.pattern.permute.xlu0 2
    %1050 = vperm.xlu0 %1049, %v61
    %v1051 = vpop.permute.xlu0 %1050
    %1053 = vset.pattern.permute.xlu0 2
    %1054 = vperm.xlu0 %1053, %v62
    %v1055 = vpop.permute.xlu0 %1054
    %1057 = vset.pattern.permute.xlu0 2
    %1058 = vperm.xlu0 %1057, %v63
    %v1059 = vpop.permute.xlu0 %1058
    %1061 = vset.pattern.permute.xlu0 2
    %1062 = vperm.xlu0 %1061, %v64
    %v1063 = vpop.permute.xlu0 %1062
    %1065 = vset.pattern.permute.xlu0 2
    %1066 = vperm.xlu0 %1065, %v65
    %v1067 = vpop.permute.xlu0 %1066
    %1069 = vset.pattern.permute.xlu0 2
    %1070 = vperm.xlu0 %1069, %v66
    %v1071 = vpop.permute.xlu0 %1070
    %1073 = vset.pattern.permute.xlu0 2
    %1074 = vperm.xlu0 %1073, %v67
    %v1075 = vpop.permute.xlu0 %1074
    %1077 = vset.pattern.permute.xlu0 2
    %1078 = vperm.xlu0 %1077, %v68
    %v1079 = vpop.permute.xlu0 %1078
    %1081 = vset.pattern.permute.xlu0 2
    %1082 = vperm.xlu0 %1081, %v69
    %v1083 = vpop.permute.xlu0 %1082
    %1085 = vset.pattern.permute.xlu0 2
    %1086 = vperm.xlu0 %1085, %v70
    %v1087 = vpop.permute.xlu0 %1086
    %1089 = vset.pattern.permute.xlu0 2
    %1090 = vperm.xlu0 %1089, %v71
    %v1091 = vpop.permute.xlu0 %1090
    %1093 = vset.pattern.permute.xlu0 2
    %1094 = vperm.xlu0 %1093, %v72
    %v1095 = vpop.permute.xlu0 %1094
    %1097 = vset.pattern.permute.xlu0 2
    %1098 = vperm.xlu0 %1097, %v73
    %v1099 = vpop.permute.xlu0 %1098
    %1101 = vset.pattern.permute.xlu0 2
    %1102 = vperm.xlu0 %1101, %v74
    %v1103 = vpop.permute.xlu0 %1102
    %1105 = vset.pattern.permute.xlu0 2
    %1106 = vperm.xlu0 %1105, %v75
    %v1107 = vpop.permute.xlu0 %1106
    %v1109 = vlaneseq
    %v1110 = vshrl.u32 %v1109, 7
    %v1111 = vsub.s32 2, %v1110
    %v1112 = vrot.slane %v76, %v1111
    %v1113 = vmul.f32 %v855, %v1112
    %v1114 = vmul.f32 %v859, %v1112
    %v1115 = vmul.f32 %v863, %v1112
    %v1116 = vmul.f32 %v867, %v1112
    %v1117 = vmul.f32 %v871, %v1112
    %v1118 = vmul.f32 %v875, %v1112
    %v1119 = vmul.f32 %v879, %v1112
    %v1120 = vmul.f32 %v883, %v1112
    %v1121 = vmul.f32 %v887, %v1112
    %v1122 = vmul.f32 %v891, %v1112
    %v1123 = vmul.f32 %v895, %v1112
    %v1124 = vmul.f32 %v899, %v1112
    %v1125 = vmul.f32 %v903, %v1112
    %v1126 = vmul.f32 %v907, %v1112
    %v1127 = vmul.f32 %v911, %v1112
    %v1128 = vmul.f32 %v915, %v1112
    %v1129 = vmul.f32 %v919, %v1112
    %v1130 = vmul.f32 %v923, %v1112
    %v1131 = vmul.f32 %v927, %v1112
    %v1132 = vmul.f32 %v931, %v1112
    %v1133 = vmul.f32 %v935, %v1112
    %v1134 = vmul.f32 %v939, %v1112
    %v1135 = vmul.f32 %v943, %v1112
    %v1136 = vmul.f32 %v947, %v1112
    %v1137 = vmul.f32 %v951, %v1112
    %v1138 = vmul.f32 %v955, %v1112
    %v1139 = vmul.f32 %v959, %v1112
    %v1140 = vmul.f32 %v963, %v1112
    %v1141 = vmul.f32 %v967, %v1112
    %v1142 = vmul.f32 %v971, %v1112
    %v1143 = vmul.f32 %v975, %v1112
    %v1144 = vmul.f32 %v979, %v1112
    %v1145 = vmul.f32 %v983, %v1112
    %v1146 = vmul.f32 %v987, %v1112
    %v1147 = vmul.f32 %v991, %v1112
    %v1148 = vmul.f32 %v995, %v1112
    %v1149 = vmul.f32 %v999, %v1112
    %v1150 = vmul.f32 %v1003, %v1112
    %v1151 = vmul.f32 %v1007, %v1112
    %v1152 = vmul.f32 %v1011, %v1112
    %v1153 = vmul.f32 %v1015, %v1112
    %v1154 = vmul.f32 %v1019, %v1112
    %v1155 = vmul.f32 %v1023, %v1112
    %v1156 = vmul.f32 %v1027, %v1112
    %v1157 = vmul.f32 %v1031, %v1112
    %v1158 = vmul.f32 %v1035, %v1112
    %v1159 = vmul.f32 %v1039, %v1112
    %v1160 = vmul.f32 %v1043, %v1112
    %v1161 = vmul.f32 %v1047, %v1112
    %v1162 = vmul.f32 %v1051, %v1112
    %v1163 = vmul.f32 %v1055, %v1112
    %v1164 = vmul.f32 %v1059, %v1112
    %v1165 = vmul.f32 %v1063, %v1112
    %v1166 = vmul.f32 %v1067, %v1112
    %v1167 = vmul.f32 %v1071, %v1112
    %v1168 = vmul.f32 %v1075, %v1112
    %v1169 = vmul.f32 %v1079, %v1112
    %v1170 = vmul.f32 %v1083, %v1112
    %v1171 = vmul.f32 %v1087, %v1112
    %v1172 = vmul.f32 %v1091, %v1112
    %v1173 = vmul.f32 %v1095, %v1112
    %v1174 = vmul.f32 %v1099, %v1112
    %v1175 = vmul.f32 %v1103, %v1112
    %v1176 = vmul.f32 %v1107, %v1112
    %v1177 = vadd.f32 %v789, %v1113
    %v1178 = vadd.f32 %v790, %v1114
    %v1179 = vadd.f32 %v791, %v1115
    %v1180 = vadd.f32 %v792, %v1116
    %v1181 = vadd.f32 %v793, %v1117
    %v1182 = vadd.f32 %v794, %v1118
    %v1183 = vadd.f32 %v795, %v1119
    %v1184 = vadd.f32 %v796, %v1120
    %v1185 = vadd.f32 %v797, %v1121
    %v1186 = vadd.f32 %v798, %v1122
    %v1187 = vadd.f32 %v799, %v1123
    %v1188 = vadd.f32 %v800, %v1124
    %v1189 = vadd.f32 %v801, %v1125
    %v1190 = vadd.f32 %v802, %v1126
    %v1191 = vadd.f32 %v803, %v1127
    %v1192 = vadd.f32 %v804, %v1128
    %v1193 = vadd.f32 %v805, %v1129
    %v1194 = vadd.f32 %v806, %v1130
    %v1195 = vadd.f32 %v807, %v1131
    %v1196 = vadd.f32 %v808, %v1132
    %v1197 = vadd.f32 %v809, %v1133
    %v1198 = vadd.f32 %v810, %v1134
    %v1199 = vadd.f32 %v811, %v1135
    %v1200 = vadd.f32 %v812, %v1136
    %v1201 = vadd.f32 %v813, %v1137
    %v1202 = vadd.f32 %v814, %v1138
    %v1203 = vadd.f32 %v815, %v1139
    %v1204 = vadd.f32 %v816, %v1140
    %v1205 = vadd.f32 %v817, %v1141
    %v1206 = vadd.f32 %v818, %v1142
    %v1207 = vadd.f32 %v819, %v1143
    %v1208 = vadd.f32 %v820, %v1144
    %v1209 = vadd.f32 %v821, %v1145
    %v1210 = vadd.f32 %v822, %v1146
    %v1211 = vadd.f32 %v823, %v1147
    %v1212 = vadd.f32 %v824, %v1148
    %v1213 = vadd.f32 %v825, %v1149
    %v1214 = vadd.f32 %v826, %v1150
    %v1215 = vadd.f32 %v827, %v1151
    %v1216 = vadd.f32 %v828, %v1152
    %v1217 = vadd.f32 %v829, %v1153
    %v1218 = vadd.f32 %v830, %v1154
    %v1219 = vadd.f32 %v831, %v1155
    %v1220 = vadd.f32 %v832, %v1156
    %v1221 = vadd.f32 %v833, %v1157
    %v1222 = vadd.f32 %v834, %v1158
    %v1223 = vadd.f32 %v835, %v1159
    %v1224 = vadd.f32 %v836, %v1160
    %v1225 = vadd.f32 %v837, %v1161
    %v1226 = vadd.f32 %v838, %v1162
    %v1227 = vadd.f32 %v839, %v1163
    %v1228 = vadd.f32 %v840, %v1164
    %v1229 = vadd.f32 %v841, %v1165
    %v1230 = vadd.f32 %v842, %v1166
    %v1231 = vadd.f32 %v843, %v1167
    %v1232 = vadd.f32 %v844, %v1168
    %v1233 = vadd.f32 %v845, %v1169
    %v1234 = vadd.f32 %v846, %v1170
    %v1235 = vadd.f32 %v847, %v1171
    %v1236 = vadd.f32 %v848, %v1172
    %v1237 = vadd.f32 %v849, %v1173
    %v1238 = vadd.f32 %v850, %v1174
    %v1239 = vadd.f32 %v851, %v1175
    %v1240 = vadd.f32 %v852, %v1176
    %1241 = vset.pattern.permute.xlu0 3
    %1242 = vperm.xlu0 %1241, %v12
    %v1243 = vpop.permute.xlu0 %1242
    %1245 = vset.pattern.permute.xlu0 3
    %1246 = vperm.xlu0 %1245, %v13
    %v1247 = vpop.permute.xlu0 %1246
    %1249 = vset.pattern.permute.xlu0 3
    %1250 = vperm.xlu0 %1249, %v14
    %v1251 = vpop.permute.xlu0 %1250
    %1253 = vset.pattern.permute.xlu0 3
    %1254 = vperm.xlu0 %1253, %v15
    %v1255 = vpop.permute.xlu0 %1254
    %1257 = vset.pattern.permute.xlu0 3
    %1258 = vperm.xlu0 %1257, %v16
    %v1259 = vpop.permute.xlu0 %1258
    %1261 = vset.pattern.permute.xlu0 3
    %1262 = vperm.xlu0 %1261, %v17
    %v1263 = vpop.permute.xlu0 %1262
    %1265 = vset.pattern.permute.xlu0 3
    %1266 = vperm.xlu0 %1265, %v18
    %v1267 = vpop.permute.xlu0 %1266
    %1269 = vset.pattern.permute.xlu0 3
    %1270 = vperm.xlu0 %1269, %v19
    %v1271 = vpop.permute.xlu0 %1270
    %1273 = vset.pattern.permute.xlu0 3
    %1274 = vperm.xlu0 %1273, %v20
    %v1275 = vpop.permute.xlu0 %1274
    %1277 = vset.pattern.permute.xlu0 3
    %1278 = vperm.xlu0 %1277, %v21
    %v1279 = vpop.permute.xlu0 %1278
    %1281 = vset.pattern.permute.xlu0 3
    %1282 = vperm.xlu0 %1281, %v22
    %v1283 = vpop.permute.xlu0 %1282
    %1285 = vset.pattern.permute.xlu0 3
    %1286 = vperm.xlu0 %1285, %v23
    %v1287 = vpop.permute.xlu0 %1286
    %1289 = vset.pattern.permute.xlu0 3
    %1290 = vperm.xlu0 %1289, %v24
    %v1291 = vpop.permute.xlu0 %1290
    %1293 = vset.pattern.permute.xlu0 3
    %1294 = vperm.xlu0 %1293, %v25
    %v1295 = vpop.permute.xlu0 %1294
    %1297 = vset.pattern.permute.xlu0 3
    %1298 = vperm.xlu0 %1297, %v26
    %v1299 = vpop.permute.xlu0 %1298
    %1301 = vset.pattern.permute.xlu0 3
    %1302 = vperm.xlu0 %1301, %v27
    %v1303 = vpop.permute.xlu0 %1302
    %1305 = vset.pattern.permute.xlu0 3
    %1306 = vperm.xlu0 %1305, %v28
    %v1307 = vpop.permute.xlu0 %1306
    %1309 = vset.pattern.permute.xlu0 3
    %1310 = vperm.xlu0 %1309, %v29
    %v1311 = vpop.permute.xlu0 %1310
    %1313 = vset.pattern.permute.xlu0 3
    %1314 = vperm.xlu0 %1313, %v30
    %v1315 = vpop.permute.xlu0 %1314
    %1317 = vset.pattern.permute.xlu0 3
    %1318 = vperm.xlu0 %1317, %v31
    %v1319 = vpop.permute.xlu0 %1318
    %1321 = vset.pattern.permute.xlu0 3
    %1322 = vperm.xlu0 %1321, %v32
    %v1323 = vpop.permute.xlu0 %1322
    %1325 = vset.pattern.permute.xlu0 3
    %1326 = vperm.xlu0 %1325, %v33
    %v1327 = vpop.permute.xlu0 %1326
    %1329 = vset.pattern.permute.xlu0 3
    %1330 = vperm.xlu0 %1329, %v34
    %v1331 = vpop.permute.xlu0 %1330
    %1333 = vset.pattern.permute.xlu0 3
    %1334 = vperm.xlu0 %1333, %v35
    %v1335 = vpop.permute.xlu0 %1334
    %1337 = vset.pattern.permute.xlu0 3
    %1338 = vperm.xlu0 %1337, %v36
    %v1339 = vpop.permute.xlu0 %1338
    %1341 = vset.pattern.permute.xlu0 3
    %1342 = vperm.xlu0 %1341, %v37
    %v1343 = vpop.permute.xlu0 %1342
    %1345 = vset.pattern.permute.xlu0 3
    %1346 = vperm.xlu0 %1345, %v38
    %v1347 = vpop.permute.xlu0 %1346
    %1349 = vset.pattern.permute.xlu0 3
    %1350 = vperm.xlu0 %1349, %v39
    %v1351 = vpop.permute.xlu0 %1350
    %1353 = vset.pattern.permute.xlu0 3
    %1354 = vperm.xlu0 %1353, %v40
    %v1355 = vpop.permute.xlu0 %1354
    %1357 = vset.pattern.permute.xlu0 3
    %1358 = vperm.xlu0 %1357, %v41
    %v1359 = vpop.permute.xlu0 %1358
    %1361 = vset.pattern.permute.xlu0 3
    %1362 = vperm.xlu0 %1361, %v42
    %v1363 = vpop.permute.xlu0 %1362
    %1365 = vset.pattern.permute.xlu0 3
    %1366 = vperm.xlu0 %1365, %v43
    %v1367 = vpop.permute.xlu0 %1366
    %1369 = vset.pattern.permute.xlu0 3
    %1370 = vperm.xlu0 %1369, %v44
    %v1371 = vpop.permute.xlu0 %1370
    %1373 = vset.pattern.permute.xlu0 3
    %1374 = vperm.xlu0 %1373, %v45
    %v1375 = vpop.permute.xlu0 %1374
    %1377 = vset.pattern.permute.xlu0 3
    %1378 = vperm.xlu0 %1377, %v46
    %v1379 = vpop.permute.xlu0 %1378
    %1381 = vset.pattern.permute.xlu0 3
    %1382 = vperm.xlu0 %1381, %v47
    %v1383 = vpop.permute.xlu0 %1382
    %1385 = vset.pattern.permute.xlu0 3
    %1386 = vperm.xlu0 %1385, %v48
    %v1387 = vpop.permute.xlu0 %1386
    %1389 = vset.pattern.permute.xlu0 3
    %1390 = vperm.xlu0 %1389, %v49
    %v1391 = vpop.permute.xlu0 %1390
    %1393 = vset.pattern.permute.xlu0 3
    %1394 = vperm.xlu0 %1393, %v50
    %v1395 = vpop.permute.xlu0 %1394
    %1397 = vset.pattern.permute.xlu0 3
    %1398 = vperm.xlu0 %1397, %v51
    %v1399 = vpop.permute.xlu0 %1398
    %1401 = vset.pattern.permute.xlu0 3
    %1402 = vperm.xlu0 %1401, %v52
    %v1403 = vpop.permute.xlu0 %1402
    %1405 = vset.pattern.permute.xlu0 3
    %1406 = vperm.xlu0 %1405, %v53
    %v1407 = vpop.permute.xlu0 %1406
    %1409 = vset.pattern.permute.xlu0 3
    %1410 = vperm.xlu0 %1409, %v54
    %v1411 = vpop.permute.xlu0 %1410
    %1413 = vset.pattern.permute.xlu0 3
    %1414 = vperm.xlu0 %1413, %v55
    %v1415 = vpop.permute.xlu0 %1414
    %1417 = vset.pattern.permute.xlu0 3
    %1418 = vperm.xlu0 %1417, %v56
    %v1419 = vpop.permute.xlu0 %1418
    %1421 = vset.pattern.permute.xlu0 3
    %1422 = vperm.xlu0 %1421, %v57
    %v1423 = vpop.permute.xlu0 %1422
    %1425 = vset.pattern.permute.xlu0 3
    %1426 = vperm.xlu0 %1425, %v58
    %v1427 = vpop.permute.xlu0 %1426
    %1429 = vset.pattern.permute.xlu0 3
    %1430 = vperm.xlu0 %1429, %v59
    %v1431 = vpop.permute.xlu0 %1430
    %1433 = vset.pattern.permute.xlu0 3
    %1434 = vperm.xlu0 %1433, %v60
    %v1435 = vpop.permute.xlu0 %1434
    %1437 = vset.pattern.permute.xlu0 3
    %1438 = vperm.xlu0 %1437, %v61
    %v1439 = vpop.permute.xlu0 %1438
    %1441 = vset.pattern.permute.xlu0 3
    %1442 = vperm.xlu0 %1441, %v62
    %v1443 = vpop.permute.xlu0 %1442
    %1445 = vset.pattern.permute.xlu0 3
    %1446 = vperm.xlu0 %1445, %v63
    %v1447 = vpop.permute.xlu0 %1446
    %1449 = vset.pattern.permute.xlu0 3
    %1450 = vperm.xlu0 %1449, %v64
    %v1451 = vpop.permute.xlu0 %1450
    %1453 = vset.pattern.permute.xlu0 3
    %1454 = vperm.xlu0 %1453, %v65
    %v1455 = vpop.permute.xlu0 %1454
    %1457 = vset.pattern.permute.xlu0 3
    %1458 = vperm.xlu0 %1457, %v66
    %v1459 = vpop.permute.xlu0 %1458
    %1461 = vset.pattern.permute.xlu0 3
    %1462 = vperm.xlu0 %1461, %v67
    %v1463 = vpop.permute.xlu0 %1462
    %1465 = vset.pattern.permute.xlu0 3
    %1466 = vperm.xlu0 %1465, %v68
    %v1467 = vpop.permute.xlu0 %1466
    %1469 = vset.pattern.permute.xlu0 3
    %1470 = vperm.xlu0 %1469, %v69
    %v1471 = vpop.permute.xlu0 %1470
    %1473 = vset.pattern.permute.xlu0 3
    %1474 = vperm.xlu0 %1473, %v70
    %v1475 = vpop.permute.xlu0 %1474
    %1477 = vset.pattern.permute.xlu0 3
    %1478 = vperm.xlu0 %1477, %v71
    %v1479 = vpop.permute.xlu0 %1478
    %1481 = vset.pattern.permute.xlu0 3
    %1482 = vperm.xlu0 %1481, %v72
    %v1483 = vpop.permute.xlu0 %1482
    %1485 = vset.pattern.permute.xlu0 3
    %1486 = vperm.xlu0 %1485, %v73
    %v1487 = vpop.permute.xlu0 %1486
    %1489 = vset.pattern.permute.xlu0 3
    %1490 = vperm.xlu0 %1489, %v74
    %v1491 = vpop.permute.xlu0 %1490
    %1493 = vset.pattern.permute.xlu0 3
    %1494 = vperm.xlu0 %1493, %v75
    %v1495 = vpop.permute.xlu0 %1494
    %v1497 = vlaneseq
    %v1498 = vshrl.u32 %v1497, 7
    %v1499 = vsub.s32 3, %v1498
    %v1500 = vrot.slane %v76, %v1499
    %v1501 = vmul.f32 %v1243, %v1500
    %v1502 = vmul.f32 %v1247, %v1500
    %v1503 = vmul.f32 %v1251, %v1500
    %v1504 = vmul.f32 %v1255, %v1500
    %v1505 = vmul.f32 %v1259, %v1500
    %v1506 = vmul.f32 %v1263, %v1500
    %v1507 = vmul.f32 %v1267, %v1500
    %v1508 = vmul.f32 %v1271, %v1500
    %v1509 = vmul.f32 %v1275, %v1500
    %v1510 = vmul.f32 %v1279, %v1500
    %v1511 = vmul.f32 %v1283, %v1500
    %v1512 = vmul.f32 %v1287, %v1500
    %v1513 = vmul.f32 %v1291, %v1500
    %v1514 = vmul.f32 %v1295, %v1500
    %v1515 = vmul.f32 %v1299, %v1500
    %v1516 = vmul.f32 %v1303, %v1500
    %v1517 = vmul.f32 %v1307, %v1500
    %v1518 = vmul.f32 %v1311, %v1500
    %v1519 = vmul.f32 %v1315, %v1500
    %v1520 = vmul.f32 %v1319, %v1500
    %v1521 = vmul.f32 %v1323, %v1500
    %v1522 = vmul.f32 %v1327, %v1500
    %v1523 = vmul.f32 %v1331, %v1500
    %v1524 = vmul.f32 %v1335, %v1500
    %v1525 = vmul.f32 %v1339, %v1500
    %v1526 = vmul.f32 %v1343, %v1500
    %v1527 = vmul.f32 %v1347, %v1500
    %v1528 = vmul.f32 %v1351, %v1500
    %v1529 = vmul.f32 %v1355, %v1500
    %v1530 = vmul.f32 %v1359, %v1500
    %v1531 = vmul.f32 %v1363, %v1500
    %v1532 = vmul.f32 %v1367, %v1500
    %v1533 = vmul.f32 %v1371, %v1500
    %v1534 = vmul.f32 %v1375, %v1500
    %v1535 = vmul.f32 %v1379, %v1500
    %v1536 = vmul.f32 %v1383, %v1500
    %v1537 = vmul.f32 %v1387, %v1500
    %v1538 = vmul.f32 %v1391, %v1500
    %v1539 = vmul.f32 %v1395, %v1500
    %v1540 = vmul.f32 %v1399, %v1500
    %v1541 = vmul.f32 %v1403, %v1500
    %v1542 = vmul.f32 %v1407, %v1500
    %v1543 = vmul.f32 %v1411, %v1500
    %v1544 = vmul.f32 %v1415, %v1500
    %v1545 = vmul.f32 %v1419, %v1500
    %v1546 = vmul.f32 %v1423, %v1500
    %v1547 = vmul.f32 %v1427, %v1500
    %v1548 = vmul.f32 %v1431, %v1500
    %v1549 = vmul.f32 %v1435, %v1500
    %v1550 = vmul.f32 %v1439, %v1500
    %v1551 = vmul.f32 %v1443, %v1500
    %v1552 = vmul.f32 %v1447, %v1500
    %v1553 = vmul.f32 %v1451, %v1500
    %v1554 = vmul.f32 %v1455, %v1500
    %v1555 = vmul.f32 %v1459, %v1500
    %v1556 = vmul.f32 %v1463, %v1500
    %v1557 = vmul.f32 %v1467, %v1500
    %v1558 = vmul.f32 %v1471, %v1500
    %v1559 = vmul.f32 %v1475, %v1500
    %v1560 = vmul.f32 %v1479, %v1500
    %v1561 = vmul.f32 %v1483, %v1500
    %v1562 = vmul.f32 %v1487, %v1500
    %v1563 = vmul.f32 %v1491, %v1500
    %v1564 = vmul.f32 %v1495, %v1500
    %v1565 = vadd.f32 %v1177, %v1501
    %v1566 = vadd.f32 %v1178, %v1502
    %v1567 = vadd.f32 %v1179, %v1503
    %v1568 = vadd.f32 %v1180, %v1504
    %v1569 = vadd.f32 %v1181, %v1505
    %v1570 = vadd.f32 %v1182, %v1506
    %v1571 = vadd.f32 %v1183, %v1507
    %v1572 = vadd.f32 %v1184, %v1508
    %v1573 = vadd.f32 %v1185, %v1509
    %v1574 = vadd.f32 %v1186, %v1510
    %v1575 = vadd.f32 %v1187, %v1511
    %v1576 = vadd.f32 %v1188, %v1512
    %v1577 = vadd.f32 %v1189, %v1513
    %v1578 = vadd.f32 %v1190, %v1514
    %v1579 = vadd.f32 %v1191, %v1515
    %v1580 = vadd.f32 %v1192, %v1516
    %v1581 = vadd.f32 %v1193, %v1517
    %v1582 = vadd.f32 %v1194, %v1518
    %v1583 = vadd.f32 %v1195, %v1519
    %v1584 = vadd.f32 %v1196, %v1520
    %v1585 = vadd.f32 %v1197, %v1521
    %v1586 = vadd.f32 %v1198, %v1522
    %v1587 = vadd.f32 %v1199, %v1523
    %v1588 = vadd.f32 %v1200, %v1524
    %v1589 = vadd.f32 %v1201, %v1525
    %v1590 = vadd.f32 %v1202, %v1526
    %v1591 = vadd.f32 %v1203, %v1527
    %v1592 = vadd.f32 %v1204, %v1528
    %v1593 = vadd.f32 %v1205, %v1529
    %v1594 = vadd.f32 %v1206, %v1530
    %v1595 = vadd.f32 %v1207, %v1531
    %v1596 = vadd.f32 %v1208, %v1532
    %v1597 = vadd.f32 %v1209, %v1533
    %v1598 = vadd.f32 %v1210, %v1534
    %v1599 = vadd.f32 %v1211, %v1535
    %v1600 = vadd.f32 %v1212, %v1536
    %v1601 = vadd.f32 %v1213, %v1537
    %v1602 = vadd.f32 %v1214, %v1538
    %v1603 = vadd.f32 %v1215, %v1539
    %v1604 = vadd.f32 %v1216, %v1540
    %v1605 = vadd.f32 %v1217, %v1541
    %v1606 = vadd.f32 %v1218, %v1542
    %v1607 = vadd.f32 %v1219, %v1543
    %v1608 = vadd.f32 %v1220, %v1544
    %v1609 = vadd.f32 %v1221, %v1545
    %v1610 = vadd.f32 %v1222, %v1546
    %v1611 = vadd.f32 %v1223, %v1547
    %v1612 = vadd.f32 %v1224, %v1548
    %v1613 = vadd.f32 %v1225, %v1549
    %v1614 = vadd.f32 %v1226, %v1550
    %v1615 = vadd.f32 %v1227, %v1551
    %v1616 = vadd.f32 %v1228, %v1552
    %v1617 = vadd.f32 %v1229, %v1553
    %v1618 = vadd.f32 %v1230, %v1554
    %v1619 = vadd.f32 %v1231, %v1555
    %v1620 = vadd.f32 %v1232, %v1556
    %v1621 = vadd.f32 %v1233, %v1557
    %v1622 = vadd.f32 %v1234, %v1558
    %v1623 = vadd.f32 %v1235, %v1559
    %v1624 = vadd.f32 %v1236, %v1560
    %v1625 = vadd.f32 %v1237, %v1561
    %v1626 = vadd.f32 %v1238, %v1562
    %v1627 = vadd.f32 %v1239, %v1563
    %v1628 = vadd.f32 %v1240, %v1564
    %v1629 = vlaneseq
    %v1630 = vshrl.u32 %v1629, 7
    %v1631 = vsub.s32 4, %v1630
    %v1632 = vrot.slane %v76, %v1631
    %v1633 = vadd.f32 %v1565, %v1632
    %v1634 = vadd.f32 %v1566, %v1632
    %v1635 = vadd.f32 %v1567, %v1632
    %v1636 = vadd.f32 %v1568, %v1632
    %v1637 = vadd.f32 %v1569, %v1632
    %v1638 = vadd.f32 %v1570, %v1632
    %v1639 = vadd.f32 %v1571, %v1632
    %v1640 = vadd.f32 %v1572, %v1632
    %v1641 = vadd.f32 %v1573, %v1632
    %v1642 = vadd.f32 %v1574, %v1632
    %v1643 = vadd.f32 %v1575, %v1632
    %v1644 = vadd.f32 %v1576, %v1632
    %v1645 = vadd.f32 %v1577, %v1632
    %v1646 = vadd.f32 %v1578, %v1632
    %v1647 = vadd.f32 %v1579, %v1632
    %v1648 = vadd.f32 %v1580, %v1632
    %v1649 = vadd.f32 %v1581, %v1632
    %v1650 = vadd.f32 %v1582, %v1632
    %v1651 = vadd.f32 %v1583, %v1632
    %v1652 = vadd.f32 %v1584, %v1632
    %v1653 = vadd.f32 %v1585, %v1632
    %v1654 = vadd.f32 %v1586, %v1632
    %v1655 = vadd.f32 %v1587, %v1632
    %v1656 = vadd.f32 %v1588, %v1632
    %v1657 = vadd.f32 %v1589, %v1632
    %v1658 = vadd.f32 %v1590, %v1632
    %v1659 = vadd.f32 %v1591, %v1632
    %v1660 = vadd.f32 %v1592, %v1632
    %v1661 = vadd.f32 %v1593, %v1632
    %v1662 = vadd.f32 %v1594, %v1632
    %v1663 = vadd.f32 %v1595, %v1632
    %v1664 = vadd.f32 %v1596, %v1632
    %v1665 = vadd.f32 %v1597, %v1632
    %v1666 = vadd.f32 %v1598, %v1632
    %v1667 = vadd.f32 %v1599, %v1632
    %v1668 = vadd.f32 %v1600, %v1632
    %v1669 = vadd.f32 %v1601, %v1632
    %v1670 = vadd.f32 %v1602, %v1632
    %v1671 = vadd.f32 %v1603, %v1632
    %v1672 = vadd.f32 %v1604, %v1632
    %v1673 = vadd.f32 %v1605, %v1632
    %v1674 = vadd.f32 %v1606, %v1632
    %v1675 = vadd.f32 %v1607, %v1632
    %v1676 = vadd.f32 %v1608, %v1632
    %v1677 = vadd.f32 %v1609, %v1632
    %v1678 = vadd.f32 %v1610, %v1632
    %v1679 = vadd.f32 %v1611, %v1632
    %v1680 = vadd.f32 %v1612, %v1632
    %v1681 = vadd.f32 %v1613, %v1632
    %v1682 = vadd.f32 %v1614, %v1632
    %v1683 = vadd.f32 %v1615, %v1632
    %v1684 = vadd.f32 %v1616, %v1632
    %v1685 = vadd.f32 %v1617, %v1632
    %v1686 = vadd.f32 %v1618, %v1632
    %v1687 = vadd.f32 %v1619, %v1632
    %v1688 = vadd.f32 %v1620, %v1632
    %v1689 = vadd.f32 %v1621, %v1632
    %v1690 = vadd.f32 %v1622, %v1632
    %v1691 = vadd.f32 %v1623, %v1632
    %v1692 = vadd.f32 %v1624, %v1632
    %v1693 = vadd.f32 %v1625, %v1632
    %v1694 = vadd.f32 %v1626, %v1632
    %v1695 = vadd.f32 %v1627, %v1632
    %v1696 = vadd.f32 %v1628, %v1632
    %v1697 = vand.u32 2147483647, %v1633
    %vm1698 = vcmp.le.f32.partialorder %v1697, 0.7853982
    %vm1699 = vcmp.lt.s32.totalorder %v1633, 0
    %v1700 = vand.u32 %v1633, 2139095040
    %v1701 = vshrl.u32 %v1700, 23
    %v1702 = vsub.s32 %v1701, 127
    %v1703 = vand.u32 2147483647, %v1633
    %v1704 = vand.u32 %v1703, 8388607
    %v1705 = vor.u32 %v1704, 8388608
    %v1706 = vsub.s32 0, %v1705
    %v1707 = vadd.s32 %v1702, 1
    %vm1708 = vcmp.gt.s32.totalorder %v1707, 0
    %v1709 = vsel %vm1708, %v1707, 0
    %v1710 = vshrl.u32 %v1709, 5
    %v1711 = vand.u32 %v1709, 31
    %v1712 = vsub.s32 32, %v1711
    %v1713 = vshrl.u32 683565275, %v1712
    %v1714 = vshll.u32 683565275, %v1711
    %v1715 = vshrl.u32 2475754826, %v1712
    %v1716 = vor.u32 %v1714, %v1715
    %v1717 = vshll.u32 2475754826, %v1711
    %v1718 = vshrl.u32 2131351028, %v1712
    %v1719 = vor.u32 %v1717, %v1718
    %v1720 = vshll.u32 2131351028, %v1711
    %v1721 = vshrl.u32 2102212464, %v1712
    %v1722 = vor.u32 %v1720, %v1721
    %v1723 = vshll.u32 2102212464, %v1711
    %v1724 = vshrl.u32 920167782, %v1712
    %v1725 = vor.u32 %v1723, %v1724
    %v1726 = vshll.u32 920167782, %v1711
    %v1727 = vshrl.u32 1326507024, %v1712
    %v1728 = vor.u32 %v1726, %v1727
    %vm1729 = vcmp.lt.s32.totalorder %v1710, 1
    %vm1730 = vcmp.lt.s32.totalorder %v1710, 2
    %vm1731 = vcmp.lt.s32.totalorder %v1710, 3
    %vm1732 = vcmp.lt.s32.totalorder %v1710, 4
    %v1733 = vsel %vm1729, %v1713, %v1716
    %v1734 = vsel %vm1732, %v1722, 2102212464
    %v1735 = vsel %vm1731, %v1719, %v1734
    %v1736 = vsel %vm1730, %v1733, %v1735
    %v1737 = vsel %vm1729, %v1716, %v1719
    %v1738 = vsel %vm1732, %v1725, 920167782
    %v1739 = vsel %vm1731, %v1722, %v1738
    %v1740 = vsel %vm1730, %v1737, %v1739
    %v1741 = vsel %vm1729, %v1719, %v1722
    %v1742 = vsel %vm1732, %v1728, 1326507024
    %v1743 = vsel %vm1731, %v1725, %v1742
    %v1744 = vsel %vm1730, %v1741, %v1743
    %v1745 = vshll.u32 %v1705, 8
    %v1746 = vmul.u32.u64.compose %v1745, %v1744
    %v1747 = vextract.low.u32 %v1746
    %v1748 = vextract.high.u32 %v1746
    %v1749 = vmul.u32.u64.compose %v1745, %v1740
    %v1750 = vextract.low.u32 %v1749
    %v1751 = vextract.high.u32 %v1749
    %v1752 = vmul.u32 %v1745, %v1736
    %v1753 = vadd.s32 %v1748, %v1750
    %vm1754 = vc.u32 %v1748, %v1750
    %v1755 = vadd.s32 %v1751, 1
    %v1756 = vsel %vm1754, %v1755, %v1751
    %v1757 = vadd.s32 %v1752, %v1756
    %v1758 = vadd.s32 %v1757, 536870912
    %v1759 = vshrl.u32 %v1758, 30
    %v1760 = vshll.u32 %v1759, 30
    %v1761 = vsub.s32 %v1757, %v1760
    %vm1762 = vcmp.lt.s32.totalorder %v1761, 0
    %v1763 = vsub.s32 0, %v1761
    %v1764 = vsel %vm1762, %v1763, %v1761
    %v1765 = vclz %v1764
    %v1766 = vsub.s32 %v1765, 2
    %vm1767 = vcmp.gt.s32.totalorder 0, %v1766
    %v1768 = vsel %vm1767, 0, %v1766
    %v1769 = vsub.s32 32, %v1768
    %v1770 = vshll.u32 %v1761, %v1768
    %v1771 = vshrl.u32 %v1753, %v1769
    %v1772 = vor.u32 %v1770, %v1771
    %v1773 = vsub.s32 4294967266, %v1768
    %v1774 = vadd.s32 %v1773, 127
    %v1775 = vshll.u32 %v1774, 23
    %v1776 = vor.u32 4788187, %v1775
    %v1777 = vand.u32 2147483647, %v1776
    %v1779 = vcvt.s32.f32 %v1772
    %v1780 = vmul.f32 %v1779, %v1777
    %v1781 = vxor.u32 %v1780, 2147483648
    %v1782 = vsel %vm1699, %v1781, %v1780
    %v1783 = vsub.s32 4, %v1759
    %v1784 = vsel %vm1699, %v1783, %v1759
    %v1785 = vsel %vm1698, %v1633, %v1782
    %v1786 = vsel %vm1698, 0, %v1784
    %v1787 = vcosq.f32.pop %v1785
    %v1788 = vsinq.f32.pop %v1785
    %vm1789 = vweird.f32 %v1633
    %v1790 = vadd.s32 %v1786, 3
    %v1791 = vand.u32 %v1790, 3
    %vm1792 = vcmp.lt.s32.totalorder %v1791, 2
    %vm1793 = vcmp.eq.s32.totalorder %v1791, 0
    %v1794 = vxor.u32 %v1788, 2147483648
    %v1795 = vsel %vm1793, %v1787, %v1794
    %vm1796 = vcmp.eq.s32.totalorder %v1791, 2
    %v1797 = vxor.u32 %v1787, 2147483648
    %v1798 = vsel %vm1796, %v1797, %v1788
    %v1799 = vsel %vm1792, %v1795, %v1798
    %v1800 = vsel %vm1789, nan, %v1799
    %v1801 = vand.u32 2147483647, %v1634
    %vm1802 = vcmp.le.f32.partialorder %v1801, 0.7853982
    %vm1803 = vcmp.lt.s32.totalorder %v1634, 0
    %v1804 = vand.u32 %v1634, 2139095040
    %v1805 = vshrl.u32 %v1804, 23
    %v1806 = vsub.s32 %v1805, 127
    %v1807 = vand.u32 2147483647, %v1634
    %v1808 = vand.u32 %v1807, 8388607
    %v1809 = vor.u32 %v1808, 8388608
    %v1810 = vsub.s32 0, %v1809
    %v1811 = vadd.s32 %v1806, 1
    %vm1812 = vcmp.gt.s32.totalorder %v1811, 0
    %v1813 = vsel %vm1812, %v1811, 0
    %v1814 = vshrl.u32 %v1813, 5
    %v1815 = vand.u32 %v1813, 31
    %v1816 = vsub.s32 32, %v1815
    %v1817 = vshrl.u32 683565275, %v1816
    %v1818 = vshll.u32 683565275, %v1815
    %v1819 = vshrl.u32 2475754826, %v1816
    %v1820 = vor.u32 %v1818, %v1819
    %v1821 = vshll.u32 2475754826, %v1815
    %v1822 = vshrl.u32 2131351028, %v1816
    %v1823 = vor.u32 %v1821, %v1822
    %v1824 = vshll.u32 2131351028, %v1815
    %v1825 = vshrl.u32 2102212464, %v1816
    %v1826 = vor.u32 %v1824, %v1825
    %v1827 = vshll.u32 2102212464, %v1815
    %v1828 = vshrl.u32 920167782, %v1816
    %v1829 = vor.u32 %v1827, %v1828
    %v1830 = vshll.u32 920167782, %v1815
    %v1831 = vshrl.u32 1326507024, %v1816
    %v1832 = vor.u32 %v1830, %v1831
    %vm1833 = vcmp.lt.s32.totalorder %v1814, 1
    %vm1834 = vcmp.lt.s32.totalorder %v1814, 2
    %vm1835 = vcmp.lt.s32.totalorder %v1814, 3
    %vm1836 = vcmp.lt.s32.totalorder %v1814, 4
    %v1837 = vsel %vm1833, %v1817, %v1820
    %v1838 = vsel %vm1836, %v1826, 2102212464
    %v1839 = vsel %vm1835, %v1823, %v1838
    %v1840 = vsel %vm1834, %v1837, %v1839
    %v1841 = vsel %vm1833, %v1820, %v1823
    %v1842 = vsel %vm1836, %v1829, 920167782
    %v1843 = vsel %vm1835, %v1826, %v1842
    %v1844 = vsel %vm1834, %v1841, %v1843
    %v1845 = vsel %vm1833, %v1823, %v1826
    %v1846 = vsel %vm1836, %v1832, 1326507024
    %v1847 = vsel %vm1835, %v1829, %v1846
    %v1848 = vsel %vm1834, %v1845, %v1847
    %v1849 = vshll.u32 %v1809, 8
    %v1850 = vmul.u32.u64.compose %v1849, %v1848
    %v1851 = vextract.low.u32 %v1850
    %v1852 = vextract.high.u32 %v1850
    %v1853 = vmul.u32.u64.compose %v1849, %v1844
    %v1854 = vextract.low.u32 %v1853
    %v1855 = vextract.high.u32 %v1853
    %v1856 = vmul.u32 %v1849, %v1840
    %v1857 = vadd.s32 %v1852, %v1854
    %vm1858 = vc.u32 %v1852, %v1854
    %v1859 = vadd.s32 %v1855, 1
    %v1860 = vsel %vm1858, %v1859, %v1855
    %v1861 = vadd.s32 %v1856, %v1860
    %v1862 = vadd.s32 %v1861, 536870912
    %v1863 = vshrl.u32 %v1862, 30
    %v1864 = vshll.u32 %v1863, 30
    %v1865 = vsub.s32 %v1861, %v1864
    %vm1866 = vcmp.lt.s32.totalorder %v1865, 0
    %v1867 = vsub.s32 0, %v1865
    %v1868 = vsel %vm1866, %v1867, %v1865
    %v1869 = vclz %v1868
    %v1870 = vsub.s32 %v1869, 2
    %vm1871 = vcmp.gt.s32.totalorder 0, %v1870
    %v1872 = vsel %vm1871, 0, %v1870
    %v1873 = vsub.s32 32, %v1872
    %v1874 = vshll.u32 %v1865, %v1872
    %v1875 = vshrl.u32 %v1857, %v1873
    %v1876 = vor.u32 %v1874, %v1875
    %v1877 = vsub.s32 4294967266, %v1872
    %v1878 = vadd.s32 %v1877, 127
    %v1879 = vshll.u32 %v1878, 23
    %v1880 = vor.u32 4788187, %v1879
    %v1881 = vand.u32 2147483647, %v1880
    %v1883 = vcvt.s32.f32 %v1876
    %v1884 = vmul.f32 %v1883, %v1881
    %v1885 = vxor.u32 %v1884, 2147483648
    %v1886 = vsel %vm1803, %v1885, %v1884
    %v1887 = vsub.s32 4, %v1863
    %v1888 = vsel %vm1803, %v1887, %v1863
    %v1889 = vsel %vm1802, %v1634, %v1886
    %v1890 = vsel %vm1802, 0, %v1888
    %v1891 = vcosq.f32.pop %v1889
    %v1892 = vsinq.f32.pop %v1889
    %vm1893 = vweird.f32 %v1634
    %v1894 = vadd.s32 %v1890, 3
    %v1895 = vand.u32 %v1894, 3
    %vm1896 = vcmp.lt.s32.totalorder %v1895, 2
    %vm1897 = vcmp.eq.s32.totalorder %v1895, 0
    %v1898 = vxor.u32 %v1892, 2147483648
    %v1899 = vsel %vm1897, %v1891, %v1898
    %vm1900 = vcmp.eq.s32.totalorder %v1895, 2
    %v1901 = vxor.u32 %v1891, 2147483648
    %v1902 = vsel %vm1900, %v1901, %v1892
    %v1903 = vsel %vm1896, %v1899, %v1902
    %v1904 = vsel %vm1893, nan, %v1903
    %v1905 = vand.u32 2147483647, %v1635
    %vm1906 = vcmp.le.f32.partialorder %v1905, 0.7853982
    %vm1907 = vcmp.lt.s32.totalorder %v1635, 0
    %v1908 = vand.u32 %v1635, 2139095040
    %v1909 = vshrl.u32 %v1908, 23
    %v1910 = vsub.s32 %v1909, 127
    %v1911 = vand.u32 2147483647, %v1635
    %v1912 = vand.u32 %v1911, 8388607
    %v1913 = vor.u32 %v1912, 8388608
    %v1914 = vsub.s32 0, %v1913
    %v1915 = vadd.s32 %v1910, 1
    %vm1916 = vcmp.gt.s32.totalorder %v1915, 0
    %v1917 = vsel %vm1916, %v1915, 0
    %v1918 = vshrl.u32 %v1917, 5
    %v1919 = vand.u32 %v1917, 31
    %v1920 = vsub.s32 32, %v1919
    %v1921 = vshrl.u32 683565275, %v1920
    %v1922 = vshll.u32 683565275, %v1919
    %v1923 = vshrl.u32 2475754826, %v1920
    %v1924 = vor.u32 %v1922, %v1923
    %v1925 = vshll.u32 2475754826, %v1919
    %v1926 = vshrl.u32 2131351028, %v1920
    %v1927 = vor.u32 %v1925, %v1926
    %v1928 = vshll.u32 2131351028, %v1919
    %v1929 = vshrl.u32 2102212464, %v1920
    %v1930 = vor.u32 %v1928, %v1929
    %v1931 = vshll.u32 2102212464, %v1919
    %v1932 = vshrl.u32 920167782, %v1920
    %v1933 = vor.u32 %v1931, %v1932
    %v1934 = vshll.u32 920167782, %v1919
    %v1935 = vshrl.u32 1326507024, %v1920
    %v1936 = vor.u32 %v1934, %v1935
    %vm1937 = vcmp.lt.s32.totalorder %v1918, 1
    %vm1938 = vcmp.lt.s32.totalorder %v1918, 2
    %vm1939 = vcmp.lt.s32.totalorder %v1918, 3
    %vm1940 = vcmp.lt.s32.totalorder %v1918, 4
    %v1941 = vsel %vm1937, %v1921, %v1924
    %v1942 = vsel %vm1940, %v1930, 2102212464
    %v1943 = vsel %vm1939, %v1927, %v1942
    %v1944 = vsel %vm1938, %v1941, %v1943
    %v1945 = vsel %vm1937, %v1924, %v1927
    %v1946 = vsel %vm1940, %v1933, 920167782
    %v1947 = vsel %vm1939, %v1930, %v1946
    %v1948 = vsel %vm1938, %v1945, %v1947
    %v1949 = vsel %vm1937, %v1927, %v1930
    %v1950 = vsel %vm1940, %v1936, 1326507024
    %v1951 = vsel %vm1939, %v1933, %v1950
    %v1952 = vsel %vm1938, %v1949, %v1951
    %v1953 = vshll.u32 %v1913, 8
    %v1954 = vmul.u32.u64.compose %v1953, %v1952
    %v1955 = vextract.low.u32 %v1954
    %v1956 = vextract.high.u32 %v1954
    %v1957 = vmul.u32.u64.compose %v1953, %v1948
    %v1958 = vextract.low.u32 %v1957
    %v1959 = vextract.high.u32 %v1957
    %v1960 = vmul.u32 %v1953, %v1944
    %v1961 = vadd.s32 %v1956, %v1958
    %vm1962 = vc.u32 %v1956, %v1958
    %v1963 = vadd.s32 %v1959, 1
    %v1964 = vsel %vm1962, %v1963, %v1959
    %v1965 = vadd.s32 %v1960, %v1964
    %v1966 = vadd.s32 %v1965, 536870912
    %v1967 = vshrl.u32 %v1966, 30
    %v1968 = vshll.u32 %v1967, 30
    %v1969 = vsub.s32 %v1965, %v1968
    %vm1970 = vcmp.lt.s32.totalorder %v1969, 0
    %v1971 = vsub.s32 0, %v1969
    %v1972 = vsel %vm1970, %v1971, %v1969
    %v1973 = vclz %v1972
    %v1974 = vsub.s32 %v1973, 2
    %vm1975 = vcmp.gt.s32.totalorder 0, %v1974
    %v1976 = vsel %vm1975, 0, %v1974
    %v1977 = vsub.s32 32, %v1976
    %v1978 = vshll.u32 %v1969, %v1976
    %v1979 = vshrl.u32 %v1961, %v1977
    %v1980 = vor.u32 %v1978, %v1979
    %v1981 = vsub.s32 4294967266, %v1976
    %v1982 = vadd.s32 %v1981, 127
    %v1983 = vshll.u32 %v1982, 23
    %v1984 = vor.u32 4788187, %v1983
    %v1985 = vand.u32 2147483647, %v1984
    %v1987 = vcvt.s32.f32 %v1980
    %v1988 = vmul.f32 %v1987, %v1985
    %v1989 = vxor.u32 %v1988, 2147483648
    %v1990 = vsel %vm1907, %v1989, %v1988
    %v1991 = vsub.s32 4, %v1967
    %v1992 = vsel %vm1907, %v1991, %v1967
    %v1993 = vsel %vm1906, %v1635, %v1990
    %v1994 = vsel %vm1906, 0, %v1992
    %v1995 = vcosq.f32.pop %v1993
    %v1996 = vsinq.f32.pop %v1993
    %vm1997 = vweird.f32 %v1635
    %v1998 = vadd.s32 %v1994, 3
    %v1999 = vand.u32 %v1998, 3
    %vm2000 = vcmp.lt.s32.totalorder %v1999, 2
    %vm2001 = vcmp.eq.s32.totalorder %v1999, 0
    %v2002 = vxor.u32 %v1996, 2147483648
    %v2003 = vsel %vm2001, %v1995, %v2002
    %vm2004 = vcmp.eq.s32.totalorder %v1999, 2
    %v2005 = vxor.u32 %v1995, 2147483648
    %v2006 = vsel %vm2004, %v2005, %v1996
    %v2007 = vsel %vm2000, %v2003, %v2006
    %v2008 = vsel %vm1997, nan, %v2007
    %v2009 = vand.u32 2147483647, %v1636
    %vm2010 = vcmp.le.f32.partialorder %v2009, 0.7853982
    %vm2011 = vcmp.lt.s32.totalorder %v1636, 0
    %v2012 = vand.u32 %v1636, 2139095040
    %v2013 = vshrl.u32 %v2012, 23
    %v2014 = vsub.s32 %v2013, 127
    %v2015 = vand.u32 2147483647, %v1636
    %v2016 = vand.u32 %v2015, 8388607
    %v2017 = vor.u32 %v2016, 8388608
    %v2018 = vsub.s32 0, %v2017
    %v2019 = vadd.s32 %v2014, 1
    %vm2020 = vcmp.gt.s32.totalorder %v2019, 0
    %v2021 = vsel %vm2020, %v2019, 0
    %v2022 = vshrl.u32 %v2021, 5
    %v2023 = vand.u32 %v2021, 31
    %v2024 = vsub.s32 32, %v2023
    %v2025 = vshrl.u32 683565275, %v2024
    %v2026 = vshll.u32 683565275, %v2023
    %v2027 = vshrl.u32 2475754826, %v2024
    %v2028 = vor.u32 %v2026, %v2027
    %v2029 = vshll.u32 2475754826, %v2023
    %v2030 = vshrl.u32 2131351028, %v2024
    %v2031 = vor.u32 %v2029, %v2030
    %v2032 = vshll.u32 2131351028, %v2023
    %v2033 = vshrl.u32 2102212464, %v2024
    %v2034 = vor.u32 %v2032, %v2033
    %v2035 = vshll.u32 2102212464, %v2023
    %v2036 = vshrl.u32 920167782, %v2024
    %v2037 = vor.u32 %v2035, %v2036
    %v2038 = vshll.u32 920167782, %v2023
    %v2039 = vshrl.u32 1326507024, %v2024
    %v2040 = vor.u32 %v2038, %v2039
    %vm2041 = vcmp.lt.s32.totalorder %v2022, 1
    %vm2042 = vcmp.lt.s32.totalorder %v2022, 2
    %vm2043 = vcmp.lt.s32.totalorder %v2022, 3
    %vm2044 = vcmp.lt.s32.totalorder %v2022, 4
    %v2045 = vsel %vm2041, %v2025, %v2028
    %v2046 = vsel %vm2044, %v2034, 2102212464
    %v2047 = vsel %vm2043, %v2031, %v2046
    %v2048 = vsel %vm2042, %v2045, %v2047
    %v2049 = vsel %vm2041, %v2028, %v2031
    %v2050 = vsel %vm2044, %v2037, 920167782
    %v2051 = vsel %vm2043, %v2034, %v2050
    %v2052 = vsel %vm2042, %v2049, %v2051
    %v2053 = vsel %vm2041, %v2031, %v2034
    %v2054 = vsel %vm2044, %v2040, 1326507024
    %v2055 = vsel %vm2043, %v2037, %v2054
    %v2056 = vsel %vm2042, %v2053, %v2055
    %v2057 = vshll.u32 %v2017, 8
    %v2058 = vmul.u32.u64.compose %v2057, %v2056
    %v2059 = vextract.low.u32 %v2058
    %v2060 = vextract.high.u32 %v2058
    %v2061 = vmul.u32.u64.compose %v2057, %v2052
    %v2062 = vextract.low.u32 %v2061
    %v2063 = vextract.high.u32 %v2061
    %v2064 = vmul.u32 %v2057, %v2048
    %v2065 = vadd.s32 %v2060, %v2062
    %vm2066 = vc.u32 %v2060, %v2062
    %v2067 = vadd.s32 %v2063, 1
    %v2068 = vsel %vm2066, %v2067, %v2063
    %v2069 = vadd.s32 %v2064, %v2068
    %v2070 = vadd.s32 %v2069, 536870912
    %v2071 = vshrl.u32 %v2070, 30
    %v2072 = vshll.u32 %v2071, 30
    %v2073 = vsub.s32 %v2069, %v2072
    %vm2074 = vcmp.lt.s32.totalorder %v2073, 0
    %v2075 = vsub.s32 0, %v2073
    %v2076 = vsel %vm2074, %v2075, %v2073
    %v2077 = vclz %v2076
    %v2078 = vsub.s32 %v2077, 2
    %vm2079 = vcmp.gt.s32.totalorder 0, %v2078
    %v2080 = vsel %vm2079, 0, %v2078
    %v2081 = vsub.s32 32, %v2080
    %v2082 = vshll.u32 %v2073, %v2080
    %v2083 = vshrl.u32 %v2065, %v2081
    %v2084 = vor.u32 %v2082, %v2083
    %v2085 = vsub.s32 4294967266, %v2080
    %v2086 = vadd.s32 %v2085, 127
    %v2087 = vshll.u32 %v2086, 23
    %v2088 = vor.u32 4788187, %v2087
    %v2089 = vand.u32 2147483647, %v2088
    %v2091 = vcvt.s32.f32 %v2084
    %v2092 = vmul.f32 %v2091, %v2089
    %v2093 = vxor.u32 %v2092, 2147483648
    %v2094 = vsel %vm2011, %v2093, %v2092
    %v2095 = vsub.s32 4, %v2071
    %v2096 = vsel %vm2011, %v2095, %v2071
    %v2097 = vsel %vm2010, %v1636, %v2094
    %v2098 = vsel %vm2010, 0, %v2096
    %v2099 = vcosq.f32.pop %v2097
    %v2100 = vsinq.f32.pop %v2097
    %vm2101 = vweird.f32 %v1636
    %v2102 = vadd.s32 %v2098, 3
    %v2103 = vand.u32 %v2102, 3
    %vm2104 = vcmp.lt.s32.totalorder %v2103, 2
    %vm2105 = vcmp.eq.s32.totalorder %v2103, 0
    %v2106 = vxor.u32 %v2100, 2147483648
    %v2107 = vsel %vm2105, %v2099, %v2106
    %vm2108 = vcmp.eq.s32.totalorder %v2103, 2
    %v2109 = vxor.u32 %v2099, 2147483648
    %v2110 = vsel %vm2108, %v2109, %v2100
    %v2111 = vsel %vm2104, %v2107, %v2110
    %v2112 = vsel %vm2101, nan, %v2111
    %v2113 = vand.u32 2147483647, %v1637
    %vm2114 = vcmp.le.f32.partialorder %v2113, 0.7853982
    %vm2115 = vcmp.lt.s32.totalorder %v1637, 0
    %v2116 = vand.u32 %v1637, 2139095040
    %v2117 = vshrl.u32 %v2116, 23
    %v2118 = vsub.s32 %v2117, 127
    %v2119 = vand.u32 2147483647, %v1637
    %v2120 = vand.u32 %v2119, 8388607
    %v2121 = vor.u32 %v2120, 8388608
    %v2122 = vsub.s32 0, %v2121
    %v2123 = vadd.s32 %v2118, 1
    %vm2124 = vcmp.gt.s32.totalorder %v2123, 0
    %v2125 = vsel %vm2124, %v2123, 0
    %v2126 = vshrl.u32 %v2125, 5
    %v2127 = vand.u32 %v2125, 31
    %v2128 = vsub.s32 32, %v2127
    %v2129 = vshrl.u32 683565275, %v2128
    %v2130 = vshll.u32 683565275, %v2127
    %v2131 = vshrl.u32 2475754826, %v2128
    %v2132 = vor.u32 %v2130, %v2131
    %v2133 = vshll.u32 2475754826, %v2127
    %v2134 = vshrl.u32 2131351028, %v2128
    %v2135 = vor.u32 %v2133, %v2134
    %v2136 = vshll.u32 2131351028, %v2127
    %v2137 = vshrl.u32 2102212464, %v2128
    %v2138 = vor.u32 %v2136, %v2137
    %v2139 = vshll.u32 2102212464, %v2127
    %v2140 = vshrl.u32 920167782, %v2128
    %v2141 = vor.u32 %v2139, %v2140
    %v2142 = vshll.u32 920167782, %v2127
    %v2143 = vshrl.u32 1326507024, %v2128
    %v2144 = vor.u32 %v2142, %v2143
    %vm2145 = vcmp.lt.s32.totalorder %v2126, 1
    %vm2146 = vcmp.lt.s32.totalorder %v2126, 2
    %vm2147 = vcmp.lt.s32.totalorder %v2126, 3
    %vm2148 = vcmp.lt.s32.totalorder %v2126, 4
    %v2149 = vsel %vm2145, %v2129, %v2132
    %v2150 = vsel %vm2148, %v2138, 2102212464
    %v2151 = vsel %vm2147, %v2135, %v2150
    %v2152 = vsel %vm2146, %v2149, %v2151
    %v2153 = vsel %vm2145, %v2132, %v2135
    %v2154 = vsel %vm2148, %v2141, 920167782
    %v2155 = vsel %vm2147, %v2138, %v2154
    %v2156 = vsel %vm2146, %v2153, %v2155
    %v2157 = vsel %vm2145, %v2135, %v2138
    %v2158 = vsel %vm2148, %v2144, 1326507024
    %v2159 = vsel %vm2147, %v2141, %v2158
    %v2160 = vsel %vm2146, %v2157, %v2159
    %v2161 = vshll.u32 %v2121, 8
    %v2162 = vmul.u32.u64.compose %v2161, %v2160
    %v2163 = vextract.low.u32 %v2162
    %v2164 = vextract.high.u32 %v2162
    %v2165 = vmul.u32.u64.compose %v2161, %v2156
    %v2166 = vextract.low.u32 %v2165
    %v2167 = vextract.high.u32 %v2165
    %v2168 = vmul.u32 %v2161, %v2152
    %v2169 = vadd.s32 %v2164, %v2166
    %vm2170 = vc.u32 %v2164, %v2166
    %v2171 = vadd.s32 %v2167, 1
    %v2172 = vsel %vm2170, %v2171, %v2167
    %v2173 = vadd.s32 %v2168, %v2172
    %v2174 = vadd.s32 %v2173, 536870912
    %v2175 = vshrl.u32 %v2174, 30
    %v2176 = vshll.u32 %v2175, 30
    %v2177 = vsub.s32 %v2173, %v2176
    %vm2178 = vcmp.lt.s32.totalorder %v2177, 0
    %v2179 = vsub.s32 0, %v2177
    %v2180 = vsel %vm2178, %v2179, %v2177
    %v2181 = vclz %v2180
    %v2182 = vsub.s32 %v2181, 2
    %vm2183 = vcmp.gt.s32.totalorder 0, %v2182
    %v2184 = vsel %vm2183, 0, %v2182
    %v2185 = vsub.s32 32, %v2184
    %v2186 = vshll.u32 %v2177, %v2184
    %v2187 = vshrl.u32 %v2169, %v2185
    %v2188 = vor.u32 %v2186, %v2187
    %v2189 = vsub.s32 4294967266, %v2184
    %v2190 = vadd.s32 %v2189, 127
    %v2191 = vshll.u32 %v2190, 23
    %v2192 = vor.u32 4788187, %v2191
    %v2193 = vand.u32 2147483647, %v2192
    %v2195 = vcvt.s32.f32 %v2188
    %v2196 = vmul.f32 %v2195, %v2193
    %v2197 = vxor.u32 %v2196, 2147483648
    %v2198 = vsel %vm2115, %v2197, %v2196
    %v2199 = vsub.s32 4, %v2175
    %v2200 = vsel %vm2115, %v2199, %v2175
    %v2201 = vsel %vm2114, %v1637, %v2198
    %v2202 = vsel %vm2114, 0, %v2200
    %v2203 = vcosq.f32.pop %v2201
    %v2204 = vsinq.f32.pop %v2201
    %vm2205 = vweird.f32 %v1637
    %v2206 = vadd.s32 %v2202, 3
    %v2207 = vand.u32 %v2206, 3
    %vm2208 = vcmp.lt.s32.totalorder %v2207, 2
    %vm2209 = vcmp.eq.s32.totalorder %v2207, 0
    %v2210 = vxor.u32 %v2204, 2147483648
    %v2211 = vsel %vm2209, %v2203, %v2210
    %vm2212 = vcmp.eq.s32.totalorder %v2207, 2
    %v2213 = vxor.u32 %v2203, 2147483648
    %v2214 = vsel %vm2212, %v2213, %v2204
    %v2215 = vsel %vm2208, %v2211, %v2214
    %v2216 = vsel %vm2205, nan, %v2215
    %v2217 = vand.u32 2147483647, %v1638
    %vm2218 = vcmp.le.f32.partialorder %v2217, 0.7853982
    %vm2219 = vcmp.lt.s32.totalorder %v1638, 0
    %v2220 = vand.u32 %v1638, 2139095040
    %v2221 = vshrl.u32 %v2220, 23
    %v2222 = vsub.s32 %v2221, 127
    %v2223 = vand.u32 2147483647, %v1638
    %v2224 = vand.u32 %v2223, 8388607
    %v2225 = vor.u32 %v2224, 8388608
    %v2226 = vsub.s32 0, %v2225
    %v2227 = vadd.s32 %v2222, 1
    %vm2228 = vcmp.gt.s32.totalorder %v2227, 0
    %v2229 = vsel %vm2228, %v2227, 0
    %v2230 = vshrl.u32 %v2229, 5
    %v2231 = vand.u32 %v2229, 31
    %v2232 = vsub.s32 32, %v2231
    %v2233 = vshrl.u32 683565275, %v2232
    %v2234 = vshll.u32 683565275, %v2231
    %v2235 = vshrl.u32 2475754826, %v2232
    %v2236 = vor.u32 %v2234, %v2235
    %v2237 = vshll.u32 2475754826, %v2231
    %v2238 = vshrl.u32 2131351028, %v2232
    %v2239 = vor.u32 %v2237, %v2238
    %v2240 = vshll.u32 2131351028, %v2231
    %v2241 = vshrl.u32 2102212464, %v2232
    %v2242 = vor.u32 %v2240, %v2241
    %v2243 = vshll.u32 2102212464, %v2231
    %v2244 = vshrl.u32 920167782, %v2232
    %v2245 = vor.u32 %v2243, %v2244
    %v2246 = vshll.u32 920167782, %v2231
    %v2247 = vshrl.u32 1326507024, %v2232
    %v2248 = vor.u32 %v2246, %v2247
    %vm2249 = vcmp.lt.s32.totalorder %v2230, 1
    %vm2250 = vcmp.lt.s32.totalorder %v2230, 2
    %vm2251 = vcmp.lt.s32.totalorder %v2230, 3
    %vm2252 = vcmp.lt.s32.totalorder %v2230, 4
    %v2253 = vsel %vm2249, %v2233, %v2236
    %v2254 = vsel %vm2252, %v2242, 2102212464
    %v2255 = vsel %vm2251, %v2239, %v2254
    %v2256 = vsel %vm2250, %v2253, %v2255
    %v2257 = vsel %vm2249, %v2236, %v2239
    %v2258 = vsel %vm2252, %v2245, 920167782
    %v2259 = vsel %vm2251, %v2242, %v2258
    %v2260 = vsel %vm2250, %v2257, %v2259
    %v2261 = vsel %vm2249, %v2239, %v2242
    %v2262 = vsel %vm2252, %v2248, 1326507024
    %v2263 = vsel %vm2251, %v2245, %v2262
    %v2264 = vsel %vm2250, %v2261, %v2263
    %v2265 = vshll.u32 %v2225, 8
    %v2266 = vmul.u32.u64.compose %v2265, %v2264
    %v2267 = vextract.low.u32 %v2266
    %v2268 = vextract.high.u32 %v2266
    %v2269 = vmul.u32.u64.compose %v2265, %v2260
    %v2270 = vextract.low.u32 %v2269
    %v2271 = vextract.high.u32 %v2269
    %v2272 = vmul.u32 %v2265, %v2256
    %v2273 = vadd.s32 %v2268, %v2270
    %vm2274 = vc.u32 %v2268, %v2270
    %v2275 = vadd.s32 %v2271, 1
    %v2276 = vsel %vm2274, %v2275, %v2271
    %v2277 = vadd.s32 %v2272, %v2276
    %v2278 = vadd.s32 %v2277, 536870912
    %v2279 = vshrl.u32 %v2278, 30
    %v2280 = vshll.u32 %v2279, 30
    %v2281 = vsub.s32 %v2277, %v2280
    %vm2282 = vcmp.lt.s32.totalorder %v2281, 0
    %v2283 = vsub.s32 0, %v2281
    %v2284 = vsel %vm2282, %v2283, %v2281
    %v2285 = vclz %v2284
    %v2286 = vsub.s32 %v2285, 2
    %vm2287 = vcmp.gt.s32.totalorder 0, %v2286
    %v2288 = vsel %vm2287, 0, %v2286
    %v2289 = vsub.s32 32, %v2288
    %v2290 = vshll.u32 %v2281, %v2288
    %v2291 = vshrl.u32 %v2273, %v2289
    %v2292 = vor.u32 %v2290, %v2291
    %v2293 = vsub.s32 4294967266, %v2288
    %v2294 = vadd.s32 %v2293, 127
    %v2295 = vshll.u32 %v2294, 23
    %v2296 = vor.u32 4788187, %v2295
    %v2297 = vand.u32 2147483647, %v2296
    %v2299 = vcvt.s32.f32 %v2292
    %v2300 = vmul.f32 %v2299, %v2297
    %v2301 = vxor.u32 %v2300, 2147483648
    %v2302 = vsel %vm2219, %v2301, %v2300
    %v2303 = vsub.s32 4, %v2279
    %v2304 = vsel %vm2219, %v2303, %v2279
    %v2305 = vsel %vm2218, %v1638, %v2302
    %v2306 = vsel %vm2218, 0, %v2304
    %v2307 = vcosq.f32.pop %v2305
    %v2308 = vsinq.f32.pop %v2305
    %vm2309 = vweird.f32 %v1638
    %v2310 = vadd.s32 %v2306, 3
    %v2311 = vand.u32 %v2310, 3
    %vm2312 = vcmp.lt.s32.totalorder %v2311, 2
    %vm2313 = vcmp.eq.s32.totalorder %v2311, 0
    %v2314 = vxor.u32 %v2308, 2147483648
    %v2315 = vsel %vm2313, %v2307, %v2314
    %vm2316 = vcmp.eq.s32.totalorder %v2311, 2
    %v2317 = vxor.u32 %v2307, 2147483648
    %v2318 = vsel %vm2316, %v2317, %v2308
    %v2319 = vsel %vm2312, %v2315, %v2318
    %v2320 = vsel %vm2309, nan, %v2319
    %v2321 = vand.u32 2147483647, %v1639
    %vm2322 = vcmp.le.f32.partialorder %v2321, 0.7853982
    %vm2323 = vcmp.lt.s32.totalorder %v1639, 0
    %v2324 = vand.u32 %v1639, 2139095040
    %v2325 = vshrl.u32 %v2324, 23
    %v2326 = vsub.s32 %v2325, 127
    %v2327 = vand.u32 2147483647, %v1639
    %v2328 = vand.u32 %v2327, 8388607
    %v2329 = vor.u32 %v2328, 8388608
    %v2330 = vsub.s32 0, %v2329
    %v2331 = vadd.s32 %v2326, 1
    %vm2332 = vcmp.gt.s32.totalorder %v2331, 0
    %v2333 = vsel %vm2332, %v2331, 0
    %v2334 = vshrl.u32 %v2333, 5
    %v2335 = vand.u32 %v2333, 31
    %v2336 = vsub.s32 32, %v2335
    %v2337 = vshrl.u32 683565275, %v2336
    %v2338 = vshll.u32 683565275, %v2335
    %v2339 = vshrl.u32 2475754826, %v2336
    %v2340 = vor.u32 %v2338, %v2339
    %v2341 = vshll.u32 2475754826, %v2335
    %v2342 = vshrl.u32 2131351028, %v2336
    %v2343 = vor.u32 %v2341, %v2342
    %v2344 = vshll.u32 2131351028, %v2335
    %v2345 = vshrl.u32 2102212464, %v2336
    %v2346 = vor.u32 %v2344, %v2345
    %v2347 = vshll.u32 2102212464, %v2335
    %v2348 = vshrl.u32 920167782, %v2336
    %v2349 = vor.u32 %v2347, %v2348
    %v2350 = vshll.u32 920167782, %v2335
    %v2351 = vshrl.u32 1326507024, %v2336
    %v2352 = vor.u32 %v2350, %v2351
    %vm2353 = vcmp.lt.s32.totalorder %v2334, 1
    %vm2354 = vcmp.lt.s32.totalorder %v2334, 2
    %vm2355 = vcmp.lt.s32.totalorder %v2334, 3
    %vm2356 = vcmp.lt.s32.totalorder %v2334, 4
    %v2357 = vsel %vm2353, %v2337, %v2340
    %v2358 = vsel %vm2356, %v2346, 2102212464
    %v2359 = vsel %vm2355, %v2343, %v2358
    %v2360 = vsel %vm2354, %v2357, %v2359
    %v2361 = vsel %vm2353, %v2340, %v2343
    %v2362 = vsel %vm2356, %v2349, 920167782
    %v2363 = vsel %vm2355, %v2346, %v2362
    %v2364 = vsel %vm2354, %v2361, %v2363
    %v2365 = vsel %vm2353, %v2343, %v2346
    %v2366 = vsel %vm2356, %v2352, 1326507024
    %v2367 = vsel %vm2355, %v2349, %v2366
    %v2368 = vsel %vm2354, %v2365, %v2367
    %v2369 = vshll.u32 %v2329, 8
    %v2370 = vmul.u32.u64.compose %v2369, %v2368
    %v2371 = vextract.low.u32 %v2370
    %v2372 = vextract.high.u32 %v2370
    %v2373 = vmul.u32.u64.compose %v2369, %v2364
    %v2374 = vextract.low.u32 %v2373
    %v2375 = vextract.high.u32 %v2373
    %v2376 = vmul.u32 %v2369, %v2360
    %v2377 = vadd.s32 %v2372, %v2374
    %vm2378 = vc.u32 %v2372, %v2374
    %v2379 = vadd.s32 %v2375, 1
    %v2380 = vsel %vm2378, %v2379, %v2375
    %v2381 = vadd.s32 %v2376, %v2380
    %v2382 = vadd.s32 %v2381, 536870912
    %v2383 = vshrl.u32 %v2382, 30
    %v2384 = vshll.u32 %v2383, 30
    %v2385 = vsub.s32 %v2381, %v2384
    %vm2386 = vcmp.lt.s32.totalorder %v2385, 0
    %v2387 = vsub.s32 0, %v2385
    %v2388 = vsel %vm2386, %v2387, %v2385
    %v2389 = vclz %v2388
    %v2390 = vsub.s32 %v2389, 2
    %vm2391 = vcmp.gt.s32.totalorder 0, %v2390
    %v2392 = vsel %vm2391, 0, %v2390
    %v2393 = vsub.s32 32, %v2392
    %v2394 = vshll.u32 %v2385, %v2392
    %v2395 = vshrl.u32 %v2377, %v2393
    %v2396 = vor.u32 %v2394, %v2395
    %v2397 = vsub.s32 4294967266, %v2392
    %v2398 = vadd.s32 %v2397, 127
    %v2399 = vshll.u32 %v2398, 23
    %v2400 = vor.u32 4788187, %v2399
    %v2401 = vand.u32 2147483647, %v2400
    %v2403 = vcvt.s32.f32 %v2396
    %v2404 = vmul.f32 %v2403, %v2401
    %v2405 = vxor.u32 %v2404, 2147483648
    %v2406 = vsel %vm2323, %v2405, %v2404
    %v2407 = vsub.s32 4, %v2383
    %v2408 = vsel %vm2323, %v2407, %v2383
    %v2409 = vsel %vm2322, %v1639, %v2406
    %v2410 = vsel %vm2322, 0, %v2408
    %v2411 = vcosq.f32.pop %v2409
    %v2412 = vsinq.f32.pop %v2409
    %vm2413 = vweird.f32 %v1639
    %v2414 = vadd.s32 %v2410, 3
    %v2415 = vand.u32 %v2414, 3
    %vm2416 = vcmp.lt.s32.totalorder %v2415, 2
    %vm2417 = vcmp.eq.s32.totalorder %v2415, 0
    %v2418 = vxor.u32 %v2412, 2147483648
    %v2419 = vsel %vm2417, %v2411, %v2418
    %vm2420 = vcmp.eq.s32.totalorder %v2415, 2
    %v2421 = vxor.u32 %v2411, 2147483648
    %v2422 = vsel %vm2420, %v2421, %v2412
    %v2423 = vsel %vm2416, %v2419, %v2422
    %v2424 = vsel %vm2413, nan, %v2423
    %v2425 = vand.u32 2147483647, %v1640
    %vm2426 = vcmp.le.f32.partialorder %v2425, 0.7853982
    %vm2427 = vcmp.lt.s32.totalorder %v1640, 0
    %v2428 = vand.u32 %v1640, 2139095040
    %v2429 = vshrl.u32 %v2428, 23
    %v2430 = vsub.s32 %v2429, 127
    %v2431 = vand.u32 2147483647, %v1640
    %v2432 = vand.u32 %v2431, 8388607
    %v2433 = vor.u32 %v2432, 8388608
    %v2434 = vsub.s32 0, %v2433
    %v2435 = vadd.s32 %v2430, 1
    %vm2436 = vcmp.gt.s32.totalorder %v2435, 0
    %v2437 = vsel %vm2436, %v2435, 0
    %v2438 = vshrl.u32 %v2437, 5
    %v2439 = vand.u32 %v2437, 31
    %v2440 = vsub.s32 32, %v2439
    %v2441 = vshrl.u32 683565275, %v2440
    %v2442 = vshll.u32 683565275, %v2439
    %v2443 = vshrl.u32 2475754826, %v2440
    %v2444 = vor.u32 %v2442, %v2443
    %v2445 = vshll.u32 2475754826, %v2439
    %v2446 = vshrl.u32 2131351028, %v2440
    %v2447 = vor.u32 %v2445, %v2446
    %v2448 = vshll.u32 2131351028, %v2439
    %v2449 = vshrl.u32 2102212464, %v2440
    %v2450 = vor.u32 %v2448, %v2449
    %v2451 = vshll.u32 2102212464, %v2439
    %v2452 = vshrl.u32 920167782, %v2440
    %v2453 = vor.u32 %v2451, %v2452
    %v2454 = vshll.u32 920167782, %v2439
    %v2455 = vshrl.u32 1326507024, %v2440
    %v2456 = vor.u32 %v2454, %v2455
    %vm2457 = vcmp.lt.s32.totalorder %v2438, 1
    %vm2458 = vcmp.lt.s32.totalorder %v2438, 2
    %vm2459 = vcmp.lt.s32.totalorder %v2438, 3
    %vm2460 = vcmp.lt.s32.totalorder %v2438, 4
    %v2461 = vsel %vm2457, %v2441, %v2444
    %v2462 = vsel %vm2460, %v2450, 2102212464
    %v2463 = vsel %vm2459, %v2447, %v2462
    %v2464 = vsel %vm2458, %v2461, %v2463
    %v2465 = vsel %vm2457, %v2444, %v2447
    %v2466 = vsel %vm2460, %v2453, 920167782
    %v2467 = vsel %vm2459, %v2450, %v2466
    %v2468 = vsel %vm2458, %v2465, %v2467
    %v2469 = vsel %vm2457, %v2447, %v2450
    %v2470 = vsel %vm2460, %v2456, 1326507024
    %v2471 = vsel %vm2459, %v2453, %v2470
    %v2472 = vsel %vm2458, %v2469, %v2471
    %v2473 = vshll.u32 %v2433, 8
    %v2474 = vmul.u32.u64.compose %v2473, %v2472
    %v2475 = vextract.low.u32 %v2474
    %v2476 = vextract.high.u32 %v2474
    %v2477 = vmul.u32.u64.compose %v2473, %v2468
    %v2478 = vextract.low.u32 %v2477
    %v2479 = vextract.high.u32 %v2477
    %v2480 = vmul.u32 %v2473, %v2464
    %v2481 = vadd.s32 %v2476, %v2478
    %vm2482 = vc.u32 %v2476, %v2478
    %v2483 = vadd.s32 %v2479, 1
    %v2484 = vsel %vm2482, %v2483, %v2479
    %v2485 = vadd.s32 %v2480, %v2484
    %v2486 = vadd.s32 %v2485, 536870912
    %v2487 = vshrl.u32 %v2486, 30
    %v2488 = vshll.u32 %v2487, 30
    %v2489 = vsub.s32 %v2485, %v2488
    %vm2490 = vcmp.lt.s32.totalorder %v2489, 0
    %v2491 = vsub.s32 0, %v2489
    %v2492 = vsel %vm2490, %v2491, %v2489
    %v2493 = vclz %v2492
    %v2494 = vsub.s32 %v2493, 2
    %vm2495 = vcmp.gt.s32.totalorder 0, %v2494
    %v2496 = vsel %vm2495, 0, %v2494
    %v2497 = vsub.s32 32, %v2496
    %v2498 = vshll.u32 %v2489, %v2496
    %v2499 = vshrl.u32 %v2481, %v2497
    %v2500 = vor.u32 %v2498, %v2499
    %v2501 = vsub.s32 4294967266, %v2496
    %v2502 = vadd.s32 %v2501, 127
    %v2503 = vshll.u32 %v2502, 23
    %v2504 = vor.u32 4788187, %v2503
    %v2505 = vand.u32 2147483647, %v2504
    %v2507 = vcvt.s32.f32 %v2500
    %v2508 = vmul.f32 %v2507, %v2505
    %v2509 = vxor.u32 %v2508, 2147483648
    %v2510 = vsel %vm2427, %v2509, %v2508
    %v2511 = vsub.s32 4, %v2487
    %v2512 = vsel %vm2427, %v2511, %v2487
    %v2513 = vsel %vm2426, %v1640, %v2510
    %v2514 = vsel %vm2426, 0, %v2512
    %v2515 = vcosq.f32.pop %v2513
    %v2516 = vsinq.f32.pop %v2513
    %vm2517 = vweird.f32 %v1640
    %v2518 = vadd.s32 %v2514, 3
    %v2519 = vand.u32 %v2518, 3
    %vm2520 = vcmp.lt.s32.totalorder %v2519, 2
    %vm2521 = vcmp.eq.s32.totalorder %v2519, 0
    %v2522 = vxor.u32 %v2516, 2147483648
    %v2523 = vsel %vm2521, %v2515, %v2522
    %vm2524 = vcmp.eq.s32.totalorder %v2519, 2
    %v2525 = vxor.u32 %v2515, 2147483648
    %v2526 = vsel %vm2524, %v2525, %v2516
    %v2527 = vsel %vm2520, %v2523, %v2526
    %v2528 = vsel %vm2517, nan, %v2527
    %v2529 = vand.u32 2147483647, %v1641
    %vm2530 = vcmp.le.f32.partialorder %v2529, 0.7853982
    %vm2531 = vcmp.lt.s32.totalorder %v1641, 0
    %v2532 = vand.u32 %v1641, 2139095040
    %v2533 = vshrl.u32 %v2532, 23
    %v2534 = vsub.s32 %v2533, 127
    %v2535 = vand.u32 2147483647, %v1641
    %v2536 = vand.u32 %v2535, 8388607
    %v2537 = vor.u32 %v2536, 8388608
    %v2538 = vsub.s32 0, %v2537
    %v2539 = vadd.s32 %v2534, 1
    %vm2540 = vcmp.gt.s32.totalorder %v2539, 0
    %v2541 = vsel %vm2540, %v2539, 0
    %v2542 = vshrl.u32 %v2541, 5
    %v2543 = vand.u32 %v2541, 31
    %v2544 = vsub.s32 32, %v2543
    %v2545 = vshrl.u32 683565275, %v2544
    %v2546 = vshll.u32 683565275, %v2543
    %v2547 = vshrl.u32 2475754826, %v2544
    %v2548 = vor.u32 %v2546, %v2547
    %v2549 = vshll.u32 2475754826, %v2543
    %v2550 = vshrl.u32 2131351028, %v2544
    %v2551 = vor.u32 %v2549, %v2550
    %v2552 = vshll.u32 2131351028, %v2543
    %v2553 = vshrl.u32 2102212464, %v2544
    %v2554 = vor.u32 %v2552, %v2553
    %v2555 = vshll.u32 2102212464, %v2543
    %v2556 = vshrl.u32 920167782, %v2544
    %v2557 = vor.u32 %v2555, %v2556
    %v2558 = vshll.u32 920167782, %v2543
    %v2559 = vshrl.u32 1326507024, %v2544
    %v2560 = vor.u32 %v2558, %v2559
    %vm2561 = vcmp.lt.s32.totalorder %v2542, 1
    %vm2562 = vcmp.lt.s32.totalorder %v2542, 2
    %vm2563 = vcmp.lt.s32.totalorder %v2542, 3
    %vm2564 = vcmp.lt.s32.totalorder %v2542, 4
    %v2565 = vsel %vm2561, %v2545, %v2548
    %v2566 = vsel %vm2564, %v2554, 2102212464
    %v2567 = vsel %vm2563, %v2551, %v2566
    %v2568 = vsel %vm2562, %v2565, %v2567
    %v2569 = vsel %vm2561, %v2548, %v2551
    %v2570 = vsel %vm2564, %v2557, 920167782
    %v2571 = vsel %vm2563, %v2554, %v2570
    %v2572 = vsel %vm2562, %v2569, %v2571
    %v2573 = vsel %vm2561, %v2551, %v2554
    %v2574 = vsel %vm2564, %v2560, 1326507024
    %v2575 = vsel %vm2563, %v2557, %v2574
    %v2576 = vsel %vm2562, %v2573, %v2575
    %v2577 = vshll.u32 %v2537, 8
    %v2578 = vmul.u32.u64.compose %v2577, %v2576
    %v2579 = vextract.low.u32 %v2578
    %v2580 = vextract.high.u32 %v2578
    %v2581 = vmul.u32.u64.compose %v2577, %v2572
    %v2582 = vextract.low.u32 %v2581
    %v2583 = vextract.high.u32 %v2581
    %v2584 = vmul.u32 %v2577, %v2568
    %v2585 = vadd.s32 %v2580, %v2582
    %vm2586 = vc.u32 %v2580, %v2582
    %v2587 = vadd.s32 %v2583, 1
    %v2588 = vsel %vm2586, %v2587, %v2583
    %v2589 = vadd.s32 %v2584, %v2588
    %v2590 = vadd.s32 %v2589, 536870912
    %v2591 = vshrl.u32 %v2590, 30
    %v2592 = vshll.u32 %v2591, 30
    %v2593 = vsub.s32 %v2589, %v2592
    %vm2594 = vcmp.lt.s32.totalorder %v2593, 0
    %v2595 = vsub.s32 0, %v2593
    %v2596 = vsel %vm2594, %v2595, %v2593
    %v2597 = vclz %v2596
    %v2598 = vsub.s32 %v2597, 2
    %vm2599 = vcmp.gt.s32.totalorder 0, %v2598
    %v2600 = vsel %vm2599, 0, %v2598
    %v2601 = vsub.s32 32, %v2600
    %v2602 = vshll.u32 %v2593, %v2600
    %v2603 = vshrl.u32 %v2585, %v2601
    %v2604 = vor.u32 %v2602, %v2603
    %v2605 = vsub.s32 4294967266, %v2600
    %v2606 = vadd.s32 %v2605, 127
    %v2607 = vshll.u32 %v2606, 23
    %v2608 = vor.u32 4788187, %v2607
    %v2609 = vand.u32 2147483647, %v2608
    %v2611 = vcvt.s32.f32 %v2604
    %v2612 = vmul.f32 %v2611, %v2609
    %v2613 = vxor.u32 %v2612, 2147483648
    %v2614 = vsel %vm2531, %v2613, %v2612
    %v2615 = vsub.s32 4, %v2591
    %v2616 = vsel %vm2531, %v2615, %v2591
    %v2617 = vsel %vm2530, %v1641, %v2614
    %v2618 = vsel %vm2530, 0, %v2616
    %v2619 = vcosq.f32.pop %v2617
    %v2620 = vsinq.f32.pop %v2617
    %vm2621 = vweird.f32 %v1641
    %v2622 = vadd.s32 %v2618, 3
    %v2623 = vand.u32 %v2622, 3
    %vm2624 = vcmp.lt.s32.totalorder %v2623, 2
    %vm2625 = vcmp.eq.s32.totalorder %v2623, 0
    %v2626 = vxor.u32 %v2620, 2147483648
    %v2627 = vsel %vm2625, %v2619, %v2626
    %vm2628 = vcmp.eq.s32.totalorder %v2623, 2
    %v2629 = vxor.u32 %v2619, 2147483648
    %v2630 = vsel %vm2628, %v2629, %v2620
    %v2631 = vsel %vm2624, %v2627, %v2630
    %v2632 = vsel %vm2621, nan, %v2631
    %v2633 = vand.u32 2147483647, %v1642
    %vm2634 = vcmp.le.f32.partialorder %v2633, 0.7853982
    %vm2635 = vcmp.lt.s32.totalorder %v1642, 0
    %v2636 = vand.u32 %v1642, 2139095040
    %v2637 = vshrl.u32 %v2636, 23
    %v2638 = vsub.s32 %v2637, 127
    %v2639 = vand.u32 2147483647, %v1642
    %v2640 = vand.u32 %v2639, 8388607
    %v2641 = vor.u32 %v2640, 8388608
    %v2642 = vsub.s32 0, %v2641
    %v2643 = vadd.s32 %v2638, 1
    %vm2644 = vcmp.gt.s32.totalorder %v2643, 0
    %v2645 = vsel %vm2644, %v2643, 0
    %v2646 = vshrl.u32 %v2645, 5
    %v2647 = vand.u32 %v2645, 31
    %v2648 = vsub.s32 32, %v2647
    %v2649 = vshrl.u32 683565275, %v2648
    %v2650 = vshll.u32 683565275, %v2647
    %v2651 = vshrl.u32 2475754826, %v2648
    %v2652 = vor.u32 %v2650, %v2651
    %v2653 = vshll.u32 2475754826, %v2647
    %v2654 = vshrl.u32 2131351028, %v2648
    %v2655 = vor.u32 %v2653, %v2654
    %v2656 = vshll.u32 2131351028, %v2647
    %v2657 = vshrl.u32 2102212464, %v2648
    %v2658 = vor.u32 %v2656, %v2657
    %v2659 = vshll.u32 2102212464, %v2647
    %v2660 = vshrl.u32 920167782, %v2648
    %v2661 = vor.u32 %v2659, %v2660
    %v2662 = vshll.u32 920167782, %v2647
    %v2663 = vshrl.u32 1326507024, %v2648
    %v2664 = vor.u32 %v2662, %v2663
    %vm2665 = vcmp.lt.s32.totalorder %v2646, 1
    %vm2666 = vcmp.lt.s32.totalorder %v2646, 2
    %vm2667 = vcmp.lt.s32.totalorder %v2646, 3
    %vm2668 = vcmp.lt.s32.totalorder %v2646, 4
    %v2669 = vsel %vm2665, %v2649, %v2652
    %v2670 = vsel %vm2668, %v2658, 2102212464
    %v2671 = vsel %vm2667, %v2655, %v2670
    %v2672 = vsel %vm2666, %v2669, %v2671
    %v2673 = vsel %vm2665, %v2652, %v2655
    %v2674 = vsel %vm2668, %v2661, 920167782
    %v2675 = vsel %vm2667, %v2658, %v2674
    %v2676 = vsel %vm2666, %v2673, %v2675
    %v2677 = vsel %vm2665, %v2655, %v2658
    %v2678 = vsel %vm2668, %v2664, 1326507024
    %v2679 = vsel %vm2667, %v2661, %v2678
    %v2680 = vsel %vm2666, %v2677, %v2679
    %v2681 = vshll.u32 %v2641, 8
    %v2682 = vmul.u32.u64.compose %v2681, %v2680
    %v2683 = vextract.low.u32 %v2682
    %v2684 = vextract.high.u32 %v2682
    %v2685 = vmul.u32.u64.compose %v2681, %v2676
    %v2686 = vextract.low.u32 %v2685
    %v2687 = vextract.high.u32 %v2685
    %v2688 = vmul.u32 %v2681, %v2672
    %v2689 = vadd.s32 %v2684, %v2686
    %vm2690 = vc.u32 %v2684, %v2686
    %v2691 = vadd.s32 %v2687, 1
    %v2692 = vsel %vm2690, %v2691, %v2687
    %v2693 = vadd.s32 %v2688, %v2692
    %v2694 = vadd.s32 %v2693, 536870912
    %v2695 = vshrl.u32 %v2694, 30
    %v2696 = vshll.u32 %v2695, 30
    %v2697 = vsub.s32 %v2693, %v2696
    %vm2698 = vcmp.lt.s32.totalorder %v2697, 0
    %v2699 = vsub.s32 0, %v2697
    %v2700 = vsel %vm2698, %v2699, %v2697
    %v2701 = vclz %v2700
    %v2702 = vsub.s32 %v2701, 2
    %vm2703 = vcmp.gt.s32.totalorder 0, %v2702
    %v2704 = vsel %vm2703, 0, %v2702
    %v2705 = vsub.s32 32, %v2704
    %v2706 = vshll.u32 %v2697, %v2704
    %v2707 = vshrl.u32 %v2689, %v2705
    %v2708 = vor.u32 %v2706, %v2707
    %v2709 = vsub.s32 4294967266, %v2704
    %v2710 = vadd.s32 %v2709, 127
    %v2711 = vshll.u32 %v2710, 23
    %v2712 = vor.u32 4788187, %v2711
    %v2713 = vand.u32 2147483647, %v2712
    %v2715 = vcvt.s32.f32 %v2708
    %v2716 = vmul.f32 %v2715, %v2713
    %v2717 = vxor.u32 %v2716, 2147483648
    %v2718 = vsel %vm2635, %v2717, %v2716
    %v2719 = vsub.s32 4, %v2695
    %v2720 = vsel %vm2635, %v2719, %v2695
    %v2721 = vsel %vm2634, %v1642, %v2718
    %v2722 = vsel %vm2634, 0, %v2720
    %v2723 = vcosq.f32.pop %v2721
    %v2724 = vsinq.f32.pop %v2721
    %vm2725 = vweird.f32 %v1642
    %v2726 = vadd.s32 %v2722, 3
    %v2727 = vand.u32 %v2726, 3
    %vm2728 = vcmp.lt.s32.totalorder %v2727, 2
    %vm2729 = vcmp.eq.s32.totalorder %v2727, 0
    %v2730 = vxor.u32 %v2724, 2147483648
    %v2731 = vsel %vm2729, %v2723, %v2730
    %vm2732 = vcmp.eq.s32.totalorder %v2727, 2
    %v2733 = vxor.u32 %v2723, 2147483648
    %v2734 = vsel %vm2732, %v2733, %v2724
    %v2735 = vsel %vm2728, %v2731, %v2734
    %v2736 = vsel %vm2725, nan, %v2735
    %v2737 = vand.u32 2147483647, %v1643
    %vm2738 = vcmp.le.f32.partialorder %v2737, 0.7853982
    %vm2739 = vcmp.lt.s32.totalorder %v1643, 0
    %v2740 = vand.u32 %v1643, 2139095040
    %v2741 = vshrl.u32 %v2740, 23
    %v2742 = vsub.s32 %v2741, 127
    %v2743 = vand.u32 2147483647, %v1643
    %v2744 = vand.u32 %v2743, 8388607
    %v2745 = vor.u32 %v2744, 8388608
    %v2746 = vsub.s32 0, %v2745
    %v2747 = vadd.s32 %v2742, 1
    %vm2748 = vcmp.gt.s32.totalorder %v2747, 0
    %v2749 = vsel %vm2748, %v2747, 0
    %v2750 = vshrl.u32 %v2749, 5
    %v2751 = vand.u32 %v2749, 31
    %v2752 = vsub.s32 32, %v2751
    %v2753 = vshrl.u32 683565275, %v2752
    %v2754 = vshll.u32 683565275, %v2751
    %v2755 = vshrl.u32 2475754826, %v2752
    %v2756 = vor.u32 %v2754, %v2755
    %v2757 = vshll.u32 2475754826, %v2751
    %v2758 = vshrl.u32 2131351028, %v2752
    %v2759 = vor.u32 %v2757, %v2758
    %v2760 = vshll.u32 2131351028, %v2751
    %v2761 = vshrl.u32 2102212464, %v2752
    %v2762 = vor.u32 %v2760, %v2761
    %v2763 = vshll.u32 2102212464, %v2751
    %v2764 = vshrl.u32 920167782, %v2752
    %v2765 = vor.u32 %v2763, %v2764
    %v2766 = vshll.u32 920167782, %v2751
    %v2767 = vshrl.u32 1326507024, %v2752
    %v2768 = vor.u32 %v2766, %v2767
    %vm2769 = vcmp.lt.s32.totalorder %v2750, 1
    %vm2770 = vcmp.lt.s32.totalorder %v2750, 2
    %vm2771 = vcmp.lt.s32.totalorder %v2750, 3
    %vm2772 = vcmp.lt.s32.totalorder %v2750, 4
    %v2773 = vsel %vm2769, %v2753, %v2756
    %v2774 = vsel %vm2772, %v2762, 2102212464
    %v2775 = vsel %vm2771, %v2759, %v2774
    %v2776 = vsel %vm2770, %v2773, %v2775
    %v2777 = vsel %vm2769, %v2756, %v2759
    %v2778 = vsel %vm2772, %v2765, 920167782
    %v2779 = vsel %vm2771, %v2762, %v2778
    %v2780 = vsel %vm2770, %v2777, %v2779
    %v2781 = vsel %vm2769, %v2759, %v2762
    %v2782 = vsel %vm2772, %v2768, 1326507024
    %v2783 = vsel %vm2771, %v2765, %v2782
    %v2784 = vsel %vm2770, %v2781, %v2783
    %v2785 = vshll.u32 %v2745, 8
    %v2786 = vmul.u32.u64.compose %v2785, %v2784
    %v2787 = vextract.low.u32 %v2786
    %v2788 = vextract.high.u32 %v2786
    %v2789 = vmul.u32.u64.compose %v2785, %v2780
    %v2790 = vextract.low.u32 %v2789
    %v2791 = vextract.high.u32 %v2789
    %v2792 = vmul.u32 %v2785, %v2776
    %v2793 = vadd.s32 %v2788, %v2790
    %vm2794 = vc.u32 %v2788, %v2790
    %v2795 = vadd.s32 %v2791, 1
    %v2796 = vsel %vm2794, %v2795, %v2791
    %v2797 = vadd.s32 %v2792, %v2796
    %v2798 = vadd.s32 %v2797, 536870912
    %v2799 = vshrl.u32 %v2798, 30
    %v2800 = vshll.u32 %v2799, 30
    %v2801 = vsub.s32 %v2797, %v2800
    %vm2802 = vcmp.lt.s32.totalorder %v2801, 0
    %v2803 = vsub.s32 0, %v2801
    %v2804 = vsel %vm2802, %v2803, %v2801
    %v2805 = vclz %v2804
    %v2806 = vsub.s32 %v2805, 2
    %vm2807 = vcmp.gt.s32.totalorder 0, %v2806
    %v2808 = vsel %vm2807, 0, %v2806
    %v2809 = vsub.s32 32, %v2808
    %v2810 = vshll.u32 %v2801, %v2808
    %v2811 = vshrl.u32 %v2793, %v2809
    %v2812 = vor.u32 %v2810, %v2811
    %v2813 = vsub.s32 4294967266, %v2808
    %v2814 = vadd.s32 %v2813, 127
    %v2815 = vshll.u32 %v2814, 23
    %v2816 = vor.u32 4788187, %v2815
    %v2817 = vand.u32 2147483647, %v2816
    %v2819 = vcvt.s32.f32 %v2812
    %v2820 = vmul.f32 %v2819, %v2817
    %v2821 = vxor.u32 %v2820, 2147483648
    %v2822 = vsel %vm2739, %v2821, %v2820
    %v2823 = vsub.s32 4, %v2799
    %v2824 = vsel %vm2739, %v2823, %v2799
    %v2825 = vsel %vm2738, %v1643, %v2822
    %v2826 = vsel %vm2738, 0, %v2824
    %v2827 = vcosq.f32.pop %v2825
    %v2828 = vsinq.f32.pop %v2825
    %vm2829 = vweird.f32 %v1643
    %v2830 = vadd.s32 %v2826, 3
    %v2831 = vand.u32 %v2830, 3
    %vm2832 = vcmp.lt.s32.totalorder %v2831, 2
    %vm2833 = vcmp.eq.s32.totalorder %v2831, 0
    %v2834 = vxor.u32 %v2828, 2147483648
    %v2835 = vsel %vm2833, %v2827, %v2834
    %vm2836 = vcmp.eq.s32.totalorder %v2831, 2
    %v2837 = vxor.u32 %v2827, 2147483648
    %v2838 = vsel %vm2836, %v2837, %v2828
    %v2839 = vsel %vm2832, %v2835, %v2838
    %v2840 = vsel %vm2829, nan, %v2839
    %v2841 = vand.u32 2147483647, %v1644
    %vm2842 = vcmp.le.f32.partialorder %v2841, 0.7853982
    %vm2843 = vcmp.lt.s32.totalorder %v1644, 0
    %v2844 = vand.u32 %v1644, 2139095040
    %v2845 = vshrl.u32 %v2844, 23
    %v2846 = vsub.s32 %v2845, 127
    %v2847 = vand.u32 2147483647, %v1644
    %v2848 = vand.u32 %v2847, 8388607
    %v2849 = vor.u32 %v2848, 8388608
    %v2850 = vsub.s32 0, %v2849
    %v2851 = vadd.s32 %v2846, 1
    %vm2852 = vcmp.gt.s32.totalorder %v2851, 0
    %v2853 = vsel %vm2852, %v2851, 0
    %v2854 = vshrl.u32 %v2853, 5
    %v2855 = vand.u32 %v2853, 31
    %v2856 = vsub.s32 32, %v2855
    %v2857 = vshrl.u32 683565275, %v2856
    %v2858 = vshll.u32 683565275, %v2855
    %v2859 = vshrl.u32 2475754826, %v2856
    %v2860 = vor.u32 %v2858, %v2859
    %v2861 = vshll.u32 2475754826, %v2855
    %v2862 = vshrl.u32 2131351028, %v2856
    %v2863 = vor.u32 %v2861, %v2862
    %v2864 = vshll.u32 2131351028, %v2855
    %v2865 = vshrl.u32 2102212464, %v2856
    %v2866 = vor.u32 %v2864, %v2865
    %v2867 = vshll.u32 2102212464, %v2855
    %v2868 = vshrl.u32 920167782, %v2856
    %v2869 = vor.u32 %v2867, %v2868
    %v2870 = vshll.u32 920167782, %v2855
    %v2871 = vshrl.u32 1326507024, %v2856
    %v2872 = vor.u32 %v2870, %v2871
    %vm2873 = vcmp.lt.s32.totalorder %v2854, 1
    %vm2874 = vcmp.lt.s32.totalorder %v2854, 2
    %vm2875 = vcmp.lt.s32.totalorder %v2854, 3
    %vm2876 = vcmp.lt.s32.totalorder %v2854, 4
    %v2877 = vsel %vm2873, %v2857, %v2860
    %v2878 = vsel %vm2876, %v2866, 2102212464
    %v2879 = vsel %vm2875, %v2863, %v2878
    %v2880 = vsel %vm2874, %v2877, %v2879
    %v2881 = vsel %vm2873, %v2860, %v2863
    %v2882 = vsel %vm2876, %v2869, 920167782
    %v2883 = vsel %vm2875, %v2866, %v2882
    %v2884 = vsel %vm2874, %v2881, %v2883
    %v2885 = vsel %vm2873, %v2863, %v2866
    %v2886 = vsel %vm2876, %v2872, 1326507024
    %v2887 = vsel %vm2875, %v2869, %v2886
    %v2888 = vsel %vm2874, %v2885, %v2887
    %v2889 = vshll.u32 %v2849, 8
    %v2890 = vmul.u32.u64.compose %v2889, %v2888
    %v2891 = vextract.low.u32 %v2890
    %v2892 = vextract.high.u32 %v2890
    %v2893 = vmul.u32.u64.compose %v2889, %v2884
    %v2894 = vextract.low.u32 %v2893
    %v2895 = vextract.high.u32 %v2893
    %v2896 = vmul.u32 %v2889, %v2880
    %v2897 = vadd.s32 %v2892, %v2894
    %vm2898 = vc.u32 %v2892, %v2894
    %v2899 = vadd.s32 %v2895, 1
    %v2900 = vsel %vm2898, %v2899, %v2895
    %v2901 = vadd.s32 %v2896, %v2900
    %v2902 = vadd.s32 %v2901, 536870912
    %v2903 = vshrl.u32 %v2902, 30
    %v2904 = vshll.u32 %v2903, 30
    %v2905 = vsub.s32 %v2901, %v2904
    %vm2906 = vcmp.lt.s32.totalorder %v2905, 0
    %v2907 = vsub.s32 0, %v2905
    %v2908 = vsel %vm2906, %v2907, %v2905
    %v2909 = vclz %v2908
    %v2910 = vsub.s32 %v2909, 2
    %vm2911 = vcmp.gt.s32.totalorder 0, %v2910
    %v2912 = vsel %vm2911, 0, %v2910
    %v2913 = vsub.s32 32, %v2912
    %v2914 = vshll.u32 %v2905, %v2912
    %v2915 = vshrl.u32 %v2897, %v2913
    %v2916 = vor.u32 %v2914, %v2915
    %v2917 = vsub.s32 4294967266, %v2912
    %v2918 = vadd.s32 %v2917, 127
    %v2919 = vshll.u32 %v2918, 23
    %v2920 = vor.u32 4788187, %v2919
    %v2921 = vand.u32 2147483647, %v2920
    %v2923 = vcvt.s32.f32 %v2916
    %v2924 = vmul.f32 %v2923, %v2921
    %v2925 = vxor.u32 %v2924, 2147483648
    %v2926 = vsel %vm2843, %v2925, %v2924
    %v2927 = vsub.s32 4, %v2903
    %v2928 = vsel %vm2843, %v2927, %v2903
    %v2929 = vsel %vm2842, %v1644, %v2926
    %v2930 = vsel %vm2842, 0, %v2928
    %v2931 = vcosq.f32.pop %v2929
    %v2932 = vsinq.f32.pop %v2929
    %vm2933 = vweird.f32 %v1644
    %v2934 = vadd.s32 %v2930, 3
    %v2935 = vand.u32 %v2934, 3
    %vm2936 = vcmp.lt.s32.totalorder %v2935, 2
    %vm2937 = vcmp.eq.s32.totalorder %v2935, 0
    %v2938 = vxor.u32 %v2932, 2147483648
    %v2939 = vsel %vm2937, %v2931, %v2938
    %vm2940 = vcmp.eq.s32.totalorder %v2935, 2
    %v2941 = vxor.u32 %v2931, 2147483648
    %v2942 = vsel %vm2940, %v2941, %v2932
    %v2943 = vsel %vm2936, %v2939, %v2942
    %v2944 = vsel %vm2933, nan, %v2943
    %v2945 = vand.u32 2147483647, %v1645
    %vm2946 = vcmp.le.f32.partialorder %v2945, 0.7853982
    %vm2947 = vcmp.lt.s32.totalorder %v1645, 0
    %v2948 = vand.u32 %v1645, 2139095040
    %v2949 = vshrl.u32 %v2948, 23
    %v2950 = vsub.s32 %v2949, 127
    %v2951 = vand.u32 2147483647, %v1645
    %v2952 = vand.u32 %v2951, 8388607
    %v2953 = vor.u32 %v2952, 8388608
    %v2954 = vsub.s32 0, %v2953
    %v2955 = vadd.s32 %v2950, 1
    %vm2956 = vcmp.gt.s32.totalorder %v2955, 0
    %v2957 = vsel %vm2956, %v2955, 0
    %v2958 = vshrl.u32 %v2957, 5
    %v2959 = vand.u32 %v2957, 31
    %v2960 = vsub.s32 32, %v2959
    %v2961 = vshrl.u32 683565275, %v2960
    %v2962 = vshll.u32 683565275, %v2959
    %v2963 = vshrl.u32 2475754826, %v2960
    %v2964 = vor.u32 %v2962, %v2963
    %v2965 = vshll.u32 2475754826, %v2959
    %v2966 = vshrl.u32 2131351028, %v2960
    %v2967 = vor.u32 %v2965, %v2966
    %v2968 = vshll.u32 2131351028, %v2959
    %v2969 = vshrl.u32 2102212464, %v2960
    %v2970 = vor.u32 %v2968, %v2969
    %v2971 = vshll.u32 2102212464, %v2959
    %v2972 = vshrl.u32 920167782, %v2960
    %v2973 = vor.u32 %v2971, %v2972
    %v2974 = vshll.u32 920167782, %v2959
    %v2975 = vshrl.u32 1326507024, %v2960
    %v2976 = vor.u32 %v2974, %v2975
    %vm2977 = vcmp.lt.s32.totalorder %v2958, 1
    %vm2978 = vcmp.lt.s32.totalorder %v2958, 2
    %vm2979 = vcmp.lt.s32.totalorder %v2958, 3
    %vm2980 = vcmp.lt.s32.totalorder %v2958, 4
    %v2981 = vsel %vm2977, %v2961, %v2964
    %v2982 = vsel %vm2980, %v2970, 2102212464
    %v2983 = vsel %vm2979, %v2967, %v2982
    %v2984 = vsel %vm2978, %v2981, %v2983
    %v2985 = vsel %vm2977, %v2964, %v2967
    %v2986 = vsel %vm2980, %v2973, 920167782
    %v2987 = vsel %vm2979, %v2970, %v2986
    %v2988 = vsel %vm2978, %v2985, %v2987
    %v2989 = vsel %vm2977, %v2967, %v2970
    %v2990 = vsel %vm2980, %v2976, 1326507024
    %v2991 = vsel %vm2979, %v2973, %v2990
    %v2992 = vsel %vm2978, %v2989, %v2991
    %v2993 = vshll.u32 %v2953, 8
    %v2994 = vmul.u32.u64.compose %v2993, %v2992
    %v2995 = vextract.low.u32 %v2994
    %v2996 = vextract.high.u32 %v2994
    %v2997 = vmul.u32.u64.compose %v2993, %v2988
    %v2998 = vextract.low.u32 %v2997
    %v2999 = vextract.high.u32 %v2997
    %v3000 = vmul.u32 %v2993, %v2984
    %v3001 = vadd.s32 %v2996, %v2998
    %vm3002 = vc.u32 %v2996, %v2998
    %v3003 = vadd.s32 %v2999, 1
    %v3004 = vsel %vm3002, %v3003, %v2999
    %v3005 = vadd.s32 %v3000, %v3004
    %v3006 = vadd.s32 %v3005, 536870912
    %v3007 = vshrl.u32 %v3006, 30
    %v3008 = vshll.u32 %v3007, 30
    %v3009 = vsub.s32 %v3005, %v3008
    %vm3010 = vcmp.lt.s32.totalorder %v3009, 0
    %v3011 = vsub.s32 0, %v3009
    %v3012 = vsel %vm3010, %v3011, %v3009
    %v3013 = vclz %v3012
    %v3014 = vsub.s32 %v3013, 2
    %vm3015 = vcmp.gt.s32.totalorder 0, %v3014
    %v3016 = vsel %vm3015, 0, %v3014
    %v3017 = vsub.s32 32, %v3016
    %v3018 = vshll.u32 %v3009, %v3016
    %v3019 = vshrl.u32 %v3001, %v3017
    %v3020 = vor.u32 %v3018, %v3019
    %v3021 = vsub.s32 4294967266, %v3016
    %v3022 = vadd.s32 %v3021, 127
    %v3023 = vshll.u32 %v3022, 23
    %v3024 = vor.u32 4788187, %v3023
    %v3025 = vand.u32 2147483647, %v3024
    %v3027 = vcvt.s32.f32 %v3020
    %v3028 = vmul.f32 %v3027, %v3025
    %v3029 = vxor.u32 %v3028, 2147483648
    %v3030 = vsel %vm2947, %v3029, %v3028
    %v3031 = vsub.s32 4, %v3007
    %v3032 = vsel %vm2947, %v3031, %v3007
    %v3033 = vsel %vm2946, %v1645, %v3030
    %v3034 = vsel %vm2946, 0, %v3032
    %v3035 = vcosq.f32.pop %v3033
    %v3036 = vsinq.f32.pop %v3033
    %vm3037 = vweird.f32 %v1645
    %v3038 = vadd.s32 %v3034, 3
    %v3039 = vand.u32 %v3038, 3
    %vm3040 = vcmp.lt.s32.totalorder %v3039, 2
    %vm3041 = vcmp.eq.s32.totalorder %v3039, 0
    %v3042 = vxor.u32 %v3036, 2147483648
    %v3043 = vsel %vm3041, %v3035, %v3042
    %vm3044 = vcmp.eq.s32.totalorder %v3039, 2
    %v3045 = vxor.u32 %v3035, 2147483648
    %v3046 = vsel %vm3044, %v3045, %v3036
    %v3047 = vsel %vm3040, %v3043, %v3046
    %v3048 = vsel %vm3037, nan, %v3047
    %v3049 = vand.u32 2147483647, %v1646
    %vm3050 = vcmp.le.f32.partialorder %v3049, 0.7853982
    %vm3051 = vcmp.lt.s32.totalorder %v1646, 0
    %v3052 = vand.u32 %v1646, 2139095040
    %v3053 = vshrl.u32 %v3052, 23
    %v3054 = vsub.s32 %v3053, 127
    %v3055 = vand.u32 2147483647, %v1646
    %v3056 = vand.u32 %v3055, 8388607
    %v3057 = vor.u32 %v3056, 8388608
    %v3058 = vsub.s32 0, %v3057
    %v3059 = vadd.s32 %v3054, 1
    %vm3060 = vcmp.gt.s32.totalorder %v3059, 0
    %v3061 = vsel %vm3060, %v3059, 0
    %v3062 = vshrl.u32 %v3061, 5
    %v3063 = vand.u32 %v3061, 31
    %v3064 = vsub.s32 32, %v3063
    %v3065 = vshrl.u32 683565275, %v3064
    %v3066 = vshll.u32 683565275, %v3063
    %v3067 = vshrl.u32 2475754826, %v3064
    %v3068 = vor.u32 %v3066, %v3067
    %v3069 = vshll.u32 2475754826, %v3063
    %v3070 = vshrl.u32 2131351028, %v3064
    %v3071 = vor.u32 %v3069, %v3070
    %v3072 = vshll.u32 2131351028, %v3063
    %v3073 = vshrl.u32 2102212464, %v3064
    %v3074 = vor.u32 %v3072, %v3073
    %v3075 = vshll.u32 2102212464, %v3063
    %v3076 = vshrl.u32 920167782, %v3064
    %v3077 = vor.u32 %v3075, %v3076
    %v3078 = vshll.u32 920167782, %v3063
    %v3079 = vshrl.u32 1326507024, %v3064
    %v3080 = vor.u32 %v3078, %v3079
    %vm3081 = vcmp.lt.s32.totalorder %v3062, 1
    %vm3082 = vcmp.lt.s32.totalorder %v3062, 2
    %vm3083 = vcmp.lt.s32.totalorder %v3062, 3
    %vm3084 = vcmp.lt.s32.totalorder %v3062, 4
    %v3085 = vsel %vm3081, %v3065, %v3068
    %v3086 = vsel %vm3084, %v3074, 2102212464
    %v3087 = vsel %vm3083, %v3071, %v3086
    %v3088 = vsel %vm3082, %v3085, %v3087
    %v3089 = vsel %vm3081, %v3068, %v3071
    %v3090 = vsel %vm3084, %v3077, 920167782
    %v3091 = vsel %vm3083, %v3074, %v3090
    %v3092 = vsel %vm3082, %v3089, %v3091
    %v3093 = vsel %vm3081, %v3071, %v3074
    %v3094 = vsel %vm3084, %v3080, 1326507024
    %v3095 = vsel %vm3083, %v3077, %v3094
    %v3096 = vsel %vm3082, %v3093, %v3095
    %v3097 = vshll.u32 %v3057, 8
    %v3098 = vmul.u32.u64.compose %v3097, %v3096
    %v3099 = vextract.low.u32 %v3098
    %v3100 = vextract.high.u32 %v3098
    %v3101 = vmul.u32.u64.compose %v3097, %v3092
    %v3102 = vextract.low.u32 %v3101
    %v3103 = vextract.high.u32 %v3101
    %v3104 = vmul.u32 %v3097, %v3088
    %v3105 = vadd.s32 %v3100, %v3102
    %vm3106 = vc.u32 %v3100, %v3102
    %v3107 = vadd.s32 %v3103, 1
    %v3108 = vsel %vm3106, %v3107, %v3103
    %v3109 = vadd.s32 %v3104, %v3108
    %v3110 = vadd.s32 %v3109, 536870912
    %v3111 = vshrl.u32 %v3110, 30
    %v3112 = vshll.u32 %v3111, 30
    %v3113 = vsub.s32 %v3109, %v3112
    %vm3114 = vcmp.lt.s32.totalorder %v3113, 0
    %v3115 = vsub.s32 0, %v3113
    %v3116 = vsel %vm3114, %v3115, %v3113
    %v3117 = vclz %v3116
    %v3118 = vsub.s32 %v3117, 2
    %vm3119 = vcmp.gt.s32.totalorder 0, %v3118
    %v3120 = vsel %vm3119, 0, %v3118
    %v3121 = vsub.s32 32, %v3120
    %v3122 = vshll.u32 %v3113, %v3120
    %v3123 = vshrl.u32 %v3105, %v3121
    %v3124 = vor.u32 %v3122, %v3123
    %v3125 = vsub.s32 4294967266, %v3120
    %v3126 = vadd.s32 %v3125, 127
    %v3127 = vshll.u32 %v3126, 23
    %v3128 = vor.u32 4788187, %v3127
    %v3129 = vand.u32 2147483647, %v3128
    %v3131 = vcvt.s32.f32 %v3124
    %v3132 = vmul.f32 %v3131, %v3129
    %v3133 = vxor.u32 %v3132, 2147483648
    %v3134 = vsel %vm3051, %v3133, %v3132
    %v3135 = vsub.s32 4, %v3111
    %v3136 = vsel %vm3051, %v3135, %v3111
    %v3137 = vsel %vm3050, %v1646, %v3134
    %v3138 = vsel %vm3050, 0, %v3136
    %v3139 = vcosq.f32.pop %v3137
    %v3140 = vsinq.f32.pop %v3137
    %vm3141 = vweird.f32 %v1646
    %v3142 = vadd.s32 %v3138, 3
    %v3143 = vand.u32 %v3142, 3
    %vm3144 = vcmp.lt.s32.totalorder %v3143, 2
    %vm3145 = vcmp.eq.s32.totalorder %v3143, 0
    %v3146 = vxor.u32 %v3140, 2147483648
    %v3147 = vsel %vm3145, %v3139, %v3146
    %vm3148 = vcmp.eq.s32.totalorder %v3143, 2
    %v3149 = vxor.u32 %v3139, 2147483648
    %v3150 = vsel %vm3148, %v3149, %v3140
    %v3151 = vsel %vm3144, %v3147, %v3150
    %v3152 = vsel %vm3141, nan, %v3151
    %v3153 = vand.u32 2147483647, %v1647
    %vm3154 = vcmp.le.f32.partialorder %v3153, 0.7853982
    %vm3155 = vcmp.lt.s32.totalorder %v1647, 0
    %v3156 = vand.u32 %v1647, 2139095040
    %v3157 = vshrl.u32 %v3156, 23
    %v3158 = vsub.s32 %v3157, 127
    %v3159 = vand.u32 2147483647, %v1647
    %v3160 = vand.u32 %v3159, 8388607
    %v3161 = vor.u32 %v3160, 8388608
    %v3162 = vsub.s32 0, %v3161
    %v3163 = vadd.s32 %v3158, 1
    %vm3164 = vcmp.gt.s32.totalorder %v3163, 0
    %v3165 = vsel %vm3164, %v3163, 0
    %v3166 = vshrl.u32 %v3165, 5
    %v3167 = vand.u32 %v3165, 31
    %v3168 = vsub.s32 32, %v3167
    %v3169 = vshrl.u32 683565275, %v3168
    %v3170 = vshll.u32 683565275, %v3167
    %v3171 = vshrl.u32 2475754826, %v3168
    %v3172 = vor.u32 %v3170, %v3171
    %v3173 = vshll.u32 2475754826, %v3167
    %v3174 = vshrl.u32 2131351028, %v3168
    %v3175 = vor.u32 %v3173, %v3174
    %v3176 = vshll.u32 2131351028, %v3167
    %v3177 = vshrl.u32 2102212464, %v3168
    %v3178 = vor.u32 %v3176, %v3177
    %v3179 = vshll.u32 2102212464, %v3167
    %v3180 = vshrl.u32 920167782, %v3168
    %v3181 = vor.u32 %v3179, %v3180
    %v3182 = vshll.u32 920167782, %v3167
    %v3183 = vshrl.u32 1326507024, %v3168
    %v3184 = vor.u32 %v3182, %v3183
    %vm3185 = vcmp.lt.s32.totalorder %v3166, 1
    %vm3186 = vcmp.lt.s32.totalorder %v3166, 2
    %vm3187 = vcmp.lt.s32.totalorder %v3166, 3
    %vm3188 = vcmp.lt.s32.totalorder %v3166, 4
    %v3189 = vsel %vm3185, %v3169, %v3172
    %v3190 = vsel %vm3188, %v3178, 2102212464
    %v3191 = vsel %vm3187, %v3175, %v3190
    %v3192 = vsel %vm3186, %v3189, %v3191
    %v3193 = vsel %vm3185, %v3172, %v3175
    %v3194 = vsel %vm3188, %v3181, 920167782
    %v3195 = vsel %vm3187, %v3178, %v3194
    %v3196 = vsel %vm3186, %v3193, %v3195
    %v3197 = vsel %vm3185, %v3175, %v3178
    %v3198 = vsel %vm3188, %v3184, 1326507024
    %v3199 = vsel %vm3187, %v3181, %v3198
    %v3200 = vsel %vm3186, %v3197, %v3199
    %v3201 = vshll.u32 %v3161, 8
    %v3202 = vmul.u32.u64.compose %v3201, %v3200
    %v3203 = vextract.low.u32 %v3202
    %v3204 = vextract.high.u32 %v3202
    %v3205 = vmul.u32.u64.compose %v3201, %v3196
    %v3206 = vextract.low.u32 %v3205
    %v3207 = vextract.high.u32 %v3205
    %v3208 = vmul.u32 %v3201, %v3192
    %v3209 = vadd.s32 %v3204, %v3206
    %vm3210 = vc.u32 %v3204, %v3206
    %v3211 = vadd.s32 %v3207, 1
    %v3212 = vsel %vm3210, %v3211, %v3207
    %v3213 = vadd.s32 %v3208, %v3212
    %v3214 = vadd.s32 %v3213, 536870912
    %v3215 = vshrl.u32 %v3214, 30
    %v3216 = vshll.u32 %v3215, 30
    %v3217 = vsub.s32 %v3213, %v3216
    %vm3218 = vcmp.lt.s32.totalorder %v3217, 0
    %v3219 = vsub.s32 0, %v3217
    %v3220 = vsel %vm3218, %v3219, %v3217
    %v3221 = vclz %v3220
    %v3222 = vsub.s32 %v3221, 2
    %vm3223 = vcmp.gt.s32.totalorder 0, %v3222
    %v3224 = vsel %vm3223, 0, %v3222
    %v3225 = vsub.s32 32, %v3224
    %v3226 = vshll.u32 %v3217, %v3224
    %v3227 = vshrl.u32 %v3209, %v3225
    %v3228 = vor.u32 %v3226, %v3227
    %v3229 = vsub.s32 4294967266, %v3224
    %v3230 = vadd.s32 %v3229, 127
    %v3231 = vshll.u32 %v3230, 23
    %v3232 = vor.u32 4788187, %v3231
    %v3233 = vand.u32 2147483647, %v3232
    %v3235 = vcvt.s32.f32 %v3228
    %v3236 = vmul.f32 %v3235, %v3233
    %v3237 = vxor.u32 %v3236, 2147483648
    %v3238 = vsel %vm3155, %v3237, %v3236
    %v3239 = vsub.s32 4, %v3215
    %v3240 = vsel %vm3155, %v3239, %v3215
    %v3241 = vsel %vm3154, %v1647, %v3238
    %v3242 = vsel %vm3154, 0, %v3240
    %v3243 = vcosq.f32.pop %v3241
    %v3244 = vsinq.f32.pop %v3241
    %vm3245 = vweird.f32 %v1647
    %v3246 = vadd.s32 %v3242, 3
    %v3247 = vand.u32 %v3246, 3
    %vm3248 = vcmp.lt.s32.totalorder %v3247, 2
    %vm3249 = vcmp.eq.s32.totalorder %v3247, 0
    %v3250 = vxor.u32 %v3244, 2147483648
    %v3251 = vsel %vm3249, %v3243, %v3250
    %vm3252 = vcmp.eq.s32.totalorder %v3247, 2
    %v3253 = vxor.u32 %v3243, 2147483648
    %v3254 = vsel %vm3252, %v3253, %v3244
    %v3255 = vsel %vm3248, %v3251, %v3254
    %v3256 = vsel %vm3245, nan, %v3255
    %v3257 = vand.u32 2147483647, %v1648
    %vm3258 = vcmp.le.f32.partialorder %v3257, 0.7853982
    %vm3259 = vcmp.lt.s32.totalorder %v1648, 0
    %v3260 = vand.u32 %v1648, 2139095040
    %v3261 = vshrl.u32 %v3260, 23
    %v3262 = vsub.s32 %v3261, 127
    %v3263 = vand.u32 2147483647, %v1648
    %v3264 = vand.u32 %v3263, 8388607
    %v3265 = vor.u32 %v3264, 8388608
    %v3266 = vsub.s32 0, %v3265
    %v3267 = vadd.s32 %v3262, 1
    %vm3268 = vcmp.gt.s32.totalorder %v3267, 0
    %v3269 = vsel %vm3268, %v3267, 0
    %v3270 = vshrl.u32 %v3269, 5
    %v3271 = vand.u32 %v3269, 31
    %v3272 = vsub.s32 32, %v3271
    %v3273 = vshrl.u32 683565275, %v3272
    %v3274 = vshll.u32 683565275, %v3271
    %v3275 = vshrl.u32 2475754826, %v3272
    %v3276 = vor.u32 %v3274, %v3275
    %v3277 = vshll.u32 2475754826, %v3271
    %v3278 = vshrl.u32 2131351028, %v3272
    %v3279 = vor.u32 %v3277, %v3278
    %v3280 = vshll.u32 2131351028, %v3271
    %v3281 = vshrl.u32 2102212464, %v3272
    %v3282 = vor.u32 %v3280, %v3281
    %v3283 = vshll.u32 2102212464, %v3271
    %v3284 = vshrl.u32 920167782, %v3272
    %v3285 = vor.u32 %v3283, %v3284
    %v3286 = vshll.u32 920167782, %v3271
    %v3287 = vshrl.u32 1326507024, %v3272
    %v3288 = vor.u32 %v3286, %v3287
    %vm3289 = vcmp.lt.s32.totalorder %v3270, 1
    %vm3290 = vcmp.lt.s32.totalorder %v3270, 2
    %vm3291 = vcmp.lt.s32.totalorder %v3270, 3
    %vm3292 = vcmp.lt.s32.totalorder %v3270, 4
    %v3293 = vsel %vm3289, %v3273, %v3276
    %v3294 = vsel %vm3292, %v3282, 2102212464
    %v3295 = vsel %vm3291, %v3279, %v3294
    %v3296 = vsel %vm3290, %v3293, %v3295
    %v3297 = vsel %vm3289, %v3276, %v3279
    %v3298 = vsel %vm3292, %v3285, 920167782
    %v3299 = vsel %vm3291, %v3282, %v3298
    %v3300 = vsel %vm3290, %v3297, %v3299
    %v3301 = vsel %vm3289, %v3279, %v3282
    %v3302 = vsel %vm3292, %v3288, 1326507024
    %v3303 = vsel %vm3291, %v3285, %v3302
    %v3304 = vsel %vm3290, %v3301, %v3303
    %v3305 = vshll.u32 %v3265, 8
    %v3306 = vmul.u32.u64.compose %v3305, %v3304
    %v3307 = vextract.low.u32 %v3306
    %v3308 = vextract.high.u32 %v3306
    %v3309 = vmul.u32.u64.compose %v3305, %v3300
    %v3310 = vextract.low.u32 %v3309
    %v3311 = vextract.high.u32 %v3309
    %v3312 = vmul.u32 %v3305, %v3296
    %v3313 = vadd.s32 %v3308, %v3310
    %vm3314 = vc.u32 %v3308, %v3310
    %v3315 = vadd.s32 %v3311, 1
    %v3316 = vsel %vm3314, %v3315, %v3311
    %v3317 = vadd.s32 %v3312, %v3316
    %v3318 = vadd.s32 %v3317, 536870912
    %v3319 = vshrl.u32 %v3318, 30
    %v3320 = vshll.u32 %v3319, 30
    %v3321 = vsub.s32 %v3317, %v3320
    %vm3322 = vcmp.lt.s32.totalorder %v3321, 0
    %v3323 = vsub.s32 0, %v3321
    %v3324 = vsel %vm3322, %v3323, %v3321
    %v3325 = vclz %v3324
    %v3326 = vsub.s32 %v3325, 2
    %vm3327 = vcmp.gt.s32.totalorder 0, %v3326
    %v3328 = vsel %vm3327, 0, %v3326
    %v3329 = vsub.s32 32, %v3328
    %v3330 = vshll.u32 %v3321, %v3328
    %v3331 = vshrl.u32 %v3313, %v3329
    %v3332 = vor.u32 %v3330, %v3331
    %v3333 = vsub.s32 4294967266, %v3328
    %v3334 = vadd.s32 %v3333, 127
    %v3335 = vshll.u32 %v3334, 23
    %v3336 = vor.u32 4788187, %v3335
    %v3337 = vand.u32 2147483647, %v3336
    %v3339 = vcvt.s32.f32 %v3332
    %v3340 = vmul.f32 %v3339, %v3337
    %v3341 = vxor.u32 %v3340, 2147483648
    %v3342 = vsel %vm3259, %v3341, %v3340
    %v3343 = vsub.s32 4, %v3319
    %v3344 = vsel %vm3259, %v3343, %v3319
    %v3345 = vsel %vm3258, %v1648, %v3342
    %v3346 = vsel %vm3258, 0, %v3344
    %v3347 = vcosq.f32.pop %v3345
    %v3348 = vsinq.f32.pop %v3345
    %vm3349 = vweird.f32 %v1648
    %v3350 = vadd.s32 %v3346, 3
    %v3351 = vand.u32 %v3350, 3
    %vm3352 = vcmp.lt.s32.totalorder %v3351, 2
    %vm3353 = vcmp.eq.s32.totalorder %v3351, 0
    %v3354 = vxor.u32 %v3348, 2147483648
    %v3355 = vsel %vm3353, %v3347, %v3354
    %vm3356 = vcmp.eq.s32.totalorder %v3351, 2
    %v3357 = vxor.u32 %v3347, 2147483648
    %v3358 = vsel %vm3356, %v3357, %v3348
    %v3359 = vsel %vm3352, %v3355, %v3358
    %v3360 = vsel %vm3349, nan, %v3359
    %v3361 = vand.u32 2147483647, %v1649
    %vm3362 = vcmp.le.f32.partialorder %v3361, 0.7853982
    %vm3363 = vcmp.lt.s32.totalorder %v1649, 0
    %v3364 = vand.u32 %v1649, 2139095040
    %v3365 = vshrl.u32 %v3364, 23
    %v3366 = vsub.s32 %v3365, 127
    %v3367 = vand.u32 2147483647, %v1649
    %v3368 = vand.u32 %v3367, 8388607
    %v3369 = vor.u32 %v3368, 8388608
    %v3370 = vsub.s32 0, %v3369
    %v3371 = vadd.s32 %v3366, 1
    %vm3372 = vcmp.gt.s32.totalorder %v3371, 0
    %v3373 = vsel %vm3372, %v3371, 0
    %v3374 = vshrl.u32 %v3373, 5
    %v3375 = vand.u32 %v3373, 31
    %v3376 = vsub.s32 32, %v3375
    %v3377 = vshrl.u32 683565275, %v3376
    %v3378 = vshll.u32 683565275, %v3375
    %v3379 = vshrl.u32 2475754826, %v3376
    %v3380 = vor.u32 %v3378, %v3379
    %v3381 = vshll.u32 2475754826, %v3375
    %v3382 = vshrl.u32 2131351028, %v3376
    %v3383 = vor.u32 %v3381, %v3382
    %v3384 = vshll.u32 2131351028, %v3375
    %v3385 = vshrl.u32 2102212464, %v3376
    %v3386 = vor.u32 %v3384, %v3385
    %v3387 = vshll.u32 2102212464, %v3375
    %v3388 = vshrl.u32 920167782, %v3376
    %v3389 = vor.u32 %v3387, %v3388
    %v3390 = vshll.u32 920167782, %v3375
    %v3391 = vshrl.u32 1326507024, %v3376
    %v3392 = vor.u32 %v3390, %v3391
    %vm3393 = vcmp.lt.s32.totalorder %v3374, 1
    %vm3394 = vcmp.lt.s32.totalorder %v3374, 2
    %vm3395 = vcmp.lt.s32.totalorder %v3374, 3
    %vm3396 = vcmp.lt.s32.totalorder %v3374, 4
    %v3397 = vsel %vm3393, %v3377, %v3380
    %v3398 = vsel %vm3396, %v3386, 2102212464
    %v3399 = vsel %vm3395, %v3383, %v3398
    %v3400 = vsel %vm3394, %v3397, %v3399
    %v3401 = vsel %vm3393, %v3380, %v3383
    %v3402 = vsel %vm3396, %v3389, 920167782
    %v3403 = vsel %vm3395, %v3386, %v3402
    %v3404 = vsel %vm3394, %v3401, %v3403
    %v3405 = vsel %vm3393, %v3383, %v3386
    %v3406 = vsel %vm3396, %v3392, 1326507024
    %v3407 = vsel %vm3395, %v3389, %v3406
    %v3408 = vsel %vm3394, %v3405, %v3407
    %v3409 = vshll.u32 %v3369, 8
    %v3410 = vmul.u32.u64.compose %v3409, %v3408
    %v3411 = vextract.low.u32 %v3410
    %v3412 = vextract.high.u32 %v3410
    %v3413 = vmul.u32.u64.compose %v3409, %v3404
    %v3414 = vextract.low.u32 %v3413
    %v3415 = vextract.high.u32 %v3413
    %v3416 = vmul.u32 %v3409, %v3400
    %v3417 = vadd.s32 %v3412, %v3414
    %vm3418 = vc.u32 %v3412, %v3414
    %v3419 = vadd.s32 %v3415, 1
    %v3420 = vsel %vm3418, %v3419, %v3415
    %v3421 = vadd.s32 %v3416, %v3420
    %v3422 = vadd.s32 %v3421, 536870912
    %v3423 = vshrl.u32 %v3422, 30
    %v3424 = vshll.u32 %v3423, 30
    %v3425 = vsub.s32 %v3421, %v3424
    %vm3426 = vcmp.lt.s32.totalorder %v3425, 0
    %v3427 = vsub.s32 0, %v3425
    %v3428 = vsel %vm3426, %v3427, %v3425
    %v3429 = vclz %v3428
    %v3430 = vsub.s32 %v3429, 2
    %vm3431 = vcmp.gt.s32.totalorder 0, %v3430
    %v3432 = vsel %vm3431, 0, %v3430
    %v3433 = vsub.s32 32, %v3432
    %v3434 = vshll.u32 %v3425, %v3432
    %v3435 = vshrl.u32 %v3417, %v3433
    %v3436 = vor.u32 %v3434, %v3435
    %v3437 = vsub.s32 4294967266, %v3432
    %v3438 = vadd.s32 %v3437, 127
    %v3439 = vshll.u32 %v3438, 23
    %v3440 = vor.u32 4788187, %v3439
    %v3441 = vand.u32 2147483647, %v3440
    %v3443 = vcvt.s32.f32 %v3436
    %v3444 = vmul.f32 %v3443, %v3441
    %v3445 = vxor.u32 %v3444, 2147483648
    %v3446 = vsel %vm3363, %v3445, %v3444
    %v3447 = vsub.s32 4, %v3423
    %v3448 = vsel %vm3363, %v3447, %v3423
    %v3449 = vsel %vm3362, %v1649, %v3446
    %v3450 = vsel %vm3362, 0, %v3448
    %v3451 = vcosq.f32.pop %v3449
    %v3452 = vsinq.f32.pop %v3449
    %vm3453 = vweird.f32 %v1649
    %v3454 = vadd.s32 %v3450, 3
    %v3455 = vand.u32 %v3454, 3
    %vm3456 = vcmp.lt.s32.totalorder %v3455, 2
    %vm3457 = vcmp.eq.s32.totalorder %v3455, 0
    %v3458 = vxor.u32 %v3452, 2147483648
    %v3459 = vsel %vm3457, %v3451, %v3458
    %vm3460 = vcmp.eq.s32.totalorder %v3455, 2
    %v3461 = vxor.u32 %v3451, 2147483648
    %v3462 = vsel %vm3460, %v3461, %v3452
    %v3463 = vsel %vm3456, %v3459, %v3462
    %v3464 = vsel %vm3453, nan, %v3463
    %v3465 = vand.u32 2147483647, %v1650
    %vm3466 = vcmp.le.f32.partialorder %v3465, 0.7853982
    %vm3467 = vcmp.lt.s32.totalorder %v1650, 0
    %v3468 = vand.u32 %v1650, 2139095040
    %v3469 = vshrl.u32 %v3468, 23
    %v3470 = vsub.s32 %v3469, 127
    %v3471 = vand.u32 2147483647, %v1650
    %v3472 = vand.u32 %v3471, 8388607
    %v3473 = vor.u32 %v3472, 8388608
    %v3474 = vsub.s32 0, %v3473
    %v3475 = vadd.s32 %v3470, 1
    %vm3476 = vcmp.gt.s32.totalorder %v3475, 0
    %v3477 = vsel %vm3476, %v3475, 0
    %v3478 = vshrl.u32 %v3477, 5
    %v3479 = vand.u32 %v3477, 31
    %v3480 = vsub.s32 32, %v3479
    %v3481 = vshrl.u32 683565275, %v3480
    %v3482 = vshll.u32 683565275, %v3479
    %v3483 = vshrl.u32 2475754826, %v3480
    %v3484 = vor.u32 %v3482, %v3483
    %v3485 = vshll.u32 2475754826, %v3479
    %v3486 = vshrl.u32 2131351028, %v3480
    %v3487 = vor.u32 %v3485, %v3486
    %v3488 = vshll.u32 2131351028, %v3479
    %v3489 = vshrl.u32 2102212464, %v3480
    %v3490 = vor.u32 %v3488, %v3489
    %v3491 = vshll.u32 2102212464, %v3479
    %v3492 = vshrl.u32 920167782, %v3480
    %v3493 = vor.u32 %v3491, %v3492
    %v3494 = vshll.u32 920167782, %v3479
    %v3495 = vshrl.u32 1326507024, %v3480
    %v3496 = vor.u32 %v3494, %v3495
    %vm3497 = vcmp.lt.s32.totalorder %v3478, 1
    %vm3498 = vcmp.lt.s32.totalorder %v3478, 2
    %vm3499 = vcmp.lt.s32.totalorder %v3478, 3
    %vm3500 = vcmp.lt.s32.totalorder %v3478, 4
    %v3501 = vsel %vm3497, %v3481, %v3484
    %v3502 = vsel %vm3500, %v3490, 2102212464
    %v3503 = vsel %vm3499, %v3487, %v3502
    %v3504 = vsel %vm3498, %v3501, %v3503
    %v3505 = vsel %vm3497, %v3484, %v3487
    %v3506 = vsel %vm3500, %v3493, 920167782
    %v3507 = vsel %vm3499, %v3490, %v3506
    %v3508 = vsel %vm3498, %v3505, %v3507
    %v3509 = vsel %vm3497, %v3487, %v3490
    %v3510 = vsel %vm3500, %v3496, 1326507024
    %v3511 = vsel %vm3499, %v3493, %v3510
    %v3512 = vsel %vm3498, %v3509, %v3511
    %v3513 = vshll.u32 %v3473, 8
    %v3514 = vmul.u32.u64.compose %v3513, %v3512
    %v3515 = vextract.low.u32 %v3514
    %v3516 = vextract.high.u32 %v3514
    %v3517 = vmul.u32.u64.compose %v3513, %v3508
    %v3518 = vextract.low.u32 %v3517
    %v3519 = vextract.high.u32 %v3517
    %v3520 = vmul.u32 %v3513, %v3504
    %v3521 = vadd.s32 %v3516, %v3518
    %vm3522 = vc.u32 %v3516, %v3518
    %v3523 = vadd.s32 %v3519, 1
    %v3524 = vsel %vm3522, %v3523, %v3519
    %v3525 = vadd.s32 %v3520, %v3524
    %v3526 = vadd.s32 %v3525, 536870912
    %v3527 = vshrl.u32 %v3526, 30
    %v3528 = vshll.u32 %v3527, 30
    %v3529 = vsub.s32 %v3525, %v3528
    %vm3530 = vcmp.lt.s32.totalorder %v3529, 0
    %v3531 = vsub.s32 0, %v3529
    %v3532 = vsel %vm3530, %v3531, %v3529
    %v3533 = vclz %v3532
    %v3534 = vsub.s32 %v3533, 2
    %vm3535 = vcmp.gt.s32.totalorder 0, %v3534
    %v3536 = vsel %vm3535, 0, %v3534
    %v3537 = vsub.s32 32, %v3536
    %v3538 = vshll.u32 %v3529, %v3536
    %v3539 = vshrl.u32 %v3521, %v3537
    %v3540 = vor.u32 %v3538, %v3539
    %v3541 = vsub.s32 4294967266, %v3536
    %v3542 = vadd.s32 %v3541, 127
    %v3543 = vshll.u32 %v3542, 23
    %v3544 = vor.u32 4788187, %v3543
    %v3545 = vand.u32 2147483647, %v3544
    %v3547 = vcvt.s32.f32 %v3540
    %v3548 = vmul.f32 %v3547, %v3545
    %v3549 = vxor.u32 %v3548, 2147483648
    %v3550 = vsel %vm3467, %v3549, %v3548
    %v3551 = vsub.s32 4, %v3527
    %v3552 = vsel %vm3467, %v3551, %v3527
    %v3553 = vsel %vm3466, %v1650, %v3550
    %v3554 = vsel %vm3466, 0, %v3552
    %v3555 = vcosq.f32.pop %v3553
    %v3556 = vsinq.f32.pop %v3553
    %vm3557 = vweird.f32 %v1650
    %v3558 = vadd.s32 %v3554, 3
    %v3559 = vand.u32 %v3558, 3
    %vm3560 = vcmp.lt.s32.totalorder %v3559, 2
    %vm3561 = vcmp.eq.s32.totalorder %v3559, 0
    %v3562 = vxor.u32 %v3556, 2147483648
    %v3563 = vsel %vm3561, %v3555, %v3562
    %vm3564 = vcmp.eq.s32.totalorder %v3559, 2
    %v3565 = vxor.u32 %v3555, 2147483648
    %v3566 = vsel %vm3564, %v3565, %v3556
    %v3567 = vsel %vm3560, %v3563, %v3566
    %v3568 = vsel %vm3557, nan, %v3567
    %v3569 = vand.u32 2147483647, %v1651
    %vm3570 = vcmp.le.f32.partialorder %v3569, 0.7853982
    %vm3571 = vcmp.lt.s32.totalorder %v1651, 0
    %v3572 = vand.u32 %v1651, 2139095040
    %v3573 = vshrl.u32 %v3572, 23
    %v3574 = vsub.s32 %v3573, 127
    %v3575 = vand.u32 2147483647, %v1651
    %v3576 = vand.u32 %v3575, 8388607
    %v3577 = vor.u32 %v3576, 8388608
    %v3578 = vsub.s32 0, %v3577
    %v3579 = vadd.s32 %v3574, 1
    %vm3580 = vcmp.gt.s32.totalorder %v3579, 0
    %v3581 = vsel %vm3580, %v3579, 0
    %v3582 = vshrl.u32 %v3581, 5
    %v3583 = vand.u32 %v3581, 31
    %v3584 = vsub.s32 32, %v3583
    %v3585 = vshrl.u32 683565275, %v3584
    %v3586 = vshll.u32 683565275, %v3583
    %v3587 = vshrl.u32 2475754826, %v3584
    %v3588 = vor.u32 %v3586, %v3587
    %v3589 = vshll.u32 2475754826, %v3583
    %v3590 = vshrl.u32 2131351028, %v3584
    %v3591 = vor.u32 %v3589, %v3590
    %v3592 = vshll.u32 2131351028, %v3583
    %v3593 = vshrl.u32 2102212464, %v3584
    %v3594 = vor.u32 %v3592, %v3593
    %v3595 = vshll.u32 2102212464, %v3583
    %v3596 = vshrl.u32 920167782, %v3584
    %v3597 = vor.u32 %v3595, %v3596
    %v3598 = vshll.u32 920167782, %v3583
    %v3599 = vshrl.u32 1326507024, %v3584
    %v3600 = vor.u32 %v3598, %v3599
    %vm3601 = vcmp.lt.s32.totalorder %v3582, 1
    %vm3602 = vcmp.lt.s32.totalorder %v3582, 2
    %vm3603 = vcmp.lt.s32.totalorder %v3582, 3
    %vm3604 = vcmp.lt.s32.totalorder %v3582, 4
    %v3605 = vsel %vm3601, %v3585, %v3588
    %v3606 = vsel %vm3604, %v3594, 2102212464
    %v3607 = vsel %vm3603, %v3591, %v3606
    %v3608 = vsel %vm3602, %v3605, %v3607
    %v3609 = vsel %vm3601, %v3588, %v3591
    %v3610 = vsel %vm3604, %v3597, 920167782
    %v3611 = vsel %vm3603, %v3594, %v3610
    %v3612 = vsel %vm3602, %v3609, %v3611
    %v3613 = vsel %vm3601, %v3591, %v3594
    %v3614 = vsel %vm3604, %v3600, 1326507024
    %v3615 = vsel %vm3603, %v3597, %v3614
    %v3616 = vsel %vm3602, %v3613, %v3615
    %v3617 = vshll.u32 %v3577, 8
    %v3618 = vmul.u32.u64.compose %v3617, %v3616
    %v3619 = vextract.low.u32 %v3618
    %v3620 = vextract.high.u32 %v3618
    %v3621 = vmul.u32.u64.compose %v3617, %v3612
    %v3622 = vextract.low.u32 %v3621
    %v3623 = vextract.high.u32 %v3621
    %v3624 = vmul.u32 %v3617, %v3608
    %v3625 = vadd.s32 %v3620, %v3622
    %vm3626 = vc.u32 %v3620, %v3622
    %v3627 = vadd.s32 %v3623, 1
    %v3628 = vsel %vm3626, %v3627, %v3623
    %v3629 = vadd.s32 %v3624, %v3628
    %v3630 = vadd.s32 %v3629, 536870912
    %v3631 = vshrl.u32 %v3630, 30
    %v3632 = vshll.u32 %v3631, 30
    %v3633 = vsub.s32 %v3629, %v3632
    %vm3634 = vcmp.lt.s32.totalorder %v3633, 0
    %v3635 = vsub.s32 0, %v3633
    %v3636 = vsel %vm3634, %v3635, %v3633
    %v3637 = vclz %v3636
    %v3638 = vsub.s32 %v3637, 2
    %vm3639 = vcmp.gt.s32.totalorder 0, %v3638
    %v3640 = vsel %vm3639, 0, %v3638
    %v3641 = vsub.s32 32, %v3640
    %v3642 = vshll.u32 %v3633, %v3640
    %v3643 = vshrl.u32 %v3625, %v3641
    %v3644 = vor.u32 %v3642, %v3643
    %v3645 = vsub.s32 4294967266, %v3640
    %v3646 = vadd.s32 %v3645, 127
    %v3647 = vshll.u32 %v3646, 23
    %v3648 = vor.u32 4788187, %v3647
    %v3649 = vand.u32 2147483647, %v3648
    %v3651 = vcvt.s32.f32 %v3644
    %v3652 = vmul.f32 %v3651, %v3649
    %v3653 = vxor.u32 %v3652, 2147483648
    %v3654 = vsel %vm3571, %v3653, %v3652
    %v3655 = vsub.s32 4, %v3631
    %v3656 = vsel %vm3571, %v3655, %v3631
    %v3657 = vsel %vm3570, %v1651, %v3654
    %v3658 = vsel %vm3570, 0, %v3656
    %v3659 = vcosq.f32.pop %v3657
    %v3660 = vsinq.f32.pop %v3657
    %vm3661 = vweird.f32 %v1651
    %v3662 = vadd.s32 %v3658, 3
    %v3663 = vand.u32 %v3662, 3
    %vm3664 = vcmp.lt.s32.totalorder %v3663, 2
    %vm3665 = vcmp.eq.s32.totalorder %v3663, 0
    %v3666 = vxor.u32 %v3660, 2147483648
    %v3667 = vsel %vm3665, %v3659, %v3666
    %vm3668 = vcmp.eq.s32.totalorder %v3663, 2
    %v3669 = vxor.u32 %v3659, 2147483648
    %v3670 = vsel %vm3668, %v3669, %v3660
    %v3671 = vsel %vm3664, %v3667, %v3670
    %v3672 = vsel %vm3661, nan, %v3671
    %v3673 = vand.u32 2147483647, %v1652
    %vm3674 = vcmp.le.f32.partialorder %v3673, 0.7853982
    %vm3675 = vcmp.lt.s32.totalorder %v1652, 0
    %v3676 = vand.u32 %v1652, 2139095040
    %v3677 = vshrl.u32 %v3676, 23
    %v3678 = vsub.s32 %v3677, 127
    %v3679 = vand.u32 2147483647, %v1652
    %v3680 = vand.u32 %v3679, 8388607
    %v3681 = vor.u32 %v3680, 8388608
    %v3682 = vsub.s32 0, %v3681
    %v3683 = vadd.s32 %v3678, 1
    %vm3684 = vcmp.gt.s32.totalorder %v3683, 0
    %v3685 = vsel %vm3684, %v3683, 0
    %v3686 = vshrl.u32 %v3685, 5
    %v3687 = vand.u32 %v3685, 31
    %v3688 = vsub.s32 32, %v3687
    %v3689 = vshrl.u32 683565275, %v3688
    %v3690 = vshll.u32 683565275, %v3687
    %v3691 = vshrl.u32 2475754826, %v3688
    %v3692 = vor.u32 %v3690, %v3691
    %v3693 = vshll.u32 2475754826, %v3687
    %v3694 = vshrl.u32 2131351028, %v3688
    %v3695 = vor.u32 %v3693, %v3694
    %v3696 = vshll.u32 2131351028, %v3687
    %v3697 = vshrl.u32 2102212464, %v3688
    %v3698 = vor.u32 %v3696, %v3697
    %v3699 = vshll.u32 2102212464, %v3687
    %v3700 = vshrl.u32 920167782, %v3688
    %v3701 = vor.u32 %v3699, %v3700
    %v3702 = vshll.u32 920167782, %v3687
    %v3703 = vshrl.u32 1326507024, %v3688
    %v3704 = vor.u32 %v3702, %v3703
    %vm3705 = vcmp.lt.s32.totalorder %v3686, 1
    %vm3706 = vcmp.lt.s32.totalorder %v3686, 2
    %vm3707 = vcmp.lt.s32.totalorder %v3686, 3
    %vm3708 = vcmp.lt.s32.totalorder %v3686, 4
    %v3709 = vsel %vm3705, %v3689, %v3692
    %v3710 = vsel %vm3708, %v3698, 2102212464
    %v3711 = vsel %vm3707, %v3695, %v3710
    %v3712 = vsel %vm3706, %v3709, %v3711
    %v3713 = vsel %vm3705, %v3692, %v3695
    %v3714 = vsel %vm3708, %v3701, 920167782
    %v3715 = vsel %vm3707, %v3698, %v3714
    %v3716 = vsel %vm3706, %v3713, %v3715
    %v3717 = vsel %vm3705, %v3695, %v3698
    %v3718 = vsel %vm3708, %v3704, 1326507024
    %v3719 = vsel %vm3707, %v3701, %v3718
    %v3720 = vsel %vm3706, %v3717, %v3719
    %v3721 = vshll.u32 %v3681, 8
    %v3722 = vmul.u32.u64.compose %v3721, %v3720
    %v3723 = vextract.low.u32 %v3722
    %v3724 = vextract.high.u32 %v3722
    %v3725 = vmul.u32.u64.compose %v3721, %v3716
    %v3726 = vextract.low.u32 %v3725
    %v3727 = vextract.high.u32 %v3725
    %v3728 = vmul.u32 %v3721, %v3712
    %v3729 = vadd.s32 %v3724, %v3726
    %vm3730 = vc.u32 %v3724, %v3726
    %v3731 = vadd.s32 %v3727, 1
    %v3732 = vsel %vm3730, %v3731, %v3727
    %v3733 = vadd.s32 %v3728, %v3732
    %v3734 = vadd.s32 %v3733, 536870912
    %v3735 = vshrl.u32 %v3734, 30
    %v3736 = vshll.u32 %v3735, 30
    %v3737 = vsub.s32 %v3733, %v3736
    %vm3738 = vcmp.lt.s32.totalorder %v3737, 0
    %v3739 = vsub.s32 0, %v3737
    %v3740 = vsel %vm3738, %v3739, %v3737
    %v3741 = vclz %v3740
    %v3742 = vsub.s32 %v3741, 2
    %vm3743 = vcmp.gt.s32.totalorder 0, %v3742
    %v3744 = vsel %vm3743, 0, %v3742
    %v3745 = vsub.s32 32, %v3744
    %v3746 = vshll.u32 %v3737, %v3744
    %v3747 = vshrl.u32 %v3729, %v3745
    %v3748 = vor.u32 %v3746, %v3747
    %v3749 = vsub.s32 4294967266, %v3744
    %v3750 = vadd.s32 %v3749, 127
    %v3751 = vshll.u32 %v3750, 23
    %v3752 = vor.u32 4788187, %v3751
    %v3753 = vand.u32 2147483647, %v3752
    %v3755 = vcvt.s32.f32 %v3748
    %v3756 = vmul.f32 %v3755, %v3753
    %v3757 = vxor.u32 %v3756, 2147483648
    %v3758 = vsel %vm3675, %v3757, %v3756
    %v3759 = vsub.s32 4, %v3735
    %v3760 = vsel %vm3675, %v3759, %v3735
    %v3761 = vsel %vm3674, %v1652, %v3758
    %v3762 = vsel %vm3674, 0, %v3760
    %v3763 = vcosq.f32.pop %v3761
    %v3764 = vsinq.f32.pop %v3761
    %vm3765 = vweird.f32 %v1652
    %v3766 = vadd.s32 %v3762, 3
    %v3767 = vand.u32 %v3766, 3
    %vm3768 = vcmp.lt.s32.totalorder %v3767, 2
    %vm3769 = vcmp.eq.s32.totalorder %v3767, 0
    %v3770 = vxor.u32 %v3764, 2147483648
    %v3771 = vsel %vm3769, %v3763, %v3770
    %vm3772 = vcmp.eq.s32.totalorder %v3767, 2
    %v3773 = vxor.u32 %v3763, 2147483648
    %v3774 = vsel %vm3772, %v3773, %v3764
    %v3775 = vsel %vm3768, %v3771, %v3774
    %v3776 = vsel %vm3765, nan, %v3775
    %v3777 = vand.u32 2147483647, %v1653
    %vm3778 = vcmp.le.f32.partialorder %v3777, 0.7853982
    %vm3779 = vcmp.lt.s32.totalorder %v1653, 0
    %v3780 = vand.u32 %v1653, 2139095040
    %v3781 = vshrl.u32 %v3780, 23
    %v3782 = vsub.s32 %v3781, 127
    %v3783 = vand.u32 2147483647, %v1653
    %v3784 = vand.u32 %v3783, 8388607
    %v3785 = vor.u32 %v3784, 8388608
    %v3786 = vsub.s32 0, %v3785
    %v3787 = vadd.s32 %v3782, 1
    %vm3788 = vcmp.gt.s32.totalorder %v3787, 0
    %v3789 = vsel %vm3788, %v3787, 0
    %v3790 = vshrl.u32 %v3789, 5
    %v3791 = vand.u32 %v3789, 31
    %v3792 = vsub.s32 32, %v3791
    %v3793 = vshrl.u32 683565275, %v3792
    %v3794 = vshll.u32 683565275, %v3791
    %v3795 = vshrl.u32 2475754826, %v3792
    %v3796 = vor.u32 %v3794, %v3795
    %v3797 = vshll.u32 2475754826, %v3791
    %v3798 = vshrl.u32 2131351028, %v3792
    %v3799 = vor.u32 %v3797, %v3798
    %v3800 = vshll.u32 2131351028, %v3791
    %v3801 = vshrl.u32 2102212464, %v3792
    %v3802 = vor.u32 %v3800, %v3801
    %v3803 = vshll.u32 2102212464, %v3791
    %v3804 = vshrl.u32 920167782, %v3792
    %v3805 = vor.u32 %v3803, %v3804
    %v3806 = vshll.u32 920167782, %v3791
    %v3807 = vshrl.u32 1326507024, %v3792
    %v3808 = vor.u32 %v3806, %v3807
    %vm3809 = vcmp.lt.s32.totalorder %v3790, 1
    %vm3810 = vcmp.lt.s32.totalorder %v3790, 2
    %vm3811 = vcmp.lt.s32.totalorder %v3790, 3
    %vm3812 = vcmp.lt.s32.totalorder %v3790, 4
    %v3813 = vsel %vm3809, %v3793, %v3796
    %v3814 = vsel %vm3812, %v3802, 2102212464
    %v3815 = vsel %vm3811, %v3799, %v3814
    %v3816 = vsel %vm3810, %v3813, %v3815
    %v3817 = vsel %vm3809, %v3796, %v3799
    %v3818 = vsel %vm3812, %v3805, 920167782
    %v3819 = vsel %vm3811, %v3802, %v3818
    %v3820 = vsel %vm3810, %v3817, %v3819
    %v3821 = vsel %vm3809, %v3799, %v3802
    %v3822 = vsel %vm3812, %v3808, 1326507024
    %v3823 = vsel %vm3811, %v3805, %v3822
    %v3824 = vsel %vm3810, %v3821, %v3823
    %v3825 = vshll.u32 %v3785, 8
    %v3826 = vmul.u32.u64.compose %v3825, %v3824
    %v3827 = vextract.low.u32 %v3826
    %v3828 = vextract.high.u32 %v3826
    %v3829 = vmul.u32.u64.compose %v3825, %v3820
    %v3830 = vextract.low.u32 %v3829
    %v3831 = vextract.high.u32 %v3829
    %v3832 = vmul.u32 %v3825, %v3816
    %v3833 = vadd.s32 %v3828, %v3830
    %vm3834 = vc.u32 %v3828, %v3830
    %v3835 = vadd.s32 %v3831, 1
    %v3836 = vsel %vm3834, %v3835, %v3831
    %v3837 = vadd.s32 %v3832, %v3836
    %v3838 = vadd.s32 %v3837, 536870912
    %v3839 = vshrl.u32 %v3838, 30
    %v3840 = vshll.u32 %v3839, 30
    %v3841 = vsub.s32 %v3837, %v3840
    %vm3842 = vcmp.lt.s32.totalorder %v3841, 0
    %v3843 = vsub.s32 0, %v3841
    %v3844 = vsel %vm3842, %v3843, %v3841
    %v3845 = vclz %v3844
    %v3846 = vsub.s32 %v3845, 2
    %vm3847 = vcmp.gt.s32.totalorder 0, %v3846
    %v3848 = vsel %vm3847, 0, %v3846
    %v3849 = vsub.s32 32, %v3848
    %v3850 = vshll.u32 %v3841, %v3848
    %v3851 = vshrl.u32 %v3833, %v3849
    %v3852 = vor.u32 %v3850, %v3851
    %v3853 = vsub.s32 4294967266, %v3848
    %v3854 = vadd.s32 %v3853, 127
    %v3855 = vshll.u32 %v3854, 23
    %v3856 = vor.u32 4788187, %v3855
    %v3857 = vand.u32 2147483647, %v3856
    %v3859 = vcvt.s32.f32 %v3852
    %v3860 = vmul.f32 %v3859, %v3857
    %v3861 = vxor.u32 %v3860, 2147483648
    %v3862 = vsel %vm3779, %v3861, %v3860
    %v3863 = vsub.s32 4, %v3839
    %v3864 = vsel %vm3779, %v3863, %v3839
    %v3865 = vsel %vm3778, %v1653, %v3862
    %v3866 = vsel %vm3778, 0, %v3864
    %v3867 = vcosq.f32.pop %v3865
    %v3868 = vsinq.f32.pop %v3865
    %vm3869 = vweird.f32 %v1653
    %v3870 = vadd.s32 %v3866, 3
    %v3871 = vand.u32 %v3870, 3
    %vm3872 = vcmp.lt.s32.totalorder %v3871, 2
    %vm3873 = vcmp.eq.s32.totalorder %v3871, 0
    %v3874 = vxor.u32 %v3868, 2147483648
    %v3875 = vsel %vm3873, %v3867, %v3874
    %vm3876 = vcmp.eq.s32.totalorder %v3871, 2
    %v3877 = vxor.u32 %v3867, 2147483648
    %v3878 = vsel %vm3876, %v3877, %v3868
    %v3879 = vsel %vm3872, %v3875, %v3878
    %v3880 = vsel %vm3869, nan, %v3879
    %v3881 = vand.u32 2147483647, %v1654
    %vm3882 = vcmp.le.f32.partialorder %v3881, 0.7853982
    %vm3883 = vcmp.lt.s32.totalorder %v1654, 0
    %v3884 = vand.u32 %v1654, 2139095040
    %v3885 = vshrl.u32 %v3884, 23
    %v3886 = vsub.s32 %v3885, 127
    %v3887 = vand.u32 2147483647, %v1654
    %v3888 = vand.u32 %v3887, 8388607
    %v3889 = vor.u32 %v3888, 8388608
    %v3890 = vsub.s32 0, %v3889
    %v3891 = vadd.s32 %v3886, 1
    %vm3892 = vcmp.gt.s32.totalorder %v3891, 0
    %v3893 = vsel %vm3892, %v3891, 0
    %v3894 = vshrl.u32 %v3893, 5
    %v3895 = vand.u32 %v3893, 31
    %v3896 = vsub.s32 32, %v3895
    %v3897 = vshrl.u32 683565275, %v3896
    %v3898 = vshll.u32 683565275, %v3895
    %v3899 = vshrl.u32 2475754826, %v3896
    %v3900 = vor.u32 %v3898, %v3899
    %v3901 = vshll.u32 2475754826, %v3895
    %v3902 = vshrl.u32 2131351028, %v3896
    %v3903 = vor.u32 %v3901, %v3902
    %v3904 = vshll.u32 2131351028, %v3895
    %v3905 = vshrl.u32 2102212464, %v3896
    %v3906 = vor.u32 %v3904, %v3905
    %v3907 = vshll.u32 2102212464, %v3895
    %v3908 = vshrl.u32 920167782, %v3896
    %v3909 = vor.u32 %v3907, %v3908
    %v3910 = vshll.u32 920167782, %v3895
    %v3911 = vshrl.u32 1326507024, %v3896
    %v3912 = vor.u32 %v3910, %v3911
    %vm3913 = vcmp.lt.s32.totalorder %v3894, 1
    %vm3914 = vcmp.lt.s32.totalorder %v3894, 2
    %vm3915 = vcmp.lt.s32.totalorder %v3894, 3
    %vm3916 = vcmp.lt.s32.totalorder %v3894, 4
    %v3917 = vsel %vm3913, %v3897, %v3900
    %v3918 = vsel %vm3916, %v3906, 2102212464
    %v3919 = vsel %vm3915, %v3903, %v3918
    %v3920 = vsel %vm3914, %v3917, %v3919
    %v3921 = vsel %vm3913, %v3900, %v3903
    %v3922 = vsel %vm3916, %v3909, 920167782
    %v3923 = vsel %vm3915, %v3906, %v3922
    %v3924 = vsel %vm3914, %v3921, %v3923
    %v3925 = vsel %vm3913, %v3903, %v3906
    %v3926 = vsel %vm3916, %v3912, 1326507024
    %v3927 = vsel %vm3915, %v3909, %v3926
    %v3928 = vsel %vm3914, %v3925, %v3927
    %v3929 = vshll.u32 %v3889, 8
    %v3930 = vmul.u32.u64.compose %v3929, %v3928
    %v3931 = vextract.low.u32 %v3930
    %v3932 = vextract.high.u32 %v3930
    %v3933 = vmul.u32.u64.compose %v3929, %v3924
    %v3934 = vextract.low.u32 %v3933
    %v3935 = vextract.high.u32 %v3933
    %v3936 = vmul.u32 %v3929, %v3920
    %v3937 = vadd.s32 %v3932, %v3934
    %vm3938 = vc.u32 %v3932, %v3934
    %v3939 = vadd.s32 %v3935, 1
    %v3940 = vsel %vm3938, %v3939, %v3935
    %v3941 = vadd.s32 %v3936, %v3940
    %v3942 = vadd.s32 %v3941, 536870912
    %v3943 = vshrl.u32 %v3942, 30
    %v3944 = vshll.u32 %v3943, 30
    %v3945 = vsub.s32 %v3941, %v3944
    %vm3946 = vcmp.lt.s32.totalorder %v3945, 0
    %v3947 = vsub.s32 0, %v3945
    %v3948 = vsel %vm3946, %v3947, %v3945
    %v3949 = vclz %v3948
    %v3950 = vsub.s32 %v3949, 2
    %vm3951 = vcmp.gt.s32.totalorder 0, %v3950
    %v3952 = vsel %vm3951, 0, %v3950
    %v3953 = vsub.s32 32, %v3952
    %v3954 = vshll.u32 %v3945, %v3952
    %v3955 = vshrl.u32 %v3937, %v3953
    %v3956 = vor.u32 %v3954, %v3955
    %v3957 = vsub.s32 4294967266, %v3952
    %v3958 = vadd.s32 %v3957, 127
    %v3959 = vshll.u32 %v3958, 23
    %v3960 = vor.u32 4788187, %v3959
    %v3961 = vand.u32 2147483647, %v3960
    %v3963 = vcvt.s32.f32 %v3956
    %v3964 = vmul.f32 %v3963, %v3961
    %v3965 = vxor.u32 %v3964, 2147483648
    %v3966 = vsel %vm3883, %v3965, %v3964
    %v3967 = vsub.s32 4, %v3943
    %v3968 = vsel %vm3883, %v3967, %v3943
    %v3969 = vsel %vm3882, %v1654, %v3966
    %v3970 = vsel %vm3882, 0, %v3968
    %v3971 = vcosq.f32.pop %v3969
    %v3972 = vsinq.f32.pop %v3969
    %vm3973 = vweird.f32 %v1654
    %v3974 = vadd.s32 %v3970, 3
    %v3975 = vand.u32 %v3974, 3
    %vm3976 = vcmp.lt.s32.totalorder %v3975, 2
    %vm3977 = vcmp.eq.s32.totalorder %v3975, 0
    %v3978 = vxor.u32 %v3972, 2147483648
    %v3979 = vsel %vm3977, %v3971, %v3978
    %vm3980 = vcmp.eq.s32.totalorder %v3975, 2
    %v3981 = vxor.u32 %v3971, 2147483648
    %v3982 = vsel %vm3980, %v3981, %v3972
    %v3983 = vsel %vm3976, %v3979, %v3982
    %v3984 = vsel %vm3973, nan, %v3983
    %v3985 = vand.u32 2147483647, %v1655
    %vm3986 = vcmp.le.f32.partialorder %v3985, 0.7853982
    %vm3987 = vcmp.lt.s32.totalorder %v1655, 0
    %v3988 = vand.u32 %v1655, 2139095040
    %v3989 = vshrl.u32 %v3988, 23
    %v3990 = vsub.s32 %v3989, 127
    %v3991 = vand.u32 2147483647, %v1655
    %v3992 = vand.u32 %v3991, 8388607
    %v3993 = vor.u32 %v3992, 8388608
    %v3994 = vsub.s32 0, %v3993
    %v3995 = vadd.s32 %v3990, 1
    %vm3996 = vcmp.gt.s32.totalorder %v3995, 0
    %v3997 = vsel %vm3996, %v3995, 0
    %v3998 = vshrl.u32 %v3997, 5
    %v3999 = vand.u32 %v3997, 31
    %v4000 = vsub.s32 32, %v3999
    %v4001 = vshrl.u32 683565275, %v4000
    %v4002 = vshll.u32 683565275, %v3999
    %v4003 = vshrl.u32 2475754826, %v4000
    %v4004 = vor.u32 %v4002, %v4003
    %v4005 = vshll.u32 2475754826, %v3999
    %v4006 = vshrl.u32 2131351028, %v4000
    %v4007 = vor.u32 %v4005, %v4006
    %v4008 = vshll.u32 2131351028, %v3999
    %v4009 = vshrl.u32 2102212464, %v4000
    %v4010 = vor.u32 %v4008, %v4009
    %v4011 = vshll.u32 2102212464, %v3999
    %v4012 = vshrl.u32 920167782, %v4000
    %v4013 = vor.u32 %v4011, %v4012
    %v4014 = vshll.u32 920167782, %v3999
    %v4015 = vshrl.u32 1326507024, %v4000
    %v4016 = vor.u32 %v4014, %v4015
    %vm4017 = vcmp.lt.s32.totalorder %v3998, 1
    %vm4018 = vcmp.lt.s32.totalorder %v3998, 2
    %vm4019 = vcmp.lt.s32.totalorder %v3998, 3
    %vm4020 = vcmp.lt.s32.totalorder %v3998, 4
    %v4021 = vsel %vm4017, %v4001, %v4004
    %v4022 = vsel %vm4020, %v4010, 2102212464
    %v4023 = vsel %vm4019, %v4007, %v4022
    %v4024 = vsel %vm4018, %v4021, %v4023
    %v4025 = vsel %vm4017, %v4004, %v4007
    %v4026 = vsel %vm4020, %v4013, 920167782
    %v4027 = vsel %vm4019, %v4010, %v4026
    %v4028 = vsel %vm4018, %v4025, %v4027
    %v4029 = vsel %vm4017, %v4007, %v4010
    %v4030 = vsel %vm4020, %v4016, 1326507024
    %v4031 = vsel %vm4019, %v4013, %v4030
    %v4032 = vsel %vm4018, %v4029, %v4031
    %v4033 = vshll.u32 %v3993, 8
    %v4034 = vmul.u32.u64.compose %v4033, %v4032
    %v4035 = vextract.low.u32 %v4034
    %v4036 = vextract.high.u32 %v4034
    %v4037 = vmul.u32.u64.compose %v4033, %v4028
    %v4038 = vextract.low.u32 %v4037
    %v4039 = vextract.high.u32 %v4037
    %v4040 = vmul.u32 %v4033, %v4024
    %v4041 = vadd.s32 %v4036, %v4038
    %vm4042 = vc.u32 %v4036, %v4038
    %v4043 = vadd.s32 %v4039, 1
    %v4044 = vsel %vm4042, %v4043, %v4039
    %v4045 = vadd.s32 %v4040, %v4044
    %v4046 = vadd.s32 %v4045, 536870912
    %v4047 = vshrl.u32 %v4046, 30
    %v4048 = vshll.u32 %v4047, 30
    %v4049 = vsub.s32 %v4045, %v4048
    %vm4050 = vcmp.lt.s32.totalorder %v4049, 0
    %v4051 = vsub.s32 0, %v4049
    %v4052 = vsel %vm4050, %v4051, %v4049
    %v4053 = vclz %v4052
    %v4054 = vsub.s32 %v4053, 2
    %vm4055 = vcmp.gt.s32.totalorder 0, %v4054
    %v4056 = vsel %vm4055, 0, %v4054
    %v4057 = vsub.s32 32, %v4056
    %v4058 = vshll.u32 %v4049, %v4056
    %v4059 = vshrl.u32 %v4041, %v4057
    %v4060 = vor.u32 %v4058, %v4059
    %v4061 = vsub.s32 4294967266, %v4056
    %v4062 = vadd.s32 %v4061, 127
    %v4063 = vshll.u32 %v4062, 23
    %v4064 = vor.u32 4788187, %v4063
    %v4065 = vand.u32 2147483647, %v4064
    %v4067 = vcvt.s32.f32 %v4060
    %v4068 = vmul.f32 %v4067, %v4065
    %v4069 = vxor.u32 %v4068, 2147483648
    %v4070 = vsel %vm3987, %v4069, %v4068
    %v4071 = vsub.s32 4, %v4047
    %v4072 = vsel %vm3987, %v4071, %v4047
    %v4073 = vsel %vm3986, %v1655, %v4070
    %v4074 = vsel %vm3986, 0, %v4072
    %v4075 = vcosq.f32.pop %v4073
    %v4076 = vsinq.f32.pop %v4073
    %vm4077 = vweird.f32 %v1655
    %v4078 = vadd.s32 %v4074, 3
    %v4079 = vand.u32 %v4078, 3
    %vm4080 = vcmp.lt.s32.totalorder %v4079, 2
    %vm4081 = vcmp.eq.s32.totalorder %v4079, 0
    %v4082 = vxor.u32 %v4076, 2147483648
    %v4083 = vsel %vm4081, %v4075, %v4082
    %vm4084 = vcmp.eq.s32.totalorder %v4079, 2
    %v4085 = vxor.u32 %v4075, 2147483648
    %v4086 = vsel %vm4084, %v4085, %v4076
    %v4087 = vsel %vm4080, %v4083, %v4086
    %v4088 = vsel %vm4077, nan, %v4087
    %v4089 = vand.u32 2147483647, %v1656
    %vm4090 = vcmp.le.f32.partialorder %v4089, 0.7853982
    %vm4091 = vcmp.lt.s32.totalorder %v1656, 0
    %v4092 = vand.u32 %v1656, 2139095040
    %v4093 = vshrl.u32 %v4092, 23
    %v4094 = vsub.s32 %v4093, 127
    %v4095 = vand.u32 2147483647, %v1656
    %v4096 = vand.u32 %v4095, 8388607
    %v4097 = vor.u32 %v4096, 8388608
    %v4098 = vsub.s32 0, %v4097
    %v4099 = vadd.s32 %v4094, 1
    %vm4100 = vcmp.gt.s32.totalorder %v4099, 0
    %v4101 = vsel %vm4100, %v4099, 0
    %v4102 = vshrl.u32 %v4101, 5
    %v4103 = vand.u32 %v4101, 31
    %v4104 = vsub.s32 32, %v4103
    %v4105 = vshrl.u32 683565275, %v4104
    %v4106 = vshll.u32 683565275, %v4103
    %v4107 = vshrl.u32 2475754826, %v4104
    %v4108 = vor.u32 %v4106, %v4107
    %v4109 = vshll.u32 2475754826, %v4103
    %v4110 = vshrl.u32 2131351028, %v4104
    %v4111 = vor.u32 %v4109, %v4110
    %v4112 = vshll.u32 2131351028, %v4103
    %v4113 = vshrl.u32 2102212464, %v4104
    %v4114 = vor.u32 %v4112, %v4113
    %v4115 = vshll.u32 2102212464, %v4103
    %v4116 = vshrl.u32 920167782, %v4104
    %v4117 = vor.u32 %v4115, %v4116
    %v4118 = vshll.u32 920167782, %v4103
    %v4119 = vshrl.u32 1326507024, %v4104
    %v4120 = vor.u32 %v4118, %v4119
    %vm4121 = vcmp.lt.s32.totalorder %v4102, 1
    %vm4122 = vcmp.lt.s32.totalorder %v4102, 2
    %vm4123 = vcmp.lt.s32.totalorder %v4102, 3
    %vm4124 = vcmp.lt.s32.totalorder %v4102, 4
    %v4125 = vsel %vm4121, %v4105, %v4108
    %v4126 = vsel %vm4124, %v4114, 2102212464
    %v4127 = vsel %vm4123, %v4111, %v4126
    %v4128 = vsel %vm4122, %v4125, %v4127
    %v4129 = vsel %vm4121, %v4108, %v4111
    %v4130 = vsel %vm4124, %v4117, 920167782
    %v4131 = vsel %vm4123, %v4114, %v4130
    %v4132 = vsel %vm4122, %v4129, %v4131
    %v4133 = vsel %vm4121, %v4111, %v4114
    %v4134 = vsel %vm4124, %v4120, 1326507024
    %v4135 = vsel %vm4123, %v4117, %v4134
    %v4136 = vsel %vm4122, %v4133, %v4135
    %v4137 = vshll.u32 %v4097, 8
    %v4138 = vmul.u32.u64.compose %v4137, %v4136
    %v4139 = vextract.low.u32 %v4138
    %v4140 = vextract.high.u32 %v4138
    %v4141 = vmul.u32.u64.compose %v4137, %v4132
    %v4142 = vextract.low.u32 %v4141
    %v4143 = vextract.high.u32 %v4141
    %v4144 = vmul.u32 %v4137, %v4128
    %v4145 = vadd.s32 %v4140, %v4142
    %vm4146 = vc.u32 %v4140, %v4142
    %v4147 = vadd.s32 %v4143, 1
    %v4148 = vsel %vm4146, %v4147, %v4143
    %v4149 = vadd.s32 %v4144, %v4148
    %v4150 = vadd.s32 %v4149, 536870912
    %v4151 = vshrl.u32 %v4150, 30
    %v4152 = vshll.u32 %v4151, 30
    %v4153 = vsub.s32 %v4149, %v4152
    %vm4154 = vcmp.lt.s32.totalorder %v4153, 0
    %v4155 = vsub.s32 0, %v4153
    %v4156 = vsel %vm4154, %v4155, %v4153
    %v4157 = vclz %v4156
    %v4158 = vsub.s32 %v4157, 2
    %vm4159 = vcmp.gt.s32.totalorder 0, %v4158
    %v4160 = vsel %vm4159, 0, %v4158
    %v4161 = vsub.s32 32, %v4160
    %v4162 = vshll.u32 %v4153, %v4160
    %v4163 = vshrl.u32 %v4145, %v4161
    %v4164 = vor.u32 %v4162, %v4163
    %v4165 = vsub.s32 4294967266, %v4160
    %v4166 = vadd.s32 %v4165, 127
    %v4167 = vshll.u32 %v4166, 23
    %v4168 = vor.u32 4788187, %v4167
    %v4169 = vand.u32 2147483647, %v4168
    %v4171 = vcvt.s32.f32 %v4164
    %v4172 = vmul.f32 %v4171, %v4169
    %v4173 = vxor.u32 %v4172, 2147483648
    %v4174 = vsel %vm4091, %v4173, %v4172
    %v4175 = vsub.s32 4, %v4151
    %v4176 = vsel %vm4091, %v4175, %v4151
    %v4177 = vsel %vm4090, %v1656, %v4174
    %v4178 = vsel %vm4090, 0, %v4176
    %v4179 = vcosq.f32.pop %v4177
    %v4180 = vsinq.f32.pop %v4177
    %vm4181 = vweird.f32 %v1656
    %v4182 = vadd.s32 %v4178, 3
    %v4183 = vand.u32 %v4182, 3
    %vm4184 = vcmp.lt.s32.totalorder %v4183, 2
    %vm4185 = vcmp.eq.s32.totalorder %v4183, 0
    %v4186 = vxor.u32 %v4180, 2147483648
    %v4187 = vsel %vm4185, %v4179, %v4186
    %vm4188 = vcmp.eq.s32.totalorder %v4183, 2
    %v4189 = vxor.u32 %v4179, 2147483648
    %v4190 = vsel %vm4188, %v4189, %v4180
    %v4191 = vsel %vm4184, %v4187, %v4190
    %v4192 = vsel %vm4181, nan, %v4191
    %v4193 = vand.u32 2147483647, %v1657
    %vm4194 = vcmp.le.f32.partialorder %v4193, 0.7853982
    %vm4195 = vcmp.lt.s32.totalorder %v1657, 0
    %v4196 = vand.u32 %v1657, 2139095040
    %v4197 = vshrl.u32 %v4196, 23
    %v4198 = vsub.s32 %v4197, 127
    %v4199 = vand.u32 2147483647, %v1657
    %v4200 = vand.u32 %v4199, 8388607
    %v4201 = vor.u32 %v4200, 8388608
    %v4202 = vsub.s32 0, %v4201
    %v4203 = vadd.s32 %v4198, 1
    %vm4204 = vcmp.gt.s32.totalorder %v4203, 0
    %v4205 = vsel %vm4204, %v4203, 0
    %v4206 = vshrl.u32 %v4205, 5
    %v4207 = vand.u32 %v4205, 31
    %v4208 = vsub.s32 32, %v4207
    %v4209 = vshrl.u32 683565275, %v4208
    %v4210 = vshll.u32 683565275, %v4207
    %v4211 = vshrl.u32 2475754826, %v4208
    %v4212 = vor.u32 %v4210, %v4211
    %v4213 = vshll.u32 2475754826, %v4207
    %v4214 = vshrl.u32 2131351028, %v4208
    %v4215 = vor.u32 %v4213, %v4214
    %v4216 = vshll.u32 2131351028, %v4207
    %v4217 = vshrl.u32 2102212464, %v4208
    %v4218 = vor.u32 %v4216, %v4217
    %v4219 = vshll.u32 2102212464, %v4207
    %v4220 = vshrl.u32 920167782, %v4208
    %v4221 = vor.u32 %v4219, %v4220
    %v4222 = vshll.u32 920167782, %v4207
    %v4223 = vshrl.u32 1326507024, %v4208
    %v4224 = vor.u32 %v4222, %v4223
    %vm4225 = vcmp.lt.s32.totalorder %v4206, 1
    %vm4226 = vcmp.lt.s32.totalorder %v4206, 2
    %vm4227 = vcmp.lt.s32.totalorder %v4206, 3
    %vm4228 = vcmp.lt.s32.totalorder %v4206, 4
    %v4229 = vsel %vm4225, %v4209, %v4212
    %v4230 = vsel %vm4228, %v4218, 2102212464
    %v4231 = vsel %vm4227, %v4215, %v4230
    %v4232 = vsel %vm4226, %v4229, %v4231
    %v4233 = vsel %vm4225, %v4212, %v4215
    %v4234 = vsel %vm4228, %v4221, 920167782
    %v4235 = vsel %vm4227, %v4218, %v4234
    %v4236 = vsel %vm4226, %v4233, %v4235
    %v4237 = vsel %vm4225, %v4215, %v4218
    %v4238 = vsel %vm4228, %v4224, 1326507024
    %v4239 = vsel %vm4227, %v4221, %v4238
    %v4240 = vsel %vm4226, %v4237, %v4239
    %v4241 = vshll.u32 %v4201, 8
    %v4242 = vmul.u32.u64.compose %v4241, %v4240
    %v4243 = vextract.low.u32 %v4242
    %v4244 = vextract.high.u32 %v4242
    %v4245 = vmul.u32.u64.compose %v4241, %v4236
    %v4246 = vextract.low.u32 %v4245
    %v4247 = vextract.high.u32 %v4245
    %v4248 = vmul.u32 %v4241, %v4232
    %v4249 = vadd.s32 %v4244, %v4246
    %vm4250 = vc.u32 %v4244, %v4246
    %v4251 = vadd.s32 %v4247, 1
    %v4252 = vsel %vm4250, %v4251, %v4247
    %v4253 = vadd.s32 %v4248, %v4252
    %v4254 = vadd.s32 %v4253, 536870912
    %v4255 = vshrl.u32 %v4254, 30
    %v4256 = vshll.u32 %v4255, 30
    %v4257 = vsub.s32 %v4253, %v4256
    %vm4258 = vcmp.lt.s32.totalorder %v4257, 0
    %v4259 = vsub.s32 0, %v4257
    %v4260 = vsel %vm4258, %v4259, %v4257
    %v4261 = vclz %v4260
    %v4262 = vsub.s32 %v4261, 2
    %vm4263 = vcmp.gt.s32.totalorder 0, %v4262
    %v4264 = vsel %vm4263, 0, %v4262
    %v4265 = vsub.s32 32, %v4264
    %v4266 = vshll.u32 %v4257, %v4264
    %v4267 = vshrl.u32 %v4249, %v4265
    %v4268 = vor.u32 %v4266, %v4267
    %v4269 = vsub.s32 4294967266, %v4264
    %v4270 = vadd.s32 %v4269, 127
    %v4271 = vshll.u32 %v4270, 23
    %v4272 = vor.u32 4788187, %v4271
    %v4273 = vand.u32 2147483647, %v4272
    %v4275 = vcvt.s32.f32 %v4268
    %v4276 = vmul.f32 %v4275, %v4273
    %v4277 = vxor.u32 %v4276, 2147483648
    %v4278 = vsel %vm4195, %v4277, %v4276
    %v4279 = vsub.s32 4, %v4255
    %v4280 = vsel %vm4195, %v4279, %v4255
    %v4281 = vsel %vm4194, %v1657, %v4278
    %v4282 = vsel %vm4194, 0, %v4280
    %v4283 = vcosq.f32.pop %v4281
    %v4284 = vsinq.f32.pop %v4281
    %vm4285 = vweird.f32 %v1657
    %v4286 = vadd.s32 %v4282, 3
    %v4287 = vand.u32 %v4286, 3
    %vm4288 = vcmp.lt.s32.totalorder %v4287, 2
    %vm4289 = vcmp.eq.s32.totalorder %v4287, 0
    %v4290 = vxor.u32 %v4284, 2147483648
    %v4291 = vsel %vm4289, %v4283, %v4290
    %vm4292 = vcmp.eq.s32.totalorder %v4287, 2
    %v4293 = vxor.u32 %v4283, 2147483648
    %v4294 = vsel %vm4292, %v4293, %v4284
    %v4295 = vsel %vm4288, %v4291, %v4294
    %v4296 = vsel %vm4285, nan, %v4295
    %v4297 = vand.u32 2147483647, %v1658
    %vm4298 = vcmp.le.f32.partialorder %v4297, 0.7853982
    %vm4299 = vcmp.lt.s32.totalorder %v1658, 0
    %v4300 = vand.u32 %v1658, 2139095040
    %v4301 = vshrl.u32 %v4300, 23
    %v4302 = vsub.s32 %v4301, 127
    %v4303 = vand.u32 2147483647, %v1658
    %v4304 = vand.u32 %v4303, 8388607
    %v4305 = vor.u32 %v4304, 8388608
    %v4306 = vsub.s32 0, %v4305
    %v4307 = vadd.s32 %v4302, 1
    %vm4308 = vcmp.gt.s32.totalorder %v4307, 0
    %v4309 = vsel %vm4308, %v4307, 0
    %v4310 = vshrl.u32 %v4309, 5
    %v4311 = vand.u32 %v4309, 31
    %v4312 = vsub.s32 32, %v4311
    %v4313 = vshrl.u32 683565275, %v4312
    %v4314 = vshll.u32 683565275, %v4311
    %v4315 = vshrl.u32 2475754826, %v4312
    %v4316 = vor.u32 %v4314, %v4315
    %v4317 = vshll.u32 2475754826, %v4311
    %v4318 = vshrl.u32 2131351028, %v4312
    %v4319 = vor.u32 %v4317, %v4318
    %v4320 = vshll.u32 2131351028, %v4311
    %v4321 = vshrl.u32 2102212464, %v4312
    %v4322 = vor.u32 %v4320, %v4321
    %v4323 = vshll.u32 2102212464, %v4311
    %v4324 = vshrl.u32 920167782, %v4312
    %v4325 = vor.u32 %v4323, %v4324
    %v4326 = vshll.u32 920167782, %v4311
    %v4327 = vshrl.u32 1326507024, %v4312
    %v4328 = vor.u32 %v4326, %v4327
    %vm4329 = vcmp.lt.s32.totalorder %v4310, 1
    %vm4330 = vcmp.lt.s32.totalorder %v4310, 2
    %vm4331 = vcmp.lt.s32.totalorder %v4310, 3
    %vm4332 = vcmp.lt.s32.totalorder %v4310, 4
    %v4333 = vsel %vm4329, %v4313, %v4316
    %v4334 = vsel %vm4332, %v4322, 2102212464
    %v4335 = vsel %vm4331, %v4319, %v4334
    %v4336 = vsel %vm4330, %v4333, %v4335
    %v4337 = vsel %vm4329, %v4316, %v4319
    %v4338 = vsel %vm4332, %v4325, 920167782
    %v4339 = vsel %vm4331, %v4322, %v4338
    %v4340 = vsel %vm4330, %v4337, %v4339
    %v4341 = vsel %vm4329, %v4319, %v4322
    %v4342 = vsel %vm4332, %v4328, 1326507024
    %v4343 = vsel %vm4331, %v4325, %v4342
    %v4344 = vsel %vm4330, %v4341, %v4343
    %v4345 = vshll.u32 %v4305, 8
    %v4346 = vmul.u32.u64.compose %v4345, %v4344
    %v4347 = vextract.low.u32 %v4346
    %v4348 = vextract.high.u32 %v4346
    %v4349 = vmul.u32.u64.compose %v4345, %v4340
    %v4350 = vextract.low.u32 %v4349
    %v4351 = vextract.high.u32 %v4349
    %v4352 = vmul.u32 %v4345, %v4336
    %v4353 = vadd.s32 %v4348, %v4350
    %vm4354 = vc.u32 %v4348, %v4350
    %v4355 = vadd.s32 %v4351, 1
    %v4356 = vsel %vm4354, %v4355, %v4351
    %v4357 = vadd.s32 %v4352, %v4356
    %v4358 = vadd.s32 %v4357, 536870912
    %v4359 = vshrl.u32 %v4358, 30
    %v4360 = vshll.u32 %v4359, 30
    %v4361 = vsub.s32 %v4357, %v4360
    %vm4362 = vcmp.lt.s32.totalorder %v4361, 0
    %v4363 = vsub.s32 0, %v4361
    %v4364 = vsel %vm4362, %v4363, %v4361
    %v4365 = vclz %v4364
    %v4366 = vsub.s32 %v4365, 2
    %vm4367 = vcmp.gt.s32.totalorder 0, %v4366
    %v4368 = vsel %vm4367, 0, %v4366
    %v4369 = vsub.s32 32, %v4368
    %v4370 = vshll.u32 %v4361, %v4368
    %v4371 = vshrl.u32 %v4353, %v4369
    %v4372 = vor.u32 %v4370, %v4371
    %v4373 = vsub.s32 4294967266, %v4368
    %v4374 = vadd.s32 %v4373, 127
    %v4375 = vshll.u32 %v4374, 23
    %v4376 = vor.u32 4788187, %v4375
    %v4377 = vand.u32 2147483647, %v4376
    %v4379 = vcvt.s32.f32 %v4372
    %v4380 = vmul.f32 %v4379, %v4377
    %v4381 = vxor.u32 %v4380, 2147483648
    %v4382 = vsel %vm4299, %v4381, %v4380
    %v4383 = vsub.s32 4, %v4359
    %v4384 = vsel %vm4299, %v4383, %v4359
    %v4385 = vsel %vm4298, %v1658, %v4382
    %v4386 = vsel %vm4298, 0, %v4384
    %v4387 = vcosq.f32.pop %v4385
    %v4388 = vsinq.f32.pop %v4385
    %vm4389 = vweird.f32 %v1658
    %v4390 = vadd.s32 %v4386, 3
    %v4391 = vand.u32 %v4390, 3
    %vm4392 = vcmp.lt.s32.totalorder %v4391, 2
    %vm4393 = vcmp.eq.s32.totalorder %v4391, 0
    %v4394 = vxor.u32 %v4388, 2147483648
    %v4395 = vsel %vm4393, %v4387, %v4394
    %vm4396 = vcmp.eq.s32.totalorder %v4391, 2
    %v4397 = vxor.u32 %v4387, 2147483648
    %v4398 = vsel %vm4396, %v4397, %v4388
    %v4399 = vsel %vm4392, %v4395, %v4398
    %v4400 = vsel %vm4389, nan, %v4399
    %v4401 = vand.u32 2147483647, %v1659
    %vm4402 = vcmp.le.f32.partialorder %v4401, 0.7853982
    %vm4403 = vcmp.lt.s32.totalorder %v1659, 0
    %v4404 = vand.u32 %v1659, 2139095040
    %v4405 = vshrl.u32 %v4404, 23
    %v4406 = vsub.s32 %v4405, 127
    %v4407 = vand.u32 2147483647, %v1659
    %v4408 = vand.u32 %v4407, 8388607
    %v4409 = vor.u32 %v4408, 8388608
    %v4410 = vsub.s32 0, %v4409
    %v4411 = vadd.s32 %v4406, 1
    %vm4412 = vcmp.gt.s32.totalorder %v4411, 0
    %v4413 = vsel %vm4412, %v4411, 0
    %v4414 = vshrl.u32 %v4413, 5
    %v4415 = vand.u32 %v4413, 31
    %v4416 = vsub.s32 32, %v4415
    %v4417 = vshrl.u32 683565275, %v4416
    %v4418 = vshll.u32 683565275, %v4415
    %v4419 = vshrl.u32 2475754826, %v4416
    %v4420 = vor.u32 %v4418, %v4419
    %v4421 = vshll.u32 2475754826, %v4415
    %v4422 = vshrl.u32 2131351028, %v4416
    %v4423 = vor.u32 %v4421, %v4422
    %v4424 = vshll.u32 2131351028, %v4415
    %v4425 = vshrl.u32 2102212464, %v4416
    %v4426 = vor.u32 %v4424, %v4425
    %v4427 = vshll.u32 2102212464, %v4415
    %v4428 = vshrl.u32 920167782, %v4416
    %v4429 = vor.u32 %v4427, %v4428
    %v4430 = vshll.u32 920167782, %v4415
    %v4431 = vshrl.u32 1326507024, %v4416
    %v4432 = vor.u32 %v4430, %v4431
    %vm4433 = vcmp.lt.s32.totalorder %v4414, 1
    %vm4434 = vcmp.lt.s32.totalorder %v4414, 2
    %vm4435 = vcmp.lt.s32.totalorder %v4414, 3
    %vm4436 = vcmp.lt.s32.totalorder %v4414, 4
    %v4437 = vsel %vm4433, %v4417, %v4420
    %v4438 = vsel %vm4436, %v4426, 2102212464
    %v4439 = vsel %vm4435, %v4423, %v4438
    %v4440 = vsel %vm4434, %v4437, %v4439
    %v4441 = vsel %vm4433, %v4420, %v4423
    %v4442 = vsel %vm4436, %v4429, 920167782
    %v4443 = vsel %vm4435, %v4426, %v4442
    %v4444 = vsel %vm4434, %v4441, %v4443
    %v4445 = vsel %vm4433, %v4423, %v4426
    %v4446 = vsel %vm4436, %v4432, 1326507024
    %v4447 = vsel %vm4435, %v4429, %v4446
    %v4448 = vsel %vm4434, %v4445, %v4447
    %v4449 = vshll.u32 %v4409, 8
    %v4450 = vmul.u32.u64.compose %v4449, %v4448
    %v4451 = vextract.low.u32 %v4450
    %v4452 = vextract.high.u32 %v4450
    %v4453 = vmul.u32.u64.compose %v4449, %v4444
    %v4454 = vextract.low.u32 %v4453
    %v4455 = vextract.high.u32 %v4453
    %v4456 = vmul.u32 %v4449, %v4440
    %v4457 = vadd.s32 %v4452, %v4454
    %vm4458 = vc.u32 %v4452, %v4454
    %v4459 = vadd.s32 %v4455, 1
    %v4460 = vsel %vm4458, %v4459, %v4455
    %v4461 = vadd.s32 %v4456, %v4460
    %v4462 = vadd.s32 %v4461, 536870912
    %v4463 = vshrl.u32 %v4462, 30
    %v4464 = vshll.u32 %v4463, 30
    %v4465 = vsub.s32 %v4461, %v4464
    %vm4466 = vcmp.lt.s32.totalorder %v4465, 0
    %v4467 = vsub.s32 0, %v4465
    %v4468 = vsel %vm4466, %v4467, %v4465
    %v4469 = vclz %v4468
    %v4470 = vsub.s32 %v4469, 2
    %vm4471 = vcmp.gt.s32.totalorder 0, %v4470
    %v4472 = vsel %vm4471, 0, %v4470
    %v4473 = vsub.s32 32, %v4472
    %v4474 = vshll.u32 %v4465, %v4472
    %v4475 = vshrl.u32 %v4457, %v4473
    %v4476 = vor.u32 %v4474, %v4475
    %v4477 = vsub.s32 4294967266, %v4472
    %v4478 = vadd.s32 %v4477, 127
    %v4479 = vshll.u32 %v4478, 23
    %v4480 = vor.u32 4788187, %v4479
    %v4481 = vand.u32 2147483647, %v4480
    %v4483 = vcvt.s32.f32 %v4476
    %v4484 = vmul.f32 %v4483, %v4481
    %v4485 = vxor.u32 %v4484, 2147483648
    %v4486 = vsel %vm4403, %v4485, %v4484
    %v4487 = vsub.s32 4, %v4463
    %v4488 = vsel %vm4403, %v4487, %v4463
    %v4489 = vsel %vm4402, %v1659, %v4486
    %v4490 = vsel %vm4402, 0, %v4488
    %v4491 = vcosq.f32.pop %v4489
    %v4492 = vsinq.f32.pop %v4489
    %vm4493 = vweird.f32 %v1659
    %v4494 = vadd.s32 %v4490, 3
    %v4495 = vand.u32 %v4494, 3
    %vm4496 = vcmp.lt.s32.totalorder %v4495, 2
    %vm4497 = vcmp.eq.s32.totalorder %v4495, 0
    %v4498 = vxor.u32 %v4492, 2147483648
    %v4499 = vsel %vm4497, %v4491, %v4498
    %vm4500 = vcmp.eq.s32.totalorder %v4495, 2
    %v4501 = vxor.u32 %v4491, 2147483648
    %v4502 = vsel %vm4500, %v4501, %v4492
    %v4503 = vsel %vm4496, %v4499, %v4502
    %v4504 = vsel %vm4493, nan, %v4503
    %v4505 = vand.u32 2147483647, %v1660
    %vm4506 = vcmp.le.f32.partialorder %v4505, 0.7853982
    %vm4507 = vcmp.lt.s32.totalorder %v1660, 0
    %v4508 = vand.u32 %v1660, 2139095040
    %v4509 = vshrl.u32 %v4508, 23
    %v4510 = vsub.s32 %v4509, 127
    %v4511 = vand.u32 2147483647, %v1660
    %v4512 = vand.u32 %v4511, 8388607
    %v4513 = vor.u32 %v4512, 8388608
    %v4514 = vsub.s32 0, %v4513
    %v4515 = vadd.s32 %v4510, 1
    %vm4516 = vcmp.gt.s32.totalorder %v4515, 0
    %v4517 = vsel %vm4516, %v4515, 0
    %v4518 = vshrl.u32 %v4517, 5
    %v4519 = vand.u32 %v4517, 31
    %v4520 = vsub.s32 32, %v4519
    %v4521 = vshrl.u32 683565275, %v4520
    %v4522 = vshll.u32 683565275, %v4519
    %v4523 = vshrl.u32 2475754826, %v4520
    %v4524 = vor.u32 %v4522, %v4523
    %v4525 = vshll.u32 2475754826, %v4519
    %v4526 = vshrl.u32 2131351028, %v4520
    %v4527 = vor.u32 %v4525, %v4526
    %v4528 = vshll.u32 2131351028, %v4519
    %v4529 = vshrl.u32 2102212464, %v4520
    %v4530 = vor.u32 %v4528, %v4529
    %v4531 = vshll.u32 2102212464, %v4519
    %v4532 = vshrl.u32 920167782, %v4520
    %v4533 = vor.u32 %v4531, %v4532
    %v4534 = vshll.u32 920167782, %v4519
    %v4535 = vshrl.u32 1326507024, %v4520
    %v4536 = vor.u32 %v4534, %v4535
    %vm4537 = vcmp.lt.s32.totalorder %v4518, 1
    %vm4538 = vcmp.lt.s32.totalorder %v4518, 2
    %vm4539 = vcmp.lt.s32.totalorder %v4518, 3
    %vm4540 = vcmp.lt.s32.totalorder %v4518, 4
    %v4541 = vsel %vm4537, %v4521, %v4524
    %v4542 = vsel %vm4540, %v4530, 2102212464
    %v4543 = vsel %vm4539, %v4527, %v4542
    %v4544 = vsel %vm4538, %v4541, %v4543
    %v4545 = vsel %vm4537, %v4524, %v4527
    %v4546 = vsel %vm4540, %v4533, 920167782
    %v4547 = vsel %vm4539, %v4530, %v4546
    %v4548 = vsel %vm4538, %v4545, %v4547
    %v4549 = vsel %vm4537, %v4527, %v4530
    %v4550 = vsel %vm4540, %v4536, 1326507024
    %v4551 = vsel %vm4539, %v4533, %v4550
    %v4552 = vsel %vm4538, %v4549, %v4551
    %v4553 = vshll.u32 %v4513, 8
    %v4554 = vmul.u32.u64.compose %v4553, %v4552
    %v4555 = vextract.low.u32 %v4554
    %v4556 = vextract.high.u32 %v4554
    %v4557 = vmul.u32.u64.compose %v4553, %v4548
    %v4558 = vextract.low.u32 %v4557
    %v4559 = vextract.high.u32 %v4557
    %v4560 = vmul.u32 %v4553, %v4544
    %v4561 = vadd.s32 %v4556, %v4558
    %vm4562 = vc.u32 %v4556, %v4558
    %v4563 = vadd.s32 %v4559, 1
    %v4564 = vsel %vm4562, %v4563, %v4559
    %v4565 = vadd.s32 %v4560, %v4564
    %v4566 = vadd.s32 %v4565, 536870912
    %v4567 = vshrl.u32 %v4566, 30
    %v4568 = vshll.u32 %v4567, 30
    %v4569 = vsub.s32 %v4565, %v4568
    %vm4570 = vcmp.lt.s32.totalorder %v4569, 0
    %v4571 = vsub.s32 0, %v4569
    %v4572 = vsel %vm4570, %v4571, %v4569
    %v4573 = vclz %v4572
    %v4574 = vsub.s32 %v4573, 2
    %vm4575 = vcmp.gt.s32.totalorder 0, %v4574
    %v4576 = vsel %vm4575, 0, %v4574
    %v4577 = vsub.s32 32, %v4576
    %v4578 = vshll.u32 %v4569, %v4576
    %v4579 = vshrl.u32 %v4561, %v4577
    %v4580 = vor.u32 %v4578, %v4579
    %v4581 = vsub.s32 4294967266, %v4576
    %v4582 = vadd.s32 %v4581, 127
    %v4583 = vshll.u32 %v4582, 23
    %v4584 = vor.u32 4788187, %v4583
    %v4585 = vand.u32 2147483647, %v4584
    %v4587 = vcvt.s32.f32 %v4580
    %v4588 = vmul.f32 %v4587, %v4585
    %v4589 = vxor.u32 %v4588, 2147483648
    %v4590 = vsel %vm4507, %v4589, %v4588
    %v4591 = vsub.s32 4, %v4567
    %v4592 = vsel %vm4507, %v4591, %v4567
    %v4593 = vsel %vm4506, %v1660, %v4590
    %v4594 = vsel %vm4506, 0, %v4592
    %v4595 = vcosq.f32.pop %v4593
    %v4596 = vsinq.f32.pop %v4593
    %vm4597 = vweird.f32 %v1660
    %v4598 = vadd.s32 %v4594, 3
    %v4599 = vand.u32 %v4598, 3
    %vm4600 = vcmp.lt.s32.totalorder %v4599, 2
    %vm4601 = vcmp.eq.s32.totalorder %v4599, 0
    %v4602 = vxor.u32 %v4596, 2147483648
    %v4603 = vsel %vm4601, %v4595, %v4602
    %vm4604 = vcmp.eq.s32.totalorder %v4599, 2
    %v4605 = vxor.u32 %v4595, 2147483648
    %v4606 = vsel %vm4604, %v4605, %v4596
    %v4607 = vsel %vm4600, %v4603, %v4606
    %v4608 = vsel %vm4597, nan, %v4607
    %v4609 = vand.u32 2147483647, %v1661
    %vm4610 = vcmp.le.f32.partialorder %v4609, 0.7853982
    %vm4611 = vcmp.lt.s32.totalorder %v1661, 0
    %v4612 = vand.u32 %v1661, 2139095040
    %v4613 = vshrl.u32 %v4612, 23
    %v4614 = vsub.s32 %v4613, 127
    %v4615 = vand.u32 2147483647, %v1661
    %v4616 = vand.u32 %v4615, 8388607
    %v4617 = vor.u32 %v4616, 8388608
    %v4618 = vsub.s32 0, %v4617
    %v4619 = vadd.s32 %v4614, 1
    %vm4620 = vcmp.gt.s32.totalorder %v4619, 0
    %v4621 = vsel %vm4620, %v4619, 0
    %v4622 = vshrl.u32 %v4621, 5
    %v4623 = vand.u32 %v4621, 31
    %v4624 = vsub.s32 32, %v4623
    %v4625 = vshrl.u32 683565275, %v4624
    %v4626 = vshll.u32 683565275, %v4623
    %v4627 = vshrl.u32 2475754826, %v4624
    %v4628 = vor.u32 %v4626, %v4627
    %v4629 = vshll.u32 2475754826, %v4623
    %v4630 = vshrl.u32 2131351028, %v4624
    %v4631 = vor.u32 %v4629, %v4630
    %v4632 = vshll.u32 2131351028, %v4623
    %v4633 = vshrl.u32 2102212464, %v4624
    %v4634 = vor.u32 %v4632, %v4633
    %v4635 = vshll.u32 2102212464, %v4623
    %v4636 = vshrl.u32 920167782, %v4624
    %v4637 = vor.u32 %v4635, %v4636
    %v4638 = vshll.u32 920167782, %v4623
    %v4639 = vshrl.u32 1326507024, %v4624
    %v4640 = vor.u32 %v4638, %v4639
    %vm4641 = vcmp.lt.s32.totalorder %v4622, 1
    %vm4642 = vcmp.lt.s32.totalorder %v4622, 2
    %vm4643 = vcmp.lt.s32.totalorder %v4622, 3
    %vm4644 = vcmp.lt.s32.totalorder %v4622, 4
    %v4645 = vsel %vm4641, %v4625, %v4628
    %v4646 = vsel %vm4644, %v4634, 2102212464
    %v4647 = vsel %vm4643, %v4631, %v4646
    %v4648 = vsel %vm4642, %v4645, %v4647
    %v4649 = vsel %vm4641, %v4628, %v4631
    %v4650 = vsel %vm4644, %v4637, 920167782
    %v4651 = vsel %vm4643, %v4634, %v4650
    %v4652 = vsel %vm4642, %v4649, %v4651
    %v4653 = vsel %vm4641, %v4631, %v4634
    %v4654 = vsel %vm4644, %v4640, 1326507024
    %v4655 = vsel %vm4643, %v4637, %v4654
    %v4656 = vsel %vm4642, %v4653, %v4655
    %v4657 = vshll.u32 %v4617, 8
    %v4658 = vmul.u32.u64.compose %v4657, %v4656
    %v4659 = vextract.low.u32 %v4658
    %v4660 = vextract.high.u32 %v4658
    %v4661 = vmul.u32.u64.compose %v4657, %v4652
    %v4662 = vextract.low.u32 %v4661
    %v4663 = vextract.high.u32 %v4661
    %v4664 = vmul.u32 %v4657, %v4648
    %v4665 = vadd.s32 %v4660, %v4662
    %vm4666 = vc.u32 %v4660, %v4662
    %v4667 = vadd.s32 %v4663, 1
    %v4668 = vsel %vm4666, %v4667, %v4663
    %v4669 = vadd.s32 %v4664, %v4668
    %v4670 = vadd.s32 %v4669, 536870912
    %v4671 = vshrl.u32 %v4670, 30
    %v4672 = vshll.u32 %v4671, 30
    %v4673 = vsub.s32 %v4669, %v4672
    %vm4674 = vcmp.lt.s32.totalorder %v4673, 0
    %v4675 = vsub.s32 0, %v4673
    %v4676 = vsel %vm4674, %v4675, %v4673
    %v4677 = vclz %v4676
    %v4678 = vsub.s32 %v4677, 2
    %vm4679 = vcmp.gt.s32.totalorder 0, %v4678
    %v4680 = vsel %vm4679, 0, %v4678
    %v4681 = vsub.s32 32, %v4680
    %v4682 = vshll.u32 %v4673, %v4680
    %v4683 = vshrl.u32 %v4665, %v4681
    %v4684 = vor.u32 %v4682, %v4683
    %v4685 = vsub.s32 4294967266, %v4680
    %v4686 = vadd.s32 %v4685, 127
    %v4687 = vshll.u32 %v4686, 23
    %v4688 = vor.u32 4788187, %v4687
    %v4689 = vand.u32 2147483647, %v4688
    %v4691 = vcvt.s32.f32 %v4684
    %v4692 = vmul.f32 %v4691, %v4689
    %v4693 = vxor.u32 %v4692, 2147483648
    %v4694 = vsel %vm4611, %v4693, %v4692
    %v4695 = vsub.s32 4, %v4671
    %v4696 = vsel %vm4611, %v4695, %v4671
    %v4697 = vsel %vm4610, %v1661, %v4694
    %v4698 = vsel %vm4610, 0, %v4696
    %v4699 = vcosq.f32.pop %v4697
    %v4700 = vsinq.f32.pop %v4697
    %vm4701 = vweird.f32 %v1661
    %v4702 = vadd.s32 %v4698, 3
    %v4703 = vand.u32 %v4702, 3
    %vm4704 = vcmp.lt.s32.totalorder %v4703, 2
    %vm4705 = vcmp.eq.s32.totalorder %v4703, 0
    %v4706 = vxor.u32 %v4700, 2147483648
    %v4707 = vsel %vm4705, %v4699, %v4706
    %vm4708 = vcmp.eq.s32.totalorder %v4703, 2
    %v4709 = vxor.u32 %v4699, 2147483648
    %v4710 = vsel %vm4708, %v4709, %v4700
    %v4711 = vsel %vm4704, %v4707, %v4710
    %v4712 = vsel %vm4701, nan, %v4711
    %v4713 = vand.u32 2147483647, %v1662
    %vm4714 = vcmp.le.f32.partialorder %v4713, 0.7853982
    %vm4715 = vcmp.lt.s32.totalorder %v1662, 0
    %v4716 = vand.u32 %v1662, 2139095040
    %v4717 = vshrl.u32 %v4716, 23
    %v4718 = vsub.s32 %v4717, 127
    %v4719 = vand.u32 2147483647, %v1662
    %v4720 = vand.u32 %v4719, 8388607
    %v4721 = vor.u32 %v4720, 8388608
    %v4722 = vsub.s32 0, %v4721
    %v4723 = vadd.s32 %v4718, 1
    %vm4724 = vcmp.gt.s32.totalorder %v4723, 0
    %v4725 = vsel %vm4724, %v4723, 0
    %v4726 = vshrl.u32 %v4725, 5
    %v4727 = vand.u32 %v4725, 31
    %v4728 = vsub.s32 32, %v4727
    %v4729 = vshrl.u32 683565275, %v4728
    %v4730 = vshll.u32 683565275, %v4727
    %v4731 = vshrl.u32 2475754826, %v4728
    %v4732 = vor.u32 %v4730, %v4731
    %v4733 = vshll.u32 2475754826, %v4727
    %v4734 = vshrl.u32 2131351028, %v4728
    %v4735 = vor.u32 %v4733, %v4734
    %v4736 = vshll.u32 2131351028, %v4727
    %v4737 = vshrl.u32 2102212464, %v4728
    %v4738 = vor.u32 %v4736, %v4737
    %v4739 = vshll.u32 2102212464, %v4727
    %v4740 = vshrl.u32 920167782, %v4728
    %v4741 = vor.u32 %v4739, %v4740
    %v4742 = vshll.u32 920167782, %v4727
    %v4743 = vshrl.u32 1326507024, %v4728
    %v4744 = vor.u32 %v4742, %v4743
    %vm4745 = vcmp.lt.s32.totalorder %v4726, 1
    %vm4746 = vcmp.lt.s32.totalorder %v4726, 2
    %vm4747 = vcmp.lt.s32.totalorder %v4726, 3
    %vm4748 = vcmp.lt.s32.totalorder %v4726, 4
    %v4749 = vsel %vm4745, %v4729, %v4732
    %v4750 = vsel %vm4748, %v4738, 2102212464
    %v4751 = vsel %vm4747, %v4735, %v4750
    %v4752 = vsel %vm4746, %v4749, %v4751
    %v4753 = vsel %vm4745, %v4732, %v4735
    %v4754 = vsel %vm4748, %v4741, 920167782
    %v4755 = vsel %vm4747, %v4738, %v4754
    %v4756 = vsel %vm4746, %v4753, %v4755
    %v4757 = vsel %vm4745, %v4735, %v4738
    %v4758 = vsel %vm4748, %v4744, 1326507024
    %v4759 = vsel %vm4747, %v4741, %v4758
    %v4760 = vsel %vm4746, %v4757, %v4759
    %v4761 = vshll.u32 %v4721, 8
    %v4762 = vmul.u32.u64.compose %v4761, %v4760
    %v4763 = vextract.low.u32 %v4762
    %v4764 = vextract.high.u32 %v4762
    %v4765 = vmul.u32.u64.compose %v4761, %v4756
    %v4766 = vextract.low.u32 %v4765
    %v4767 = vextract.high.u32 %v4765
    %v4768 = vmul.u32 %v4761, %v4752
    %v4769 = vadd.s32 %v4764, %v4766
    %vm4770 = vc.u32 %v4764, %v4766
    %v4771 = vadd.s32 %v4767, 1
    %v4772 = vsel %vm4770, %v4771, %v4767
    %v4773 = vadd.s32 %v4768, %v4772
    %v4774 = vadd.s32 %v4773, 536870912
    %v4775 = vshrl.u32 %v4774, 30
    %v4776 = vshll.u32 %v4775, 30
    %v4777 = vsub.s32 %v4773, %v4776
    %vm4778 = vcmp.lt.s32.totalorder %v4777, 0
    %v4779 = vsub.s32 0, %v4777
    %v4780 = vsel %vm4778, %v4779, %v4777
    %v4781 = vclz %v4780
    %v4782 = vsub.s32 %v4781, 2
    %vm4783 = vcmp.gt.s32.totalorder 0, %v4782
    %v4784 = vsel %vm4783, 0, %v4782
    %v4785 = vsub.s32 32, %v4784
    %v4786 = vshll.u32 %v4777, %v4784
    %v4787 = vshrl.u32 %v4769, %v4785
    %v4788 = vor.u32 %v4786, %v4787
    %v4789 = vsub.s32 4294967266, %v4784
    %v4790 = vadd.s32 %v4789, 127
    %v4791 = vshll.u32 %v4790, 23
    %v4792 = vor.u32 4788187, %v4791
    %v4793 = vand.u32 2147483647, %v4792
    %v4795 = vcvt.s32.f32 %v4788
    %v4796 = vmul.f32 %v4795, %v4793
    %v4797 = vxor.u32 %v4796, 2147483648
    %v4798 = vsel %vm4715, %v4797, %v4796
    %v4799 = vsub.s32 4, %v4775
    %v4800 = vsel %vm4715, %v4799, %v4775
    %v4801 = vsel %vm4714, %v1662, %v4798
    %v4802 = vsel %vm4714, 0, %v4800
    %v4803 = vcosq.f32.pop %v4801
    %v4804 = vsinq.f32.pop %v4801
    %vm4805 = vweird.f32 %v1662
    %v4806 = vadd.s32 %v4802, 3
    %v4807 = vand.u32 %v4806, 3
    %vm4808 = vcmp.lt.s32.totalorder %v4807, 2
    %vm4809 = vcmp.eq.s32.totalorder %v4807, 0
    %v4810 = vxor.u32 %v4804, 2147483648
    %v4811 = vsel %vm4809, %v4803, %v4810
    %vm4812 = vcmp.eq.s32.totalorder %v4807, 2
    %v4813 = vxor.u32 %v4803, 2147483648
    %v4814 = vsel %vm4812, %v4813, %v4804
    %v4815 = vsel %vm4808, %v4811, %v4814
    %v4816 = vsel %vm4805, nan, %v4815
    %v4817 = vand.u32 2147483647, %v1663
    %vm4818 = vcmp.le.f32.partialorder %v4817, 0.7853982
    %vm4819 = vcmp.lt.s32.totalorder %v1663, 0
    %v4820 = vand.u32 %v1663, 2139095040
    %v4821 = vshrl.u32 %v4820, 23
    %v4822 = vsub.s32 %v4821, 127
    %v4823 = vand.u32 2147483647, %v1663
    %v4824 = vand.u32 %v4823, 8388607
    %v4825 = vor.u32 %v4824, 8388608
    %v4826 = vsub.s32 0, %v4825
    %v4827 = vadd.s32 %v4822, 1
    %vm4828 = vcmp.gt.s32.totalorder %v4827, 0
    %v4829 = vsel %vm4828, %v4827, 0
    %v4830 = vshrl.u32 %v4829, 5
    %v4831 = vand.u32 %v4829, 31
    %v4832 = vsub.s32 32, %v4831
    %v4833 = vshrl.u32 683565275, %v4832
    %v4834 = vshll.u32 683565275, %v4831
    %v4835 = vshrl.u32 2475754826, %v4832
    %v4836 = vor.u32 %v4834, %v4835
    %v4837 = vshll.u32 2475754826, %v4831
    %v4838 = vshrl.u32 2131351028, %v4832
    %v4839 = vor.u32 %v4837, %v4838
    %v4840 = vshll.u32 2131351028, %v4831
    %v4841 = vshrl.u32 2102212464, %v4832
    %v4842 = vor.u32 %v4840, %v4841
    %v4843 = vshll.u32 2102212464, %v4831
    %v4844 = vshrl.u32 920167782, %v4832
    %v4845 = vor.u32 %v4843, %v4844
    %v4846 = vshll.u32 920167782, %v4831
    %v4847 = vshrl.u32 1326507024, %v4832
    %v4848 = vor.u32 %v4846, %v4847
    %vm4849 = vcmp.lt.s32.totalorder %v4830, 1
    %vm4850 = vcmp.lt.s32.totalorder %v4830, 2
    %vm4851 = vcmp.lt.s32.totalorder %v4830, 3
    %vm4852 = vcmp.lt.s32.totalorder %v4830, 4
    %v4853 = vsel %vm4849, %v4833, %v4836
    %v4854 = vsel %vm4852, %v4842, 2102212464
    %v4855 = vsel %vm4851, %v4839, %v4854
    %v4856 = vsel %vm4850, %v4853, %v4855
    %v4857 = vsel %vm4849, %v4836, %v4839
    %v4858 = vsel %vm4852, %v4845, 920167782
    %v4859 = vsel %vm4851, %v4842, %v4858
    %v4860 = vsel %vm4850, %v4857, %v4859
    %v4861 = vsel %vm4849, %v4839, %v4842
    %v4862 = vsel %vm4852, %v4848, 1326507024
    %v4863 = vsel %vm4851, %v4845, %v4862
    %v4864 = vsel %vm4850, %v4861, %v4863
    %v4865 = vshll.u32 %v4825, 8
    %v4866 = vmul.u32.u64.compose %v4865, %v4864
    %v4867 = vextract.low.u32 %v4866
    %v4868 = vextract.high.u32 %v4866
    %v4869 = vmul.u32.u64.compose %v4865, %v4860
    %v4870 = vextract.low.u32 %v4869
    %v4871 = vextract.high.u32 %v4869
    %v4872 = vmul.u32 %v4865, %v4856
    %v4873 = vadd.s32 %v4868, %v4870
    %vm4874 = vc.u32 %v4868, %v4870
    %v4875 = vadd.s32 %v4871, 1
    %v4876 = vsel %vm4874, %v4875, %v4871
    %v4877 = vadd.s32 %v4872, %v4876
    %v4878 = vadd.s32 %v4877, 536870912
    %v4879 = vshrl.u32 %v4878, 30
    %v4880 = vshll.u32 %v4879, 30
    %v4881 = vsub.s32 %v4877, %v4880
    %vm4882 = vcmp.lt.s32.totalorder %v4881, 0
    %v4883 = vsub.s32 0, %v4881
    %v4884 = vsel %vm4882, %v4883, %v4881
    %v4885 = vclz %v4884
    %v4886 = vsub.s32 %v4885, 2
    %vm4887 = vcmp.gt.s32.totalorder 0, %v4886
    %v4888 = vsel %vm4887, 0, %v4886
    %v4889 = vsub.s32 32, %v4888
    %v4890 = vshll.u32 %v4881, %v4888
    %v4891 = vshrl.u32 %v4873, %v4889
    %v4892 = vor.u32 %v4890, %v4891
    %v4893 = vsub.s32 4294967266, %v4888
    %v4894 = vadd.s32 %v4893, 127
    %v4895 = vshll.u32 %v4894, 23
    %v4896 = vor.u32 4788187, %v4895
    %v4897 = vand.u32 2147483647, %v4896
    %v4899 = vcvt.s32.f32 %v4892
    %v4900 = vmul.f32 %v4899, %v4897
    %v4901 = vxor.u32 %v4900, 2147483648
    %v4902 = vsel %vm4819, %v4901, %v4900
    %v4903 = vsub.s32 4, %v4879
    %v4904 = vsel %vm4819, %v4903, %v4879
    %v4905 = vsel %vm4818, %v1663, %v4902
    %v4906 = vsel %vm4818, 0, %v4904
    %v4907 = vcosq.f32.pop %v4905
    %v4908 = vsinq.f32.pop %v4905
    %vm4909 = vweird.f32 %v1663
    %v4910 = vadd.s32 %v4906, 3
    %v4911 = vand.u32 %v4910, 3
    %vm4912 = vcmp.lt.s32.totalorder %v4911, 2
    %vm4913 = vcmp.eq.s32.totalorder %v4911, 0
    %v4914 = vxor.u32 %v4908, 2147483648
    %v4915 = vsel %vm4913, %v4907, %v4914
    %vm4916 = vcmp.eq.s32.totalorder %v4911, 2
    %v4917 = vxor.u32 %v4907, 2147483648
    %v4918 = vsel %vm4916, %v4917, %v4908
    %v4919 = vsel %vm4912, %v4915, %v4918
    %v4920 = vsel %vm4909, nan, %v4919
    %v4921 = vand.u32 2147483647, %v1664
    %vm4922 = vcmp.le.f32.partialorder %v4921, 0.7853982
    %vm4923 = vcmp.lt.s32.totalorder %v1664, 0
    %v4924 = vand.u32 %v1664, 2139095040
    %v4925 = vshrl.u32 %v4924, 23
    %v4926 = vsub.s32 %v4925, 127
    %v4927 = vand.u32 2147483647, %v1664
    %v4928 = vand.u32 %v4927, 8388607
    %v4929 = vor.u32 %v4928, 8388608
    %v4930 = vsub.s32 0, %v4929
    %v4931 = vadd.s32 %v4926, 1
    %vm4932 = vcmp.gt.s32.totalorder %v4931, 0
    %v4933 = vsel %vm4932, %v4931, 0
    %v4934 = vshrl.u32 %v4933, 5
    %v4935 = vand.u32 %v4933, 31
    %v4936 = vsub.s32 32, %v4935
    %v4937 = vshrl.u32 683565275, %v4936
    %v4938 = vshll.u32 683565275, %v4935
    %v4939 = vshrl.u32 2475754826, %v4936
    %v4940 = vor.u32 %v4938, %v4939
    %v4941 = vshll.u32 2475754826, %v4935
    %v4942 = vshrl.u32 2131351028, %v4936
    %v4943 = vor.u32 %v4941, %v4942
    %v4944 = vshll.u32 2131351028, %v4935
    %v4945 = vshrl.u32 2102212464, %v4936
    %v4946 = vor.u32 %v4944, %v4945
    %v4947 = vshll.u32 2102212464, %v4935
    %v4948 = vshrl.u32 920167782, %v4936
    %v4949 = vor.u32 %v4947, %v4948
    %v4950 = vshll.u32 920167782, %v4935
    %v4951 = vshrl.u32 1326507024, %v4936
    %v4952 = vor.u32 %v4950, %v4951
    %vm4953 = vcmp.lt.s32.totalorder %v4934, 1
    %vm4954 = vcmp.lt.s32.totalorder %v4934, 2
    %vm4955 = vcmp.lt.s32.totalorder %v4934, 3
    %vm4956 = vcmp.lt.s32.totalorder %v4934, 4
    %v4957 = vsel %vm4953, %v4937, %v4940
    %v4958 = vsel %vm4956, %v4946, 2102212464
    %v4959 = vsel %vm4955, %v4943, %v4958
    %v4960 = vsel %vm4954, %v4957, %v4959
    %v4961 = vsel %vm4953, %v4940, %v4943
    %v4962 = vsel %vm4956, %v4949, 920167782
    %v4963 = vsel %vm4955, %v4946, %v4962
    %v4964 = vsel %vm4954, %v4961, %v4963
    %v4965 = vsel %vm4953, %v4943, %v4946
    %v4966 = vsel %vm4956, %v4952, 1326507024
    %v4967 = vsel %vm4955, %v4949, %v4966
    %v4968 = vsel %vm4954, %v4965, %v4967
    %v4969 = vshll.u32 %v4929, 8
    %v4970 = vmul.u32.u64.compose %v4969, %v4968
    %v4971 = vextract.low.u32 %v4970
    %v4972 = vextract.high.u32 %v4970
    %v4973 = vmul.u32.u64.compose %v4969, %v4964
    %v4974 = vextract.low.u32 %v4973
    %v4975 = vextract.high.u32 %v4973
    %v4976 = vmul.u32 %v4969, %v4960
    %v4977 = vadd.s32 %v4972, %v4974
    %vm4978 = vc.u32 %v4972, %v4974
    %v4979 = vadd.s32 %v4975, 1
    %v4980 = vsel %vm4978, %v4979, %v4975
    %v4981 = vadd.s32 %v4976, %v4980
    %v4982 = vadd.s32 %v4981, 536870912
    %v4983 = vshrl.u32 %v4982, 30
    %v4984 = vshll.u32 %v4983, 30
    %v4985 = vsub.s32 %v4981, %v4984
    %vm4986 = vcmp.lt.s32.totalorder %v4985, 0
    %v4987 = vsub.s32 0, %v4985
    %v4988 = vsel %vm4986, %v4987, %v4985
    %v4989 = vclz %v4988
    %v4990 = vsub.s32 %v4989, 2
    %vm4991 = vcmp.gt.s32.totalorder 0, %v4990
    %v4992 = vsel %vm4991, 0, %v4990
    %v4993 = vsub.s32 32, %v4992
    %v4994 = vshll.u32 %v4985, %v4992
    %v4995 = vshrl.u32 %v4977, %v4993
    %v4996 = vor.u32 %v4994, %v4995
    %v4997 = vsub.s32 4294967266, %v4992
    %v4998 = vadd.s32 %v4997, 127
    %v4999 = vshll.u32 %v4998, 23
    %v5000 = vor.u32 4788187, %v4999
    %v5001 = vand.u32 2147483647, %v5000
    %v5003 = vcvt.s32.f32 %v4996
    %v5004 = vmul.f32 %v5003, %v5001
    %v5005 = vxor.u32 %v5004, 2147483648
    %v5006 = vsel %vm4923, %v5005, %v5004
    %v5007 = vsub.s32 4, %v4983
    %v5008 = vsel %vm4923, %v5007, %v4983
    %v5009 = vsel %vm4922, %v1664, %v5006
    %v5010 = vsel %vm4922, 0, %v5008
    %v5011 = vcosq.f32.pop %v5009
    %v5012 = vsinq.f32.pop %v5009
    %vm5013 = vweird.f32 %v1664
    %v5014 = vadd.s32 %v5010, 3
    %v5015 = vand.u32 %v5014, 3
    %vm5016 = vcmp.lt.s32.totalorder %v5015, 2
    %vm5017 = vcmp.eq.s32.totalorder %v5015, 0
    %v5018 = vxor.u32 %v5012, 2147483648
    %v5019 = vsel %vm5017, %v5011, %v5018
    %vm5020 = vcmp.eq.s32.totalorder %v5015, 2
    %v5021 = vxor.u32 %v5011, 2147483648
    %v5022 = vsel %vm5020, %v5021, %v5012
    %v5023 = vsel %vm5016, %v5019, %v5022
    %v5024 = vsel %vm5013, nan, %v5023
    %v5025 = vand.u32 2147483647, %v1665
    %vm5026 = vcmp.le.f32.partialorder %v5025, 0.7853982
    %vm5027 = vcmp.lt.s32.totalorder %v1665, 0
    %v5028 = vand.u32 %v1665, 2139095040
    %v5029 = vshrl.u32 %v5028, 23
    %v5030 = vsub.s32 %v5029, 127
    %v5031 = vand.u32 2147483647, %v1665
    %v5032 = vand.u32 %v5031, 8388607
    %v5033 = vor.u32 %v5032, 8388608
    %v5034 = vsub.s32 0, %v5033
    %v5035 = vadd.s32 %v5030, 1
    %vm5036 = vcmp.gt.s32.totalorder %v5035, 0
    %v5037 = vsel %vm5036, %v5035, 0
    %v5038 = vshrl.u32 %v5037, 5
    %v5039 = vand.u32 %v5037, 31
    %v5040 = vsub.s32 32, %v5039
    %v5041 = vshrl.u32 683565275, %v5040
    %v5042 = vshll.u32 683565275, %v5039
    %v5043 = vshrl.u32 2475754826, %v5040
    %v5044 = vor.u32 %v5042, %v5043
    %v5045 = vshll.u32 2475754826, %v5039
    %v5046 = vshrl.u32 2131351028, %v5040
    %v5047 = vor.u32 %v5045, %v5046
    %v5048 = vshll.u32 2131351028, %v5039
    %v5049 = vshrl.u32 2102212464, %v5040
    %v5050 = vor.u32 %v5048, %v5049
    %v5051 = vshll.u32 2102212464, %v5039
    %v5052 = vshrl.u32 920167782, %v5040
    %v5053 = vor.u32 %v5051, %v5052
    %v5054 = vshll.u32 920167782, %v5039
    %v5055 = vshrl.u32 1326507024, %v5040
    %v5056 = vor.u32 %v5054, %v5055
    %vm5057 = vcmp.lt.s32.totalorder %v5038, 1
    %vm5058 = vcmp.lt.s32.totalorder %v5038, 2
    %vm5059 = vcmp.lt.s32.totalorder %v5038, 3
    %vm5060 = vcmp.lt.s32.totalorder %v5038, 4
    %v5061 = vsel %vm5057, %v5041, %v5044
    %v5062 = vsel %vm5060, %v5050, 2102212464
    %v5063 = vsel %vm5059, %v5047, %v5062
    %v5064 = vsel %vm5058, %v5061, %v5063
    %v5065 = vsel %vm5057, %v5044, %v5047
    %v5066 = vsel %vm5060, %v5053, 920167782
    %v5067 = vsel %vm5059, %v5050, %v5066
    %v5068 = vsel %vm5058, %v5065, %v5067
    %v5069 = vsel %vm5057, %v5047, %v5050
    %v5070 = vsel %vm5060, %v5056, 1326507024
    %v5071 = vsel %vm5059, %v5053, %v5070
    %v5072 = vsel %vm5058, %v5069, %v5071
    %v5073 = vshll.u32 %v5033, 8
    %v5074 = vmul.u32.u64.compose %v5073, %v5072
    %v5075 = vextract.low.u32 %v5074
    %v5076 = vextract.high.u32 %v5074
    %v5077 = vmul.u32.u64.compose %v5073, %v5068
    %v5078 = vextract.low.u32 %v5077
    %v5079 = vextract.high.u32 %v5077
    %v5080 = vmul.u32 %v5073, %v5064
    %v5081 = vadd.s32 %v5076, %v5078
    %vm5082 = vc.u32 %v5076, %v5078
    %v5083 = vadd.s32 %v5079, 1
    %v5084 = vsel %vm5082, %v5083, %v5079
    %v5085 = vadd.s32 %v5080, %v5084
    %v5086 = vadd.s32 %v5085, 536870912
    %v5087 = vshrl.u32 %v5086, 30
    %v5088 = vshll.u32 %v5087, 30
    %v5089 = vsub.s32 %v5085, %v5088
    %vm5090 = vcmp.lt.s32.totalorder %v5089, 0
    %v5091 = vsub.s32 0, %v5089
    %v5092 = vsel %vm5090, %v5091, %v5089
    %v5093 = vclz %v5092
    %v5094 = vsub.s32 %v5093, 2
    %vm5095 = vcmp.gt.s32.totalorder 0, %v5094
    %v5096 = vsel %vm5095, 0, %v5094
    %v5097 = vsub.s32 32, %v5096
    %v5098 = vshll.u32 %v5089, %v5096
    %v5099 = vshrl.u32 %v5081, %v5097
    %v5100 = vor.u32 %v5098, %v5099
    %v5101 = vsub.s32 4294967266, %v5096
    %v5102 = vadd.s32 %v5101, 127
    %v5103 = vshll.u32 %v5102, 23
    %v5104 = vor.u32 4788187, %v5103
    %v5105 = vand.u32 2147483647, %v5104
    %v5107 = vcvt.s32.f32 %v5100
    %v5108 = vmul.f32 %v5107, %v5105
    %v5109 = vxor.u32 %v5108, 2147483648
    %v5110 = vsel %vm5027, %v5109, %v5108
    %v5111 = vsub.s32 4, %v5087
    %v5112 = vsel %vm5027, %v5111, %v5087
    %v5113 = vsel %vm5026, %v1665, %v5110
    %v5114 = vsel %vm5026, 0, %v5112
    %v5115 = vcosq.f32.pop %v5113
    %v5116 = vsinq.f32.pop %v5113
    %vm5117 = vweird.f32 %v1665
    %v5118 = vadd.s32 %v5114, 3
    %v5119 = vand.u32 %v5118, 3
    %vm5120 = vcmp.lt.s32.totalorder %v5119, 2
    %vm5121 = vcmp.eq.s32.totalorder %v5119, 0
    %v5122 = vxor.u32 %v5116, 2147483648
    %v5123 = vsel %vm5121, %v5115, %v5122
    %vm5124 = vcmp.eq.s32.totalorder %v5119, 2
    %v5125 = vxor.u32 %v5115, 2147483648
    %v5126 = vsel %vm5124, %v5125, %v5116
    %v5127 = vsel %vm5120, %v5123, %v5126
    %v5128 = vsel %vm5117, nan, %v5127
    %v5129 = vand.u32 2147483647, %v1666
    %vm5130 = vcmp.le.f32.partialorder %v5129, 0.7853982
    %vm5131 = vcmp.lt.s32.totalorder %v1666, 0
    %v5132 = vand.u32 %v1666, 2139095040
    %v5133 = vshrl.u32 %v5132, 23
    %v5134 = vsub.s32 %v5133, 127
    %v5135 = vand.u32 2147483647, %v1666
    %v5136 = vand.u32 %v5135, 8388607
    %v5137 = vor.u32 %v5136, 8388608
    %v5138 = vsub.s32 0, %v5137
    %v5139 = vadd.s32 %v5134, 1
    %vm5140 = vcmp.gt.s32.totalorder %v5139, 0
    %v5141 = vsel %vm5140, %v5139, 0
    %v5142 = vshrl.u32 %v5141, 5
    %v5143 = vand.u32 %v5141, 31
    %v5144 = vsub.s32 32, %v5143
    %v5145 = vshrl.u32 683565275, %v5144
    %v5146 = vshll.u32 683565275, %v5143
    %v5147 = vshrl.u32 2475754826, %v5144
    %v5148 = vor.u32 %v5146, %v5147
    %v5149 = vshll.u32 2475754826, %v5143
    %v5150 = vshrl.u32 2131351028, %v5144
    %v5151 = vor.u32 %v5149, %v5150
    %v5152 = vshll.u32 2131351028, %v5143
    %v5153 = vshrl.u32 2102212464, %v5144
    %v5154 = vor.u32 %v5152, %v5153
    %v5155 = vshll.u32 2102212464, %v5143
    %v5156 = vshrl.u32 920167782, %v5144
    %v5157 = vor.u32 %v5155, %v5156
    %v5158 = vshll.u32 920167782, %v5143
    %v5159 = vshrl.u32 1326507024, %v5144
    %v5160 = vor.u32 %v5158, %v5159
    %vm5161 = vcmp.lt.s32.totalorder %v5142, 1
    %vm5162 = vcmp.lt.s32.totalorder %v5142, 2
    %vm5163 = vcmp.lt.s32.totalorder %v5142, 3
    %vm5164 = vcmp.lt.s32.totalorder %v5142, 4
    %v5165 = vsel %vm5161, %v5145, %v5148
    %v5166 = vsel %vm5164, %v5154, 2102212464
    %v5167 = vsel %vm5163, %v5151, %v5166
    %v5168 = vsel %vm5162, %v5165, %v5167
    %v5169 = vsel %vm5161, %v5148, %v5151
    %v5170 = vsel %vm5164, %v5157, 920167782
    %v5171 = vsel %vm5163, %v5154, %v5170
    %v5172 = vsel %vm5162, %v5169, %v5171
    %v5173 = vsel %vm5161, %v5151, %v5154
    %v5174 = vsel %vm5164, %v5160, 1326507024
    %v5175 = vsel %vm5163, %v5157, %v5174
    %v5176 = vsel %vm5162, %v5173, %v5175
    %v5177 = vshll.u32 %v5137, 8
    %v5178 = vmul.u32.u64.compose %v5177, %v5176
    %v5179 = vextract.low.u32 %v5178
    %v5180 = vextract.high.u32 %v5178
    %v5181 = vmul.u32.u64.compose %v5177, %v5172
    %v5182 = vextract.low.u32 %v5181
    %v5183 = vextract.high.u32 %v5181
    %v5184 = vmul.u32 %v5177, %v5168
    %v5185 = vadd.s32 %v5180, %v5182
    %vm5186 = vc.u32 %v5180, %v5182
    %v5187 = vadd.s32 %v5183, 1
    %v5188 = vsel %vm5186, %v5187, %v5183
    %v5189 = vadd.s32 %v5184, %v5188
    %v5190 = vadd.s32 %v5189, 536870912
    %v5191 = vshrl.u32 %v5190, 30
    %v5192 = vshll.u32 %v5191, 30
    %v5193 = vsub.s32 %v5189, %v5192
    %vm5194 = vcmp.lt.s32.totalorder %v5193, 0
    %v5195 = vsub.s32 0, %v5193
    %v5196 = vsel %vm5194, %v5195, %v5193
    %v5197 = vclz %v5196
    %v5198 = vsub.s32 %v5197, 2
    %vm5199 = vcmp.gt.s32.totalorder 0, %v5198
    %v5200 = vsel %vm5199, 0, %v5198
    %v5201 = vsub.s32 32, %v5200
    %v5202 = vshll.u32 %v5193, %v5200
    %v5203 = vshrl.u32 %v5185, %v5201
    %v5204 = vor.u32 %v5202, %v5203
    %v5205 = vsub.s32 4294967266, %v5200
    %v5206 = vadd.s32 %v5205, 127
    %v5207 = vshll.u32 %v5206, 23
    %v5208 = vor.u32 4788187, %v5207
    %v5209 = vand.u32 2147483647, %v5208
    %v5211 = vcvt.s32.f32 %v5204
    %v5212 = vmul.f32 %v5211, %v5209
    %v5213 = vxor.u32 %v5212, 2147483648
    %v5214 = vsel %vm5131, %v5213, %v5212
    %v5215 = vsub.s32 4, %v5191
    %v5216 = vsel %vm5131, %v5215, %v5191
    %v5217 = vsel %vm5130, %v1666, %v5214
    %v5218 = vsel %vm5130, 0, %v5216
    %v5219 = vcosq.f32.pop %v5217
    %v5220 = vsinq.f32.pop %v5217
    %vm5221 = vweird.f32 %v1666
    %v5222 = vadd.s32 %v5218, 3
    %v5223 = vand.u32 %v5222, 3
    %vm5224 = vcmp.lt.s32.totalorder %v5223, 2
    %vm5225 = vcmp.eq.s32.totalorder %v5223, 0
    %v5226 = vxor.u32 %v5220, 2147483648
    %v5227 = vsel %vm5225, %v5219, %v5226
    %vm5228 = vcmp.eq.s32.totalorder %v5223, 2
    %v5229 = vxor.u32 %v5219, 2147483648
    %v5230 = vsel %vm5228, %v5229, %v5220
    %v5231 = vsel %vm5224, %v5227, %v5230
    %v5232 = vsel %vm5221, nan, %v5231
    %v5233 = vand.u32 2147483647, %v1667
    %vm5234 = vcmp.le.f32.partialorder %v5233, 0.7853982
    %vm5235 = vcmp.lt.s32.totalorder %v1667, 0
    %v5236 = vand.u32 %v1667, 2139095040
    %v5237 = vshrl.u32 %v5236, 23
    %v5238 = vsub.s32 %v5237, 127
    %v5239 = vand.u32 2147483647, %v1667
    %v5240 = vand.u32 %v5239, 8388607
    %v5241 = vor.u32 %v5240, 8388608
    %v5242 = vsub.s32 0, %v5241
    %v5243 = vadd.s32 %v5238, 1
    %vm5244 = vcmp.gt.s32.totalorder %v5243, 0
    %v5245 = vsel %vm5244, %v5243, 0
    %v5246 = vshrl.u32 %v5245, 5
    %v5247 = vand.u32 %v5245, 31
    %v5248 = vsub.s32 32, %v5247
    %v5249 = vshrl.u32 683565275, %v5248
    %v5250 = vshll.u32 683565275, %v5247
    %v5251 = vshrl.u32 2475754826, %v5248
    %v5252 = vor.u32 %v5250, %v5251
    %v5253 = vshll.u32 2475754826, %v5247
    %v5254 = vshrl.u32 2131351028, %v5248
    %v5255 = vor.u32 %v5253, %v5254
    %v5256 = vshll.u32 2131351028, %v5247
    %v5257 = vshrl.u32 2102212464, %v5248
    %v5258 = vor.u32 %v5256, %v5257
    %v5259 = vshll.u32 2102212464, %v5247
    %v5260 = vshrl.u32 920167782, %v5248
    %v5261 = vor.u32 %v5259, %v5260
    %v5262 = vshll.u32 920167782, %v5247
    %v5263 = vshrl.u32 1326507024, %v5248
    %v5264 = vor.u32 %v5262, %v5263
    %vm5265 = vcmp.lt.s32.totalorder %v5246, 1
    %vm5266 = vcmp.lt.s32.totalorder %v5246, 2
    %vm5267 = vcmp.lt.s32.totalorder %v5246, 3
    %vm5268 = vcmp.lt.s32.totalorder %v5246, 4
    %v5269 = vsel %vm5265, %v5249, %v5252
    %v5270 = vsel %vm5268, %v5258, 2102212464
    %v5271 = vsel %vm5267, %v5255, %v5270
    %v5272 = vsel %vm5266, %v5269, %v5271
    %v5273 = vsel %vm5265, %v5252, %v5255
    %v5274 = vsel %vm5268, %v5261, 920167782
    %v5275 = vsel %vm5267, %v5258, %v5274
    %v5276 = vsel %vm5266, %v5273, %v5275
    %v5277 = vsel %vm5265, %v5255, %v5258
    %v5278 = vsel %vm5268, %v5264, 1326507024
    %v5279 = vsel %vm5267, %v5261, %v5278
    %v5280 = vsel %vm5266, %v5277, %v5279
    %v5281 = vshll.u32 %v5241, 8
    %v5282 = vmul.u32.u64.compose %v5281, %v5280
    %v5283 = vextract.low.u32 %v5282
    %v5284 = vextract.high.u32 %v5282
    %v5285 = vmul.u32.u64.compose %v5281, %v5276
    %v5286 = vextract.low.u32 %v5285
    %v5287 = vextract.high.u32 %v5285
    %v5288 = vmul.u32 %v5281, %v5272
    %v5289 = vadd.s32 %v5284, %v5286
    %vm5290 = vc.u32 %v5284, %v5286
    %v5291 = vadd.s32 %v5287, 1
    %v5292 = vsel %vm5290, %v5291, %v5287
    %v5293 = vadd.s32 %v5288, %v5292
    %v5294 = vadd.s32 %v5293, 536870912
    %v5295 = vshrl.u32 %v5294, 30
    %v5296 = vshll.u32 %v5295, 30
    %v5297 = vsub.s32 %v5293, %v5296
    %vm5298 = vcmp.lt.s32.totalorder %v5297, 0
    %v5299 = vsub.s32 0, %v5297
    %v5300 = vsel %vm5298, %v5299, %v5297
    %v5301 = vclz %v5300
    %v5302 = vsub.s32 %v5301, 2
    %vm5303 = vcmp.gt.s32.totalorder 0, %v5302
    %v5304 = vsel %vm5303, 0, %v5302
    %v5305 = vsub.s32 32, %v5304
    %v5306 = vshll.u32 %v5297, %v5304
    %v5307 = vshrl.u32 %v5289, %v5305
    %v5308 = vor.u32 %v5306, %v5307
    %v5309 = vsub.s32 4294967266, %v5304
    %v5310 = vadd.s32 %v5309, 127
    %v5311 = vshll.u32 %v5310, 23
    %v5312 = vor.u32 4788187, %v5311
    %v5313 = vand.u32 2147483647, %v5312
    %v5315 = vcvt.s32.f32 %v5308
    %v5316 = vmul.f32 %v5315, %v5313
    %v5317 = vxor.u32 %v5316, 2147483648
    %v5318 = vsel %vm5235, %v5317, %v5316
    %v5319 = vsub.s32 4, %v5295
    %v5320 = vsel %vm5235, %v5319, %v5295
    %v5321 = vsel %vm5234, %v1667, %v5318
    %v5322 = vsel %vm5234, 0, %v5320
    %v5323 = vcosq.f32.pop %v5321
    %v5324 = vsinq.f32.pop %v5321
    %vm5325 = vweird.f32 %v1667
    %v5326 = vadd.s32 %v5322, 3
    %v5327 = vand.u32 %v5326, 3
    %vm5328 = vcmp.lt.s32.totalorder %v5327, 2
    %vm5329 = vcmp.eq.s32.totalorder %v5327, 0
    %v5330 = vxor.u32 %v5324, 2147483648
    %v5331 = vsel %vm5329, %v5323, %v5330
    %vm5332 = vcmp.eq.s32.totalorder %v5327, 2
    %v5333 = vxor.u32 %v5323, 2147483648
    %v5334 = vsel %vm5332, %v5333, %v5324
    %v5335 = vsel %vm5328, %v5331, %v5334
    %v5336 = vsel %vm5325, nan, %v5335
    %v5337 = vand.u32 2147483647, %v1668
    %vm5338 = vcmp.le.f32.partialorder %v5337, 0.7853982
    %vm5339 = vcmp.lt.s32.totalorder %v1668, 0
    %v5340 = vand.u32 %v1668, 2139095040
    %v5341 = vshrl.u32 %v5340, 23
    %v5342 = vsub.s32 %v5341, 127
    %v5343 = vand.u32 2147483647, %v1668
    %v5344 = vand.u32 %v5343, 8388607
    %v5345 = vor.u32 %v5344, 8388608
    %v5346 = vsub.s32 0, %v5345
    %v5347 = vadd.s32 %v5342, 1
    %vm5348 = vcmp.gt.s32.totalorder %v5347, 0
    %v5349 = vsel %vm5348, %v5347, 0
    %v5350 = vshrl.u32 %v5349, 5
    %v5351 = vand.u32 %v5349, 31
    %v5352 = vsub.s32 32, %v5351
    %v5353 = vshrl.u32 683565275, %v5352
    %v5354 = vshll.u32 683565275, %v5351
    %v5355 = vshrl.u32 2475754826, %v5352
    %v5356 = vor.u32 %v5354, %v5355
    %v5357 = vshll.u32 2475754826, %v5351
    %v5358 = vshrl.u32 2131351028, %v5352
    %v5359 = vor.u32 %v5357, %v5358
    %v5360 = vshll.u32 2131351028, %v5351
    %v5361 = vshrl.u32 2102212464, %v5352
    %v5362 = vor.u32 %v5360, %v5361
    %v5363 = vshll.u32 2102212464, %v5351
    %v5364 = vshrl.u32 920167782, %v5352
    %v5365 = vor.u32 %v5363, %v5364
    %v5366 = vshll.u32 920167782, %v5351
    %v5367 = vshrl.u32 1326507024, %v5352
    %v5368 = vor.u32 %v5366, %v5367
    %vm5369 = vcmp.lt.s32.totalorder %v5350, 1
    %vm5370 = vcmp.lt.s32.totalorder %v5350, 2
    %vm5371 = vcmp.lt.s32.totalorder %v5350, 3
    %vm5372 = vcmp.lt.s32.totalorder %v5350, 4
    %v5373 = vsel %vm5369, %v5353, %v5356
    %v5374 = vsel %vm5372, %v5362, 2102212464
    %v5375 = vsel %vm5371, %v5359, %v5374
    %v5376 = vsel %vm5370, %v5373, %v5375
    %v5377 = vsel %vm5369, %v5356, %v5359
    %v5378 = vsel %vm5372, %v5365, 920167782
    %v5379 = vsel %vm5371, %v5362, %v5378
    %v5380 = vsel %vm5370, %v5377, %v5379
    %v5381 = vsel %vm5369, %v5359, %v5362
    %v5382 = vsel %vm5372, %v5368, 1326507024
    %v5383 = vsel %vm5371, %v5365, %v5382
    %v5384 = vsel %vm5370, %v5381, %v5383
    %v5385 = vshll.u32 %v5345, 8
    %v5386 = vmul.u32.u64.compose %v5385, %v5384
    %v5387 = vextract.low.u32 %v5386
    %v5388 = vextract.high.u32 %v5386
    %v5389 = vmul.u32.u64.compose %v5385, %v5380
    %v5390 = vextract.low.u32 %v5389
    %v5391 = vextract.high.u32 %v5389
    %v5392 = vmul.u32 %v5385, %v5376
    %v5393 = vadd.s32 %v5388, %v5390
    %vm5394 = vc.u32 %v5388, %v5390
    %v5395 = vadd.s32 %v5391, 1
    %v5396 = vsel %vm5394, %v5395, %v5391
    %v5397 = vadd.s32 %v5392, %v5396
    %v5398 = vadd.s32 %v5397, 536870912
    %v5399 = vshrl.u32 %v5398, 30
    %v5400 = vshll.u32 %v5399, 30
    %v5401 = vsub.s32 %v5397, %v5400
    %vm5402 = vcmp.lt.s32.totalorder %v5401, 0
    %v5403 = vsub.s32 0, %v5401
    %v5404 = vsel %vm5402, %v5403, %v5401
    %v5405 = vclz %v5404
    %v5406 = vsub.s32 %v5405, 2
    %vm5407 = vcmp.gt.s32.totalorder 0, %v5406
    %v5408 = vsel %vm5407, 0, %v5406
    %v5409 = vsub.s32 32, %v5408
    %v5410 = vshll.u32 %v5401, %v5408
    %v5411 = vshrl.u32 %v5393, %v5409
    %v5412 = vor.u32 %v5410, %v5411
    %v5413 = vsub.s32 4294967266, %v5408
    %v5414 = vadd.s32 %v5413, 127
    %v5415 = vshll.u32 %v5414, 23
    %v5416 = vor.u32 4788187, %v5415
    %v5417 = vand.u32 2147483647, %v5416
    %v5419 = vcvt.s32.f32 %v5412
    %v5420 = vmul.f32 %v5419, %v5417
    %v5421 = vxor.u32 %v5420, 2147483648
    %v5422 = vsel %vm5339, %v5421, %v5420
    %v5423 = vsub.s32 4, %v5399
    %v5424 = vsel %vm5339, %v5423, %v5399
    %v5425 = vsel %vm5338, %v1668, %v5422
    %v5426 = vsel %vm5338, 0, %v5424
    %v5427 = vcosq.f32.pop %v5425
    %v5428 = vsinq.f32.pop %v5425
    %vm5429 = vweird.f32 %v1668
    %v5430 = vadd.s32 %v5426, 3
    %v5431 = vand.u32 %v5430, 3
    %vm5432 = vcmp.lt.s32.totalorder %v5431, 2
    %vm5433 = vcmp.eq.s32.totalorder %v5431, 0
    %v5434 = vxor.u32 %v5428, 2147483648
    %v5435 = vsel %vm5433, %v5427, %v5434
    %vm5436 = vcmp.eq.s32.totalorder %v5431, 2
    %v5437 = vxor.u32 %v5427, 2147483648
    %v5438 = vsel %vm5436, %v5437, %v5428
    %v5439 = vsel %vm5432, %v5435, %v5438
    %v5440 = vsel %vm5429, nan, %v5439
    %v5441 = vand.u32 2147483647, %v1669
    %vm5442 = vcmp.le.f32.partialorder %v5441, 0.7853982
    %vm5443 = vcmp.lt.s32.totalorder %v1669, 0
    %v5444 = vand.u32 %v1669, 2139095040
    %v5445 = vshrl.u32 %v5444, 23
    %v5446 = vsub.s32 %v5445, 127
    %v5447 = vand.u32 2147483647, %v1669
    %v5448 = vand.u32 %v5447, 8388607
    %v5449 = vor.u32 %v5448, 8388608
    %v5450 = vsub.s32 0, %v5449
    %v5451 = vadd.s32 %v5446, 1
    %vm5452 = vcmp.gt.s32.totalorder %v5451, 0
    %v5453 = vsel %vm5452, %v5451, 0
    %v5454 = vshrl.u32 %v5453, 5
    %v5455 = vand.u32 %v5453, 31
    %v5456 = vsub.s32 32, %v5455
    %v5457 = vshrl.u32 683565275, %v5456
    %v5458 = vshll.u32 683565275, %v5455
    %v5459 = vshrl.u32 2475754826, %v5456
    %v5460 = vor.u32 %v5458, %v5459
    %v5461 = vshll.u32 2475754826, %v5455
    %v5462 = vshrl.u32 2131351028, %v5456
    %v5463 = vor.u32 %v5461, %v5462
    %v5464 = vshll.u32 2131351028, %v5455
    %v5465 = vshrl.u32 2102212464, %v5456
    %v5466 = vor.u32 %v5464, %v5465
    %v5467 = vshll.u32 2102212464, %v5455
    %v5468 = vshrl.u32 920167782, %v5456
    %v5469 = vor.u32 %v5467, %v5468
    %v5470 = vshll.u32 920167782, %v5455
    %v5471 = vshrl.u32 1326507024, %v5456
    %v5472 = vor.u32 %v5470, %v5471
    %vm5473 = vcmp.lt.s32.totalorder %v5454, 1
    %vm5474 = vcmp.lt.s32.totalorder %v5454, 2
    %vm5475 = vcmp.lt.s32.totalorder %v5454, 3
    %vm5476 = vcmp.lt.s32.totalorder %v5454, 4
    %v5477 = vsel %vm5473, %v5457, %v5460
    %v5478 = vsel %vm5476, %v5466, 2102212464
    %v5479 = vsel %vm5475, %v5463, %v5478
    %v5480 = vsel %vm5474, %v5477, %v5479
    %v5481 = vsel %vm5473, %v5460, %v5463
    %v5482 = vsel %vm5476, %v5469, 920167782
    %v5483 = vsel %vm5475, %v5466, %v5482
    %v5484 = vsel %vm5474, %v5481, %v5483
    %v5485 = vsel %vm5473, %v5463, %v5466
    %v5486 = vsel %vm5476, %v5472, 1326507024
    %v5487 = vsel %vm5475, %v5469, %v5486
    %v5488 = vsel %vm5474, %v5485, %v5487
    %v5489 = vshll.u32 %v5449, 8
    %v5490 = vmul.u32.u64.compose %v5489, %v5488
    %v5491 = vextract.low.u32 %v5490
    %v5492 = vextract.high.u32 %v5490
    %v5493 = vmul.u32.u64.compose %v5489, %v5484
    %v5494 = vextract.low.u32 %v5493
    %v5495 = vextract.high.u32 %v5493
    %v5496 = vmul.u32 %v5489, %v5480
    %v5497 = vadd.s32 %v5492, %v5494
    %vm5498 = vc.u32 %v5492, %v5494
    %v5499 = vadd.s32 %v5495, 1
    %v5500 = vsel %vm5498, %v5499, %v5495
    %v5501 = vadd.s32 %v5496, %v5500
    %v5502 = vadd.s32 %v5501, 536870912
    %v5503 = vshrl.u32 %v5502, 30
    %v5504 = vshll.u32 %v5503, 30
    %v5505 = vsub.s32 %v5501, %v5504
    %vm5506 = vcmp.lt.s32.totalorder %v5505, 0
    %v5507 = vsub.s32 0, %v5505
    %v5508 = vsel %vm5506, %v5507, %v5505
    %v5509 = vclz %v5508
    %v5510 = vsub.s32 %v5509, 2
    %vm5511 = vcmp.gt.s32.totalorder 0, %v5510
    %v5512 = vsel %vm5511, 0, %v5510
    %v5513 = vsub.s32 32, %v5512
    %v5514 = vshll.u32 %v5505, %v5512
    %v5515 = vshrl.u32 %v5497, %v5513
    %v5516 = vor.u32 %v5514, %v5515
    %v5517 = vsub.s32 4294967266, %v5512
    %v5518 = vadd.s32 %v5517, 127
    %v5519 = vshll.u32 %v5518, 23
    %v5520 = vor.u32 4788187, %v5519
    %v5521 = vand.u32 2147483647, %v5520
    %v5523 = vcvt.s32.f32 %v5516
    %v5524 = vmul.f32 %v5523, %v5521
    %v5525 = vxor.u32 %v5524, 2147483648
    %v5526 = vsel %vm5443, %v5525, %v5524
    %v5527 = vsub.s32 4, %v5503
    %v5528 = vsel %vm5443, %v5527, %v5503
    %v5529 = vsel %vm5442, %v1669, %v5526
    %v5530 = vsel %vm5442, 0, %v5528
    %v5531 = vcosq.f32.pop %v5529
    %v5532 = vsinq.f32.pop %v5529
    %vm5533 = vweird.f32 %v1669
    %v5534 = vadd.s32 %v5530, 3
    %v5535 = vand.u32 %v5534, 3
    %vm5536 = vcmp.lt.s32.totalorder %v5535, 2
    %vm5537 = vcmp.eq.s32.totalorder %v5535, 0
    %v5538 = vxor.u32 %v5532, 2147483648
    %v5539 = vsel %vm5537, %v5531, %v5538
    %vm5540 = vcmp.eq.s32.totalorder %v5535, 2
    %v5541 = vxor.u32 %v5531, 2147483648
    %v5542 = vsel %vm5540, %v5541, %v5532
    %v5543 = vsel %vm5536, %v5539, %v5542
    %v5544 = vsel %vm5533, nan, %v5543
    %v5545 = vand.u32 2147483647, %v1670
    %vm5546 = vcmp.le.f32.partialorder %v5545, 0.7853982
    %vm5547 = vcmp.lt.s32.totalorder %v1670, 0
    %v5548 = vand.u32 %v1670, 2139095040
    %v5549 = vshrl.u32 %v5548, 23
    %v5550 = vsub.s32 %v5549, 127
    %v5551 = vand.u32 2147483647, %v1670
    %v5552 = vand.u32 %v5551, 8388607
    %v5553 = vor.u32 %v5552, 8388608
    %v5554 = vsub.s32 0, %v5553
    %v5555 = vadd.s32 %v5550, 1
    %vm5556 = vcmp.gt.s32.totalorder %v5555, 0
    %v5557 = vsel %vm5556, %v5555, 0
    %v5558 = vshrl.u32 %v5557, 5
    %v5559 = vand.u32 %v5557, 31
    %v5560 = vsub.s32 32, %v5559
    %v5561 = vshrl.u32 683565275, %v5560
    %v5562 = vshll.u32 683565275, %v5559
    %v5563 = vshrl.u32 2475754826, %v5560
    %v5564 = vor.u32 %v5562, %v5563
    %v5565 = vshll.u32 2475754826, %v5559
    %v5566 = vshrl.u32 2131351028, %v5560
    %v5567 = vor.u32 %v5565, %v5566
    %v5568 = vshll.u32 2131351028, %v5559
    %v5569 = vshrl.u32 2102212464, %v5560
    %v5570 = vor.u32 %v5568, %v5569
    %v5571 = vshll.u32 2102212464, %v5559
    %v5572 = vshrl.u32 920167782, %v5560
    %v5573 = vor.u32 %v5571, %v5572
    %v5574 = vshll.u32 920167782, %v5559
    %v5575 = vshrl.u32 1326507024, %v5560
    %v5576 = vor.u32 %v5574, %v5575
    %vm5577 = vcmp.lt.s32.totalorder %v5558, 1
    %vm5578 = vcmp.lt.s32.totalorder %v5558, 2
    %vm5579 = vcmp.lt.s32.totalorder %v5558, 3
    %vm5580 = vcmp.lt.s32.totalorder %v5558, 4
    %v5581 = vsel %vm5577, %v5561, %v5564
    %v5582 = vsel %vm5580, %v5570, 2102212464
    %v5583 = vsel %vm5579, %v5567, %v5582
    %v5584 = vsel %vm5578, %v5581, %v5583
    %v5585 = vsel %vm5577, %v5564, %v5567
    %v5586 = vsel %vm5580, %v5573, 920167782
    %v5587 = vsel %vm5579, %v5570, %v5586
    %v5588 = vsel %vm5578, %v5585, %v5587
    %v5589 = vsel %vm5577, %v5567, %v5570
    %v5590 = vsel %vm5580, %v5576, 1326507024
    %v5591 = vsel %vm5579, %v5573, %v5590
    %v5592 = vsel %vm5578, %v5589, %v5591
    %v5593 = vshll.u32 %v5553, 8
    %v5594 = vmul.u32.u64.compose %v5593, %v5592
    %v5595 = vextract.low.u32 %v5594
    %v5596 = vextract.high.u32 %v5594
    %v5597 = vmul.u32.u64.compose %v5593, %v5588
    %v5598 = vextract.low.u32 %v5597
    %v5599 = vextract.high.u32 %v5597
    %v5600 = vmul.u32 %v5593, %v5584
    %v5601 = vadd.s32 %v5596, %v5598
    %vm5602 = vc.u32 %v5596, %v5598
    %v5603 = vadd.s32 %v5599, 1
    %v5604 = vsel %vm5602, %v5603, %v5599
    %v5605 = vadd.s32 %v5600, %v5604
    %v5606 = vadd.s32 %v5605, 536870912
    %v5607 = vshrl.u32 %v5606, 30
    %v5608 = vshll.u32 %v5607, 30
    %v5609 = vsub.s32 %v5605, %v5608
    %vm5610 = vcmp.lt.s32.totalorder %v5609, 0
    %v5611 = vsub.s32 0, %v5609
    %v5612 = vsel %vm5610, %v5611, %v5609
    %v5613 = vclz %v5612
    %v5614 = vsub.s32 %v5613, 2
    %vm5615 = vcmp.gt.s32.totalorder 0, %v5614
    %v5616 = vsel %vm5615, 0, %v5614
    %v5617 = vsub.s32 32, %v5616
    %v5618 = vshll.u32 %v5609, %v5616
    %v5619 = vshrl.u32 %v5601, %v5617
    %v5620 = vor.u32 %v5618, %v5619
    %v5621 = vsub.s32 4294967266, %v5616
    %v5622 = vadd.s32 %v5621, 127
    %v5623 = vshll.u32 %v5622, 23
    %v5624 = vor.u32 4788187, %v5623
    %v5625 = vand.u32 2147483647, %v5624
    %v5627 = vcvt.s32.f32 %v5620
    %v5628 = vmul.f32 %v5627, %v5625
    %v5629 = vxor.u32 %v5628, 2147483648
    %v5630 = vsel %vm5547, %v5629, %v5628
    %v5631 = vsub.s32 4, %v5607
    %v5632 = vsel %vm5547, %v5631, %v5607
    %v5633 = vsel %vm5546, %v1670, %v5630
    %v5634 = vsel %vm5546, 0, %v5632
    %v5635 = vcosq.f32.pop %v5633
    %v5636 = vsinq.f32.pop %v5633
    %vm5637 = vweird.f32 %v1670
    %v5638 = vadd.s32 %v5634, 3
    %v5639 = vand.u32 %v5638, 3
    %vm5640 = vcmp.lt.s32.totalorder %v5639, 2
    %vm5641 = vcmp.eq.s32.totalorder %v5639, 0
    %v5642 = vxor.u32 %v5636, 2147483648
    %v5643 = vsel %vm5641, %v5635, %v5642
    %vm5644 = vcmp.eq.s32.totalorder %v5639, 2
    %v5645 = vxor.u32 %v5635, 2147483648
    %v5646 = vsel %vm5644, %v5645, %v5636
    %v5647 = vsel %vm5640, %v5643, %v5646
    %v5648 = vsel %vm5637, nan, %v5647
    %v5649 = vand.u32 2147483647, %v1671
    %vm5650 = vcmp.le.f32.partialorder %v5649, 0.7853982
    %vm5651 = vcmp.lt.s32.totalorder %v1671, 0
    %v5652 = vand.u32 %v1671, 2139095040
    %v5653 = vshrl.u32 %v5652, 23
    %v5654 = vsub.s32 %v5653, 127
    %v5655 = vand.u32 2147483647, %v1671
    %v5656 = vand.u32 %v5655, 8388607
    %v5657 = vor.u32 %v5656, 8388608
    %v5658 = vsub.s32 0, %v5657
    %v5659 = vadd.s32 %v5654, 1
    %vm5660 = vcmp.gt.s32.totalorder %v5659, 0
    %v5661 = vsel %vm5660, %v5659, 0
    %v5662 = vshrl.u32 %v5661, 5
    %v5663 = vand.u32 %v5661, 31
    %v5664 = vsub.s32 32, %v5663
    %v5665 = vshrl.u32 683565275, %v5664
    %v5666 = vshll.u32 683565275, %v5663
    %v5667 = vshrl.u32 2475754826, %v5664
    %v5668 = vor.u32 %v5666, %v5667
    %v5669 = vshll.u32 2475754826, %v5663
    %v5670 = vshrl.u32 2131351028, %v5664
    %v5671 = vor.u32 %v5669, %v5670
    %v5672 = vshll.u32 2131351028, %v5663
    %v5673 = vshrl.u32 2102212464, %v5664
    %v5674 = vor.u32 %v5672, %v5673
    %v5675 = vshll.u32 2102212464, %v5663
    %v5676 = vshrl.u32 920167782, %v5664
    %v5677 = vor.u32 %v5675, %v5676
    %v5678 = vshll.u32 920167782, %v5663
    %v5679 = vshrl.u32 1326507024, %v5664
    %v5680 = vor.u32 %v5678, %v5679
    %vm5681 = vcmp.lt.s32.totalorder %v5662, 1
    %vm5682 = vcmp.lt.s32.totalorder %v5662, 2
    %vm5683 = vcmp.lt.s32.totalorder %v5662, 3
    %vm5684 = vcmp.lt.s32.totalorder %v5662, 4
    %v5685 = vsel %vm5681, %v5665, %v5668
    %v5686 = vsel %vm5684, %v5674, 2102212464
    %v5687 = vsel %vm5683, %v5671, %v5686
    %v5688 = vsel %vm5682, %v5685, %v5687
    %v5689 = vsel %vm5681, %v5668, %v5671
    %v5690 = vsel %vm5684, %v5677, 920167782
    %v5691 = vsel %vm5683, %v5674, %v5690
    %v5692 = vsel %vm5682, %v5689, %v5691
    %v5693 = vsel %vm5681, %v5671, %v5674
    %v5694 = vsel %vm5684, %v5680, 1326507024
    %v5695 = vsel %vm5683, %v5677, %v5694
    %v5696 = vsel %vm5682, %v5693, %v5695
    %v5697 = vshll.u32 %v5657, 8
    %v5698 = vmul.u32.u64.compose %v5697, %v5696
    %v5699 = vextract.low.u32 %v5698
    %v5700 = vextract.high.u32 %v5698
    %v5701 = vmul.u32.u64.compose %v5697, %v5692
    %v5702 = vextract.low.u32 %v5701
    %v5703 = vextract.high.u32 %v5701
    %v5704 = vmul.u32 %v5697, %v5688
    %v5705 = vadd.s32 %v5700, %v5702
    %vm5706 = vc.u32 %v5700, %v5702
    %v5707 = vadd.s32 %v5703, 1
    %v5708 = vsel %vm5706, %v5707, %v5703
    %v5709 = vadd.s32 %v5704, %v5708
    %v5710 = vadd.s32 %v5709, 536870912
    %v5711 = vshrl.u32 %v5710, 30
    %v5712 = vshll.u32 %v5711, 30
    %v5713 = vsub.s32 %v5709, %v5712
    %vm5714 = vcmp.lt.s32.totalorder %v5713, 0
    %v5715 = vsub.s32 0, %v5713
    %v5716 = vsel %vm5714, %v5715, %v5713
    %v5717 = vclz %v5716
    %v5718 = vsub.s32 %v5717, 2
    %vm5719 = vcmp.gt.s32.totalorder 0, %v5718
    %v5720 = vsel %vm5719, 0, %v5718
    %v5721 = vsub.s32 32, %v5720
    %v5722 = vshll.u32 %v5713, %v5720
    %v5723 = vshrl.u32 %v5705, %v5721
    %v5724 = vor.u32 %v5722, %v5723
    %v5725 = vsub.s32 4294967266, %v5720
    %v5726 = vadd.s32 %v5725, 127
    %v5727 = vshll.u32 %v5726, 23
    %v5728 = vor.u32 4788187, %v5727
    %v5729 = vand.u32 2147483647, %v5728
    %v5731 = vcvt.s32.f32 %v5724
    %v5732 = vmul.f32 %v5731, %v5729
    %v5733 = vxor.u32 %v5732, 2147483648
    %v5734 = vsel %vm5651, %v5733, %v5732
    %v5735 = vsub.s32 4, %v5711
    %v5736 = vsel %vm5651, %v5735, %v5711
    %v5737 = vsel %vm5650, %v1671, %v5734
    %v5738 = vsel %vm5650, 0, %v5736
    %v5739 = vcosq.f32.pop %v5737
    %v5740 = vsinq.f32.pop %v5737
    %vm5741 = vweird.f32 %v1671
    %v5742 = vadd.s32 %v5738, 3
    %v5743 = vand.u32 %v5742, 3
    %vm5744 = vcmp.lt.s32.totalorder %v5743, 2
    %vm5745 = vcmp.eq.s32.totalorder %v5743, 0
    %v5746 = vxor.u32 %v5740, 2147483648
    %v5747 = vsel %vm5745, %v5739, %v5746
    %vm5748 = vcmp.eq.s32.totalorder %v5743, 2
    %v5749 = vxor.u32 %v5739, 2147483648
    %v5750 = vsel %vm5748, %v5749, %v5740
    %v5751 = vsel %vm5744, %v5747, %v5750
    %v5752 = vsel %vm5741, nan, %v5751
    %v5753 = vand.u32 2147483647, %v1672
    %vm5754 = vcmp.le.f32.partialorder %v5753, 0.7853982
    %vm5755 = vcmp.lt.s32.totalorder %v1672, 0
    %v5756 = vand.u32 %v1672, 2139095040
    %v5757 = vshrl.u32 %v5756, 23
    %v5758 = vsub.s32 %v5757, 127
    %v5759 = vand.u32 2147483647, %v1672
    %v5760 = vand.u32 %v5759, 8388607
    %v5761 = vor.u32 %v5760, 8388608
    %v5762 = vsub.s32 0, %v5761
    %v5763 = vadd.s32 %v5758, 1
    %vm5764 = vcmp.gt.s32.totalorder %v5763, 0
    %v5765 = vsel %vm5764, %v5763, 0
    %v5766 = vshrl.u32 %v5765, 5
    %v5767 = vand.u32 %v5765, 31
    %v5768 = vsub.s32 32, %v5767
    %v5769 = vshrl.u32 683565275, %v5768
    %v5770 = vshll.u32 683565275, %v5767
    %v5771 = vshrl.u32 2475754826, %v5768
    %v5772 = vor.u32 %v5770, %v5771
    %v5773 = vshll.u32 2475754826, %v5767
    %v5774 = vshrl.u32 2131351028, %v5768
    %v5775 = vor.u32 %v5773, %v5774
    %v5776 = vshll.u32 2131351028, %v5767
    %v5777 = vshrl.u32 2102212464, %v5768
    %v5778 = vor.u32 %v5776, %v5777
    %v5779 = vshll.u32 2102212464, %v5767
    %v5780 = vshrl.u32 920167782, %v5768
    %v5781 = vor.u32 %v5779, %v5780
    %v5782 = vshll.u32 920167782, %v5767
    %v5783 = vshrl.u32 1326507024, %v5768
    %v5784 = vor.u32 %v5782, %v5783
    %vm5785 = vcmp.lt.s32.totalorder %v5766, 1
    %vm5786 = vcmp.lt.s32.totalorder %v5766, 2
    %vm5787 = vcmp.lt.s32.totalorder %v5766, 3
    %vm5788 = vcmp.lt.s32.totalorder %v5766, 4
    %v5789 = vsel %vm5785, %v5769, %v5772
    %v5790 = vsel %vm5788, %v5778, 2102212464
    %v5791 = vsel %vm5787, %v5775, %v5790
    %v5792 = vsel %vm5786, %v5789, %v5791
    %v5793 = vsel %vm5785, %v5772, %v5775
    %v5794 = vsel %vm5788, %v5781, 920167782
    %v5795 = vsel %vm5787, %v5778, %v5794
    %v5796 = vsel %vm5786, %v5793, %v5795
    %v5797 = vsel %vm5785, %v5775, %v5778
    %v5798 = vsel %vm5788, %v5784, 1326507024
    %v5799 = vsel %vm5787, %v5781, %v5798
    %v5800 = vsel %vm5786, %v5797, %v5799
    %v5801 = vshll.u32 %v5761, 8
    %v5802 = vmul.u32.u64.compose %v5801, %v5800
    %v5803 = vextract.low.u32 %v5802
    %v5804 = vextract.high.u32 %v5802
    %v5805 = vmul.u32.u64.compose %v5801, %v5796
    %v5806 = vextract.low.u32 %v5805
    %v5807 = vextract.high.u32 %v5805
    %v5808 = vmul.u32 %v5801, %v5792
    %v5809 = vadd.s32 %v5804, %v5806
    %vm5810 = vc.u32 %v5804, %v5806
    %v5811 = vadd.s32 %v5807, 1
    %v5812 = vsel %vm5810, %v5811, %v5807
    %v5813 = vadd.s32 %v5808, %v5812
    %v5814 = vadd.s32 %v5813, 536870912
    %v5815 = vshrl.u32 %v5814, 30
    %v5816 = vshll.u32 %v5815, 30
    %v5817 = vsub.s32 %v5813, %v5816
    %vm5818 = vcmp.lt.s32.totalorder %v5817, 0
    %v5819 = vsub.s32 0, %v5817
    %v5820 = vsel %vm5818, %v5819, %v5817
    %v5821 = vclz %v5820
    %v5822 = vsub.s32 %v5821, 2
    %vm5823 = vcmp.gt.s32.totalorder 0, %v5822
    %v5824 = vsel %vm5823, 0, %v5822
    %v5825 = vsub.s32 32, %v5824
    %v5826 = vshll.u32 %v5817, %v5824
    %v5827 = vshrl.u32 %v5809, %v5825
    %v5828 = vor.u32 %v5826, %v5827
    %v5829 = vsub.s32 4294967266, %v5824
    %v5830 = vadd.s32 %v5829, 127
    %v5831 = vshll.u32 %v5830, 23
    %v5832 = vor.u32 4788187, %v5831
    %v5833 = vand.u32 2147483647, %v5832
    %v5835 = vcvt.s32.f32 %v5828
    %v5836 = vmul.f32 %v5835, %v5833
    %v5837 = vxor.u32 %v5836, 2147483648
    %v5838 = vsel %vm5755, %v5837, %v5836
    %v5839 = vsub.s32 4, %v5815
    %v5840 = vsel %vm5755, %v5839, %v5815
    %v5841 = vsel %vm5754, %v1672, %v5838
    %v5842 = vsel %vm5754, 0, %v5840
    %v5843 = vcosq.f32.pop %v5841
    %v5844 = vsinq.f32.pop %v5841
    %vm5845 = vweird.f32 %v1672
    %v5846 = vadd.s32 %v5842, 3
    %v5847 = vand.u32 %v5846, 3
    %vm5848 = vcmp.lt.s32.totalorder %v5847, 2
    %vm5849 = vcmp.eq.s32.totalorder %v5847, 0
    %v5850 = vxor.u32 %v5844, 2147483648
    %v5851 = vsel %vm5849, %v5843, %v5850
    %vm5852 = vcmp.eq.s32.totalorder %v5847, 2
    %v5853 = vxor.u32 %v5843, 2147483648
    %v5854 = vsel %vm5852, %v5853, %v5844
    %v5855 = vsel %vm5848, %v5851, %v5854
    %v5856 = vsel %vm5845, nan, %v5855
    %v5857 = vand.u32 2147483647, %v1673
    %vm5858 = vcmp.le.f32.partialorder %v5857, 0.7853982
    %vm5859 = vcmp.lt.s32.totalorder %v1673, 0
    %v5860 = vand.u32 %v1673, 2139095040
    %v5861 = vshrl.u32 %v5860, 23
    %v5862 = vsub.s32 %v5861, 127
    %v5863 = vand.u32 2147483647, %v1673
    %v5864 = vand.u32 %v5863, 8388607
    %v5865 = vor.u32 %v5864, 8388608
    %v5866 = vsub.s32 0, %v5865
    %v5867 = vadd.s32 %v5862, 1
    %vm5868 = vcmp.gt.s32.totalorder %v5867, 0
    %v5869 = vsel %vm5868, %v5867, 0
    %v5870 = vshrl.u32 %v5869, 5
    %v5871 = vand.u32 %v5869, 31
    %v5872 = vsub.s32 32, %v5871
    %v5873 = vshrl.u32 683565275, %v5872
    %v5874 = vshll.u32 683565275, %v5871
    %v5875 = vshrl.u32 2475754826, %v5872
    %v5876 = vor.u32 %v5874, %v5875
    %v5877 = vshll.u32 2475754826, %v5871
    %v5878 = vshrl.u32 2131351028, %v5872
    %v5879 = vor.u32 %v5877, %v5878
    %v5880 = vshll.u32 2131351028, %v5871
    %v5881 = vshrl.u32 2102212464, %v5872
    %v5882 = vor.u32 %v5880, %v5881
    %v5883 = vshll.u32 2102212464, %v5871
    %v5884 = vshrl.u32 920167782, %v5872
    %v5885 = vor.u32 %v5883, %v5884
    %v5886 = vshll.u32 920167782, %v5871
    %v5887 = vshrl.u32 1326507024, %v5872
    %v5888 = vor.u32 %v5886, %v5887
    %vm5889 = vcmp.lt.s32.totalorder %v5870, 1
    %vm5890 = vcmp.lt.s32.totalorder %v5870, 2
    %vm5891 = vcmp.lt.s32.totalorder %v5870, 3
    %vm5892 = vcmp.lt.s32.totalorder %v5870, 4
    %v5893 = vsel %vm5889, %v5873, %v5876
    %v5894 = vsel %vm5892, %v5882, 2102212464
    %v5895 = vsel %vm5891, %v5879, %v5894
    %v5896 = vsel %vm5890, %v5893, %v5895
    %v5897 = vsel %vm5889, %v5876, %v5879
    %v5898 = vsel %vm5892, %v5885, 920167782
    %v5899 = vsel %vm5891, %v5882, %v5898
    %v5900 = vsel %vm5890, %v5897, %v5899
    %v5901 = vsel %vm5889, %v5879, %v5882
    %v5902 = vsel %vm5892, %v5888, 1326507024
    %v5903 = vsel %vm5891, %v5885, %v5902
    %v5904 = vsel %vm5890, %v5901, %v5903
    %v5905 = vshll.u32 %v5865, 8
    %v5906 = vmul.u32.u64.compose %v5905, %v5904
    %v5907 = vextract.low.u32 %v5906
    %v5908 = vextract.high.u32 %v5906
    %v5909 = vmul.u32.u64.compose %v5905, %v5900
    %v5910 = vextract.low.u32 %v5909
    %v5911 = vextract.high.u32 %v5909
    %v5912 = vmul.u32 %v5905, %v5896
    %v5913 = vadd.s32 %v5908, %v5910
    %vm5914 = vc.u32 %v5908, %v5910
    %v5915 = vadd.s32 %v5911, 1
    %v5916 = vsel %vm5914, %v5915, %v5911
    %v5917 = vadd.s32 %v5912, %v5916
    %v5918 = vadd.s32 %v5917, 536870912
    %v5919 = vshrl.u32 %v5918, 30
    %v5920 = vshll.u32 %v5919, 30
    %v5921 = vsub.s32 %v5917, %v5920
    %vm5922 = vcmp.lt.s32.totalorder %v5921, 0
    %v5923 = vsub.s32 0, %v5921
    %v5924 = vsel %vm5922, %v5923, %v5921
    %v5925 = vclz %v5924
    %v5926 = vsub.s32 %v5925, 2
    %vm5927 = vcmp.gt.s32.totalorder 0, %v5926
    %v5928 = vsel %vm5927, 0, %v5926
    %v5929 = vsub.s32 32, %v5928
    %v5930 = vshll.u32 %v5921, %v5928
    %v5931 = vshrl.u32 %v5913, %v5929
    %v5932 = vor.u32 %v5930, %v5931
    %v5933 = vsub.s32 4294967266, %v5928
    %v5934 = vadd.s32 %v5933, 127
    %v5935 = vshll.u32 %v5934, 23
    %v5936 = vor.u32 4788187, %v5935
    %v5937 = vand.u32 2147483647, %v5936
    %v5939 = vcvt.s32.f32 %v5932
    %v5940 = vmul.f32 %v5939, %v5937
    %v5941 = vxor.u32 %v5940, 2147483648
    %v5942 = vsel %vm5859, %v5941, %v5940
    %v5943 = vsub.s32 4, %v5919
    %v5944 = vsel %vm5859, %v5943, %v5919
    %v5945 = vsel %vm5858, %v1673, %v5942
    %v5946 = vsel %vm5858, 0, %v5944
    %v5947 = vcosq.f32.pop %v5945
    %v5948 = vsinq.f32.pop %v5945
    %vm5949 = vweird.f32 %v1673
    %v5950 = vadd.s32 %v5946, 3
    %v5951 = vand.u32 %v5950, 3
    %vm5952 = vcmp.lt.s32.totalorder %v5951, 2
    %vm5953 = vcmp.eq.s32.totalorder %v5951, 0
    %v5954 = vxor.u32 %v5948, 2147483648
    %v5955 = vsel %vm5953, %v5947, %v5954
    %vm5956 = vcmp.eq.s32.totalorder %v5951, 2
    %v5957 = vxor.u32 %v5947, 2147483648
    %v5958 = vsel %vm5956, %v5957, %v5948
    %v5959 = vsel %vm5952, %v5955, %v5958
    %v5960 = vsel %vm5949, nan, %v5959
    %v5961 = vand.u32 2147483647, %v1674
    %vm5962 = vcmp.le.f32.partialorder %v5961, 0.7853982
    %vm5963 = vcmp.lt.s32.totalorder %v1674, 0
    %v5964 = vand.u32 %v1674, 2139095040
    %v5965 = vshrl.u32 %v5964, 23
    %v5966 = vsub.s32 %v5965, 127
    %v5967 = vand.u32 2147483647, %v1674
    %v5968 = vand.u32 %v5967, 8388607
    %v5969 = vor.u32 %v5968, 8388608
    %v5970 = vsub.s32 0, %v5969
    %v5971 = vadd.s32 %v5966, 1
    %vm5972 = vcmp.gt.s32.totalorder %v5971, 0
    %v5973 = vsel %vm5972, %v5971, 0
    %v5974 = vshrl.u32 %v5973, 5
    %v5975 = vand.u32 %v5973, 31
    %v5976 = vsub.s32 32, %v5975
    %v5977 = vshrl.u32 683565275, %v5976
    %v5978 = vshll.u32 683565275, %v5975
    %v5979 = vshrl.u32 2475754826, %v5976
    %v5980 = vor.u32 %v5978, %v5979
    %v5981 = vshll.u32 2475754826, %v5975
    %v5982 = vshrl.u32 2131351028, %v5976
    %v5983 = vor.u32 %v5981, %v5982
    %v5984 = vshll.u32 2131351028, %v5975
    %v5985 = vshrl.u32 2102212464, %v5976
    %v5986 = vor.u32 %v5984, %v5985
    %v5987 = vshll.u32 2102212464, %v5975
    %v5988 = vshrl.u32 920167782, %v5976
    %v5989 = vor.u32 %v5987, %v5988
    %v5990 = vshll.u32 920167782, %v5975
    %v5991 = vshrl.u32 1326507024, %v5976
    %v5992 = vor.u32 %v5990, %v5991
    %vm5993 = vcmp.lt.s32.totalorder %v5974, 1
    %vm5994 = vcmp.lt.s32.totalorder %v5974, 2
    %vm5995 = vcmp.lt.s32.totalorder %v5974, 3
    %vm5996 = vcmp.lt.s32.totalorder %v5974, 4
    %v5997 = vsel %vm5993, %v5977, %v5980
    %v5998 = vsel %vm5996, %v5986, 2102212464
    %v5999 = vsel %vm5995, %v5983, %v5998
    %v6000 = vsel %vm5994, %v5997, %v5999
    %v6001 = vsel %vm5993, %v5980, %v5983
    %v6002 = vsel %vm5996, %v5989, 920167782
    %v6003 = vsel %vm5995, %v5986, %v6002
    %v6004 = vsel %vm5994, %v6001, %v6003
    %v6005 = vsel %vm5993, %v5983, %v5986
    %v6006 = vsel %vm5996, %v5992, 1326507024
    %v6007 = vsel %vm5995, %v5989, %v6006
    %v6008 = vsel %vm5994, %v6005, %v6007
    %v6009 = vshll.u32 %v5969, 8
    %v6010 = vmul.u32.u64.compose %v6009, %v6008
    %v6011 = vextract.low.u32 %v6010
    %v6012 = vextract.high.u32 %v6010
    %v6013 = vmul.u32.u64.compose %v6009, %v6004
    %v6014 = vextract.low.u32 %v6013
    %v6015 = vextract.high.u32 %v6013
    %v6016 = vmul.u32 %v6009, %v6000
    %v6017 = vadd.s32 %v6012, %v6014
    %vm6018 = vc.u32 %v6012, %v6014
    %v6019 = vadd.s32 %v6015, 1
    %v6020 = vsel %vm6018, %v6019, %v6015
    %v6021 = vadd.s32 %v6016, %v6020
    %v6022 = vadd.s32 %v6021, 536870912
    %v6023 = vshrl.u32 %v6022, 30
    %v6024 = vshll.u32 %v6023, 30
    %v6025 = vsub.s32 %v6021, %v6024
    %vm6026 = vcmp.lt.s32.totalorder %v6025, 0
    %v6027 = vsub.s32 0, %v6025
    %v6028 = vsel %vm6026, %v6027, %v6025
    %v6029 = vclz %v6028
    %v6030 = vsub.s32 %v6029, 2
    %vm6031 = vcmp.gt.s32.totalorder 0, %v6030
    %v6032 = vsel %vm6031, 0, %v6030
    %v6033 = vsub.s32 32, %v6032
    %v6034 = vshll.u32 %v6025, %v6032
    %v6035 = vshrl.u32 %v6017, %v6033
    %v6036 = vor.u32 %v6034, %v6035
    %v6037 = vsub.s32 4294967266, %v6032
    %v6038 = vadd.s32 %v6037, 127
    %v6039 = vshll.u32 %v6038, 23
    %v6040 = vor.u32 4788187, %v6039
    %v6041 = vand.u32 2147483647, %v6040
    %v6043 = vcvt.s32.f32 %v6036
    %v6044 = vmul.f32 %v6043, %v6041
    %v6045 = vxor.u32 %v6044, 2147483648
    %v6046 = vsel %vm5963, %v6045, %v6044
    %v6047 = vsub.s32 4, %v6023
    %v6048 = vsel %vm5963, %v6047, %v6023
    %v6049 = vsel %vm5962, %v1674, %v6046
    %v6050 = vsel %vm5962, 0, %v6048
    %v6051 = vcosq.f32.pop %v6049
    %v6052 = vsinq.f32.pop %v6049
    %vm6053 = vweird.f32 %v1674
    %v6054 = vadd.s32 %v6050, 3
    %v6055 = vand.u32 %v6054, 3
    %vm6056 = vcmp.lt.s32.totalorder %v6055, 2
    %vm6057 = vcmp.eq.s32.totalorder %v6055, 0
    %v6058 = vxor.u32 %v6052, 2147483648
    %v6059 = vsel %vm6057, %v6051, %v6058
    %vm6060 = vcmp.eq.s32.totalorder %v6055, 2
    %v6061 = vxor.u32 %v6051, 2147483648
    %v6062 = vsel %vm6060, %v6061, %v6052
    %v6063 = vsel %vm6056, %v6059, %v6062
    %v6064 = vsel %vm6053, nan, %v6063
    %v6065 = vand.u32 2147483647, %v1675
    %vm6066 = vcmp.le.f32.partialorder %v6065, 0.7853982
    %vm6067 = vcmp.lt.s32.totalorder %v1675, 0
    %v6068 = vand.u32 %v1675, 2139095040
    %v6069 = vshrl.u32 %v6068, 23
    %v6070 = vsub.s32 %v6069, 127
    %v6071 = vand.u32 2147483647, %v1675
    %v6072 = vand.u32 %v6071, 8388607
    %v6073 = vor.u32 %v6072, 8388608
    %v6074 = vsub.s32 0, %v6073
    %v6075 = vadd.s32 %v6070, 1
    %vm6076 = vcmp.gt.s32.totalorder %v6075, 0
    %v6077 = vsel %vm6076, %v6075, 0
    %v6078 = vshrl.u32 %v6077, 5
    %v6079 = vand.u32 %v6077, 31
    %v6080 = vsub.s32 32, %v6079
    %v6081 = vshrl.u32 683565275, %v6080
    %v6082 = vshll.u32 683565275, %v6079
    %v6083 = vshrl.u32 2475754826, %v6080
    %v6084 = vor.u32 %v6082, %v6083
    %v6085 = vshll.u32 2475754826, %v6079
    %v6086 = vshrl.u32 2131351028, %v6080
    %v6087 = vor.u32 %v6085, %v6086
    %v6088 = vshll.u32 2131351028, %v6079
    %v6089 = vshrl.u32 2102212464, %v6080
    %v6090 = vor.u32 %v6088, %v6089
    %v6091 = vshll.u32 2102212464, %v6079
    %v6092 = vshrl.u32 920167782, %v6080
    %v6093 = vor.u32 %v6091, %v6092
    %v6094 = vshll.u32 920167782, %v6079
    %v6095 = vshrl.u32 1326507024, %v6080
    %v6096 = vor.u32 %v6094, %v6095
    %vm6097 = vcmp.lt.s32.totalorder %v6078, 1
    %vm6098 = vcmp.lt.s32.totalorder %v6078, 2
    %vm6099 = vcmp.lt.s32.totalorder %v6078, 3
    %vm6100 = vcmp.lt.s32.totalorder %v6078, 4
    %v6101 = vsel %vm6097, %v6081, %v6084
    %v6102 = vsel %vm6100, %v6090, 2102212464
    %v6103 = vsel %vm6099, %v6087, %v6102
    %v6104 = vsel %vm6098, %v6101, %v6103
    %v6105 = vsel %vm6097, %v6084, %v6087
    %v6106 = vsel %vm6100, %v6093, 920167782
    %v6107 = vsel %vm6099, %v6090, %v6106
    %v6108 = vsel %vm6098, %v6105, %v6107
    %v6109 = vsel %vm6097, %v6087, %v6090
    %v6110 = vsel %vm6100, %v6096, 1326507024
    %v6111 = vsel %vm6099, %v6093, %v6110
    %v6112 = vsel %vm6098, %v6109, %v6111
    %v6113 = vshll.u32 %v6073, 8
    %v6114 = vmul.u32.u64.compose %v6113, %v6112
    %v6115 = vextract.low.u32 %v6114
    %v6116 = vextract.high.u32 %v6114
    %v6117 = vmul.u32.u64.compose %v6113, %v6108
    %v6118 = vextract.low.u32 %v6117
    %v6119 = vextract.high.u32 %v6117
    %v6120 = vmul.u32 %v6113, %v6104
    %v6121 = vadd.s32 %v6116, %v6118
    %vm6122 = vc.u32 %v6116, %v6118
    %v6123 = vadd.s32 %v6119, 1
    %v6124 = vsel %vm6122, %v6123, %v6119
    %v6125 = vadd.s32 %v6120, %v6124
    %v6126 = vadd.s32 %v6125, 536870912
    %v6127 = vshrl.u32 %v6126, 30
    %v6128 = vshll.u32 %v6127, 30
    %v6129 = vsub.s32 %v6125, %v6128
    %vm6130 = vcmp.lt.s32.totalorder %v6129, 0
    %v6131 = vsub.s32 0, %v6129
    %v6132 = vsel %vm6130, %v6131, %v6129
    %v6133 = vclz %v6132
    %v6134 = vsub.s32 %v6133, 2
    %vm6135 = vcmp.gt.s32.totalorder 0, %v6134
    %v6136 = vsel %vm6135, 0, %v6134
    %v6137 = vsub.s32 32, %v6136
    %v6138 = vshll.u32 %v6129, %v6136
    %v6139 = vshrl.u32 %v6121, %v6137
    %v6140 = vor.u32 %v6138, %v6139
    %v6141 = vsub.s32 4294967266, %v6136
    %v6142 = vadd.s32 %v6141, 127
    %v6143 = vshll.u32 %v6142, 23
    %v6144 = vor.u32 4788187, %v6143
    %v6145 = vand.u32 2147483647, %v6144
    %v6147 = vcvt.s32.f32 %v6140
    %v6148 = vmul.f32 %v6147, %v6145
    %v6149 = vxor.u32 %v6148, 2147483648
    %v6150 = vsel %vm6067, %v6149, %v6148
    %v6151 = vsub.s32 4, %v6127
    %v6152 = vsel %vm6067, %v6151, %v6127
    %v6153 = vsel %vm6066, %v1675, %v6150
    %v6154 = vsel %vm6066, 0, %v6152
    %v6155 = vcosq.f32.pop %v6153
    %v6156 = vsinq.f32.pop %v6153
    %vm6157 = vweird.f32 %v1675
    %v6158 = vadd.s32 %v6154, 3
    %v6159 = vand.u32 %v6158, 3
    %vm6160 = vcmp.lt.s32.totalorder %v6159, 2
    %vm6161 = vcmp.eq.s32.totalorder %v6159, 0
    %v6162 = vxor.u32 %v6156, 2147483648
    %v6163 = vsel %vm6161, %v6155, %v6162
    %vm6164 = vcmp.eq.s32.totalorder %v6159, 2
    %v6165 = vxor.u32 %v6155, 2147483648
    %v6166 = vsel %vm6164, %v6165, %v6156
    %v6167 = vsel %vm6160, %v6163, %v6166
    %v6168 = vsel %vm6157, nan, %v6167
    %v6169 = vand.u32 2147483647, %v1676
    %vm6170 = vcmp.le.f32.partialorder %v6169, 0.7853982
    %vm6171 = vcmp.lt.s32.totalorder %v1676, 0
    %v6172 = vand.u32 %v1676, 2139095040
    %v6173 = vshrl.u32 %v6172, 23
    %v6174 = vsub.s32 %v6173, 127
    %v6175 = vand.u32 2147483647, %v1676
    %v6176 = vand.u32 %v6175, 8388607
    %v6177 = vor.u32 %v6176, 8388608
    %v6178 = vsub.s32 0, %v6177
    %v6179 = vadd.s32 %v6174, 1
    %vm6180 = vcmp.gt.s32.totalorder %v6179, 0
    %v6181 = vsel %vm6180, %v6179, 0
    %v6182 = vshrl.u32 %v6181, 5
    %v6183 = vand.u32 %v6181, 31
    %v6184 = vsub.s32 32, %v6183
    %v6185 = vshrl.u32 683565275, %v6184
    %v6186 = vshll.u32 683565275, %v6183
    %v6187 = vshrl.u32 2475754826, %v6184
    %v6188 = vor.u32 %v6186, %v6187
    %v6189 = vshll.u32 2475754826, %v6183
    %v6190 = vshrl.u32 2131351028, %v6184
    %v6191 = vor.u32 %v6189, %v6190
    %v6192 = vshll.u32 2131351028, %v6183
    %v6193 = vshrl.u32 2102212464, %v6184
    %v6194 = vor.u32 %v6192, %v6193
    %v6195 = vshll.u32 2102212464, %v6183
    %v6196 = vshrl.u32 920167782, %v6184
    %v6197 = vor.u32 %v6195, %v6196
    %v6198 = vshll.u32 920167782, %v6183
    %v6199 = vshrl.u32 1326507024, %v6184
    %v6200 = vor.u32 %v6198, %v6199
    %vm6201 = vcmp.lt.s32.totalorder %v6182, 1
    %vm6202 = vcmp.lt.s32.totalorder %v6182, 2
    %vm6203 = vcmp.lt.s32.totalorder %v6182, 3
    %vm6204 = vcmp.lt.s32.totalorder %v6182, 4
    %v6205 = vsel %vm6201, %v6185, %v6188
    %v6206 = vsel %vm6204, %v6194, 2102212464
    %v6207 = vsel %vm6203, %v6191, %v6206
    %v6208 = vsel %vm6202, %v6205, %v6207
    %v6209 = vsel %vm6201, %v6188, %v6191
    %v6210 = vsel %vm6204, %v6197, 920167782
    %v6211 = vsel %vm6203, %v6194, %v6210
    %v6212 = vsel %vm6202, %v6209, %v6211
    %v6213 = vsel %vm6201, %v6191, %v6194
    %v6214 = vsel %vm6204, %v6200, 1326507024
    %v6215 = vsel %vm6203, %v6197, %v6214
    %v6216 = vsel %vm6202, %v6213, %v6215
    %v6217 = vshll.u32 %v6177, 8
    %v6218 = vmul.u32.u64.compose %v6217, %v6216
    %v6219 = vextract.low.u32 %v6218
    %v6220 = vextract.high.u32 %v6218
    %v6221 = vmul.u32.u64.compose %v6217, %v6212
    %v6222 = vextract.low.u32 %v6221
    %v6223 = vextract.high.u32 %v6221
    %v6224 = vmul.u32 %v6217, %v6208
    %v6225 = vadd.s32 %v6220, %v6222
    %vm6226 = vc.u32 %v6220, %v6222
    %v6227 = vadd.s32 %v6223, 1
    %v6228 = vsel %vm6226, %v6227, %v6223
    %v6229 = vadd.s32 %v6224, %v6228
    %v6230 = vadd.s32 %v6229, 536870912
    %v6231 = vshrl.u32 %v6230, 30
    %v6232 = vshll.u32 %v6231, 30
    %v6233 = vsub.s32 %v6229, %v6232
    %vm6234 = vcmp.lt.s32.totalorder %v6233, 0
    %v6235 = vsub.s32 0, %v6233
    %v6236 = vsel %vm6234, %v6235, %v6233
    %v6237 = vclz %v6236
    %v6238 = vsub.s32 %v6237, 2
    %vm6239 = vcmp.gt.s32.totalorder 0, %v6238
    %v6240 = vsel %vm6239, 0, %v6238
    %v6241 = vsub.s32 32, %v6240
    %v6242 = vshll.u32 %v6233, %v6240
    %v6243 = vshrl.u32 %v6225, %v6241
    %v6244 = vor.u32 %v6242, %v6243
    %v6245 = vsub.s32 4294967266, %v6240
    %v6246 = vadd.s32 %v6245, 127
    %v6247 = vshll.u32 %v6246, 23
    %v6248 = vor.u32 4788187, %v6247
    %v6249 = vand.u32 2147483647, %v6248
    %v6251 = vcvt.s32.f32 %v6244
    %v6252 = vmul.f32 %v6251, %v6249
    %v6253 = vxor.u32 %v6252, 2147483648
    %v6254 = vsel %vm6171, %v6253, %v6252
    %v6255 = vsub.s32 4, %v6231
    %v6256 = vsel %vm6171, %v6255, %v6231
    %v6257 = vsel %vm6170, %v1676, %v6254
    %v6258 = vsel %vm6170, 0, %v6256
    %v6259 = vcosq.f32.pop %v6257
    %v6260 = vsinq.f32.pop %v6257
    %vm6261 = vweird.f32 %v1676
    %v6262 = vadd.s32 %v6258, 3
    %v6263 = vand.u32 %v6262, 3
    %vm6264 = vcmp.lt.s32.totalorder %v6263, 2
    %vm6265 = vcmp.eq.s32.totalorder %v6263, 0
    %v6266 = vxor.u32 %v6260, 2147483648
    %v6267 = vsel %vm6265, %v6259, %v6266
    %vm6268 = vcmp.eq.s32.totalorder %v6263, 2
    %v6269 = vxor.u32 %v6259, 2147483648
    %v6270 = vsel %vm6268, %v6269, %v6260
    %v6271 = vsel %vm6264, %v6267, %v6270
    %v6272 = vsel %vm6261, nan, %v6271
    %v6273 = vand.u32 2147483647, %v1677
    %vm6274 = vcmp.le.f32.partialorder %v6273, 0.7853982
    %vm6275 = vcmp.lt.s32.totalorder %v1677, 0
    %v6276 = vand.u32 %v1677, 2139095040
    %v6277 = vshrl.u32 %v6276, 23
    %v6278 = vsub.s32 %v6277, 127
    %v6279 = vand.u32 2147483647, %v1677
    %v6280 = vand.u32 %v6279, 8388607
    %v6281 = vor.u32 %v6280, 8388608
    %v6282 = vsub.s32 0, %v6281
    %v6283 = vadd.s32 %v6278, 1
    %vm6284 = vcmp.gt.s32.totalorder %v6283, 0
    %v6285 = vsel %vm6284, %v6283, 0
    %v6286 = vshrl.u32 %v6285, 5
    %v6287 = vand.u32 %v6285, 31
    %v6288 = vsub.s32 32, %v6287
    %v6289 = vshrl.u32 683565275, %v6288
    %v6290 = vshll.u32 683565275, %v6287
    %v6291 = vshrl.u32 2475754826, %v6288
    %v6292 = vor.u32 %v6290, %v6291
    %v6293 = vshll.u32 2475754826, %v6287
    %v6294 = vshrl.u32 2131351028, %v6288
    %v6295 = vor.u32 %v6293, %v6294
    %v6296 = vshll.u32 2131351028, %v6287
    %v6297 = vshrl.u32 2102212464, %v6288
    %v6298 = vor.u32 %v6296, %v6297
    %v6299 = vshll.u32 2102212464, %v6287
    %v6300 = vshrl.u32 920167782, %v6288
    %v6301 = vor.u32 %v6299, %v6300
    %v6302 = vshll.u32 920167782, %v6287
    %v6303 = vshrl.u32 1326507024, %v6288
    %v6304 = vor.u32 %v6302, %v6303
    %vm6305 = vcmp.lt.s32.totalorder %v6286, 1
    %vm6306 = vcmp.lt.s32.totalorder %v6286, 2
    %vm6307 = vcmp.lt.s32.totalorder %v6286, 3
    %vm6308 = vcmp.lt.s32.totalorder %v6286, 4
    %v6309 = vsel %vm6305, %v6289, %v6292
    %v6310 = vsel %vm6308, %v6298, 2102212464
    %v6311 = vsel %vm6307, %v6295, %v6310
    %v6312 = vsel %vm6306, %v6309, %v6311
    %v6313 = vsel %vm6305, %v6292, %v6295
    %v6314 = vsel %vm6308, %v6301, 920167782
    %v6315 = vsel %vm6307, %v6298, %v6314
    %v6316 = vsel %vm6306, %v6313, %v6315
    %v6317 = vsel %vm6305, %v6295, %v6298
    %v6318 = vsel %vm6308, %v6304, 1326507024
    %v6319 = vsel %vm6307, %v6301, %v6318
    %v6320 = vsel %vm6306, %v6317, %v6319
    %v6321 = vshll.u32 %v6281, 8
    %v6322 = vmul.u32.u64.compose %v6321, %v6320
    %v6323 = vextract.low.u32 %v6322
    %v6324 = vextract.high.u32 %v6322
    %v6325 = vmul.u32.u64.compose %v6321, %v6316
    %v6326 = vextract.low.u32 %v6325
    %v6327 = vextract.high.u32 %v6325
    %v6328 = vmul.u32 %v6321, %v6312
    %v6329 = vadd.s32 %v6324, %v6326
    %vm6330 = vc.u32 %v6324, %v6326
    %v6331 = vadd.s32 %v6327, 1
    %v6332 = vsel %vm6330, %v6331, %v6327
    %v6333 = vadd.s32 %v6328, %v6332
    %v6334 = vadd.s32 %v6333, 536870912
    %v6335 = vshrl.u32 %v6334, 30
    %v6336 = vshll.u32 %v6335, 30
    %v6337 = vsub.s32 %v6333, %v6336
    %vm6338 = vcmp.lt.s32.totalorder %v6337, 0
    %v6339 = vsub.s32 0, %v6337
    %v6340 = vsel %vm6338, %v6339, %v6337
    %v6341 = vclz %v6340
    %v6342 = vsub.s32 %v6341, 2
    %vm6343 = vcmp.gt.s32.totalorder 0, %v6342
    %v6344 = vsel %vm6343, 0, %v6342
    %v6345 = vsub.s32 32, %v6344
    %v6346 = vshll.u32 %v6337, %v6344
    %v6347 = vshrl.u32 %v6329, %v6345
    %v6348 = vor.u32 %v6346, %v6347
    %v6349 = vsub.s32 4294967266, %v6344
    %v6350 = vadd.s32 %v6349, 127
    %v6351 = vshll.u32 %v6350, 23
    %v6352 = vor.u32 4788187, %v6351
    %v6353 = vand.u32 2147483647, %v6352
    %v6355 = vcvt.s32.f32 %v6348
    %v6356 = vmul.f32 %v6355, %v6353
    %v6357 = vxor.u32 %v6356, 2147483648
    %v6358 = vsel %vm6275, %v6357, %v6356
    %v6359 = vsub.s32 4, %v6335
    %v6360 = vsel %vm6275, %v6359, %v6335
    %v6361 = vsel %vm6274, %v1677, %v6358
    %v6362 = vsel %vm6274, 0, %v6360
    %v6363 = vcosq.f32.pop %v6361
    %v6364 = vsinq.f32.pop %v6361
    %vm6365 = vweird.f32 %v1677
    %v6366 = vadd.s32 %v6362, 3
    %v6367 = vand.u32 %v6366, 3
    %vm6368 = vcmp.lt.s32.totalorder %v6367, 2
    %vm6369 = vcmp.eq.s32.totalorder %v6367, 0
    %v6370 = vxor.u32 %v6364, 2147483648
    %v6371 = vsel %vm6369, %v6363, %v6370
    %vm6372 = vcmp.eq.s32.totalorder %v6367, 2
    %v6373 = vxor.u32 %v6363, 2147483648
    %v6374 = vsel %vm6372, %v6373, %v6364
    %v6375 = vsel %vm6368, %v6371, %v6374
    %v6376 = vsel %vm6365, nan, %v6375
    %v6377 = vand.u32 2147483647, %v1678
    %vm6378 = vcmp.le.f32.partialorder %v6377, 0.7853982
    %vm6379 = vcmp.lt.s32.totalorder %v1678, 0
    %v6380 = vand.u32 %v1678, 2139095040
    %v6381 = vshrl.u32 %v6380, 23
    %v6382 = vsub.s32 %v6381, 127
    %v6383 = vand.u32 2147483647, %v1678
    %v6384 = vand.u32 %v6383, 8388607
    %v6385 = vor.u32 %v6384, 8388608
    %v6386 = vsub.s32 0, %v6385
    %v6387 = vadd.s32 %v6382, 1
    %vm6388 = vcmp.gt.s32.totalorder %v6387, 0
    %v6389 = vsel %vm6388, %v6387, 0
    %v6390 = vshrl.u32 %v6389, 5
    %v6391 = vand.u32 %v6389, 31
    %v6392 = vsub.s32 32, %v6391
    %v6393 = vshrl.u32 683565275, %v6392
    %v6394 = vshll.u32 683565275, %v6391
    %v6395 = vshrl.u32 2475754826, %v6392
    %v6396 = vor.u32 %v6394, %v6395
    %v6397 = vshll.u32 2475754826, %v6391
    %v6398 = vshrl.u32 2131351028, %v6392
    %v6399 = vor.u32 %v6397, %v6398
    %v6400 = vshll.u32 2131351028, %v6391
    %v6401 = vshrl.u32 2102212464, %v6392
    %v6402 = vor.u32 %v6400, %v6401
    %v6403 = vshll.u32 2102212464, %v6391
    %v6404 = vshrl.u32 920167782, %v6392
    %v6405 = vor.u32 %v6403, %v6404
    %v6406 = vshll.u32 920167782, %v6391
    %v6407 = vshrl.u32 1326507024, %v6392
    %v6408 = vor.u32 %v6406, %v6407
    %vm6409 = vcmp.lt.s32.totalorder %v6390, 1
    %vm6410 = vcmp.lt.s32.totalorder %v6390, 2
    %vm6411 = vcmp.lt.s32.totalorder %v6390, 3
    %vm6412 = vcmp.lt.s32.totalorder %v6390, 4
    %v6413 = vsel %vm6409, %v6393, %v6396
    %v6414 = vsel %vm6412, %v6402, 2102212464
    %v6415 = vsel %vm6411, %v6399, %v6414
    %v6416 = vsel %vm6410, %v6413, %v6415
    %v6417 = vsel %vm6409, %v6396, %v6399
    %v6418 = vsel %vm6412, %v6405, 920167782
    %v6419 = vsel %vm6411, %v6402, %v6418
    %v6420 = vsel %vm6410, %v6417, %v6419
    %v6421 = vsel %vm6409, %v6399, %v6402
    %v6422 = vsel %vm6412, %v6408, 1326507024
    %v6423 = vsel %vm6411, %v6405, %v6422
    %v6424 = vsel %vm6410, %v6421, %v6423
    %v6425 = vshll.u32 %v6385, 8
    %v6426 = vmul.u32.u64.compose %v6425, %v6424
    %v6427 = vextract.low.u32 %v6426
    %v6428 = vextract.high.u32 %v6426
    %v6429 = vmul.u32.u64.compose %v6425, %v6420
    %v6430 = vextract.low.u32 %v6429
    %v6431 = vextract.high.u32 %v6429
    %v6432 = vmul.u32 %v6425, %v6416
    %v6433 = vadd.s32 %v6428, %v6430
    %vm6434 = vc.u32 %v6428, %v6430
    %v6435 = vadd.s32 %v6431, 1
    %v6436 = vsel %vm6434, %v6435, %v6431
    %v6437 = vadd.s32 %v6432, %v6436
    %v6438 = vadd.s32 %v6437, 536870912
    %v6439 = vshrl.u32 %v6438, 30
    %v6440 = vshll.u32 %v6439, 30
    %v6441 = vsub.s32 %v6437, %v6440
    %vm6442 = vcmp.lt.s32.totalorder %v6441, 0
    %v6443 = vsub.s32 0, %v6441
    %v6444 = vsel %vm6442, %v6443, %v6441
    %v6445 = vclz %v6444
    %v6446 = vsub.s32 %v6445, 2
    %vm6447 = vcmp.gt.s32.totalorder 0, %v6446
    %v6448 = vsel %vm6447, 0, %v6446
    %v6449 = vsub.s32 32, %v6448
    %v6450 = vshll.u32 %v6441, %v6448
    %v6451 = vshrl.u32 %v6433, %v6449
    %v6452 = vor.u32 %v6450, %v6451
    %v6453 = vsub.s32 4294967266, %v6448
    %v6454 = vadd.s32 %v6453, 127
    %v6455 = vshll.u32 %v6454, 23
    %v6456 = vor.u32 4788187, %v6455
    %v6457 = vand.u32 2147483647, %v6456
    %v6459 = vcvt.s32.f32 %v6452
    %v6460 = vmul.f32 %v6459, %v6457
    %v6461 = vxor.u32 %v6460, 2147483648
    %v6462 = vsel %vm6379, %v6461, %v6460
    %v6463 = vsub.s32 4, %v6439
    %v6464 = vsel %vm6379, %v6463, %v6439
    %v6465 = vsel %vm6378, %v1678, %v6462
    %v6466 = vsel %vm6378, 0, %v6464
    %v6467 = vcosq.f32.pop %v6465
    %v6468 = vsinq.f32.pop %v6465
    %vm6469 = vweird.f32 %v1678
    %v6470 = vadd.s32 %v6466, 3
    %v6471 = vand.u32 %v6470, 3
    %vm6472 = vcmp.lt.s32.totalorder %v6471, 2
    %vm6473 = vcmp.eq.s32.totalorder %v6471, 0
    %v6474 = vxor.u32 %v6468, 2147483648
    %v6475 = vsel %vm6473, %v6467, %v6474
    %vm6476 = vcmp.eq.s32.totalorder %v6471, 2
    %v6477 = vxor.u32 %v6467, 2147483648
    %v6478 = vsel %vm6476, %v6477, %v6468
    %v6479 = vsel %vm6472, %v6475, %v6478
    %v6480 = vsel %vm6469, nan, %v6479
    %v6481 = vand.u32 2147483647, %v1679
    %vm6482 = vcmp.le.f32.partialorder %v6481, 0.7853982
    %vm6483 = vcmp.lt.s32.totalorder %v1679, 0
    %v6484 = vand.u32 %v1679, 2139095040
    %v6485 = vshrl.u32 %v6484, 23
    %v6486 = vsub.s32 %v6485, 127
    %v6487 = vand.u32 2147483647, %v1679
    %v6488 = vand.u32 %v6487, 8388607
    %v6489 = vor.u32 %v6488, 8388608
    %v6490 = vsub.s32 0, %v6489
    %v6491 = vadd.s32 %v6486, 1
    %vm6492 = vcmp.gt.s32.totalorder %v6491, 0
    %v6493 = vsel %vm6492, %v6491, 0
    %v6494 = vshrl.u32 %v6493, 5
    %v6495 = vand.u32 %v6493, 31
    %v6496 = vsub.s32 32, %v6495
    %v6497 = vshrl.u32 683565275, %v6496
    %v6498 = vshll.u32 683565275, %v6495
    %v6499 = vshrl.u32 2475754826, %v6496
    %v6500 = vor.u32 %v6498, %v6499
    %v6501 = vshll.u32 2475754826, %v6495
    %v6502 = vshrl.u32 2131351028, %v6496
    %v6503 = vor.u32 %v6501, %v6502
    %v6504 = vshll.u32 2131351028, %v6495
    %v6505 = vshrl.u32 2102212464, %v6496
    %v6506 = vor.u32 %v6504, %v6505
    %v6507 = vshll.u32 2102212464, %v6495
    %v6508 = vshrl.u32 920167782, %v6496
    %v6509 = vor.u32 %v6507, %v6508
    %v6510 = vshll.u32 920167782, %v6495
    %v6511 = vshrl.u32 1326507024, %v6496
    %v6512 = vor.u32 %v6510, %v6511
    %vm6513 = vcmp.lt.s32.totalorder %v6494, 1
    %vm6514 = vcmp.lt.s32.totalorder %v6494, 2
    %vm6515 = vcmp.lt.s32.totalorder %v6494, 3
    %vm6516 = vcmp.lt.s32.totalorder %v6494, 4
    %v6517 = vsel %vm6513, %v6497, %v6500
    %v6518 = vsel %vm6516, %v6506, 2102212464
    %v6519 = vsel %vm6515, %v6503, %v6518
    %v6520 = vsel %vm6514, %v6517, %v6519
    %v6521 = vsel %vm6513, %v6500, %v6503
    %v6522 = vsel %vm6516, %v6509, 920167782
    %v6523 = vsel %vm6515, %v6506, %v6522
    %v6524 = vsel %vm6514, %v6521, %v6523
    %v6525 = vsel %vm6513, %v6503, %v6506
    %v6526 = vsel %vm6516, %v6512, 1326507024
    %v6527 = vsel %vm6515, %v6509, %v6526
    %v6528 = vsel %vm6514, %v6525, %v6527
    %v6529 = vshll.u32 %v6489, 8
    %v6530 = vmul.u32.u64.compose %v6529, %v6528
    %v6531 = vextract.low.u32 %v6530
    %v6532 = vextract.high.u32 %v6530
    %v6533 = vmul.u32.u64.compose %v6529, %v6524
    %v6534 = vextract.low.u32 %v6533
    %v6535 = vextract.high.u32 %v6533
    %v6536 = vmul.u32 %v6529, %v6520
    %v6537 = vadd.s32 %v6532, %v6534
    %vm6538 = vc.u32 %v6532, %v6534
    %v6539 = vadd.s32 %v6535, 1
    %v6540 = vsel %vm6538, %v6539, %v6535
    %v6541 = vadd.s32 %v6536, %v6540
    %v6542 = vadd.s32 %v6541, 536870912
    %v6543 = vshrl.u32 %v6542, 30
    %v6544 = vshll.u32 %v6543, 30
    %v6545 = vsub.s32 %v6541, %v6544
    %vm6546 = vcmp.lt.s32.totalorder %v6545, 0
    %v6547 = vsub.s32 0, %v6545
    %v6548 = vsel %vm6546, %v6547, %v6545
    %v6549 = vclz %v6548
    %v6550 = vsub.s32 %v6549, 2
    %vm6551 = vcmp.gt.s32.totalorder 0, %v6550
    %v6552 = vsel %vm6551, 0, %v6550
    %v6553 = vsub.s32 32, %v6552
    %v6554 = vshll.u32 %v6545, %v6552
    %v6555 = vshrl.u32 %v6537, %v6553
    %v6556 = vor.u32 %v6554, %v6555
    %v6557 = vsub.s32 4294967266, %v6552
    %v6558 = vadd.s32 %v6557, 127
    %v6559 = vshll.u32 %v6558, 23
    %v6560 = vor.u32 4788187, %v6559
    %v6561 = vand.u32 2147483647, %v6560
    %v6563 = vcvt.s32.f32 %v6556
    %v6564 = vmul.f32 %v6563, %v6561
    %v6565 = vxor.u32 %v6564, 2147483648
    %v6566 = vsel %vm6483, %v6565, %v6564
    %v6567 = vsub.s32 4, %v6543
    %v6568 = vsel %vm6483, %v6567, %v6543
    %v6569 = vsel %vm6482, %v1679, %v6566
    %v6570 = vsel %vm6482, 0, %v6568
    %v6571 = vcosq.f32.pop %v6569
    %v6572 = vsinq.f32.pop %v6569
    %vm6573 = vweird.f32 %v1679
    %v6574 = vadd.s32 %v6570, 3
    %v6575 = vand.u32 %v6574, 3
    %vm6576 = vcmp.lt.s32.totalorder %v6575, 2
    %vm6577 = vcmp.eq.s32.totalorder %v6575, 0
    %v6578 = vxor.u32 %v6572, 2147483648
    %v6579 = vsel %vm6577, %v6571, %v6578
    %vm6580 = vcmp.eq.s32.totalorder %v6575, 2
    %v6581 = vxor.u32 %v6571, 2147483648
    %v6582 = vsel %vm6580, %v6581, %v6572
    %v6583 = vsel %vm6576, %v6579, %v6582
    %v6584 = vsel %vm6573, nan, %v6583
    %v6585 = vand.u32 2147483647, %v1680
    %vm6586 = vcmp.le.f32.partialorder %v6585, 0.7853982
    %vm6587 = vcmp.lt.s32.totalorder %v1680, 0
    %v6588 = vand.u32 %v1680, 2139095040
    %v6589 = vshrl.u32 %v6588, 23
    %v6590 = vsub.s32 %v6589, 127
    %v6591 = vand.u32 2147483647, %v1680
    %v6592 = vand.u32 %v6591, 8388607
    %v6593 = vor.u32 %v6592, 8388608
    %v6594 = vsub.s32 0, %v6593
    %v6595 = vadd.s32 %v6590, 1
    %vm6596 = vcmp.gt.s32.totalorder %v6595, 0
    %v6597 = vsel %vm6596, %v6595, 0
    %v6598 = vshrl.u32 %v6597, 5
    %v6599 = vand.u32 %v6597, 31
    %v6600 = vsub.s32 32, %v6599
    %v6601 = vshrl.u32 683565275, %v6600
    %v6602 = vshll.u32 683565275, %v6599
    %v6603 = vshrl.u32 2475754826, %v6600
    %v6604 = vor.u32 %v6602, %v6603
    %v6605 = vshll.u32 2475754826, %v6599
    %v6606 = vshrl.u32 2131351028, %v6600
    %v6607 = vor.u32 %v6605, %v6606
    %v6608 = vshll.u32 2131351028, %v6599
    %v6609 = vshrl.u32 2102212464, %v6600
    %v6610 = vor.u32 %v6608, %v6609
    %v6611 = vshll.u32 2102212464, %v6599
    %v6612 = vshrl.u32 920167782, %v6600
    %v6613 = vor.u32 %v6611, %v6612
    %v6614 = vshll.u32 920167782, %v6599
    %v6615 = vshrl.u32 1326507024, %v6600
    %v6616 = vor.u32 %v6614, %v6615
    %vm6617 = vcmp.lt.s32.totalorder %v6598, 1
    %vm6618 = vcmp.lt.s32.totalorder %v6598, 2
    %vm6619 = vcmp.lt.s32.totalorder %v6598, 3
    %vm6620 = vcmp.lt.s32.totalorder %v6598, 4
    %v6621 = vsel %vm6617, %v6601, %v6604
    %v6622 = vsel %vm6620, %v6610, 2102212464
    %v6623 = vsel %vm6619, %v6607, %v6622
    %v6624 = vsel %vm6618, %v6621, %v6623
    %v6625 = vsel %vm6617, %v6604, %v6607
    %v6626 = vsel %vm6620, %v6613, 920167782
    %v6627 = vsel %vm6619, %v6610, %v6626
    %v6628 = vsel %vm6618, %v6625, %v6627
    %v6629 = vsel %vm6617, %v6607, %v6610
    %v6630 = vsel %vm6620, %v6616, 1326507024
    %v6631 = vsel %vm6619, %v6613, %v6630
    %v6632 = vsel %vm6618, %v6629, %v6631
    %v6633 = vshll.u32 %v6593, 8
    %v6634 = vmul.u32.u64.compose %v6633, %v6632
    %v6635 = vextract.low.u32 %v6634
    %v6636 = vextract.high.u32 %v6634
    %v6637 = vmul.u32.u64.compose %v6633, %v6628
    %v6638 = vextract.low.u32 %v6637
    %v6639 = vextract.high.u32 %v6637
    %v6640 = vmul.u32 %v6633, %v6624
    %v6641 = vadd.s32 %v6636, %v6638
    %vm6642 = vc.u32 %v6636, %v6638
    %v6643 = vadd.s32 %v6639, 1
    %v6644 = vsel %vm6642, %v6643, %v6639
    %v6645 = vadd.s32 %v6640, %v6644
    %v6646 = vadd.s32 %v6645, 536870912
    %v6647 = vshrl.u32 %v6646, 30
    %v6648 = vshll.u32 %v6647, 30
    %v6649 = vsub.s32 %v6645, %v6648
    %vm6650 = vcmp.lt.s32.totalorder %v6649, 0
    %v6651 = vsub.s32 0, %v6649
    %v6652 = vsel %vm6650, %v6651, %v6649
    %v6653 = vclz %v6652
    %v6654 = vsub.s32 %v6653, 2
    %vm6655 = vcmp.gt.s32.totalorder 0, %v6654
    %v6656 = vsel %vm6655, 0, %v6654
    %v6657 = vsub.s32 32, %v6656
    %v6658 = vshll.u32 %v6649, %v6656
    %v6659 = vshrl.u32 %v6641, %v6657
    %v6660 = vor.u32 %v6658, %v6659
    %v6661 = vsub.s32 4294967266, %v6656
    %v6662 = vadd.s32 %v6661, 127
    %v6663 = vshll.u32 %v6662, 23
    %v6664 = vor.u32 4788187, %v6663
    %v6665 = vand.u32 2147483647, %v6664
    %v6667 = vcvt.s32.f32 %v6660
    %v6668 = vmul.f32 %v6667, %v6665
    %v6669 = vxor.u32 %v6668, 2147483648
    %v6670 = vsel %vm6587, %v6669, %v6668
    %v6671 = vsub.s32 4, %v6647
    %v6672 = vsel %vm6587, %v6671, %v6647
    %v6673 = vsel %vm6586, %v1680, %v6670
    %v6674 = vsel %vm6586, 0, %v6672
    %v6675 = vcosq.f32.pop %v6673
    %v6676 = vsinq.f32.pop %v6673
    %vm6677 = vweird.f32 %v1680
    %v6678 = vadd.s32 %v6674, 3
    %v6679 = vand.u32 %v6678, 3
    %vm6680 = vcmp.lt.s32.totalorder %v6679, 2
    %vm6681 = vcmp.eq.s32.totalorder %v6679, 0
    %v6682 = vxor.u32 %v6676, 2147483648
    %v6683 = vsel %vm6681, %v6675, %v6682
    %vm6684 = vcmp.eq.s32.totalorder %v6679, 2
    %v6685 = vxor.u32 %v6675, 2147483648
    %v6686 = vsel %vm6684, %v6685, %v6676
    %v6687 = vsel %vm6680, %v6683, %v6686
    %v6688 = vsel %vm6677, nan, %v6687
    %v6689 = vand.u32 2147483647, %v1681
    %vm6690 = vcmp.le.f32.partialorder %v6689, 0.7853982
    %vm6691 = vcmp.lt.s32.totalorder %v1681, 0
    %v6692 = vand.u32 %v1681, 2139095040
    %v6693 = vshrl.u32 %v6692, 23
    %v6694 = vsub.s32 %v6693, 127
    %v6695 = vand.u32 2147483647, %v1681
    %v6696 = vand.u32 %v6695, 8388607
    %v6697 = vor.u32 %v6696, 8388608
    %v6698 = vsub.s32 0, %v6697
    %v6699 = vadd.s32 %v6694, 1
    %vm6700 = vcmp.gt.s32.totalorder %v6699, 0
    %v6701 = vsel %vm6700, %v6699, 0
    %v6702 = vshrl.u32 %v6701, 5
    %v6703 = vand.u32 %v6701, 31
    %v6704 = vsub.s32 32, %v6703
    %v6705 = vshrl.u32 683565275, %v6704
    %v6706 = vshll.u32 683565275, %v6703
    %v6707 = vshrl.u32 2475754826, %v6704
    %v6708 = vor.u32 %v6706, %v6707
    %v6709 = vshll.u32 2475754826, %v6703
    %v6710 = vshrl.u32 2131351028, %v6704
    %v6711 = vor.u32 %v6709, %v6710
    %v6712 = vshll.u32 2131351028, %v6703
    %v6713 = vshrl.u32 2102212464, %v6704
    %v6714 = vor.u32 %v6712, %v6713
    %v6715 = vshll.u32 2102212464, %v6703
    %v6716 = vshrl.u32 920167782, %v6704
    %v6717 = vor.u32 %v6715, %v6716
    %v6718 = vshll.u32 920167782, %v6703
    %v6719 = vshrl.u32 1326507024, %v6704
    %v6720 = vor.u32 %v6718, %v6719
    %vm6721 = vcmp.lt.s32.totalorder %v6702, 1
    %vm6722 = vcmp.lt.s32.totalorder %v6702, 2
    %vm6723 = vcmp.lt.s32.totalorder %v6702, 3
    %vm6724 = vcmp.lt.s32.totalorder %v6702, 4
    %v6725 = vsel %vm6721, %v6705, %v6708
    %v6726 = vsel %vm6724, %v6714, 2102212464
    %v6727 = vsel %vm6723, %v6711, %v6726
    %v6728 = vsel %vm6722, %v6725, %v6727
    %v6729 = vsel %vm6721, %v6708, %v6711
    %v6730 = vsel %vm6724, %v6717, 920167782
    %v6731 = vsel %vm6723, %v6714, %v6730
    %v6732 = vsel %vm6722, %v6729, %v6731
    %v6733 = vsel %vm6721, %v6711, %v6714
    %v6734 = vsel %vm6724, %v6720, 1326507024
    %v6735 = vsel %vm6723, %v6717, %v6734
    %v6736 = vsel %vm6722, %v6733, %v6735
    %v6737 = vshll.u32 %v6697, 8
    %v6738 = vmul.u32.u64.compose %v6737, %v6736
    %v6739 = vextract.low.u32 %v6738
    %v6740 = vextract.high.u32 %v6738
    %v6741 = vmul.u32.u64.compose %v6737, %v6732
    %v6742 = vextract.low.u32 %v6741
    %v6743 = vextract.high.u32 %v6741
    %v6744 = vmul.u32 %v6737, %v6728
    %v6745 = vadd.s32 %v6740, %v6742
    %vm6746 = vc.u32 %v6740, %v6742
    %v6747 = vadd.s32 %v6743, 1
    %v6748 = vsel %vm6746, %v6747, %v6743
    %v6749 = vadd.s32 %v6744, %v6748
    %v6750 = vadd.s32 %v6749, 536870912
    %v6751 = vshrl.u32 %v6750, 30
    %v6752 = vshll.u32 %v6751, 30
    %v6753 = vsub.s32 %v6749, %v6752
    %vm6754 = vcmp.lt.s32.totalorder %v6753, 0
    %v6755 = vsub.s32 0, %v6753
    %v6756 = vsel %vm6754, %v6755, %v6753
    %v6757 = vclz %v6756
    %v6758 = vsub.s32 %v6757, 2
    %vm6759 = vcmp.gt.s32.totalorder 0, %v6758
    %v6760 = vsel %vm6759, 0, %v6758
    %v6761 = vsub.s32 32, %v6760
    %v6762 = vshll.u32 %v6753, %v6760
    %v6763 = vshrl.u32 %v6745, %v6761
    %v6764 = vor.u32 %v6762, %v6763
    %v6765 = vsub.s32 4294967266, %v6760
    %v6766 = vadd.s32 %v6765, 127
    %v6767 = vshll.u32 %v6766, 23
    %v6768 = vor.u32 4788187, %v6767
    %v6769 = vand.u32 2147483647, %v6768
    %v6771 = vcvt.s32.f32 %v6764
    %v6772 = vmul.f32 %v6771, %v6769
    %v6773 = vxor.u32 %v6772, 2147483648
    %v6774 = vsel %vm6691, %v6773, %v6772
    %v6775 = vsub.s32 4, %v6751
    %v6776 = vsel %vm6691, %v6775, %v6751
    %v6777 = vsel %vm6690, %v1681, %v6774
    %v6778 = vsel %vm6690, 0, %v6776
    %v6779 = vcosq.f32.pop %v6777
    %v6780 = vsinq.f32.pop %v6777
    %vm6781 = vweird.f32 %v1681
    %v6782 = vadd.s32 %v6778, 3
    %v6783 = vand.u32 %v6782, 3
    %vm6784 = vcmp.lt.s32.totalorder %v6783, 2
    %vm6785 = vcmp.eq.s32.totalorder %v6783, 0
    %v6786 = vxor.u32 %v6780, 2147483648
    %v6787 = vsel %vm6785, %v6779, %v6786
    %vm6788 = vcmp.eq.s32.totalorder %v6783, 2
    %v6789 = vxor.u32 %v6779, 2147483648
    %v6790 = vsel %vm6788, %v6789, %v6780
    %v6791 = vsel %vm6784, %v6787, %v6790
    %v6792 = vsel %vm6781, nan, %v6791
    %v6793 = vand.u32 2147483647, %v1682
    %vm6794 = vcmp.le.f32.partialorder %v6793, 0.7853982
    %vm6795 = vcmp.lt.s32.totalorder %v1682, 0
    %v6796 = vand.u32 %v1682, 2139095040
    %v6797 = vshrl.u32 %v6796, 23
    %v6798 = vsub.s32 %v6797, 127
    %v6799 = vand.u32 2147483647, %v1682
    %v6800 = vand.u32 %v6799, 8388607
    %v6801 = vor.u32 %v6800, 8388608
    %v6802 = vsub.s32 0, %v6801
    %v6803 = vadd.s32 %v6798, 1
    %vm6804 = vcmp.gt.s32.totalorder %v6803, 0
    %v6805 = vsel %vm6804, %v6803, 0
    %v6806 = vshrl.u32 %v6805, 5
    %v6807 = vand.u32 %v6805, 31
    %v6808 = vsub.s32 32, %v6807
    %v6809 = vshrl.u32 683565275, %v6808
    %v6810 = vshll.u32 683565275, %v6807
    %v6811 = vshrl.u32 2475754826, %v6808
    %v6812 = vor.u32 %v6810, %v6811
    %v6813 = vshll.u32 2475754826, %v6807
    %v6814 = vshrl.u32 2131351028, %v6808
    %v6815 = vor.u32 %v6813, %v6814
    %v6816 = vshll.u32 2131351028, %v6807
    %v6817 = vshrl.u32 2102212464, %v6808
    %v6818 = vor.u32 %v6816, %v6817
    %v6819 = vshll.u32 2102212464, %v6807
    %v6820 = vshrl.u32 920167782, %v6808
    %v6821 = vor.u32 %v6819, %v6820
    %v6822 = vshll.u32 920167782, %v6807
    %v6823 = vshrl.u32 1326507024, %v6808
    %v6824 = vor.u32 %v6822, %v6823
    %vm6825 = vcmp.lt.s32.totalorder %v6806, 1
    %vm6826 = vcmp.lt.s32.totalorder %v6806, 2
    %vm6827 = vcmp.lt.s32.totalorder %v6806, 3
    %vm6828 = vcmp.lt.s32.totalorder %v6806, 4
    %v6829 = vsel %vm6825, %v6809, %v6812
    %v6830 = vsel %vm6828, %v6818, 2102212464
    %v6831 = vsel %vm6827, %v6815, %v6830
    %v6832 = vsel %vm6826, %v6829, %v6831
    %v6833 = vsel %vm6825, %v6812, %v6815
    %v6834 = vsel %vm6828, %v6821, 920167782
    %v6835 = vsel %vm6827, %v6818, %v6834
    %v6836 = vsel %vm6826, %v6833, %v6835
    %v6837 = vsel %vm6825, %v6815, %v6818
    %v6838 = vsel %vm6828, %v6824, 1326507024
    %v6839 = vsel %vm6827, %v6821, %v6838
    %v6840 = vsel %vm6826, %v6837, %v6839
    %v6841 = vshll.u32 %v6801, 8
    %v6842 = vmul.u32.u64.compose %v6841, %v6840
    %v6843 = vextract.low.u32 %v6842
    %v6844 = vextract.high.u32 %v6842
    %v6845 = vmul.u32.u64.compose %v6841, %v6836
    %v6846 = vextract.low.u32 %v6845
    %v6847 = vextract.high.u32 %v6845
    %v6848 = vmul.u32 %v6841, %v6832
    %v6849 = vadd.s32 %v6844, %v6846
    %vm6850 = vc.u32 %v6844, %v6846
    %v6851 = vadd.s32 %v6847, 1
    %v6852 = vsel %vm6850, %v6851, %v6847
    %v6853 = vadd.s32 %v6848, %v6852
    %v6854 = vadd.s32 %v6853, 536870912
    %v6855 = vshrl.u32 %v6854, 30
    %v6856 = vshll.u32 %v6855, 30
    %v6857 = vsub.s32 %v6853, %v6856
    %vm6858 = vcmp.lt.s32.totalorder %v6857, 0
    %v6859 = vsub.s32 0, %v6857
    %v6860 = vsel %vm6858, %v6859, %v6857
    %v6861 = vclz %v6860
    %v6862 = vsub.s32 %v6861, 2
    %vm6863 = vcmp.gt.s32.totalorder 0, %v6862
    %v6864 = vsel %vm6863, 0, %v6862
    %v6865 = vsub.s32 32, %v6864
    %v6866 = vshll.u32 %v6857, %v6864
    %v6867 = vshrl.u32 %v6849, %v6865
    %v6868 = vor.u32 %v6866, %v6867
    %v6869 = vsub.s32 4294967266, %v6864
    %v6870 = vadd.s32 %v6869, 127
    %v6871 = vshll.u32 %v6870, 23
    %v6872 = vor.u32 4788187, %v6871
    %v6873 = vand.u32 2147483647, %v6872
    %v6875 = vcvt.s32.f32 %v6868
    %v6876 = vmul.f32 %v6875, %v6873
    %v6877 = vxor.u32 %v6876, 2147483648
    %v6878 = vsel %vm6795, %v6877, %v6876
    %v6879 = vsub.s32 4, %v6855
    %v6880 = vsel %vm6795, %v6879, %v6855
    %v6881 = vsel %vm6794, %v1682, %v6878
    %v6882 = vsel %vm6794, 0, %v6880
    %v6883 = vcosq.f32.pop %v6881
    %v6884 = vsinq.f32.pop %v6881
    %vm6885 = vweird.f32 %v1682
    %v6886 = vadd.s32 %v6882, 3
    %v6887 = vand.u32 %v6886, 3
    %vm6888 = vcmp.lt.s32.totalorder %v6887, 2
    %vm6889 = vcmp.eq.s32.totalorder %v6887, 0
    %v6890 = vxor.u32 %v6884, 2147483648
    %v6891 = vsel %vm6889, %v6883, %v6890
    %vm6892 = vcmp.eq.s32.totalorder %v6887, 2
    %v6893 = vxor.u32 %v6883, 2147483648
    %v6894 = vsel %vm6892, %v6893, %v6884
    %v6895 = vsel %vm6888, %v6891, %v6894
    %v6896 = vsel %vm6885, nan, %v6895
    %v6897 = vand.u32 2147483647, %v1683
    %vm6898 = vcmp.le.f32.partialorder %v6897, 0.7853982
    %vm6899 = vcmp.lt.s32.totalorder %v1683, 0
    %v6900 = vand.u32 %v1683, 2139095040
    %v6901 = vshrl.u32 %v6900, 23
    %v6902 = vsub.s32 %v6901, 127
    %v6903 = vand.u32 2147483647, %v1683
    %v6904 = vand.u32 %v6903, 8388607
    %v6905 = vor.u32 %v6904, 8388608
    %v6906 = vsub.s32 0, %v6905
    %v6907 = vadd.s32 %v6902, 1
    %vm6908 = vcmp.gt.s32.totalorder %v6907, 0
    %v6909 = vsel %vm6908, %v6907, 0
    %v6910 = vshrl.u32 %v6909, 5
    %v6911 = vand.u32 %v6909, 31
    %v6912 = vsub.s32 32, %v6911
    %v6913 = vshrl.u32 683565275, %v6912
    %v6914 = vshll.u32 683565275, %v6911
    %v6915 = vshrl.u32 2475754826, %v6912
    %v6916 = vor.u32 %v6914, %v6915
    %v6917 = vshll.u32 2475754826, %v6911
    %v6918 = vshrl.u32 2131351028, %v6912
    %v6919 = vor.u32 %v6917, %v6918
    %v6920 = vshll.u32 2131351028, %v6911
    %v6921 = vshrl.u32 2102212464, %v6912
    %v6922 = vor.u32 %v6920, %v6921
    %v6923 = vshll.u32 2102212464, %v6911
    %v6924 = vshrl.u32 920167782, %v6912
    %v6925 = vor.u32 %v6923, %v6924
    %v6926 = vshll.u32 920167782, %v6911
    %v6927 = vshrl.u32 1326507024, %v6912
    %v6928 = vor.u32 %v6926, %v6927
    %vm6929 = vcmp.lt.s32.totalorder %v6910, 1
    %vm6930 = vcmp.lt.s32.totalorder %v6910, 2
    %vm6931 = vcmp.lt.s32.totalorder %v6910, 3
    %vm6932 = vcmp.lt.s32.totalorder %v6910, 4
    %v6933 = vsel %vm6929, %v6913, %v6916
    %v6934 = vsel %vm6932, %v6922, 2102212464
    %v6935 = vsel %vm6931, %v6919, %v6934
    %v6936 = vsel %vm6930, %v6933, %v6935
    %v6937 = vsel %vm6929, %v6916, %v6919
    %v6938 = vsel %vm6932, %v6925, 920167782
    %v6939 = vsel %vm6931, %v6922, %v6938
    %v6940 = vsel %vm6930, %v6937, %v6939
    %v6941 = vsel %vm6929, %v6919, %v6922
    %v6942 = vsel %vm6932, %v6928, 1326507024
    %v6943 = vsel %vm6931, %v6925, %v6942
    %v6944 = vsel %vm6930, %v6941, %v6943
    %v6945 = vshll.u32 %v6905, 8
    %v6946 = vmul.u32.u64.compose %v6945, %v6944
    %v6947 = vextract.low.u32 %v6946
    %v6948 = vextract.high.u32 %v6946
    %v6949 = vmul.u32.u64.compose %v6945, %v6940
    %v6950 = vextract.low.u32 %v6949
    %v6951 = vextract.high.u32 %v6949
    %v6952 = vmul.u32 %v6945, %v6936
    %v6953 = vadd.s32 %v6948, %v6950
    %vm6954 = vc.u32 %v6948, %v6950
    %v6955 = vadd.s32 %v6951, 1
    %v6956 = vsel %vm6954, %v6955, %v6951
    %v6957 = vadd.s32 %v6952, %v6956
    %v6958 = vadd.s32 %v6957, 536870912
    %v6959 = vshrl.u32 %v6958, 30
    %v6960 = vshll.u32 %v6959, 30
    %v6961 = vsub.s32 %v6957, %v6960
    %vm6962 = vcmp.lt.s32.totalorder %v6961, 0
    %v6963 = vsub.s32 0, %v6961
    %v6964 = vsel %vm6962, %v6963, %v6961
    %v6965 = vclz %v6964
    %v6966 = vsub.s32 %v6965, 2
    %vm6967 = vcmp.gt.s32.totalorder 0, %v6966
    %v6968 = vsel %vm6967, 0, %v6966
    %v6969 = vsub.s32 32, %v6968
    %v6970 = vshll.u32 %v6961, %v6968
    %v6971 = vshrl.u32 %v6953, %v6969
    %v6972 = vor.u32 %v6970, %v6971
    %v6973 = vsub.s32 4294967266, %v6968
    %v6974 = vadd.s32 %v6973, 127
    %v6975 = vshll.u32 %v6974, 23
    %v6976 = vor.u32 4788187, %v6975
    %v6977 = vand.u32 2147483647, %v6976
    %v6979 = vcvt.s32.f32 %v6972
    %v6980 = vmul.f32 %v6979, %v6977
    %v6981 = vxor.u32 %v6980, 2147483648
    %v6982 = vsel %vm6899, %v6981, %v6980
    %v6983 = vsub.s32 4, %v6959
    %v6984 = vsel %vm6899, %v6983, %v6959
    %v6985 = vsel %vm6898, %v1683, %v6982
    %v6986 = vsel %vm6898, 0, %v6984
    %v6987 = vcosq.f32.pop %v6985
    %v6988 = vsinq.f32.pop %v6985
    %vm6989 = vweird.f32 %v1683
    %v6990 = vadd.s32 %v6986, 3
    %v6991 = vand.u32 %v6990, 3
    %vm6992 = vcmp.lt.s32.totalorder %v6991, 2
    %vm6993 = vcmp.eq.s32.totalorder %v6991, 0
    %v6994 = vxor.u32 %v6988, 2147483648
    %v6995 = vsel %vm6993, %v6987, %v6994
    %vm6996 = vcmp.eq.s32.totalorder %v6991, 2
    %v6997 = vxor.u32 %v6987, 2147483648
    %v6998 = vsel %vm6996, %v6997, %v6988
    %v6999 = vsel %vm6992, %v6995, %v6998
    %v7000 = vsel %vm6989, nan, %v6999
    %v7001 = vand.u32 2147483647, %v1684
    %vm7002 = vcmp.le.f32.partialorder %v7001, 0.7853982
    %vm7003 = vcmp.lt.s32.totalorder %v1684, 0
    %v7004 = vand.u32 %v1684, 2139095040
    %v7005 = vshrl.u32 %v7004, 23
    %v7006 = vsub.s32 %v7005, 127
    %v7007 = vand.u32 2147483647, %v1684
    %v7008 = vand.u32 %v7007, 8388607
    %v7009 = vor.u32 %v7008, 8388608
    %v7010 = vsub.s32 0, %v7009
    %v7011 = vadd.s32 %v7006, 1
    %vm7012 = vcmp.gt.s32.totalorder %v7011, 0
    %v7013 = vsel %vm7012, %v7011, 0
    %v7014 = vshrl.u32 %v7013, 5
    %v7015 = vand.u32 %v7013, 31
    %v7016 = vsub.s32 32, %v7015
    %v7017 = vshrl.u32 683565275, %v7016
    %v7018 = vshll.u32 683565275, %v7015
    %v7019 = vshrl.u32 2475754826, %v7016
    %v7020 = vor.u32 %v7018, %v7019
    %v7021 = vshll.u32 2475754826, %v7015
    %v7022 = vshrl.u32 2131351028, %v7016
    %v7023 = vor.u32 %v7021, %v7022
    %v7024 = vshll.u32 2131351028, %v7015
    %v7025 = vshrl.u32 2102212464, %v7016
    %v7026 = vor.u32 %v7024, %v7025
    %v7027 = vshll.u32 2102212464, %v7015
    %v7028 = vshrl.u32 920167782, %v7016
    %v7029 = vor.u32 %v7027, %v7028
    %v7030 = vshll.u32 920167782, %v7015
    %v7031 = vshrl.u32 1326507024, %v7016
    %v7032 = vor.u32 %v7030, %v7031
    %vm7033 = vcmp.lt.s32.totalorder %v7014, 1
    %vm7034 = vcmp.lt.s32.totalorder %v7014, 2
    %vm7035 = vcmp.lt.s32.totalorder %v7014, 3
    %vm7036 = vcmp.lt.s32.totalorder %v7014, 4
    %v7037 = vsel %vm7033, %v7017, %v7020
    %v7038 = vsel %vm7036, %v7026, 2102212464
    %v7039 = vsel %vm7035, %v7023, %v7038
    %v7040 = vsel %vm7034, %v7037, %v7039
    %v7041 = vsel %vm7033, %v7020, %v7023
    %v7042 = vsel %vm7036, %v7029, 920167782
    %v7043 = vsel %vm7035, %v7026, %v7042
    %v7044 = vsel %vm7034, %v7041, %v7043
    %v7045 = vsel %vm7033, %v7023, %v7026
    %v7046 = vsel %vm7036, %v7032, 1326507024
    %v7047 = vsel %vm7035, %v7029, %v7046
    %v7048 = vsel %vm7034, %v7045, %v7047
    %v7049 = vshll.u32 %v7009, 8
    %v7050 = vmul.u32.u64.compose %v7049, %v7048
    %v7051 = vextract.low.u32 %v7050
    %v7052 = vextract.high.u32 %v7050
    %v7053 = vmul.u32.u64.compose %v7049, %v7044
    %v7054 = vextract.low.u32 %v7053
    %v7055 = vextract.high.u32 %v7053
    %v7056 = vmul.u32 %v7049, %v7040
    %v7057 = vadd.s32 %v7052, %v7054
    %vm7058 = vc.u32 %v7052, %v7054
    %v7059 = vadd.s32 %v7055, 1
    %v7060 = vsel %vm7058, %v7059, %v7055
    %v7061 = vadd.s32 %v7056, %v7060
    %v7062 = vadd.s32 %v7061, 536870912
    %v7063 = vshrl.u32 %v7062, 30
    %v7064 = vshll.u32 %v7063, 30
    %v7065 = vsub.s32 %v7061, %v7064
    %vm7066 = vcmp.lt.s32.totalorder %v7065, 0
    %v7067 = vsub.s32 0, %v7065
    %v7068 = vsel %vm7066, %v7067, %v7065
    %v7069 = vclz %v7068
    %v7070 = vsub.s32 %v7069, 2
    %vm7071 = vcmp.gt.s32.totalorder 0, %v7070
    %v7072 = vsel %vm7071, 0, %v7070
    %v7073 = vsub.s32 32, %v7072
    %v7074 = vshll.u32 %v7065, %v7072
    %v7075 = vshrl.u32 %v7057, %v7073
    %v7076 = vor.u32 %v7074, %v7075
    %v7077 = vsub.s32 4294967266, %v7072
    %v7078 = vadd.s32 %v7077, 127
    %v7079 = vshll.u32 %v7078, 23
    %v7080 = vor.u32 4788187, %v7079
    %v7081 = vand.u32 2147483647, %v7080
    %v7083 = vcvt.s32.f32 %v7076
    %v7084 = vmul.f32 %v7083, %v7081
    %v7085 = vxor.u32 %v7084, 2147483648
    %v7086 = vsel %vm7003, %v7085, %v7084
    %v7087 = vsub.s32 4, %v7063
    %v7088 = vsel %vm7003, %v7087, %v7063
    %v7089 = vsel %vm7002, %v1684, %v7086
    %v7090 = vsel %vm7002, 0, %v7088
    %v7091 = vcosq.f32.pop %v7089
    %v7092 = vsinq.f32.pop %v7089
    %vm7093 = vweird.f32 %v1684
    %v7094 = vadd.s32 %v7090, 3
    %v7095 = vand.u32 %v7094, 3
    %vm7096 = vcmp.lt.s32.totalorder %v7095, 2
    %vm7097 = vcmp.eq.s32.totalorder %v7095, 0
    %v7098 = vxor.u32 %v7092, 2147483648
    %v7099 = vsel %vm7097, %v7091, %v7098
    %vm7100 = vcmp.eq.s32.totalorder %v7095, 2
    %v7101 = vxor.u32 %v7091, 2147483648
    %v7102 = vsel %vm7100, %v7101, %v7092
    %v7103 = vsel %vm7096, %v7099, %v7102
    %v7104 = vsel %vm7093, nan, %v7103
    %v7105 = vand.u32 2147483647, %v1685
    %vm7106 = vcmp.le.f32.partialorder %v7105, 0.7853982
    %vm7107 = vcmp.lt.s32.totalorder %v1685, 0
    %v7108 = vand.u32 %v1685, 2139095040
    %v7109 = vshrl.u32 %v7108, 23
    %v7110 = vsub.s32 %v7109, 127
    %v7111 = vand.u32 2147483647, %v1685
    %v7112 = vand.u32 %v7111, 8388607
    %v7113 = vor.u32 %v7112, 8388608
    %v7114 = vsub.s32 0, %v7113
    %v7115 = vadd.s32 %v7110, 1
    %vm7116 = vcmp.gt.s32.totalorder %v7115, 0
    %v7117 = vsel %vm7116, %v7115, 0
    %v7118 = vshrl.u32 %v7117, 5
    %v7119 = vand.u32 %v7117, 31
    %v7120 = vsub.s32 32, %v7119
    %v7121 = vshrl.u32 683565275, %v7120
    %v7122 = vshll.u32 683565275, %v7119
    %v7123 = vshrl.u32 2475754826, %v7120
    %v7124 = vor.u32 %v7122, %v7123
    %v7125 = vshll.u32 2475754826, %v7119
    %v7126 = vshrl.u32 2131351028, %v7120
    %v7127 = vor.u32 %v7125, %v7126
    %v7128 = vshll.u32 2131351028, %v7119
    %v7129 = vshrl.u32 2102212464, %v7120
    %v7130 = vor.u32 %v7128, %v7129
    %v7131 = vshll.u32 2102212464, %v7119
    %v7132 = vshrl.u32 920167782, %v7120
    %v7133 = vor.u32 %v7131, %v7132
    %v7134 = vshll.u32 920167782, %v7119
    %v7135 = vshrl.u32 1326507024, %v7120
    %v7136 = vor.u32 %v7134, %v7135
    %vm7137 = vcmp.lt.s32.totalorder %v7118, 1
    %vm7138 = vcmp.lt.s32.totalorder %v7118, 2
    %vm7139 = vcmp.lt.s32.totalorder %v7118, 3
    %vm7140 = vcmp.lt.s32.totalorder %v7118, 4
    %v7141 = vsel %vm7137, %v7121, %v7124
    %v7142 = vsel %vm7140, %v7130, 2102212464
    %v7143 = vsel %vm7139, %v7127, %v7142
    %v7144 = vsel %vm7138, %v7141, %v7143
    %v7145 = vsel %vm7137, %v7124, %v7127
    %v7146 = vsel %vm7140, %v7133, 920167782
    %v7147 = vsel %vm7139, %v7130, %v7146
    %v7148 = vsel %vm7138, %v7145, %v7147
    %v7149 = vsel %vm7137, %v7127, %v7130
    %v7150 = vsel %vm7140, %v7136, 1326507024
    %v7151 = vsel %vm7139, %v7133, %v7150
    %v7152 = vsel %vm7138, %v7149, %v7151
    %v7153 = vshll.u32 %v7113, 8
    %v7154 = vmul.u32.u64.compose %v7153, %v7152
    %v7155 = vextract.low.u32 %v7154
    %v7156 = vextract.high.u32 %v7154
    %v7157 = vmul.u32.u64.compose %v7153, %v7148
    %v7158 = vextract.low.u32 %v7157
    %v7159 = vextract.high.u32 %v7157
    %v7160 = vmul.u32 %v7153, %v7144
    %v7161 = vadd.s32 %v7156, %v7158
    %vm7162 = vc.u32 %v7156, %v7158
    %v7163 = vadd.s32 %v7159, 1
    %v7164 = vsel %vm7162, %v7163, %v7159
    %v7165 = vadd.s32 %v7160, %v7164
    %v7166 = vadd.s32 %v7165, 536870912
    %v7167 = vshrl.u32 %v7166, 30
    %v7168 = vshll.u32 %v7167, 30
    %v7169 = vsub.s32 %v7165, %v7168
    %vm7170 = vcmp.lt.s32.totalorder %v7169, 0
    %v7171 = vsub.s32 0, %v7169
    %v7172 = vsel %vm7170, %v7171, %v7169
    %v7173 = vclz %v7172
    %v7174 = vsub.s32 %v7173, 2
    %vm7175 = vcmp.gt.s32.totalorder 0, %v7174
    %v7176 = vsel %vm7175, 0, %v7174
    %v7177 = vsub.s32 32, %v7176
    %v7178 = vshll.u32 %v7169, %v7176
    %v7179 = vshrl.u32 %v7161, %v7177
    %v7180 = vor.u32 %v7178, %v7179
    %v7181 = vsub.s32 4294967266, %v7176
    %v7182 = vadd.s32 %v7181, 127
    %v7183 = vshll.u32 %v7182, 23
    %v7184 = vor.u32 4788187, %v7183
    %v7185 = vand.u32 2147483647, %v7184
    %v7187 = vcvt.s32.f32 %v7180
    %v7188 = vmul.f32 %v7187, %v7185
    %v7189 = vxor.u32 %v7188, 2147483648
    %v7190 = vsel %vm7107, %v7189, %v7188
    %v7191 = vsub.s32 4, %v7167
    %v7192 = vsel %vm7107, %v7191, %v7167
    %v7193 = vsel %vm7106, %v1685, %v7190
    %v7194 = vsel %vm7106, 0, %v7192
    %v7195 = vcosq.f32.pop %v7193
    %v7196 = vsinq.f32.pop %v7193
    %vm7197 = vweird.f32 %v1685
    %v7198 = vadd.s32 %v7194, 3
    %v7199 = vand.u32 %v7198, 3
    %vm7200 = vcmp.lt.s32.totalorder %v7199, 2
    %vm7201 = vcmp.eq.s32.totalorder %v7199, 0
    %v7202 = vxor.u32 %v7196, 2147483648
    %v7203 = vsel %vm7201, %v7195, %v7202
    %vm7204 = vcmp.eq.s32.totalorder %v7199, 2
    %v7205 = vxor.u32 %v7195, 2147483648
    %v7206 = vsel %vm7204, %v7205, %v7196
    %v7207 = vsel %vm7200, %v7203, %v7206
    %v7208 = vsel %vm7197, nan, %v7207
    %v7209 = vand.u32 2147483647, %v1686
    %vm7210 = vcmp.le.f32.partialorder %v7209, 0.7853982
    %vm7211 = vcmp.lt.s32.totalorder %v1686, 0
    %v7212 = vand.u32 %v1686, 2139095040
    %v7213 = vshrl.u32 %v7212, 23
    %v7214 = vsub.s32 %v7213, 127
    %v7215 = vand.u32 2147483647, %v1686
    %v7216 = vand.u32 %v7215, 8388607
    %v7217 = vor.u32 %v7216, 8388608
    %v7218 = vsub.s32 0, %v7217
    %v7219 = vadd.s32 %v7214, 1
    %vm7220 = vcmp.gt.s32.totalorder %v7219, 0
    %v7221 = vsel %vm7220, %v7219, 0
    %v7222 = vshrl.u32 %v7221, 5
    %v7223 = vand.u32 %v7221, 31
    %v7224 = vsub.s32 32, %v7223
    %v7225 = vshrl.u32 683565275, %v7224
    %v7226 = vshll.u32 683565275, %v7223
    %v7227 = vshrl.u32 2475754826, %v7224
    %v7228 = vor.u32 %v7226, %v7227
    %v7229 = vshll.u32 2475754826, %v7223
    %v7230 = vshrl.u32 2131351028, %v7224
    %v7231 = vor.u32 %v7229, %v7230
    %v7232 = vshll.u32 2131351028, %v7223
    %v7233 = vshrl.u32 2102212464, %v7224
    %v7234 = vor.u32 %v7232, %v7233
    %v7235 = vshll.u32 2102212464, %v7223
    %v7236 = vshrl.u32 920167782, %v7224
    %v7237 = vor.u32 %v7235, %v7236
    %v7238 = vshll.u32 920167782, %v7223
    %v7239 = vshrl.u32 1326507024, %v7224
    %v7240 = vor.u32 %v7238, %v7239
    %vm7241 = vcmp.lt.s32.totalorder %v7222, 1
    %vm7242 = vcmp.lt.s32.totalorder %v7222, 2
    %vm7243 = vcmp.lt.s32.totalorder %v7222, 3
    %vm7244 = vcmp.lt.s32.totalorder %v7222, 4
    %v7245 = vsel %vm7241, %v7225, %v7228
    %v7246 = vsel %vm7244, %v7234, 2102212464
    %v7247 = vsel %vm7243, %v7231, %v7246
    %v7248 = vsel %vm7242, %v7245, %v7247
    %v7249 = vsel %vm7241, %v7228, %v7231
    %v7250 = vsel %vm7244, %v7237, 920167782
    %v7251 = vsel %vm7243, %v7234, %v7250
    %v7252 = vsel %vm7242, %v7249, %v7251
    %v7253 = vsel %vm7241, %v7231, %v7234
    %v7254 = vsel %vm7244, %v7240, 1326507024
    %v7255 = vsel %vm7243, %v7237, %v7254
    %v7256 = vsel %vm7242, %v7253, %v7255
    %v7257 = vshll.u32 %v7217, 8
    %v7258 = vmul.u32.u64.compose %v7257, %v7256
    %v7259 = vextract.low.u32 %v7258
    %v7260 = vextract.high.u32 %v7258
    %v7261 = vmul.u32.u64.compose %v7257, %v7252
    %v7262 = vextract.low.u32 %v7261
    %v7263 = vextract.high.u32 %v7261
    %v7264 = vmul.u32 %v7257, %v7248
    %v7265 = vadd.s32 %v7260, %v7262
    %vm7266 = vc.u32 %v7260, %v7262
    %v7267 = vadd.s32 %v7263, 1
    %v7268 = vsel %vm7266, %v7267, %v7263
    %v7269 = vadd.s32 %v7264, %v7268
    %v7270 = vadd.s32 %v7269, 536870912
    %v7271 = vshrl.u32 %v7270, 30
    %v7272 = vshll.u32 %v7271, 30
    %v7273 = vsub.s32 %v7269, %v7272
    %vm7274 = vcmp.lt.s32.totalorder %v7273, 0
    %v7275 = vsub.s32 0, %v7273
    %v7276 = vsel %vm7274, %v7275, %v7273
    %v7277 = vclz %v7276
    %v7278 = vsub.s32 %v7277, 2
    %vm7279 = vcmp.gt.s32.totalorder 0, %v7278
    %v7280 = vsel %vm7279, 0, %v7278
    %v7281 = vsub.s32 32, %v7280
    %v7282 = vshll.u32 %v7273, %v7280
    %v7283 = vshrl.u32 %v7265, %v7281
    %v7284 = vor.u32 %v7282, %v7283
    %v7285 = vsub.s32 4294967266, %v7280
    %v7286 = vadd.s32 %v7285, 127
    %v7287 = vshll.u32 %v7286, 23
    %v7288 = vor.u32 4788187, %v7287
    %v7289 = vand.u32 2147483647, %v7288
    %v7291 = vcvt.s32.f32 %v7284
    %v7292 = vmul.f32 %v7291, %v7289
    %v7293 = vxor.u32 %v7292, 2147483648
    %v7294 = vsel %vm7211, %v7293, %v7292
    %v7295 = vsub.s32 4, %v7271
    %v7296 = vsel %vm7211, %v7295, %v7271
    %v7297 = vsel %vm7210, %v1686, %v7294
    %v7298 = vsel %vm7210, 0, %v7296
    %v7299 = vcosq.f32.pop %v7297
    %v7300 = vsinq.f32.pop %v7297
    %vm7301 = vweird.f32 %v1686
    %v7302 = vadd.s32 %v7298, 3
    %v7303 = vand.u32 %v7302, 3
    %vm7304 = vcmp.lt.s32.totalorder %v7303, 2
    %vm7305 = vcmp.eq.s32.totalorder %v7303, 0
    %v7306 = vxor.u32 %v7300, 2147483648
    %v7307 = vsel %vm7305, %v7299, %v7306
    %vm7308 = vcmp.eq.s32.totalorder %v7303, 2
    %v7309 = vxor.u32 %v7299, 2147483648
    %v7310 = vsel %vm7308, %v7309, %v7300
    %v7311 = vsel %vm7304, %v7307, %v7310
    %v7312 = vsel %vm7301, nan, %v7311
    %v7313 = vand.u32 2147483647, %v1687
    %vm7314 = vcmp.le.f32.partialorder %v7313, 0.7853982
    %vm7315 = vcmp.lt.s32.totalorder %v1687, 0
    %v7316 = vand.u32 %v1687, 2139095040
    %v7317 = vshrl.u32 %v7316, 23
    %v7318 = vsub.s32 %v7317, 127
    %v7319 = vand.u32 2147483647, %v1687
    %v7320 = vand.u32 %v7319, 8388607
    %v7321 = vor.u32 %v7320, 8388608
    %v7322 = vsub.s32 0, %v7321
    %v7323 = vadd.s32 %v7318, 1
    %vm7324 = vcmp.gt.s32.totalorder %v7323, 0
    %v7325 = vsel %vm7324, %v7323, 0
    %v7326 = vshrl.u32 %v7325, 5
    %v7327 = vand.u32 %v7325, 31
    %v7328 = vsub.s32 32, %v7327
    %v7329 = vshrl.u32 683565275, %v7328
    %v7330 = vshll.u32 683565275, %v7327
    %v7331 = vshrl.u32 2475754826, %v7328
    %v7332 = vor.u32 %v7330, %v7331
    %v7333 = vshll.u32 2475754826, %v7327
    %v7334 = vshrl.u32 2131351028, %v7328
    %v7335 = vor.u32 %v7333, %v7334
    %v7336 = vshll.u32 2131351028, %v7327
    %v7337 = vshrl.u32 2102212464, %v7328
    %v7338 = vor.u32 %v7336, %v7337
    %v7339 = vshll.u32 2102212464, %v7327
    %v7340 = vshrl.u32 920167782, %v7328
    %v7341 = vor.u32 %v7339, %v7340
    %v7342 = vshll.u32 920167782, %v7327
    %v7343 = vshrl.u32 1326507024, %v7328
    %v7344 = vor.u32 %v7342, %v7343
    %vm7345 = vcmp.lt.s32.totalorder %v7326, 1
    %vm7346 = vcmp.lt.s32.totalorder %v7326, 2
    %vm7347 = vcmp.lt.s32.totalorder %v7326, 3
    %vm7348 = vcmp.lt.s32.totalorder %v7326, 4
    %v7349 = vsel %vm7345, %v7329, %v7332
    %v7350 = vsel %vm7348, %v7338, 2102212464
    %v7351 = vsel %vm7347, %v7335, %v7350
    %v7352 = vsel %vm7346, %v7349, %v7351
    %v7353 = vsel %vm7345, %v7332, %v7335
    %v7354 = vsel %vm7348, %v7341, 920167782
    %v7355 = vsel %vm7347, %v7338, %v7354
    %v7356 = vsel %vm7346, %v7353, %v7355
    %v7357 = vsel %vm7345, %v7335, %v7338
    %v7358 = vsel %vm7348, %v7344, 1326507024
    %v7359 = vsel %vm7347, %v7341, %v7358
    %v7360 = vsel %vm7346, %v7357, %v7359
    %v7361 = vshll.u32 %v7321, 8
    %v7362 = vmul.u32.u64.compose %v7361, %v7360
    %v7363 = vextract.low.u32 %v7362
    %v7364 = vextract.high.u32 %v7362
    %v7365 = vmul.u32.u64.compose %v7361, %v7356
    %v7366 = vextract.low.u32 %v7365
    %v7367 = vextract.high.u32 %v7365
    %v7368 = vmul.u32 %v7361, %v7352
    %v7369 = vadd.s32 %v7364, %v7366
    %vm7370 = vc.u32 %v7364, %v7366
    %v7371 = vadd.s32 %v7367, 1
    %v7372 = vsel %vm7370, %v7371, %v7367
    %v7373 = vadd.s32 %v7368, %v7372
    %v7374 = vadd.s32 %v7373, 536870912
    %v7375 = vshrl.u32 %v7374, 30
    %v7376 = vshll.u32 %v7375, 30
    %v7377 = vsub.s32 %v7373, %v7376
    %vm7378 = vcmp.lt.s32.totalorder %v7377, 0
    %v7379 = vsub.s32 0, %v7377
    %v7380 = vsel %vm7378, %v7379, %v7377
    %v7381 = vclz %v7380
    %v7382 = vsub.s32 %v7381, 2
    %vm7383 = vcmp.gt.s32.totalorder 0, %v7382
    %v7384 = vsel %vm7383, 0, %v7382
    %v7385 = vsub.s32 32, %v7384
    %v7386 = vshll.u32 %v7377, %v7384
    %v7387 = vshrl.u32 %v7369, %v7385
    %v7388 = vor.u32 %v7386, %v7387
    %v7389 = vsub.s32 4294967266, %v7384
    %v7390 = vadd.s32 %v7389, 127
    %v7391 = vshll.u32 %v7390, 23
    %v7392 = vor.u32 4788187, %v7391
    %v7393 = vand.u32 2147483647, %v7392
    %v7395 = vcvt.s32.f32 %v7388
    %v7396 = vmul.f32 %v7395, %v7393
    %v7397 = vxor.u32 %v7396, 2147483648
    %v7398 = vsel %vm7315, %v7397, %v7396
    %v7399 = vsub.s32 4, %v7375
    %v7400 = vsel %vm7315, %v7399, %v7375
    %v7401 = vsel %vm7314, %v1687, %v7398
    %v7402 = vsel %vm7314, 0, %v7400
    %v7403 = vcosq.f32.pop %v7401
    %v7404 = vsinq.f32.pop %v7401
    %vm7405 = vweird.f32 %v1687
    %v7406 = vadd.s32 %v7402, 3
    %v7407 = vand.u32 %v7406, 3
    %vm7408 = vcmp.lt.s32.totalorder %v7407, 2
    %vm7409 = vcmp.eq.s32.totalorder %v7407, 0
    %v7410 = vxor.u32 %v7404, 2147483648
    %v7411 = vsel %vm7409, %v7403, %v7410
    %vm7412 = vcmp.eq.s32.totalorder %v7407, 2
    %v7413 = vxor.u32 %v7403, 2147483648
    %v7414 = vsel %vm7412, %v7413, %v7404
    %v7415 = vsel %vm7408, %v7411, %v7414
    %v7416 = vsel %vm7405, nan, %v7415
    %v7417 = vand.u32 2147483647, %v1688
    %vm7418 = vcmp.le.f32.partialorder %v7417, 0.7853982
    %vm7419 = vcmp.lt.s32.totalorder %v1688, 0
    %v7420 = vand.u32 %v1688, 2139095040
    %v7421 = vshrl.u32 %v7420, 23
    %v7422 = vsub.s32 %v7421, 127
    %v7423 = vand.u32 2147483647, %v1688
    %v7424 = vand.u32 %v7423, 8388607
    %v7425 = vor.u32 %v7424, 8388608
    %v7426 = vsub.s32 0, %v7425
    %v7427 = vadd.s32 %v7422, 1
    %vm7428 = vcmp.gt.s32.totalorder %v7427, 0
    %v7429 = vsel %vm7428, %v7427, 0
    %v7430 = vshrl.u32 %v7429, 5
    %v7431 = vand.u32 %v7429, 31
    %v7432 = vsub.s32 32, %v7431
    %v7433 = vshrl.u32 683565275, %v7432
    %v7434 = vshll.u32 683565275, %v7431
    %v7435 = vshrl.u32 2475754826, %v7432
    %v7436 = vor.u32 %v7434, %v7435
    %v7437 = vshll.u32 2475754826, %v7431
    %v7438 = vshrl.u32 2131351028, %v7432
    %v7439 = vor.u32 %v7437, %v7438
    %v7440 = vshll.u32 2131351028, %v7431
    %v7441 = vshrl.u32 2102212464, %v7432
    %v7442 = vor.u32 %v7440, %v7441
    %v7443 = vshll.u32 2102212464, %v7431
    %v7444 = vshrl.u32 920167782, %v7432
    %v7445 = vor.u32 %v7443, %v7444
    %v7446 = vshll.u32 920167782, %v7431
    %v7447 = vshrl.u32 1326507024, %v7432
    %v7448 = vor.u32 %v7446, %v7447
    %vm7449 = vcmp.lt.s32.totalorder %v7430, 1
    %vm7450 = vcmp.lt.s32.totalorder %v7430, 2
    %vm7451 = vcmp.lt.s32.totalorder %v7430, 3
    %vm7452 = vcmp.lt.s32.totalorder %v7430, 4
    %v7453 = vsel %vm7449, %v7433, %v7436
    %v7454 = vsel %vm7452, %v7442, 2102212464
    %v7455 = vsel %vm7451, %v7439, %v7454
    %v7456 = vsel %vm7450, %v7453, %v7455
    %v7457 = vsel %vm7449, %v7436, %v7439
    %v7458 = vsel %vm7452, %v7445, 920167782
    %v7459 = vsel %vm7451, %v7442, %v7458
    %v7460 = vsel %vm7450, %v7457, %v7459
    %v7461 = vsel %vm7449, %v7439, %v7442
    %v7462 = vsel %vm7452, %v7448, 1326507024
    %v7463 = vsel %vm7451, %v7445, %v7462
    %v7464 = vsel %vm7450, %v7461, %v7463
    %v7465 = vshll.u32 %v7425, 8
    %v7466 = vmul.u32.u64.compose %v7465, %v7464
    %v7467 = vextract.low.u32 %v7466
    %v7468 = vextract.high.u32 %v7466
    %v7469 = vmul.u32.u64.compose %v7465, %v7460
    %v7470 = vextract.low.u32 %v7469
    %v7471 = vextract.high.u32 %v7469
    %v7472 = vmul.u32 %v7465, %v7456
    %v7473 = vadd.s32 %v7468, %v7470
    %vm7474 = vc.u32 %v7468, %v7470
    %v7475 = vadd.s32 %v7471, 1
    %v7476 = vsel %vm7474, %v7475, %v7471
    %v7477 = vadd.s32 %v7472, %v7476
    %v7478 = vadd.s32 %v7477, 536870912
    %v7479 = vshrl.u32 %v7478, 30
    %v7480 = vshll.u32 %v7479, 30
    %v7481 = vsub.s32 %v7477, %v7480
    %vm7482 = vcmp.lt.s32.totalorder %v7481, 0
    %v7483 = vsub.s32 0, %v7481
    %v7484 = vsel %vm7482, %v7483, %v7481
    %v7485 = vclz %v7484
    %v7486 = vsub.s32 %v7485, 2
    %vm7487 = vcmp.gt.s32.totalorder 0, %v7486
    %v7488 = vsel %vm7487, 0, %v7486
    %v7489 = vsub.s32 32, %v7488
    %v7490 = vshll.u32 %v7481, %v7488
    %v7491 = vshrl.u32 %v7473, %v7489
    %v7492 = vor.u32 %v7490, %v7491
    %v7493 = vsub.s32 4294967266, %v7488
    %v7494 = vadd.s32 %v7493, 127
    %v7495 = vshll.u32 %v7494, 23
    %v7496 = vor.u32 4788187, %v7495
    %v7497 = vand.u32 2147483647, %v7496
    %v7499 = vcvt.s32.f32 %v7492
    %v7500 = vmul.f32 %v7499, %v7497
    %v7501 = vxor.u32 %v7500, 2147483648
    %v7502 = vsel %vm7419, %v7501, %v7500
    %v7503 = vsub.s32 4, %v7479
    %v7504 = vsel %vm7419, %v7503, %v7479
    %v7505 = vsel %vm7418, %v1688, %v7502
    %v7506 = vsel %vm7418, 0, %v7504
    %v7507 = vcosq.f32.pop %v7505
    %v7508 = vsinq.f32.pop %v7505
    %vm7509 = vweird.f32 %v1688
    %v7510 = vadd.s32 %v7506, 3
    %v7511 = vand.u32 %v7510, 3
    %vm7512 = vcmp.lt.s32.totalorder %v7511, 2
    %vm7513 = vcmp.eq.s32.totalorder %v7511, 0
    %v7514 = vxor.u32 %v7508, 2147483648
    %v7515 = vsel %vm7513, %v7507, %v7514
    %vm7516 = vcmp.eq.s32.totalorder %v7511, 2
    %v7517 = vxor.u32 %v7507, 2147483648
    %v7518 = vsel %vm7516, %v7517, %v7508
    %v7519 = vsel %vm7512, %v7515, %v7518
    %v7520 = vsel %vm7509, nan, %v7519
    %v7521 = vand.u32 2147483647, %v1689
    %vm7522 = vcmp.le.f32.partialorder %v7521, 0.7853982
    %vm7523 = vcmp.lt.s32.totalorder %v1689, 0
    %v7524 = vand.u32 %v1689, 2139095040
    %v7525 = vshrl.u32 %v7524, 23
    %v7526 = vsub.s32 %v7525, 127
    %v7527 = vand.u32 2147483647, %v1689
    %v7528 = vand.u32 %v7527, 8388607
    %v7529 = vor.u32 %v7528, 8388608
    %v7530 = vsub.s32 0, %v7529
    %v7531 = vadd.s32 %v7526, 1
    %vm7532 = vcmp.gt.s32.totalorder %v7531, 0
    %v7533 = vsel %vm7532, %v7531, 0
    %v7534 = vshrl.u32 %v7533, 5
    %v7535 = vand.u32 %v7533, 31
    %v7536 = vsub.s32 32, %v7535
    %v7537 = vshrl.u32 683565275, %v7536
    %v7538 = vshll.u32 683565275, %v7535
    %v7539 = vshrl.u32 2475754826, %v7536
    %v7540 = vor.u32 %v7538, %v7539
    %v7541 = vshll.u32 2475754826, %v7535
    %v7542 = vshrl.u32 2131351028, %v7536
    %v7543 = vor.u32 %v7541, %v7542
    %v7544 = vshll.u32 2131351028, %v7535
    %v7545 = vshrl.u32 2102212464, %v7536
    %v7546 = vor.u32 %v7544, %v7545
    %v7547 = vshll.u32 2102212464, %v7535
    %v7548 = vshrl.u32 920167782, %v7536
    %v7549 = vor.u32 %v7547, %v7548
    %v7550 = vshll.u32 920167782, %v7535
    %v7551 = vshrl.u32 1326507024, %v7536
    %v7552 = vor.u32 %v7550, %v7551
    %vm7553 = vcmp.lt.s32.totalorder %v7534, 1
    %vm7554 = vcmp.lt.s32.totalorder %v7534, 2
    %vm7555 = vcmp.lt.s32.totalorder %v7534, 3
    %vm7556 = vcmp.lt.s32.totalorder %v7534, 4
    %v7557 = vsel %vm7553, %v7537, %v7540
    %v7558 = vsel %vm7556, %v7546, 2102212464
    %v7559 = vsel %vm7555, %v7543, %v7558
    %v7560 = vsel %vm7554, %v7557, %v7559
    %v7561 = vsel %vm7553, %v7540, %v7543
    %v7562 = vsel %vm7556, %v7549, 920167782
    %v7563 = vsel %vm7555, %v7546, %v7562
    %v7564 = vsel %vm7554, %v7561, %v7563
    %v7565 = vsel %vm7553, %v7543, %v7546
    %v7566 = vsel %vm7556, %v7552, 1326507024
    %v7567 = vsel %vm7555, %v7549, %v7566
    %v7568 = vsel %vm7554, %v7565, %v7567
    %v7569 = vshll.u32 %v7529, 8
    %v7570 = vmul.u32.u64.compose %v7569, %v7568
    %v7571 = vextract.low.u32 %v7570
    %v7572 = vextract.high.u32 %v7570
    %v7573 = vmul.u32.u64.compose %v7569, %v7564
    %v7574 = vextract.low.u32 %v7573
    %v7575 = vextract.high.u32 %v7573
    %v7576 = vmul.u32 %v7569, %v7560
    %v7577 = vadd.s32 %v7572, %v7574
    %vm7578 = vc.u32 %v7572, %v7574
    %v7579 = vadd.s32 %v7575, 1
    %v7580 = vsel %vm7578, %v7579, %v7575
    %v7581 = vadd.s32 %v7576, %v7580
    %v7582 = vadd.s32 %v7581, 536870912
    %v7583 = vshrl.u32 %v7582, 30
    %v7584 = vshll.u32 %v7583, 30
    %v7585 = vsub.s32 %v7581, %v7584
    %vm7586 = vcmp.lt.s32.totalorder %v7585, 0
    %v7587 = vsub.s32 0, %v7585
    %v7588 = vsel %vm7586, %v7587, %v7585
    %v7589 = vclz %v7588
    %v7590 = vsub.s32 %v7589, 2
    %vm7591 = vcmp.gt.s32.totalorder 0, %v7590
    %v7592 = vsel %vm7591, 0, %v7590
    %v7593 = vsub.s32 32, %v7592
    %v7594 = vshll.u32 %v7585, %v7592
    %v7595 = vshrl.u32 %v7577, %v7593
    %v7596 = vor.u32 %v7594, %v7595
    %v7597 = vsub.s32 4294967266, %v7592
    %v7598 = vadd.s32 %v7597, 127
    %v7599 = vshll.u32 %v7598, 23
    %v7600 = vor.u32 4788187, %v7599
    %v7601 = vand.u32 2147483647, %v7600
    %v7603 = vcvt.s32.f32 %v7596
    %v7604 = vmul.f32 %v7603, %v7601
    %v7605 = vxor.u32 %v7604, 2147483648
    %v7606 = vsel %vm7523, %v7605, %v7604
    %v7607 = vsub.s32 4, %v7583
    %v7608 = vsel %vm7523, %v7607, %v7583
    %v7609 = vsel %vm7522, %v1689, %v7606
    %v7610 = vsel %vm7522, 0, %v7608
    %v7611 = vcosq.f32.pop %v7609
    %v7612 = vsinq.f32.pop %v7609
    %vm7613 = vweird.f32 %v1689
    %v7614 = vadd.s32 %v7610, 3
    %v7615 = vand.u32 %v7614, 3
    %vm7616 = vcmp.lt.s32.totalorder %v7615, 2
    %vm7617 = vcmp.eq.s32.totalorder %v7615, 0
    %v7618 = vxor.u32 %v7612, 2147483648
    %v7619 = vsel %vm7617, %v7611, %v7618
    %vm7620 = vcmp.eq.s32.totalorder %v7615, 2
    %v7621 = vxor.u32 %v7611, 2147483648
    %v7622 = vsel %vm7620, %v7621, %v7612
    %v7623 = vsel %vm7616, %v7619, %v7622
    %v7624 = vsel %vm7613, nan, %v7623
    %v7625 = vand.u32 2147483647, %v1690
    %vm7626 = vcmp.le.f32.partialorder %v7625, 0.7853982
    %vm7627 = vcmp.lt.s32.totalorder %v1690, 0
    %v7628 = vand.u32 %v1690, 2139095040
    %v7629 = vshrl.u32 %v7628, 23
    %v7630 = vsub.s32 %v7629, 127
    %v7631 = vand.u32 2147483647, %v1690
    %v7632 = vand.u32 %v7631, 8388607
    %v7633 = vor.u32 %v7632, 8388608
    %v7634 = vsub.s32 0, %v7633
    %v7635 = vadd.s32 %v7630, 1
    %vm7636 = vcmp.gt.s32.totalorder %v7635, 0
    %v7637 = vsel %vm7636, %v7635, 0
    %v7638 = vshrl.u32 %v7637, 5
    %v7639 = vand.u32 %v7637, 31
    %v7640 = vsub.s32 32, %v7639
    %v7641 = vshrl.u32 683565275, %v7640
    %v7642 = vshll.u32 683565275, %v7639
    %v7643 = vshrl.u32 2475754826, %v7640
    %v7644 = vor.u32 %v7642, %v7643
    %v7645 = vshll.u32 2475754826, %v7639
    %v7646 = vshrl.u32 2131351028, %v7640
    %v7647 = vor.u32 %v7645, %v7646
    %v7648 = vshll.u32 2131351028, %v7639
    %v7649 = vshrl.u32 2102212464, %v7640
    %v7650 = vor.u32 %v7648, %v7649
    %v7651 = vshll.u32 2102212464, %v7639
    %v7652 = vshrl.u32 920167782, %v7640
    %v7653 = vor.u32 %v7651, %v7652
    %v7654 = vshll.u32 920167782, %v7639
    %v7655 = vshrl.u32 1326507024, %v7640
    %v7656 = vor.u32 %v7654, %v7655
    %vm7657 = vcmp.lt.s32.totalorder %v7638, 1
    %vm7658 = vcmp.lt.s32.totalorder %v7638, 2
    %vm7659 = vcmp.lt.s32.totalorder %v7638, 3
    %vm7660 = vcmp.lt.s32.totalorder %v7638, 4
    %v7661 = vsel %vm7657, %v7641, %v7644
    %v7662 = vsel %vm7660, %v7650, 2102212464
    %v7663 = vsel %vm7659, %v7647, %v7662
    %v7664 = vsel %vm7658, %v7661, %v7663
    %v7665 = vsel %vm7657, %v7644, %v7647
    %v7666 = vsel %vm7660, %v7653, 920167782
    %v7667 = vsel %vm7659, %v7650, %v7666
    %v7668 = vsel %vm7658, %v7665, %v7667
    %v7669 = vsel %vm7657, %v7647, %v7650
    %v7670 = vsel %vm7660, %v7656, 1326507024
    %v7671 = vsel %vm7659, %v7653, %v7670
    %v7672 = vsel %vm7658, %v7669, %v7671
    %v7673 = vshll.u32 %v7633, 8
    %v7674 = vmul.u32.u64.compose %v7673, %v7672
    %v7675 = vextract.low.u32 %v7674
    %v7676 = vextract.high.u32 %v7674
    %v7677 = vmul.u32.u64.compose %v7673, %v7668
    %v7678 = vextract.low.u32 %v7677
    %v7679 = vextract.high.u32 %v7677
    %v7680 = vmul.u32 %v7673, %v7664
    %v7681 = vadd.s32 %v7676, %v7678
    %vm7682 = vc.u32 %v7676, %v7678
    %v7683 = vadd.s32 %v7679, 1
    %v7684 = vsel %vm7682, %v7683, %v7679
    %v7685 = vadd.s32 %v7680, %v7684
    %v7686 = vadd.s32 %v7685, 536870912
    %v7687 = vshrl.u32 %v7686, 30
    %v7688 = vshll.u32 %v7687, 30
    %v7689 = vsub.s32 %v7685, %v7688
    %vm7690 = vcmp.lt.s32.totalorder %v7689, 0
    %v7691 = vsub.s32 0, %v7689
    %v7692 = vsel %vm7690, %v7691, %v7689
    %v7693 = vclz %v7692
    %v7694 = vsub.s32 %v7693, 2
    %vm7695 = vcmp.gt.s32.totalorder 0, %v7694
    %v7696 = vsel %vm7695, 0, %v7694
    %v7697 = vsub.s32 32, %v7696
    %v7698 = vshll.u32 %v7689, %v7696
    %v7699 = vshrl.u32 %v7681, %v7697
    %v7700 = vor.u32 %v7698, %v7699
    %v7701 = vsub.s32 4294967266, %v7696
    %v7702 = vadd.s32 %v7701, 127
    %v7703 = vshll.u32 %v7702, 23
    %v7704 = vor.u32 4788187, %v7703
    %v7705 = vand.u32 2147483647, %v7704
    %v7707 = vcvt.s32.f32 %v7700
    %v7708 = vmul.f32 %v7707, %v7705
    %v7709 = vxor.u32 %v7708, 2147483648
    %v7710 = vsel %vm7627, %v7709, %v7708
    %v7711 = vsub.s32 4, %v7687
    %v7712 = vsel %vm7627, %v7711, %v7687
    %v7713 = vsel %vm7626, %v1690, %v7710
    %v7714 = vsel %vm7626, 0, %v7712
    %v7715 = vcosq.f32.pop %v7713
    %v7716 = vsinq.f32.pop %v7713
    %vm7717 = vweird.f32 %v1690
    %v7718 = vadd.s32 %v7714, 3
    %v7719 = vand.u32 %v7718, 3
    %vm7720 = vcmp.lt.s32.totalorder %v7719, 2
    %vm7721 = vcmp.eq.s32.totalorder %v7719, 0
    %v7722 = vxor.u32 %v7716, 2147483648
    %v7723 = vsel %vm7721, %v7715, %v7722
    %vm7724 = vcmp.eq.s32.totalorder %v7719, 2
    %v7725 = vxor.u32 %v7715, 2147483648
    %v7726 = vsel %vm7724, %v7725, %v7716
    %v7727 = vsel %vm7720, %v7723, %v7726
    %v7728 = vsel %vm7717, nan, %v7727
    %v7729 = vand.u32 2147483647, %v1691
    %vm7730 = vcmp.le.f32.partialorder %v7729, 0.7853982
    %vm7731 = vcmp.lt.s32.totalorder %v1691, 0
    %v7732 = vand.u32 %v1691, 2139095040
    %v7733 = vshrl.u32 %v7732, 23
    %v7734 = vsub.s32 %v7733, 127
    %v7735 = vand.u32 2147483647, %v1691
    %v7736 = vand.u32 %v7735, 8388607
    %v7737 = vor.u32 %v7736, 8388608
    %v7738 = vsub.s32 0, %v7737
    %v7739 = vadd.s32 %v7734, 1
    %vm7740 = vcmp.gt.s32.totalorder %v7739, 0
    %v7741 = vsel %vm7740, %v7739, 0
    %v7742 = vshrl.u32 %v7741, 5
    %v7743 = vand.u32 %v7741, 31
    %v7744 = vsub.s32 32, %v7743
    %v7745 = vshrl.u32 683565275, %v7744
    %v7746 = vshll.u32 683565275, %v7743
    %v7747 = vshrl.u32 2475754826, %v7744
    %v7748 = vor.u32 %v7746, %v7747
    %v7749 = vshll.u32 2475754826, %v7743
    %v7750 = vshrl.u32 2131351028, %v7744
    %v7751 = vor.u32 %v7749, %v7750
    %v7752 = vshll.u32 2131351028, %v7743
    %v7753 = vshrl.u32 2102212464, %v7744
    %v7754 = vor.u32 %v7752, %v7753
    %v7755 = vshll.u32 2102212464, %v7743
    %v7756 = vshrl.u32 920167782, %v7744
    %v7757 = vor.u32 %v7755, %v7756
    %v7758 = vshll.u32 920167782, %v7743
    %v7759 = vshrl.u32 1326507024, %v7744
    %v7760 = vor.u32 %v7758, %v7759
    %vm7761 = vcmp.lt.s32.totalorder %v7742, 1
    %vm7762 = vcmp.lt.s32.totalorder %v7742, 2
    %vm7763 = vcmp.lt.s32.totalorder %v7742, 3
    %vm7764 = vcmp.lt.s32.totalorder %v7742, 4
    %v7765 = vsel %vm7761, %v7745, %v7748
    %v7766 = vsel %vm7764, %v7754, 2102212464
    %v7767 = vsel %vm7763, %v7751, %v7766
    %v7768 = vsel %vm7762, %v7765, %v7767
    %v7769 = vsel %vm7761, %v7748, %v7751
    %v7770 = vsel %vm7764, %v7757, 920167782
    %v7771 = vsel %vm7763, %v7754, %v7770
    %v7772 = vsel %vm7762, %v7769, %v7771
    %v7773 = vsel %vm7761, %v7751, %v7754
    %v7774 = vsel %vm7764, %v7760, 1326507024
    %v7775 = vsel %vm7763, %v7757, %v7774
    %v7776 = vsel %vm7762, %v7773, %v7775
    %v7777 = vshll.u32 %v7737, 8
    %v7778 = vmul.u32.u64.compose %v7777, %v7776
    %v7779 = vextract.low.u32 %v7778
    %v7780 = vextract.high.u32 %v7778
    %v7781 = vmul.u32.u64.compose %v7777, %v7772
    %v7782 = vextract.low.u32 %v7781
    %v7783 = vextract.high.u32 %v7781
    %v7784 = vmul.u32 %v7777, %v7768
    %v7785 = vadd.s32 %v7780, %v7782
    %vm7786 = vc.u32 %v7780, %v7782
    %v7787 = vadd.s32 %v7783, 1
    %v7788 = vsel %vm7786, %v7787, %v7783
    %v7789 = vadd.s32 %v7784, %v7788
    %v7790 = vadd.s32 %v7789, 536870912
    %v7791 = vshrl.u32 %v7790, 30
    %v7792 = vshll.u32 %v7791, 30
    %v7793 = vsub.s32 %v7789, %v7792
    %vm7794 = vcmp.lt.s32.totalorder %v7793, 0
    %v7795 = vsub.s32 0, %v7793
    %v7796 = vsel %vm7794, %v7795, %v7793
    %v7797 = vclz %v7796
    %v7798 = vsub.s32 %v7797, 2
    %vm7799 = vcmp.gt.s32.totalorder 0, %v7798
    %v7800 = vsel %vm7799, 0, %v7798
    %v7801 = vsub.s32 32, %v7800
    %v7802 = vshll.u32 %v7793, %v7800
    %v7803 = vshrl.u32 %v7785, %v7801
    %v7804 = vor.u32 %v7802, %v7803
    %v7805 = vsub.s32 4294967266, %v7800
    %v7806 = vadd.s32 %v7805, 127
    %v7807 = vshll.u32 %v7806, 23
    %v7808 = vor.u32 4788187, %v7807
    %v7809 = vand.u32 2147483647, %v7808
    %v7811 = vcvt.s32.f32 %v7804
    %v7812 = vmul.f32 %v7811, %v7809
    %v7813 = vxor.u32 %v7812, 2147483648
    %v7814 = vsel %vm7731, %v7813, %v7812
    %v7815 = vsub.s32 4, %v7791
    %v7816 = vsel %vm7731, %v7815, %v7791
    %v7817 = vsel %vm7730, %v1691, %v7814
    %v7818 = vsel %vm7730, 0, %v7816
    %v7819 = vcosq.f32.pop %v7817
    %v7820 = vsinq.f32.pop %v7817
    %vm7821 = vweird.f32 %v1691
    %v7822 = vadd.s32 %v7818, 3
    %v7823 = vand.u32 %v7822, 3
    %vm7824 = vcmp.lt.s32.totalorder %v7823, 2
    %vm7825 = vcmp.eq.s32.totalorder %v7823, 0
    %v7826 = vxor.u32 %v7820, 2147483648
    %v7827 = vsel %vm7825, %v7819, %v7826
    %vm7828 = vcmp.eq.s32.totalorder %v7823, 2
    %v7829 = vxor.u32 %v7819, 2147483648
    %v7830 = vsel %vm7828, %v7829, %v7820
    %v7831 = vsel %vm7824, %v7827, %v7830
    %v7832 = vsel %vm7821, nan, %v7831
    %v7833 = vand.u32 2147483647, %v1692
    %vm7834 = vcmp.le.f32.partialorder %v7833, 0.7853982
    %vm7835 = vcmp.lt.s32.totalorder %v1692, 0
    %v7836 = vand.u32 %v1692, 2139095040
    %v7837 = vshrl.u32 %v7836, 23
    %v7838 = vsub.s32 %v7837, 127
    %v7839 = vand.u32 2147483647, %v1692
    %v7840 = vand.u32 %v7839, 8388607
    %v7841 = vor.u32 %v7840, 8388608
    %v7842 = vsub.s32 0, %v7841
    %v7843 = vadd.s32 %v7838, 1
    %vm7844 = vcmp.gt.s32.totalorder %v7843, 0
    %v7845 = vsel %vm7844, %v7843, 0
    %v7846 = vshrl.u32 %v7845, 5
    %v7847 = vand.u32 %v7845, 31
    %v7848 = vsub.s32 32, %v7847
    %v7849 = vshrl.u32 683565275, %v7848
    %v7850 = vshll.u32 683565275, %v7847
    %v7851 = vshrl.u32 2475754826, %v7848
    %v7852 = vor.u32 %v7850, %v7851
    %v7853 = vshll.u32 2475754826, %v7847
    %v7854 = vshrl.u32 2131351028, %v7848
    %v7855 = vor.u32 %v7853, %v7854
    %v7856 = vshll.u32 2131351028, %v7847
    %v7857 = vshrl.u32 2102212464, %v7848
    %v7858 = vor.u32 %v7856, %v7857
    %v7859 = vshll.u32 2102212464, %v7847
    %v7860 = vshrl.u32 920167782, %v7848
    %v7861 = vor.u32 %v7859, %v7860
    %v7862 = vshll.u32 920167782, %v7847
    %v7863 = vshrl.u32 1326507024, %v7848
    %v7864 = vor.u32 %v7862, %v7863
    %vm7865 = vcmp.lt.s32.totalorder %v7846, 1
    %vm7866 = vcmp.lt.s32.totalorder %v7846, 2
    %vm7867 = vcmp.lt.s32.totalorder %v7846, 3
    %vm7868 = vcmp.lt.s32.totalorder %v7846, 4
    %v7869 = vsel %vm7865, %v7849, %v7852
    %v7870 = vsel %vm7868, %v7858, 2102212464
    %v7871 = vsel %vm7867, %v7855, %v7870
    %v7872 = vsel %vm7866, %v7869, %v7871
    %v7873 = vsel %vm7865, %v7852, %v7855
    %v7874 = vsel %vm7868, %v7861, 920167782
    %v7875 = vsel %vm7867, %v7858, %v7874
    %v7876 = vsel %vm7866, %v7873, %v7875
    %v7877 = vsel %vm7865, %v7855, %v7858
    %v7878 = vsel %vm7868, %v7864, 1326507024
    %v7879 = vsel %vm7867, %v7861, %v7878
    %v7880 = vsel %vm7866, %v7877, %v7879
    %v7881 = vshll.u32 %v7841, 8
    %v7882 = vmul.u32.u64.compose %v7881, %v7880
    %v7883 = vextract.low.u32 %v7882
    %v7884 = vextract.high.u32 %v7882
    %v7885 = vmul.u32.u64.compose %v7881, %v7876
    %v7886 = vextract.low.u32 %v7885
    %v7887 = vextract.high.u32 %v7885
    %v7888 = vmul.u32 %v7881, %v7872
    %v7889 = vadd.s32 %v7884, %v7886
    %vm7890 = vc.u32 %v7884, %v7886
    %v7891 = vadd.s32 %v7887, 1
    %v7892 = vsel %vm7890, %v7891, %v7887
    %v7893 = vadd.s32 %v7888, %v7892
    %v7894 = vadd.s32 %v7893, 536870912
    %v7895 = vshrl.u32 %v7894, 30
    %v7896 = vshll.u32 %v7895, 30
    %v7897 = vsub.s32 %v7893, %v7896
    %vm7898 = vcmp.lt.s32.totalorder %v7897, 0
    %v7899 = vsub.s32 0, %v7897
    %v7900 = vsel %vm7898, %v7899, %v7897
    %v7901 = vclz %v7900
    %v7902 = vsub.s32 %v7901, 2
    %vm7903 = vcmp.gt.s32.totalorder 0, %v7902
    %v7904 = vsel %vm7903, 0, %v7902
    %v7905 = vsub.s32 32, %v7904
    %v7906 = vshll.u32 %v7897, %v7904
    %v7907 = vshrl.u32 %v7889, %v7905
    %v7908 = vor.u32 %v7906, %v7907
    %v7909 = vsub.s32 4294967266, %v7904
    %v7910 = vadd.s32 %v7909, 127
    %v7911 = vshll.u32 %v7910, 23
    %v7912 = vor.u32 4788187, %v7911
    %v7913 = vand.u32 2147483647, %v7912
    %v7915 = vcvt.s32.f32 %v7908
    %v7916 = vmul.f32 %v7915, %v7913
    %v7917 = vxor.u32 %v7916, 2147483648
    %v7918 = vsel %vm7835, %v7917, %v7916
    %v7919 = vsub.s32 4, %v7895
    %v7920 = vsel %vm7835, %v7919, %v7895
    %v7921 = vsel %vm7834, %v1692, %v7918
    %v7922 = vsel %vm7834, 0, %v7920
    %v7923 = vcosq.f32.pop %v7921
    %v7924 = vsinq.f32.pop %v7921
    %vm7925 = vweird.f32 %v1692
    %v7926 = vadd.s32 %v7922, 3
    %v7927 = vand.u32 %v7926, 3
    %vm7928 = vcmp.lt.s32.totalorder %v7927, 2
    %vm7929 = vcmp.eq.s32.totalorder %v7927, 0
    %v7930 = vxor.u32 %v7924, 2147483648
    %v7931 = vsel %vm7929, %v7923, %v7930
    %vm7932 = vcmp.eq.s32.totalorder %v7927, 2
    %v7933 = vxor.u32 %v7923, 2147483648
    %v7934 = vsel %vm7932, %v7933, %v7924
    %v7935 = vsel %vm7928, %v7931, %v7934
    %v7936 = vsel %vm7925, nan, %v7935
    %v7937 = vand.u32 2147483647, %v1693
    %vm7938 = vcmp.le.f32.partialorder %v7937, 0.7853982
    %vm7939 = vcmp.lt.s32.totalorder %v1693, 0
    %v7940 = vand.u32 %v1693, 2139095040
    %v7941 = vshrl.u32 %v7940, 23
    %v7942 = vsub.s32 %v7941, 127
    %v7943 = vand.u32 2147483647, %v1693
    %v7944 = vand.u32 %v7943, 8388607
    %v7945 = vor.u32 %v7944, 8388608
    %v7946 = vsub.s32 0, %v7945
    %v7947 = vadd.s32 %v7942, 1
    %vm7948 = vcmp.gt.s32.totalorder %v7947, 0
    %v7949 = vsel %vm7948, %v7947, 0
    %v7950 = vshrl.u32 %v7949, 5
    %v7951 = vand.u32 %v7949, 31
    %v7952 = vsub.s32 32, %v7951
    %v7953 = vshrl.u32 683565275, %v7952
    %v7954 = vshll.u32 683565275, %v7951
    %v7955 = vshrl.u32 2475754826, %v7952
    %v7956 = vor.u32 %v7954, %v7955
    %v7957 = vshll.u32 2475754826, %v7951
    %v7958 = vshrl.u32 2131351028, %v7952
    %v7959 = vor.u32 %v7957, %v7958
    %v7960 = vshll.u32 2131351028, %v7951
    %v7961 = vshrl.u32 2102212464, %v7952
    %v7962 = vor.u32 %v7960, %v7961
    %v7963 = vshll.u32 2102212464, %v7951
    %v7964 = vshrl.u32 920167782, %v7952
    %v7965 = vor.u32 %v7963, %v7964
    %v7966 = vshll.u32 920167782, %v7951
    %v7967 = vshrl.u32 1326507024, %v7952
    %v7968 = vor.u32 %v7966, %v7967
    %vm7969 = vcmp.lt.s32.totalorder %v7950, 1
    %vm7970 = vcmp.lt.s32.totalorder %v7950, 2
    %vm7971 = vcmp.lt.s32.totalorder %v7950, 3
    %vm7972 = vcmp.lt.s32.totalorder %v7950, 4
    %v7973 = vsel %vm7969, %v7953, %v7956
    %v7974 = vsel %vm7972, %v7962, 2102212464
    %v7975 = vsel %vm7971, %v7959, %v7974
    %v7976 = vsel %vm7970, %v7973, %v7975
    %v7977 = vsel %vm7969, %v7956, %v7959
    %v7978 = vsel %vm7972, %v7965, 920167782
    %v7979 = vsel %vm7971, %v7962, %v7978
    %v7980 = vsel %vm7970, %v7977, %v7979
    %v7981 = vsel %vm7969, %v7959, %v7962
    %v7982 = vsel %vm7972, %v7968, 1326507024
    %v7983 = vsel %vm7971, %v7965, %v7982
    %v7984 = vsel %vm7970, %v7981, %v7983
    %v7985 = vshll.u32 %v7945, 8
    %v7986 = vmul.u32.u64.compose %v7985, %v7984
    %v7987 = vextract.low.u32 %v7986
    %v7988 = vextract.high.u32 %v7986
    %v7989 = vmul.u32.u64.compose %v7985, %v7980
    %v7990 = vextract.low.u32 %v7989
    %v7991 = vextract.high.u32 %v7989
    %v7992 = vmul.u32 %v7985, %v7976
    %v7993 = vadd.s32 %v7988, %v7990
    %vm7994 = vc.u32 %v7988, %v7990
    %v7995 = vadd.s32 %v7991, 1
    %v7996 = vsel %vm7994, %v7995, %v7991
    %v7997 = vadd.s32 %v7992, %v7996
    %v7998 = vadd.s32 %v7997, 536870912
    %v7999 = vshrl.u32 %v7998, 30
    %v8000 = vshll.u32 %v7999, 30
    %v8001 = vsub.s32 %v7997, %v8000
    %vm8002 = vcmp.lt.s32.totalorder %v8001, 0
    %v8003 = vsub.s32 0, %v8001
    %v8004 = vsel %vm8002, %v8003, %v8001
    %v8005 = vclz %v8004
    %v8006 = vsub.s32 %v8005, 2
    %vm8007 = vcmp.gt.s32.totalorder 0, %v8006
    %v8008 = vsel %vm8007, 0, %v8006
    %v8009 = vsub.s32 32, %v8008
    %v8010 = vshll.u32 %v8001, %v8008
    %v8011 = vshrl.u32 %v7993, %v8009
    %v8012 = vor.u32 %v8010, %v8011
    %v8013 = vsub.s32 4294967266, %v8008
    %v8014 = vadd.s32 %v8013, 127
    %v8015 = vshll.u32 %v8014, 23
    %v8016 = vor.u32 4788187, %v8015
    %v8017 = vand.u32 2147483647, %v8016
    %v8019 = vcvt.s32.f32 %v8012
    %v8020 = vmul.f32 %v8019, %v8017
    %v8021 = vxor.u32 %v8020, 2147483648
    %v8022 = vsel %vm7939, %v8021, %v8020
    %v8023 = vsub.s32 4, %v7999
    %v8024 = vsel %vm7939, %v8023, %v7999
    %v8025 = vsel %vm7938, %v1693, %v8022
    %v8026 = vsel %vm7938, 0, %v8024
    %v8027 = vcosq.f32.pop %v8025
    %v8028 = vsinq.f32.pop %v8025
    %vm8029 = vweird.f32 %v1693
    %v8030 = vadd.s32 %v8026, 3
    %v8031 = vand.u32 %v8030, 3
    %vm8032 = vcmp.lt.s32.totalorder %v8031, 2
    %vm8033 = vcmp.eq.s32.totalorder %v8031, 0
    %v8034 = vxor.u32 %v8028, 2147483648
    %v8035 = vsel %vm8033, %v8027, %v8034
    %vm8036 = vcmp.eq.s32.totalorder %v8031, 2
    %v8037 = vxor.u32 %v8027, 2147483648
    %v8038 = vsel %vm8036, %v8037, %v8028
    %v8039 = vsel %vm8032, %v8035, %v8038
    %v8040 = vsel %vm8029, nan, %v8039
    %v8041 = vand.u32 2147483647, %v1694
    %vm8042 = vcmp.le.f32.partialorder %v8041, 0.7853982
    %vm8043 = vcmp.lt.s32.totalorder %v1694, 0
    %v8044 = vand.u32 %v1694, 2139095040
    %v8045 = vshrl.u32 %v8044, 23
    %v8046 = vsub.s32 %v8045, 127
    %v8047 = vand.u32 2147483647, %v1694
    %v8048 = vand.u32 %v8047, 8388607
    %v8049 = vor.u32 %v8048, 8388608
    %v8050 = vsub.s32 0, %v8049
    %v8051 = vadd.s32 %v8046, 1
    %vm8052 = vcmp.gt.s32.totalorder %v8051, 0
    %v8053 = vsel %vm8052, %v8051, 0
    %v8054 = vshrl.u32 %v8053, 5
    %v8055 = vand.u32 %v8053, 31
    %v8056 = vsub.s32 32, %v8055
    %v8057 = vshrl.u32 683565275, %v8056
    %v8058 = vshll.u32 683565275, %v8055
    %v8059 = vshrl.u32 2475754826, %v8056
    %v8060 = vor.u32 %v8058, %v8059
    %v8061 = vshll.u32 2475754826, %v8055
    %v8062 = vshrl.u32 2131351028, %v8056
    %v8063 = vor.u32 %v8061, %v8062
    %v8064 = vshll.u32 2131351028, %v8055
    %v8065 = vshrl.u32 2102212464, %v8056
    %v8066 = vor.u32 %v8064, %v8065
    %v8067 = vshll.u32 2102212464, %v8055
    %v8068 = vshrl.u32 920167782, %v8056
    %v8069 = vor.u32 %v8067, %v8068
    %v8070 = vshll.u32 920167782, %v8055
    %v8071 = vshrl.u32 1326507024, %v8056
    %v8072 = vor.u32 %v8070, %v8071
    %vm8073 = vcmp.lt.s32.totalorder %v8054, 1
    %vm8074 = vcmp.lt.s32.totalorder %v8054, 2
    %vm8075 = vcmp.lt.s32.totalorder %v8054, 3
    %vm8076 = vcmp.lt.s32.totalorder %v8054, 4
    %v8077 = vsel %vm8073, %v8057, %v8060
    %v8078 = vsel %vm8076, %v8066, 2102212464
    %v8079 = vsel %vm8075, %v8063, %v8078
    %v8080 = vsel %vm8074, %v8077, %v8079
    %v8081 = vsel %vm8073, %v8060, %v8063
    %v8082 = vsel %vm8076, %v8069, 920167782
    %v8083 = vsel %vm8075, %v8066, %v8082
    %v8084 = vsel %vm8074, %v8081, %v8083
    %v8085 = vsel %vm8073, %v8063, %v8066
    %v8086 = vsel %vm8076, %v8072, 1326507024
    %v8087 = vsel %vm8075, %v8069, %v8086
    %v8088 = vsel %vm8074, %v8085, %v8087
    %v8089 = vshll.u32 %v8049, 8
    %v8090 = vmul.u32.u64.compose %v8089, %v8088
    %v8091 = vextract.low.u32 %v8090
    %v8092 = vextract.high.u32 %v8090
    %v8093 = vmul.u32.u64.compose %v8089, %v8084
    %v8094 = vextract.low.u32 %v8093
    %v8095 = vextract.high.u32 %v8093
    %v8096 = vmul.u32 %v8089, %v8080
    %v8097 = vadd.s32 %v8092, %v8094
    %vm8098 = vc.u32 %v8092, %v8094
    %v8099 = vadd.s32 %v8095, 1
    %v8100 = vsel %vm8098, %v8099, %v8095
    %v8101 = vadd.s32 %v8096, %v8100
    %v8102 = vadd.s32 %v8101, 536870912
    %v8103 = vshrl.u32 %v8102, 30
    %v8104 = vshll.u32 %v8103, 30
    %v8105 = vsub.s32 %v8101, %v8104
    %vm8106 = vcmp.lt.s32.totalorder %v8105, 0
    %v8107 = vsub.s32 0, %v8105
    %v8108 = vsel %vm8106, %v8107, %v8105
    %v8109 = vclz %v8108
    %v8110 = vsub.s32 %v8109, 2
    %vm8111 = vcmp.gt.s32.totalorder 0, %v8110
    %v8112 = vsel %vm8111, 0, %v8110
    %v8113 = vsub.s32 32, %v8112
    %v8114 = vshll.u32 %v8105, %v8112
    %v8115 = vshrl.u32 %v8097, %v8113
    %v8116 = vor.u32 %v8114, %v8115
    %v8117 = vsub.s32 4294967266, %v8112
    %v8118 = vadd.s32 %v8117, 127
    %v8119 = vshll.u32 %v8118, 23
    %v8120 = vor.u32 4788187, %v8119
    %v8121 = vand.u32 2147483647, %v8120
    %v8123 = vcvt.s32.f32 %v8116
    %v8124 = vmul.f32 %v8123, %v8121
    %v8125 = vxor.u32 %v8124, 2147483648
    %v8126 = vsel %vm8043, %v8125, %v8124
    %v8127 = vsub.s32 4, %v8103
    %v8128 = vsel %vm8043, %v8127, %v8103
    %v8129 = vsel %vm8042, %v1694, %v8126
    %v8130 = vsel %vm8042, 0, %v8128
    %v8131 = vcosq.f32.pop %v8129
    %v8132 = vsinq.f32.pop %v8129
    %vm8133 = vweird.f32 %v1694
    %v8134 = vadd.s32 %v8130, 3
    %v8135 = vand.u32 %v8134, 3
    %vm8136 = vcmp.lt.s32.totalorder %v8135, 2
    %vm8137 = vcmp.eq.s32.totalorder %v8135, 0
    %v8138 = vxor.u32 %v8132, 2147483648
    %v8139 = vsel %vm8137, %v8131, %v8138
    %vm8140 = vcmp.eq.s32.totalorder %v8135, 2
    %v8141 = vxor.u32 %v8131, 2147483648
    %v8142 = vsel %vm8140, %v8141, %v8132
    %v8143 = vsel %vm8136, %v8139, %v8142
    %v8144 = vsel %vm8133, nan, %v8143
    %v8145 = vand.u32 2147483647, %v1695
    %vm8146 = vcmp.le.f32.partialorder %v8145, 0.7853982
    %vm8147 = vcmp.lt.s32.totalorder %v1695, 0
    %v8148 = vand.u32 %v1695, 2139095040
    %v8149 = vshrl.u32 %v8148, 23
    %v8150 = vsub.s32 %v8149, 127
    %v8151 = vand.u32 2147483647, %v1695
    %v8152 = vand.u32 %v8151, 8388607
    %v8153 = vor.u32 %v8152, 8388608
    %v8154 = vsub.s32 0, %v8153
    %v8155 = vadd.s32 %v8150, 1
    %vm8156 = vcmp.gt.s32.totalorder %v8155, 0
    %v8157 = vsel %vm8156, %v8155, 0
    %v8158 = vshrl.u32 %v8157, 5
    %v8159 = vand.u32 %v8157, 31
    %v8160 = vsub.s32 32, %v8159
    %v8161 = vshrl.u32 683565275, %v8160
    %v8162 = vshll.u32 683565275, %v8159
    %v8163 = vshrl.u32 2475754826, %v8160
    %v8164 = vor.u32 %v8162, %v8163
    %v8165 = vshll.u32 2475754826, %v8159
    %v8166 = vshrl.u32 2131351028, %v8160
    %v8167 = vor.u32 %v8165, %v8166
    %v8168 = vshll.u32 2131351028, %v8159
    %v8169 = vshrl.u32 2102212464, %v8160
    %v8170 = vor.u32 %v8168, %v8169
    %v8171 = vshll.u32 2102212464, %v8159
    %v8172 = vshrl.u32 920167782, %v8160
    %v8173 = vor.u32 %v8171, %v8172
    %v8174 = vshll.u32 920167782, %v8159
    %v8175 = vshrl.u32 1326507024, %v8160
    %v8176 = vor.u32 %v8174, %v8175
    %vm8177 = vcmp.lt.s32.totalorder %v8158, 1
    %vm8178 = vcmp.lt.s32.totalorder %v8158, 2
    %vm8179 = vcmp.lt.s32.totalorder %v8158, 3
    %vm8180 = vcmp.lt.s32.totalorder %v8158, 4
    %v8181 = vsel %vm8177, %v8161, %v8164
    %v8182 = vsel %vm8180, %v8170, 2102212464
    %v8183 = vsel %vm8179, %v8167, %v8182
    %v8184 = vsel %vm8178, %v8181, %v8183
    %v8185 = vsel %vm8177, %v8164, %v8167
    %v8186 = vsel %vm8180, %v8173, 920167782
    %v8187 = vsel %vm8179, %v8170, %v8186
    %v8188 = vsel %vm8178, %v8185, %v8187
    %v8189 = vsel %vm8177, %v8167, %v8170
    %v8190 = vsel %vm8180, %v8176, 1326507024
    %v8191 = vsel %vm8179, %v8173, %v8190
    %v8192 = vsel %vm8178, %v8189, %v8191
    %v8193 = vshll.u32 %v8153, 8
    %v8194 = vmul.u32.u64.compose %v8193, %v8192
    %v8195 = vextract.low.u32 %v8194
    %v8196 = vextract.high.u32 %v8194
    %v8197 = vmul.u32.u64.compose %v8193, %v8188
    %v8198 = vextract.low.u32 %v8197
    %v8199 = vextract.high.u32 %v8197
    %v8200 = vmul.u32 %v8193, %v8184
    %v8201 = vadd.s32 %v8196, %v8198
    %vm8202 = vc.u32 %v8196, %v8198
    %v8203 = vadd.s32 %v8199, 1
    %v8204 = vsel %vm8202, %v8203, %v8199
    %v8205 = vadd.s32 %v8200, %v8204
    %v8206 = vadd.s32 %v8205, 536870912
    %v8207 = vshrl.u32 %v8206, 30
    %v8208 = vshll.u32 %v8207, 30
    %v8209 = vsub.s32 %v8205, %v8208
    %vm8210 = vcmp.lt.s32.totalorder %v8209, 0
    %v8211 = vsub.s32 0, %v8209
    %v8212 = vsel %vm8210, %v8211, %v8209
    %v8213 = vclz %v8212
    %v8214 = vsub.s32 %v8213, 2
    %vm8215 = vcmp.gt.s32.totalorder 0, %v8214
    %v8216 = vsel %vm8215, 0, %v8214
    %v8217 = vsub.s32 32, %v8216
    %v8218 = vshll.u32 %v8209, %v8216
    %v8219 = vshrl.u32 %v8201, %v8217
    %v8220 = vor.u32 %v8218, %v8219
    %v8221 = vsub.s32 4294967266, %v8216
    %v8222 = vadd.s32 %v8221, 127
    %v8223 = vshll.u32 %v8222, 23
    %v8224 = vor.u32 4788187, %v8223
    %v8225 = vand.u32 2147483647, %v8224
    %v8227 = vcvt.s32.f32 %v8220
    %v8228 = vmul.f32 %v8227, %v8225
    %v8229 = vxor.u32 %v8228, 2147483648
    %v8230 = vsel %vm8147, %v8229, %v8228
    %v8231 = vsub.s32 4, %v8207
    %v8232 = vsel %vm8147, %v8231, %v8207
    %v8233 = vsel %vm8146, %v1695, %v8230
    %v8234 = vsel %vm8146, 0, %v8232
    %v8235 = vcosq.f32.pop %v8233
    %v8236 = vsinq.f32.pop %v8233
    %vm8237 = vweird.f32 %v1695
    %v8238 = vadd.s32 %v8234, 3
    %v8239 = vand.u32 %v8238, 3
    %vm8240 = vcmp.lt.s32.totalorder %v8239, 2
    %vm8241 = vcmp.eq.s32.totalorder %v8239, 0
    %v8242 = vxor.u32 %v8236, 2147483648
    %v8243 = vsel %vm8241, %v8235, %v8242
    %vm8244 = vcmp.eq.s32.totalorder %v8239, 2
    %v8245 = vxor.u32 %v8235, 2147483648
    %v8246 = vsel %vm8244, %v8245, %v8236
    %v8247 = vsel %vm8240, %v8243, %v8246
    %v8248 = vsel %vm8237, nan, %v8247
    %v8249 = vand.u32 2147483647, %v1696
    %vm8250 = vcmp.le.f32.partialorder %v8249, 0.7853982
    %vm8251 = vcmp.lt.s32.totalorder %v1696, 0
    %v8252 = vand.u32 %v1696, 2139095040
    %v8253 = vshrl.u32 %v8252, 23
    %v8254 = vsub.s32 %v8253, 127
    %v8255 = vand.u32 2147483647, %v1696
    %v8256 = vand.u32 %v8255, 8388607
    %v8257 = vor.u32 %v8256, 8388608
    %v8258 = vsub.s32 0, %v8257
    %v8259 = vadd.s32 %v8254, 1
    %vm8260 = vcmp.gt.s32.totalorder %v8259, 0
    %v8261 = vsel %vm8260, %v8259, 0
    %v8262 = vshrl.u32 %v8261, 5
    %v8263 = vand.u32 %v8261, 31
    %v8264 = vsub.s32 32, %v8263
    %v8265 = vshrl.u32 683565275, %v8264
    %v8266 = vshll.u32 683565275, %v8263
    %v8267 = vshrl.u32 2475754826, %v8264
    %v8268 = vor.u32 %v8266, %v8267
    %v8269 = vshll.u32 2475754826, %v8263
    %v8270 = vshrl.u32 2131351028, %v8264
    %v8271 = vor.u32 %v8269, %v8270
    %v8272 = vshll.u32 2131351028, %v8263
    %v8273 = vshrl.u32 2102212464, %v8264
    %v8274 = vor.u32 %v8272, %v8273
    %v8275 = vshll.u32 2102212464, %v8263
    %v8276 = vshrl.u32 920167782, %v8264
    %v8277 = vor.u32 %v8275, %v8276
    %v8278 = vshll.u32 920167782, %v8263
    %v8279 = vshrl.u32 1326507024, %v8264
    %v8280 = vor.u32 %v8278, %v8279
    %vm8281 = vcmp.lt.s32.totalorder %v8262, 1
    %vm8282 = vcmp.lt.s32.totalorder %v8262, 2
    %vm8283 = vcmp.lt.s32.totalorder %v8262, 3
    %vm8284 = vcmp.lt.s32.totalorder %v8262, 4
    %v8285 = vsel %vm8281, %v8265, %v8268
    %v8286 = vsel %vm8284, %v8274, 2102212464
    %v8287 = vsel %vm8283, %v8271, %v8286
    %v8288 = vsel %vm8282, %v8285, %v8287
    %v8289 = vsel %vm8281, %v8268, %v8271
    %v8290 = vsel %vm8284, %v8277, 920167782
    %v8291 = vsel %vm8283, %v8274, %v8290
    %v8292 = vsel %vm8282, %v8289, %v8291
    %v8293 = vsel %vm8281, %v8271, %v8274
    %v8294 = vsel %vm8284, %v8280, 1326507024
    %v8295 = vsel %vm8283, %v8277, %v8294
    %v8296 = vsel %vm8282, %v8293, %v8295
    %v8297 = vshll.u32 %v8257, 8
    %v8298 = vmul.u32.u64.compose %v8297, %v8296
    %v8299 = vextract.low.u32 %v8298
    %v8300 = vextract.high.u32 %v8298
    %v8301 = vmul.u32.u64.compose %v8297, %v8292
    %v8302 = vextract.low.u32 %v8301
    %v8303 = vextract.high.u32 %v8301
    %v8304 = vmul.u32 %v8297, %v8288
    %v8305 = vadd.s32 %v8300, %v8302
    %vm8306 = vc.u32 %v8300, %v8302
    %v8307 = vadd.s32 %v8303, 1
    %v8308 = vsel %vm8306, %v8307, %v8303
    %v8309 = vadd.s32 %v8304, %v8308
    %v8310 = vadd.s32 %v8309, 536870912
    %v8311 = vshrl.u32 %v8310, 30
    %v8312 = vshll.u32 %v8311, 30
    %v8313 = vsub.s32 %v8309, %v8312
    %vm8314 = vcmp.lt.s32.totalorder %v8313, 0
    %v8315 = vsub.s32 0, %v8313
    %v8316 = vsel %vm8314, %v8315, %v8313
    %v8317 = vclz %v8316
    %v8318 = vsub.s32 %v8317, 2
    %vm8319 = vcmp.gt.s32.totalorder 0, %v8318
    %v8320 = vsel %vm8319, 0, %v8318
    %v8321 = vsub.s32 32, %v8320
    %v8322 = vshll.u32 %v8313, %v8320
    %v8323 = vshrl.u32 %v8305, %v8321
    %v8324 = vor.u32 %v8322, %v8323
    %v8325 = vsub.s32 4294967266, %v8320
    %v8326 = vadd.s32 %v8325, 127
    %v8327 = vshll.u32 %v8326, 23
    %v8328 = vor.u32 4788187, %v8327
    %v8329 = vand.u32 2147483647, %v8328
    %v8331 = vcvt.s32.f32 %v8324
    %v8332 = vmul.f32 %v8331, %v8329
    %v8333 = vxor.u32 %v8332, 2147483648
    %v8334 = vsel %vm8251, %v8333, %v8332
    %v8335 = vsub.s32 4, %v8311
    %v8336 = vsel %vm8251, %v8335, %v8311
    %v8337 = vsel %vm8250, %v1696, %v8334
    %v8338 = vsel %vm8250, 0, %v8336
    %v8339 = vcosq.f32.pop %v8337
    %v8340 = vsinq.f32.pop %v8337
    %vm8341 = vweird.f32 %v1696
    %v8342 = vadd.s32 %v8338, 3
    %v8343 = vand.u32 %v8342, 3
    %vm8344 = vcmp.lt.s32.totalorder %v8343, 2
    %vm8345 = vcmp.eq.s32.totalorder %v8343, 0
    %v8346 = vxor.u32 %v8340, 2147483648
    %v8347 = vsel %vm8345, %v8339, %v8346
    %vm8348 = vcmp.eq.s32.totalorder %v8343, 2
    %v8349 = vxor.u32 %v8339, 2147483648
    %v8350 = vsel %vm8348, %v8349, %v8340
    %v8351 = vsel %vm8344, %v8347, %v8350
    %v8352 = vsel %vm8341, nan, %v8351
    %8353 = vst [vmem:[#allocation2] sm:$0xff] %v1800
    %8354 = vst [vmem:[#allocation2 + $0x8] sm:$0xff] %v1904
    %8355 = vst [vmem:[#allocation2 + $0x10] sm:$0xff] %v2008
    %8356 = vst [vmem:[#allocation2 + $0x18] sm:$0xff] %v2112
    %8357 = vst [vmem:[#allocation2 + $0x20] sm:$0xff] %v2216
    %8358 = vst [vmem:[#allocation2 + $0x28] sm:$0xff] %v2320
    %8359 = vst [vmem:[#allocation2 + $0x30] sm:$0xff] %v2424
    %8360 = vst [vmem:[#allocation2 + $0x38] sm:$0xff] %v2528
    %8361 = vst [vmem:[#allocation2 + $0x40] sm:$0xff] %v2632
    %8362 = vst [vmem:[#allocation2 + $0x48] sm:$0xff] %v2736
    %8363 = vst [vmem:[#allocation2 + $0x50] sm:$0xff] %v2840
    %8364 = vst [vmem:[#allocation2 + $0x58] sm:$0xff] %v2944
    %8365 = vst [vmem:[#allocation2 + $0x60] sm:$0xff] %v3048
    %8366 = vst [vmem:[#allocation2 + $0x68] sm:$0xff] %v3152
    %8367 = vst [vmem:[#allocation2 + $0x70] sm:$0xff] %v3256
    %8368 = vst [vmem:[#allocation2 + $0x78] sm:$0xff] %v3360
    %8369 = vst [vmem:[#allocation2 + $0x80] sm:$0xff] %v3464
    %8370 = vst [vmem:[#allocation2 + $0x88] sm:$0xff] %v3568
    %8371 = vst [vmem:[#allocation2 + $0x90] sm:$0xff] %v3672
    %8372 = vst [vmem:[#allocation2 + $0x98] sm:$0xff] %v3776
    %8373 = vst [vmem:[#allocation2 + $0xa0] sm:$0xff] %v3880
    %8374 = vst [vmem:[#allocation2 + $0xa8] sm:$0xff] %v3984
    %8375 = vst [vmem:[#allocation2 + $0xb0] sm:$0xff] %v4088
    %8376 = vst [vmem:[#allocation2 + $0xb8] sm:$0xff] %v4192
    %8377 = vst [vmem:[#allocation2 + $0xc0] sm:$0xff] %v4296
    %8378 = vst [vmem:[#allocation2 + $0xc8] sm:$0xff] %v4400
    %8379 = vst [vmem:[#allocation2 + $0xd0] sm:$0xff] %v4504
    %8380 = vst [vmem:[#allocation2 + $0xd8] sm:$0xff] %v4608
    %8381 = vst [vmem:[#allocation2 + $0xe0] sm:$0xff] %v4712
    %8382 = vst [vmem:[#allocation2 + $0xe8] sm:$0xff] %v4816
    %8383 = vst [vmem:[#allocation2 + $0xf0] sm:$0xff] %v4920
    %8384 = vst [vmem:[#allocation2 + $0xf8] sm:$0xff] %v5024
    %8385 = vst [vmem:[#allocation2 + $0x100] sm:$0xff] %v5128
    %8386 = vst [vmem:[#allocation2 + $0x108] sm:$0xff] %v5232
    %8387 = vst [vmem:[#allocation2 + $0x110] sm:$0xff] %v5336
    %8388 = vst [vmem:[#allocation2 + $0x118] sm:$0xff] %v5440
    %8389 = vst [vmem:[#allocation2 + $0x120] sm:$0xff] %v5544
    %8390 = vst [vmem:[#allocation2 + $0x128] sm:$0xff] %v5648
    %8391 = vst [vmem:[#allocation2 + $0x130] sm:$0xff] %v5752
    %8392 = vst [vmem:[#allocation2 + $0x138] sm:$0xff] %v5856
    %8393 = vst [vmem:[#allocation2 + $0x140] sm:$0xff] %v5960
    %8394 = vst [vmem:[#allocation2 + $0x148] sm:$0xff] %v6064
    %8395 = vst [vmem:[#allocation2 + $0x150] sm:$0xff] %v6168
    %8396 = vst [vmem:[#allocation2 + $0x158] sm:$0xff] %v6272
    %8397 = vst [vmem:[#allocation2 + $0x160] sm:$0xff] %v6376
    %8398 = vst [vmem:[#allocation2 + $0x168] sm:$0xff] %v6480
    %8399 = vst [vmem:[#allocation2 + $0x170] sm:$0xff] %v6584
    %8400 = vst [vmem:[#allocation2 + $0x178] sm:$0xff] %v6688
    %8401 = vst [vmem:[#allocation2 + $0x180] sm:$0xff] %v6792
    %8402 = vst [vmem:[#allocation2 + $0x188] sm:$0xff] %v6896
    %8403 = vst [vmem:[#allocation2 + $0x190] sm:$0xff] %v7000
    %8404 = vst [vmem:[#allocation2 + $0x198] sm:$0xff] %v7104
    %8405 = vst [vmem:[#allocation2 + $0x1a0] sm:$0xff] %v7208
    %8406 = vst [vmem:[#allocation2 + $0x1a8] sm:$0xff] %v7312
    %8407 = vst [vmem:[#allocation2 + $0x1b0] sm:$0xff] %v7416
    %8408 = vst [vmem:[#allocation2 + $0x1b8] sm:$0xff] %v7520
    %8409 = vst [vmem:[#allocation2 + $0x1c0] sm:$0xff] %v7624
    %8410 = vst [vmem:[#allocation2 + $0x1c8] sm:$0xff] %v7728
    %8411 = vst [vmem:[#allocation2 + $0x1d0] sm:$0xff] %v7832
    %8412 = vst [vmem:[#allocation2 + $0x1d8] sm:$0xff] %v7936
    %8413 = vst [vmem:[#allocation2 + $0x1e0] sm:$0xff] %v8040
    %8414 = vst [vmem:[#allocation2 + $0x1e8] sm:$0xff] %v8144
    %8415 = vst [vmem:[#allocation2 + $0x1f0] sm:$0xff] %v8248
    %8416 = vst [vmem:[#allocation2 + $0x1f8] sm:$0xff] %v8352
    // Predicated region
    $region10: #{tpu_custom_call.1} parent=1 // pred_check
      _
    $region11: #{tpu_custom_call.1} parent=1 // pred_check_branch
      %8418 = sbr.rel (0) target = $region13
    $region12: #{tpu_custom_call.1} parent=1 // pred_region
      %s8420 = ssub.s32 8192, 8192
      %8421 = vsyncadd [#allocation3], %s8420
      %s8422 = sshll.u32 [#allocation2], 4
      %s8423 = int_to_ptr.vmem [resolvable:$true] %s8422
      %8428 = dma.vmem_to_hbm [thread:$0]  %s8423, 8192, %s2, [#allocation3], 128, 128, 8
    $region13: #{tpu_custom_call.1} parent=1 // pred_fallthru
      _
    // Predicated region
    $region14: #{tpu_custom_call.1} parent=1 // pred_check
      _
    $region15: #{tpu_custom_call.1} parent=1 // pred_check_branch
      %8430 = sbr.rel (0) target = $region17
    $region16: #{tpu_custom_call.1} parent=1 // pred_region
      %8431 = dma.done [#allocation3], 8192
    $region17: #{tpu_custom_call.1} parent=1 // pred_fallthru
      _
    %8432 = vsyncpa [#allocation3], 1

</llo_original>
